<compile_context>
chip_gen: v5e
topology: v5e:2x2
jax: 0.10.0
libtpu: 0.0.40
codegen_flags: <defaults>
</compile_context>

<pallas_src>
import jax
import jax.numpy as jnp
import numpy as np
from jax import lax
from jax.experimental import pallas as pl
from jax.experimental.pallas import tpu as pltpu

# ---- model dims (from the PyTorch module) -----------------------------------
N_CLASSES = 45
C_IN = 256
C_OUT = 70
KH = KW = 2
H_IN = W_IN = 6                 # implied by view(-1, 70*5*5): conv out is 5x5
H_OUT = W_OUT = 5
FC1_IN = C_OUT * H_OUT * W_OUT  # 1750
FC1_OUT = 200

# ---- lane-padded dims (keep every matmul output 128-lane dense) -------------
COUT_PAD = 128                  # 70  -> 128
FC1_PAD = 256                   # 200 -> 256
OUT_PAD = 128                   # 45  -> 128
N_POS = H_OUT * W_OUT           # 25 conv output pixels
N_TAP = KH * KW                 # 4  conv taps
N_PIX = H_IN * W_IN             # 36 input pixels


def _round_up(v, m):
    return (v + m - 1) // m * m


# -----------------------------------------------------------------------------
# Fused kernel: conv + ReLU + (hwc) flatten + fc1 + tanh + fc2
#   x_ref : (36, BN, 256)  bf16   spatial-position-major input slab
#   wc_ref: (4, 256, 128)  bf16   conv weight, one (Cin, Cout_pad) slab per tap
#   bc_ref: (1, 128)       f32    conv bias (zero padded)
#   w1_ref: (25, 128, 256) bf16   fc1 weight pre-permuted to (hw, c, j)
#   b1_ref: (1, 256)       f32
#   w2_ref: (256, 128)     bf16
#   b2_ref: (1, 128)       f32
#   o_ref : (BN, 128)      f32    padded logits (slice [:, :45] outside)
# -----------------------------------------------------------------------------
def transfer3_kernel(x_ref, wc_ref, bc_ref, w1_ref, b1_ref, w2_ref, b2_ref,
                     o_ref):
    bn = o_ref.shape[0]
    bc = bc_ref[...]                                    # (1, 128) f32
    y1 = jnp.zeros((bn, FC1_PAD), jnp.float32)          # fc1 accumulator

    # Conv as 4 accumulated taps per output pixel; the ReLU'd activation feeds
    # fc1 immediately, so the (hw, c) flatten never materializes.
    for oh in range(H_OUT):
        for ow in range(W_OUT):
            acc = jnp.zeros((bn, COUT_PAD), jnp.float32)
            for kh in range(KH):
                for kw in range(KW):
                    p = (oh + kh) * W_IN + (ow + kw)
                    xa = x_ref[p]                        # (BN, 256) bf16
                    acc += jnp.dot(xa, wc_ref[kh * KW + kw],
                                   preferred_element_type=jnp.float32)
            h = jnp.maximum(acc + bc, 0.0)               # ReLU + bias in f32
            y1 += jnp.dot(h.astype(jnp.bfloat16), w1_ref[oh * W_OUT + ow],
                          preferred_element_type=jnp.float32)

    h1 = jnp.tanh(y1 + b1_ref[...])                      # (BN, 256) f32
    out = jnp.dot(h1.astype(jnp.bfloat16), w2_ref[...],
                  preferred_element_type=jnp.float32) + b2_ref[...]
    o_ref[...] = out


# -----------------------------------------------------------------------------
# Wrapper
# -----------------------------------------------------------------------------
def transfer3_forward(x_nchw, params, batch_block=None):
    """x_nchw: (N, 256, 6, 6) float32. params: output of convert_params()."""
    wc, bc, w1p, b1p, w2p, b2p = params
    n = x_nchw.shape[0]
    assert x_nchw.shape[1:] == (C_IN, H_IN, W_IN), x_nchw.shape

    bn = batch_block or min(64, _round_up(n, 8))
    n_pad = _round_up(n, bn)

    # NCHW -> (h*w, N, C) slab: channels are lane-dense and every conv tap is a
    # plain leading-dim index inside the kernel (no im2col, no gather).
    xs = jnp.transpose(x_nchw, (2, 3, 0, 1)).reshape(N_PIX, n, C_IN)
    if n_pad != n:
        xs = jnp.pad(xs, ((0, 0), (0, n_pad - n), (0, 0)))
    xs = xs.astype(jnp.bfloat16)

    flops = n_pad * (N_POS * (N_TAP * 2 * C_IN * COUT_PAD
                              + 2 * COUT_PAD * FC1_PAD)
                     + 2 * FC1_PAD * OUT_PAD)
    bytes_accessed = (xs.size * 2 + wc.size * 2 + w1p.size * 2 + w2p.size * 2
                      + (bc.size + b1p.size + b2p.size) * 4
                      + n_pad * OUT_PAD * 4)

    out = pl.pallas_call(
        transfer3_kernel,
        out_shape=jax.ShapeDtypeStruct((n_pad, OUT_PAD), jnp.float32),
        grid_spec=pltpu.PrefetchScalarGridSpec(
            num_scalar_prefetch=0,
            grid=(n_pad // bn,),
            in_specs=[
                pl.BlockSpec((N_PIX, bn, C_IN), lambda b: (0, b, 0)),
                pl.BlockSpec((N_TAP, C_IN, COUT_PAD), lambda b: (0, 0, 0)),
                pl.BlockSpec((1, COUT_PAD), lambda b: (0, 0)),
                pl.BlockSpec((N_POS, COUT_PAD, FC1_PAD), lambda b: (0, 0, 0)),
                pl.BlockSpec((1, FC1_PAD), lambda b: (0, 0)),
                pl.BlockSpec((FC1_PAD, OUT_PAD), lambda b: (0, 0)),
                pl.BlockSpec((1, OUT_PAD), lambda b: (0, 0)),
            ],
            out_specs=pl.BlockSpec((bn, OUT_PAD), lambda b: (b, 0)),
        ),
        compiler_params=pltpu.CompilerParams(
            dimension_semantics=("parallel",)),
        cost_estimate=pl.CostEstimate(
            flops=int(flops),
            transcendentals=int(n_pad * FC1_PAD),
            bytes_accessed=int(bytes_accessed)),
    )(xs, wc, bc, w1p, b1p, w2p, b2p)

    return out[:n, :N_CLASSES]


# -----------------------------------------------------------------------------
# One-time parameter conversion: PyTorch layout -> padded/permuted bf16 layout.
# -----------------------------------------------------------------------------
def convert_params(w_conv, b_conv, w1, b1, w2, b2):
    """w_conv: (70,256,2,2) OIHW, b_conv: (70,), w1: (200,1750), b1: (200,),
    w2: (45,200), b2: (45,)."""
    # conv weight -> (tap, Cin, Cout_pad), tap = kh*KW + kw; pad Cout with 0.
    wc = jnp.transpose(w_conv, (2, 3, 1, 0)).reshape(N_TAP, C_IN, C_OUT)
    wc = jnp.pad(wc, ((0, 0), (0, 0), (0, COUT_PAD - C_OUT)))
    bc = jnp.pad(b_conv, (0, COUT_PAD - C_OUT)).reshape(1, COUT_PAD)

    # fc1: fold PyTorch's channel-major flatten (idx = c*25 + hw) into the
    # weight -> (hw, c, j); zero rows for the padded 70..127 channels.
    w1r = jnp.transpose(w1.reshape(FC1_OUT, C_OUT, N_POS), (2, 1, 0))
    w1p = jnp.pad(w1r, ((0, 0), (0, COUT_PAD - C_OUT), (0, FC1_PAD - FC1_OUT)))
    b1p = jnp.pad(b1, (0, FC1_PAD - FC1_OUT)).reshape(1, FC1_PAD)

    # fc2: transpose + zero-pad rows (hidden 200->256) and cols (45->128).
    w2p = jnp.pad(w2.T, ((0, FC1_PAD - FC1_OUT), (0, OUT_PAD - N_CLASSES)))
    b2p = jnp.pad(b2, (0, OUT_PAD - N_CLASSES)).reshape(1, OUT_PAD)

    return (wc.astype(jnp.bfloat16), bc.astype(jnp.float32),
            w1p.astype(jnp.bfloat16), b1p.astype(jnp.float32),
            w2p.astype(jnp.bfloat16), b2p.astype(jnp.float32))


# -----------------------------------------------------------------------------
# Plain-JAX f32 reference (PyTorch semantics) for a correctness check.
# -----------------------------------------------------------------------------
def reference_forward(x, torch_params):
    w_conv, b_conv, w1, b1, w2, b2 = torch_params
    y = lax.conv_general_dilated(x, w_conv, window_strides=(1, 1),
                                 padding="VALID",
                                 dimension_numbers=("NCHW", "OIHW", "NCHW"))
    y = jnp.maximum(y + b_conv.reshape(1, C_OUT, 1, 1), 0.0)
    y = y.reshape(x.shape[0], FC1_IN)
    h = jnp.tanh(y @ w1.T + b1)
    return h @ w2.T + b2


if __name__ == "__main__":
    key = jax.random.PRNGKey(0)
    ks = jax.random.split(key, 7)
    torch_params = (
        jax.random.normal(ks[0], (C_OUT, C_IN, KH, KW), jnp.float32) * 0.02,
        jax.random.normal(ks[1], (C_OUT,), jnp.float32) * 0.02,
        jax.random.normal(ks[2], (FC1_OUT, FC1_IN), jnp.float32) * 0.02,
        jax.random.normal(ks[3], (FC1_OUT,), jnp.float32) * 0.02,
        jax.random.normal(ks[4], (N_CLASSES, FC1_OUT), jnp.float32) * 0.02,
        jax.random.normal(ks[5], (N_CLASSES,), jnp.float32) * 0.02,
    )
    params = convert_params(*torch_params)

    batch = 2
    x = jax.random.normal(ks[6], (batch, C_IN, H_IN, W_IN), jnp.float32)

    fwd = jax.jit(transfer3_forward)
    out = jax.block_until_ready(fwd(x, params))
    assert out.shape == (batch, N_CLASSES), out.shape

    ref = reference_forward(x, torch_params)
    np.testing.assert_allclose(np.asarray(out), np.asarray(ref),
                               atol=2.5e-2, rtol=2.5e-2)
    print("KERNEL_OK")
</pallas_src>

<mosaic_0001>
module attributes {stable_mosaic.version = 11 : i64} {
  func.func @transfer3_kernel(%arg0: i32, %arg1: memref<36x8x256xbf16, #tpu.memory_space<vmem>>, %arg2: memref<4x256x128xbf16, #tpu.memory_space<vmem>>, %arg3: memref<1x128xf32, #tpu.memory_space<vmem>>, %arg4: memref<25x128x256xbf16, #tpu.memory_space<vmem>>, %arg5: memref<1x256xf32, #tpu.memory_space<vmem>>, %arg6: memref<256x128xbf16, #tpu.memory_space<vmem>>, %arg7: memref<1x128xf32, #tpu.memory_space<vmem>>, %arg8: memref<8x128xf32, #tpu.memory_space<vmem>>) attributes {dimension_semantics = [#tpu.dimension_semantics<parallel>], iteration_bounds = array<i64: 1>, scalar_prefetch = 0 : i64, scratch_operands = 0 : i64, tpu.core_type = #tpu.core_type<tc>, window_params = [{transform_indices = @transform_0, window_bounds = array<i64: 36, 8, 256>}, {pipeline_mode = #tpu.pipeline_mode<synchronous>, transform_indices = @transform_1, window_bounds = array<i64: 4, 256, 128>}, {pipeline_mode = #tpu.pipeline_mode<synchronous>, transform_indices = @transform_2, window_bounds = array<i64: 1, 128>}, {pipeline_mode = #tpu.pipeline_mode<synchronous>, transform_indices = @transform_3, window_bounds = array<i64: 25, 128, 256>}, {pipeline_mode = #tpu.pipeline_mode<synchronous>, transform_indices = @transform_4, window_bounds = array<i64: 1, 256>}, {pipeline_mode = #tpu.pipeline_mode<synchronous>, transform_indices = @transform_5, window_bounds = array<i64: 256, 128>}, {pipeline_mode = #tpu.pipeline_mode<synchronous>, transform_indices = @transform_6, window_bounds = array<i64: 1, 128>}, {transform_indices = @transform_7, window_bounds = array<i64: 8, 128>}]} {
    %c0 = arith.constant 0 : index
    %c0_0 = arith.constant 0 : index
    %0 = vector.load %arg3[%c0, %c0_0] : memref<1x128xf32, #tpu.memory_space<vmem>>, vector<1x128xf32>
    %cst = arith.constant 0.000000e+00 : f32
    %1 = vector.broadcast %cst : f32 to vector<8x256xf32>
    %cst_1 = arith.constant 0.000000e+00 : f32
    %2 = vector.broadcast %cst_1 : f32 to vector<8x128xf32>
    %c0_2 = arith.constant 0 : index
    %c0_3 = arith.constant 0 : index
    %c0_4 = arith.constant 0 : index
    %3 = vector.load %arg1[%c0_2, %c0_3, %c0_4] : memref<36x8x256xbf16, #tpu.memory_space<vmem>>, vector<1x8x256xbf16>
    %4 = vector.shape_cast %3 : vector<1x8x256xbf16> to vector<8x256xbf16>
    %c0_5 = arith.constant 0 : index
    %c0_6 = arith.constant 0 : index
    %c0_7 = arith.constant 0 : index
    %5 = vector.load %arg2[%c0_5, %c0_6, %c0_7] : memref<4x256x128xbf16, #tpu.memory_space<vmem>>, vector<1x256x128xbf16>
    %6 = vector.shape_cast %5 : vector<1x256x128xbf16> to vector<256x128xbf16>
    %cst_8 = arith.constant dense<0.000000e+00> : vector<8x128xf32>
    %7 = tpu.matmul %4, %6, %cst_8 {dimension_numbers = #tpu.dot_dimension_numbers<[1], [0], [0], [1], [0, 0, 1, 1], [], []>} : vector<8x256xbf16>, vector<256x128xbf16>, vector<8x128xf32> -> vector<8x128xf32>
    %8 = arith.addf %2, %7 : vector<8x128xf32>
    %c1 = arith.constant 1 : index
    %c0_9 = arith.constant 0 : index
    %c0_10 = arith.constant 0 : index
    %9 = vector.load %arg1[%c1, %c0_9, %c0_10] : memref<36x8x256xbf16, #tpu.memory_space<vmem>>, vector<1x8x256xbf16>
    %10 = vector.shape_cast %9 : vector<1x8x256xbf16> to vector<8x256xbf16>
    %c1_11 = arith.constant 1 : index
    %c0_12 = arith.constant 0 : index
    %c0_13 = arith.constant 0 : index
    %11 = vector.load %arg2[%c1_11, %c0_12, %c0_13] : memref<4x256x128xbf16, #tpu.memory_space<vmem>>, vector<1x256x128xbf16>
    %12 = vector.shape_cast %11 : vector<1x256x128xbf16> to vector<256x128xbf16>
    %cst_14 = arith.constant dense<0.000000e+00> : vector<8x128xf32>
    %13 = tpu.matmul %10, %12, %cst_14 {dimension_numbers = #tpu.dot_dimension_numbers<[1], [0], [0], [1], [0, 0, 1, 1], [], []>} : vector<8x256xbf16>, vector<256x128xbf16>, vector<8x128xf32> -> vector<8x128xf32>
    %14 = arith.addf %8, %13 : vector<8x128xf32>
    %c6 = arith.constant 6 : index
    %c0_15 = arith.constant 0 : index
    %c0_16 = arith.constant 0 : index
    %15 = vector.load %arg1[%c6, %c0_15, %c0_16] : memref<36x8x256xbf16, #tpu.memory_space<vmem>>, vector<1x8x256xbf16>
    %16 = vector.shape_cast %15 : vector<1x8x256xbf16> to vector<8x256xbf16>
    %c2 = arith.constant 2 : index
    %c0_17 = arith.constant 0 : index
    %c0_18 = arith.constant 0 : index
    %17 = vector.load %arg2[%c2, %c0_17, %c0_18] : memref<4x256x128xbf16, #tpu.memory_space<vmem>>, vector<1x256x128xbf16>
    %18 = vector.shape_cast %17 : vector<1x256x128xbf16> to vector<256x128xbf16>
    %cst_19 = arith.constant dense<0.000000e+00> : vector<8x128xf32>
    %19 = tpu.matmul %16, %18, %cst_19 {dimension_numbers = #tpu.dot_dimension_numbers<[1], [0], [0], [1], [0, 0, 1, 1], [], []>} : vector<8x256xbf16>, vector<256x128xbf16>, vector<8x128xf32> -> vector<8x128xf32>
    %20 = arith.addf %14, %19 : vector<8x128xf32>
    %c7 = arith.constant 7 : index
    %c0_20 = arith.constant 0 : index
    %c0_21 = arith.constant 0 : index
    %21 = vector.load %arg1[%c7, %c0_20, %c0_21] : memref<36x8x256xbf16, #tpu.memory_space<vmem>>, vector<1x8x256xbf16>
    %22 = vector.shape_cast %21 : vector<1x8x256xbf16> to vector<8x256xbf16>
    %c3 = arith.constant 3 : index
    %c0_22 = arith.constant 0 : index
    %c0_23 = arith.constant 0 : index
    %23 = vector.load %arg2[%c3, %c0_22, %c0_23] : memref<4x256x128xbf16, #tpu.memory_space<vmem>>, vector<1x256x128xbf16>
    %24 = vector.shape_cast %23 : vector<1x256x128xbf16> to vector<256x128xbf16>
    %cst_24 = arith.constant dense<0.000000e+00> : vector<8x128xf32>
    %25 = tpu.matmul %22, %24, %cst_24 {dimension_numbers = #tpu.dot_dimension_numbers<[1], [0], [0], [1], [0, 0, 1, 1], [], []>} : vector<8x256xbf16>, vector<256x128xbf16>, vector<8x128xf32> -> vector<8x128xf32>
    %26 = arith.addf %20, %25 : vector<8x128xf32>
    %27 = vector.broadcast %0 : vector<1x128xf32> to vector<8x128xf32>
    %28 = arith.addf %26, %27 : vector<8x128xf32>
    %cst_25 = arith.constant 0.000000e+00 : f32
    %29 = vector.broadcast %cst_25 : f32 to vector<8x128xf32>
    %30 = arith.maximumf %28, %29 : vector<8x128xf32>
    %31 = arith.truncf %30 : vector<8x128xf32> to vector<8x128xbf16>
    %c0_26 = arith.constant 0 : index
    %c0_27 = arith.constant 0 : index
    %c0_28 = arith.constant 0 : index
    %32 = vector.load %arg4[%c0_26, %c0_27, %c0_28] : memref<25x128x256xbf16, #tpu.memory_space<vmem>>, vector<1x128x256xbf16>
    %33 = vector.shape_cast %32 : vector<1x128x256xbf16> to vector<128x256xbf16>
    %cst_29 = arith.constant dense<0.000000e+00> : vector<8x256xf32>
    %34 = tpu.matmul %31, %33, %cst_29 {dimension_numbers = #tpu.dot_dimension_numbers<[1], [0], [0], [1], [0, 0, 1, 1], [], []>} : vector<8x128xbf16>, vector<128x256xbf16>, vector<8x256xf32> -> vector<8x256xf32>
    %35 = arith.addf %1, %34 : vector<8x256xf32>
    %cst_30 = arith.constant 0.000000e+00 : f32
    %36 = vector.broadcast %cst_30 : f32 to vector<8x128xf32>
    %c1_31 = arith.constant 1 : index
    %c0_32 = arith.constant 0 : index
    %c0_33 = arith.constant 0 : index
    %37 = vector.load %arg1[%c1_31, %c0_32, %c0_33] : memref<36x8x256xbf16, #tpu.memory_space<vmem>>, vector<1x8x256xbf16>
    %38 = vector.shape_cast %37 : vector<1x8x256xbf16> to vector<8x256xbf16>
    %c0_34 = arith.constant 0 : index
    %c0_35 = arith.constant 0 : index
    %c0_36 = arith.constant 0 : index
    %39 = vector.load %arg2[%c0_34, %c0_35, %c0_36] : memref<4x256x128xbf16, #tpu.memory_space<vmem>>, vector<1x256x128xbf16>
    %40 = vector.shape_cast %39 : vector<1x256x128xbf16> to vector<256x128xbf16>
    %cst_37 = arith.constant dense<0.000000e+00> : vector<8x128xf32>
    %41 = tpu.matmul %38, %40, %cst_37 {dimension_numbers = #tpu.dot_dimension_numbers<[1], [0], [0], [1], [0, 0, 1, 1], [], []>} : vector<8x256xbf16>, vector<256x128xbf16>, vector<8x128xf32> -> vector<8x128xf32>
    %42 = arith.addf %36, %41 : vector<8x128xf32>
    %c2_38 = arith.constant 2 : index
    %c0_39 = arith.constant 0 : index
    %c0_40 = arith.constant 0 : index
    %43 = vector.load %arg1[%c2_38, %c0_39, %c0_40] : memref<36x8x256xbf16, #tpu.memory_space<vmem>>, vector<1x8x256xbf16>
    %44 = vector.shape_cast %43 : vector<1x8x256xbf16> to vector<8x256xbf16>
    %c1_41 = arith.constant 1 : index
    %c0_42 = arith.constant 0 : index
    %c0_43 = arith.constant 0 : index
    %45 = vector.load %arg2[%c1_41, %c0_42, %c0_43] : memref<4x256x128xbf16, #tpu.memory_space<vmem>>, vector<1x256x128xbf16>
    %46 = vector.shape_cast %45 : vector<1x256x128xbf16> to vector<256x128xbf16>
    %cst_44 = arith.constant dense<0.000000e+00> : vector<8x128xf32>
    %47 = tpu.matmul %44, %46, %cst_44 {dimension_numbers = #tpu.dot_dimension_numbers<[1], [0], [0], [1], [0, 0, 1, 1], [], []>} : vector<8x256xbf16>, vector<256x128xbf16>, vector<8x128xf32> -> vector<8x128xf32>
    %48 = arith.addf %42, %47 : vector<8x128xf32>
    %c7_45 = arith.constant 7 : index
    %c0_46 = arith.constant 0 : index
    %c0_47 = arith.constant 0 : index
    %49 = vector.load %arg1[%c7_45, %c0_46, %c0_47] : memref<36x8x256xbf16, #tpu.memory_space<vmem>>, vector<1x8x256xbf16>
    %50 = vector.shape_cast %49 : vector<1x8x256xbf16> to vector<8x256xbf16>
    %c2_48 = arith.constant 2 : index
    %c0_49 = arith.constant 0 : index
    %c0_50 = arith.constant 0 : index
    %51 = vector.load %arg2[%c2_48, %c0_49, %c0_50] : memref<4x256x128xbf16, #tpu.memory_space<vmem>>, vector<1x256x128xbf16>
    %52 = vector.shape_cast %51 : vector<1x256x128xbf16> to vector<256x128xbf16>
    %cst_51 = arith.constant dense<0.000000e+00> : vector<8x128xf32>
    %53 = tpu.matmul %50, %52, %cst_51 {dimension_numbers = #tpu.dot_dimension_numbers<[1], [0], [0], [1], [0, 0, 1, 1], [], []>} : vector<8x256xbf16>, vector<256x128xbf16>, vector<8x128xf32> -> vector<8x128xf32>
    %54 = arith.addf %48, %53 : vector<8x128xf32>
    %c8 = arith.constant 8 : index
    %c0_52 = arith.constant 0 : index
    %c0_53 = arith.constant 0 : index
    %55 = vector.load %arg1[%c8, %c0_52, %c0_53] : memref<36x8x256xbf16, #tpu.memory_space<vmem>>, vector<1x8x256xbf16>
    %56 = vector.shape_cast %55 : vector<1x8x256xbf16> to vector<8x256xbf16>
    %c3_54 = arith.constant 3 : index
    %c0_55 = arith.constant 0 : index
    %c0_56 = arith.constant 0 : index
    %57 = vector.load %arg2[%c3_54, %c0_55, %c0_56] : memref<4x256x128xbf16, #tpu.memory_space<vmem>>, vector<1x256x128xbf16>
    %58 = vector.shape_cast %57 : vector<1x256x128xbf16> to vector<256x128xbf16>
    %cst_57 = arith.constant dense<0.000000e+00> : vector<8x128xf32>
    %59 = tpu.matmul %56, %58, %cst_57 {dimension_numbers = #tpu.dot_dimension_numbers<[1], [0], [0], [1], [0, 0, 1, 1], [], []>} : vector<8x256xbf16>, vector<256x128xbf16>, vector<8x128xf32> -> vector<8x128xf32>
    %60 = arith.addf %54, %59 : vector<8x128xf32>
    %61 = vector.broadcast %0 : vector<1x128xf32> to vector<8x128xf32>
    %62 = arith.addf %60, %61 : vector<8x128xf32>
    %cst_58 = arith.constant 0.000000e+00 : f32
    %63 = vector.broadcast %cst_58 : f32 to vector<8x128xf32>
    %64 = arith.maximumf %62, %63 : vector<8x128xf32>
    %65 = arith.truncf %64 : vector<8x128xf32> to vector<8x128xbf16>
    %c1_59 = arith.constant 1 : index
    %c0_60 = arith.constant 0 : index
    %c0_61 = arith.constant 0 : index
    %66 = vector.load %arg4[%c1_59, %c0_60, %c0_61] : memref<25x128x256xbf16, #tpu.memory_space<vmem>>, vector<1x128x256xbf16>
    %67 = vector.shape_cast %66 : vector<1x128x256xbf16> to vector<128x256xbf16>
    %cst_62 = arith.constant dense<0.000000e+00> : vector<8x256xf32>
    %68 = tpu.matmul %65, %67, %cst_62 {dimension_numbers = #tpu.dot_dimension_numbers<[1], [0], [0], [1], [0, 0, 1, 1], [], []>} : vector<8x128xbf16>, vector<128x256xbf16>, vector<8x256xf32> -> vector<8x256xf32>
    %69 = arith.addf %35, %68 : vector<8x256xf32>
    %cst_63 = arith.constant 0.000000e+00 : f32
    %70 = vector.broadcast %cst_63 : f32 to vector<8x128xf32>
    %c2_64 = arith.constant 2 : index
    %c0_65 = arith.constant 0 : index
    %c0_66 = arith.constant 0 : index
    %71 = vector.load %arg1[%c2_64, %c0_65, %c0_66] : memref<36x8x256xbf16, #tpu.memory_space<vmem>>, vector<1x8x256xbf16>
    %72 = vector.shape_cast %71 : vector<1x8x256xbf16> to vector<8x256xbf16>
    %c0_67 = arith.constant 0 : index
    %c0_68 = arith.constant 0 : index
    %c0_69 = arith.constant 0 : index
    %73 = vector.load %arg2[%c0_67, %c0_68, %c0_69] : memref<4x256x128xbf16, #tpu.memory_space<vmem>>, vector<1x256x128xbf16>
    %74 = vector.shape_cast %73 : vector<1x256x128xbf16> to vector<256x128xbf16>
    %cst_70 = arith.constant dense<0.000000e+00> : vector<8x128xf32>
    %75 = tpu.matmul %72, %74, %cst_70 {dimension_numbers = #tpu.dot_dimension_numbers<[1], [0], [0], [1], [0, 0, 1, 1], [], []>} : vector<8x256xbf16>, vector<256x128xbf16>, vector<8x128xf32> -> vector<8x128xf32>
    %76 = arith.addf %70, %75 : vector<8x128xf32>
    %c3_71 = arith.constant 3 : index
    %c0_72 = arith.constant 0 : index
    %c0_73 = arith.constant 0 : index
    %77 = vector.load %arg1[%c3_71, %c0_72, %c0_73] : memref<36x8x256xbf16, #tpu.memory_space<vmem>>, vector<1x8x256xbf16>
    %78 = vector.shape_cast %77 : vector<1x8x256xbf16> to vector<8x256xbf16>
    %c1_74 = arith.constant 1 : index
    %c0_75 = arith.constant 0 : index
    %c0_76 = arith.constant 0 : index
    %79 = vector.load %arg2[%c1_74, %c0_75, %c0_76] : memref<4x256x128xbf16, #tpu.memory_space<vmem>>, vector<1x256x128xbf16>
    %80 = vector.shape_cast %79 : vector<1x256x128xbf16> to vector<256x128xbf16>
    %cst_77 = arith.constant dense<0.000000e+00> : vector<8x128xf32>
    %81 = tpu.matmul %78, %80, %cst_77 {dimension_numbers = #tpu.dot_dimension_numbers<[1], [0], [0], [1], [0, 0, 1, 1], [], []>} : vector<8x256xbf16>, vector<256x128xbf16>, vector<8x128xf32> -> vector<8x128xf32>
    %82 = arith.addf %76, %81 : vector<8x128xf32>
    %c8_78 = arith.constant 8 : index
    %c0_79 = arith.constant 0 : index
    %c0_80 = arith.constant 0 : index
    %83 = vector.load %arg1[%c8_78, %c0_79, %c0_80] : memref<36x8x256xbf16, #tpu.memory_space<vmem>>, vector<1x8x256xbf16>
    %84 = vector.shape_cast %83 : vector<1x8x256xbf16> to vector<8x256xbf16>
    %c2_81 = arith.constant 2 : index
    %c0_82 = arith.constant 0 : index
    %c0_83 = arith.constant 0 : index
    %85 = vector.load %arg2[%c2_81, %c0_82, %c0_83] : memref<4x256x128xbf16, #tpu.memory_space<vmem>>, vector<1x256x128xbf16>
    %86 = vector.shape_cast %85 : vector<1x256x128xbf16> to vector<256x128xbf16>
    %cst_84 = arith.constant dense<0.000000e+00> : vector<8x128xf32>
    %87 = tpu.matmul %84, %86, %cst_84 {dimension_numbers = #tpu.dot_dimension_numbers<[1], [0], [0], [1], [0, 0, 1, 1], [], []>} : vector<8x256xbf16>, vector<256x128xbf16>, vector<8x128xf32> -> vector<8x128xf32>
    %88 = arith.addf %82, %87 : vector<8x128xf32>
    %c9 = arith.constant 9 : index
    %c0_85 = arith.constant 0 : index
    %c0_86 = arith.constant 0 : index
    %89 = vector.load %arg1[%c9, %c0_85, %c0_86] : memref<36x8x256xbf16, #tpu.memory_space<vmem>>, vector<1x8x256xbf16>
    %90 = vector.shape_cast %89 : vector<1x8x256xbf16> to vector<8x256xbf16>
    %c3_87 = arith.constant 3 : index
    %c0_88 = arith.constant 0 : index
    %c0_89 = arith.constant 0 : index
    %91 = vector.load %arg2[%c3_87, %c0_88, %c0_89] : memref<4x256x128xbf16, #tpu.memory_space<vmem>>, vector<1x256x128xbf16>
    %92 = vector.shape_cast %91 : vector<1x256x128xbf16> to vector<256x128xbf16>
    %cst_90 = arith.constant dense<0.000000e+00> : vector<8x128xf32>
    %93 = tpu.matmul %90, %92, %cst_90 {dimension_numbers = #tpu.dot_dimension_numbers<[1], [0], [0], [1], [0, 0, 1, 1], [], []>} : vector<8x256xbf16>, vector<256x128xbf16>, vector<8x128xf32> -> vector<8x128xf32>
    %94 = arith.addf %88, %93 : vector<8x128xf32>
    %95 = vector.broadcast %0 : vector<1x128xf32> to vector<8x128xf32>
    %96 = arith.addf %94, %95 : vector<8x128xf32>
    %cst_91 = arith.constant 0.000000e+00 : f32
    %97 = vector.broadcast %cst_91 : f32 to vector<8x128xf32>
    %98 = arith.maximumf %96, %97 : vector<8x128xf32>
    %99 = arith.truncf %98 : vector<8x128xf32> to vector<8x128xbf16>
    %c2_92 = arith.constant 2 : index
    %c0_93 = arith.constant 0 : index
    %c0_94 = arith.constant 0 : index
    %100 = vector.load %arg4[%c2_92, %c0_93, %c0_94] : memref<25x128x256xbf16, #tpu.memory_space<vmem>>, vector<1x128x256xbf16>
    %101 = vector.shape_cast %100 : vector<1x128x256xbf16> to vector<128x256xbf16>
    %cst_95 = arith.constant dense<0.000000e+00> : vector<8x256xf32>
    %102 = tpu.matmul %99, %101, %cst_95 {dimension_numbers = #tpu.dot_dimension_numbers<[1], [0], [0], [1], [0, 0, 1, 1], [], []>} : vector<8x128xbf16>, vector<128x256xbf16>, vector<8x256xf32> -> vector<8x256xf32>
    %103 = arith.addf %69, %102 : vector<8x256xf32>
    %cst_96 = arith.constant 0.000000e+00 : f32
    %104 = vector.broadcast %cst_96 : f32 to vector<8x128xf32>
    %c3_97 = arith.constant 3 : index
    %c0_98 = arith.constant 0 : index
    %c0_99 = arith.constant 0 : index
    %105 = vector.load %arg1[%c3_97, %c0_98, %c0_99] : memref<36x8x256xbf16, #tpu.memory_space<vmem>>, vector<1x8x256xbf16>
    %106 = vector.shape_cast %105 : vector<1x8x256xbf16> to vector<8x256xbf16>
    %c0_100 = arith.constant 0 : index
    %c0_101 = arith.constant 0 : index
    %c0_102 = arith.constant 0 : index
    %107 = vector.load %arg2[%c0_100, %c0_101, %c0_102] : memref<4x256x128xbf16, #tpu.memory_space<vmem>>, vector<1x256x128xbf16>
    %108 = vector.shape_cast %107 : vector<1x256x128xbf16> to vector<256x128xbf16>
    %cst_103 = arith.constant dense<0.000000e+00> : vector<8x128xf32>
    %109 = tpu.matmul %106, %108, %cst_103 {dimension_numbers = #tpu.dot_dimension_numbers<[1], [0], [0], [1], [0, 0, 1, 1], [], []>} : vector<8x256xbf16>, vector<256x128xbf16>, vector<8x128xf32> -> vector<8x128xf32>
    %110 = arith.addf %104, %109 : vector<8x128xf32>
    %c4 = arith.constant 4 : index
    %c0_104 = arith.constant 0 : index
    %c0_105 = arith.constant 0 : index
    %111 = vector.load %arg1[%c4, %c0_104, %c0_105] : memref<36x8x256xbf16, #tpu.memory_space<vmem>>, vector<1x8x256xbf16>
    %112 = vector.shape_cast %111 : vector<1x8x256xbf16> to vector<8x256xbf16>
    %c1_106 = arith.constant 1 : index
    %c0_107 = arith.constant 0 : index
    %c0_108 = arith.constant 0 : index
    %113 = vector.load %arg2[%c1_106, %c0_107, %c0_108] : memref<4x256x128xbf16, #tpu.memory_space<vmem>>, vector<1x256x128xbf16>
    %114 = vector.shape_cast %113 : vector<1x256x128xbf16> to vector<256x128xbf16>
    %cst_109 = arith.constant dense<0.000000e+00> : vector<8x128xf32>
    %115 = tpu.matmul %112, %114, %cst_109 {dimension_numbers = #tpu.dot_dimension_numbers<[1], [0], [0], [1], [0, 0, 1, 1], [], []>} : vector<8x256xbf16>, vector<256x128xbf16>, vector<8x128xf32> -> vector<8x128xf32>
    %116 = arith.addf %110, %115 : vector<8x128xf32>
    %c9_110 = arith.constant 9 : index
    %c0_111 = arith.constant 0 : index
    %c0_112 = arith.constant 0 : index
    %117 = vector.load %arg1[%c9_110, %c0_111, %c0_112] : memref<36x8x256xbf16, #tpu.memory_space<vmem>>, vector<1x8x256xbf16>
    %118 = vector.shape_cast %117 : vector<1x8x256xbf16> to vector<8x256xbf16>
    %c2_113 = arith.constant 2 : index
    %c0_114 = arith.constant 0 : index
    %c0_115 = arith.constant 0 : index
    %119 = vector.load %arg2[%c2_113, %c0_114, %c0_115] : memref<4x256x128xbf16, #tpu.memory_space<vmem>>, vector<1x256x128xbf16>
    %120 = vector.shape_cast %119 : vector<1x256x128xbf16> to vector<256x128xbf16>
    %cst_116 = arith.constant dense<0.000000e+00> : vector<8x128xf32>
    %121 = tpu.matmul %118, %120, %cst_116 {dimension_numbers = #tpu.dot_dimension_numbers<[1], [0], [0], [1], [0, 0, 1, 1], [], []>} : vector<8x256xbf16>, vector<256x128xbf16>, vector<8x128xf32> -> vector<8x128xf32>
    %122 = arith.addf %116, %121 : vector<8x128xf32>
    %c10 = arith.constant 10 : index
    %c0_117 = arith.constant 0 : index
    %c0_118 = arith.constant 0 : index
    %123 = vector.load %arg1[%c10, %c0_117, %c0_118] : memref<36x8x256xbf16, #tpu.memory_space<vmem>>, vector<1x8x256xbf16>
    %124 = vector.shape_cast %123 : vector<1x8x256xbf16> to vector<8x256xbf16>
    %c3_119 = arith.constant 3 : index
    %c0_120 = arith.constant 0 : index
    %c0_121 = arith.constant 0 : index
    %125 = vector.load %arg2[%c3_119, %c0_120, %c0_121] : memref<4x256x128xbf16, #tpu.memory_space<vmem>>, vector<1x256x128xbf16>
    %126 = vector.shape_cast %125 : vector<1x256x128xbf16> to vector<256x128xbf16>
    %cst_122 = arith.constant dense<0.000000e+00> : vector<8x128xf32>
    %127 = tpu.matmul %124, %126, %cst_122 {dimension_numbers = #tpu.dot_dimension_numbers<[1], [0], [0], [1], [0, 0, 1, 1], [], []>} : vector<8x256xbf16>, vector<256x128xbf16>, vector<8x128xf32> -> vector<8x128xf32>
    %128 = arith.addf %122, %127 : vector<8x128xf32>
    %129 = vector.broadcast %0 : vector<1x128xf32> to vector<8x128xf32>
    %130 = arith.addf %128, %129 : vector<8x128xf32>
    %cst_123 = arith.constant 0.000000e+00 : f32
    %131 = vector.broadcast %cst_123 : f32 to vector<8x128xf32>
    %132 = arith.maximumf %130, %131 : vector<8x128xf32>
    %133 = arith.truncf %132 : vector<8x128xf32> to vector<8x128xbf16>
    %c3_124 = arith.constant 3 : index
    %c0_125 = arith.constant 0 : index
    %c0_126 = arith.constant 0 : index
    %134 = vector.load %arg4[%c3_124, %c0_125, %c0_126] : memref<25x128x256xbf16, #tpu.memory_space<vmem>>, vector<1x128x256xbf16>
    %135 = vector.shape_cast %134 : vector<1x128x256xbf16> to vector<128x256xbf16>
    %cst_127 = arith.constant dense<0.000000e+00> : vector<8x256xf32>
    %136 = tpu.matmul %133, %135, %cst_127 {dimension_numbers = #tpu.dot_dimension_numbers<[1], [0], [0], [1], [0, 0, 1, 1], [], []>} : vector<8x128xbf16>, vector<128x256xbf16>, vector<8x256xf32> -> vector<8x256xf32>
    %137 = arith.addf %103, %136 : vector<8x256xf32>
    %cst_128 = arith.constant 0.000000e+00 : f32
    %138 = vector.broadcast %cst_128 : f32 to vector<8x128xf32>
    %c4_129 = arith.constant 4 : index
    %c0_130 = arith.constant 0 : index
    %c0_131 = arith.constant 0 : index
    %139 = vector.load %arg1[%c4_129, %c0_130, %c0_131] : memref<36x8x256xbf16, #tpu.memory_space<vmem>>, vector<1x8x256xbf16>
    %140 = vector.shape_cast %139 : vector<1x8x256xbf16> to vector<8x256xbf16>
    %c0_132 = arith.constant 0 : index
    %c0_133 = arith.constant 0 : index
    %c0_134 = arith.constant 0 : index
    %141 = vector.load %arg2[%c0_132, %c0_133, %c0_134] : memref<4x256x128xbf16, #tpu.memory_space<vmem>>, vector<1x256x128xbf16>
    %142 = vector.shape_cast %141 : vector<1x256x128xbf16> to vector<256x128xbf16>
    %cst_135 = arith.constant dense<0.000000e+00> : vector<8x128xf32>
    %143 = tpu.matmul %140, %142, %cst_135 {dimension_numbers = #tpu.dot_dimension_numbers<[1], [0], [0], [1], [0, 0, 1, 1], [], []>} : vector<8x256xbf16>, vector<256x128xbf16>, vector<8x128xf32> -> vector<8x128xf32>
    %144 = arith.addf %138, %143 : vector<8x128xf32>
    %c5 = arith.constant 5 : index
    %c0_136 = arith.constant 0 : index
    %c0_137 = arith.constant 0 : index
    %145 = vector.load %arg1[%c5, %c0_136, %c0_137] : memref<36x8x256xbf16, #tpu.memory_space<vmem>>, vector<1x8x256xbf16>
    %146 = vector.shape_cast %145 : vector<1x8x256xbf16> to vector<8x256xbf16>
    %c1_138 = arith.constant 1 : index
    %c0_139 = arith.constant 0 : index
    %c0_140 = arith.constant 0 : index
    %147 = vector.load %arg2[%c1_138, %c0_139, %c0_140] : memref<4x256x128xbf16, #tpu.memory_space<vmem>>, vector<1x256x128xbf16>
    %148 = vector.shape_cast %147 : vector<1x256x128xbf16> to vector<256x128xbf16>
    %cst_141 = arith.constant dense<0.000000e+00> : vector<8x128xf32>
    %149 = tpu.matmul %146, %148, %cst_141 {dimension_numbers = #tpu.dot_dimension_numbers<[1], [0], [0], [1], [0, 0, 1, 1], [], []>} : vector<8x256xbf16>, vector<256x128xbf16>, vector<8x128xf32> -> vector<8x128xf32>
    %150 = arith.addf %144, %149 : vector<8x128xf32>
    %c10_142 = arith.constant 10 : index
    %c0_143 = arith.constant 0 : index
    %c0_144 = arith.constant 0 : index
    %151 = vector.load %arg1[%c10_142, %c0_143, %c0_144] : memref<36x8x256xbf16, #tpu.memory_space<vmem>>, vector<1x8x256xbf16>
    %152 = vector.shape_cast %151 : vector<1x8x256xbf16> to vector<8x256xbf16>
    %c2_145 = arith.constant 2 : index
    %c0_146 = arith.constant 0 : index
    %c0_147 = arith.constant 0 : index
    %153 = vector.load %arg2[%c2_145, %c0_146, %c0_147] : memref<4x256x128xbf16, #tpu.memory_space<vmem>>, vector<1x256x128xbf16>
    %154 = vector.shape_cast %153 : vector<1x256x128xbf16> to vector<256x128xbf16>
    %cst_148 = arith.constant dense<0.000000e+00> : vector<8x128xf32>
    %155 = tpu.matmul %152, %154, %cst_148 {dimension_numbers = #tpu.dot_dimension_numbers<[1], [0], [0], [1], [0, 0, 1, 1], [], []>} : vector<8x256xbf16>, vector<256x128xbf16>, vector<8x128xf32> -> vector<8x128xf32>
    %156 = arith.addf %150, %155 : vector<8x128xf32>
    %c11 = arith.constant 11 : index
    %c0_149 = arith.constant 0 : index
    %c0_150 = arith.constant 0 : index
    %157 = vector.load %arg1[%c11, %c0_149, %c0_150] : memref<36x8x256xbf16, #tpu.memory_space<vmem>>, vector<1x8x256xbf16>
    %158 = vector.shape_cast %157 : vector<1x8x256xbf16> to vector<8x256xbf16>
    %c3_151 = arith.constant 3 : index
    %c0_152 = arith.constant 0 : index
    %c0_153 = arith.constant 0 : index
    %159 = vector.load %arg2[%c3_151, %c0_152, %c0_153] : memref<4x256x128xbf16, #tpu.memory_space<vmem>>, vector<1x256x128xbf16>
    %160 = vector.shape_cast %159 : vector<1x256x128xbf16> to vector<256x128xbf16>
    %cst_154 = arith.constant dense<0.000000e+00> : vector<8x128xf32>
    %161 = tpu.matmul %158, %160, %cst_154 {dimension_numbers = #tpu.dot_dimension_numbers<[1], [0], [0], [1], [0, 0, 1, 1], [], []>} : vector<8x256xbf16>, vector<256x128xbf16>, vector<8x128xf32> -> vector<8x128xf32>
    %162 = arith.addf %156, %161 : vector<8x128xf32>
    %163 = vector.broadcast %0 : vector<1x128xf32> to vector<8x128xf32>
    %164 = arith.addf %162, %163 : vector<8x128xf32>
    %cst_155 = arith.constant 0.000000e+00 : f32
    %165 = vector.broadcast %cst_155 : f32 to vector<8x128xf32>
    %166 = arith.maximumf %164, %165 : vector<8x128xf32>
    %167 = arith.truncf %166 : vector<8x128xf32> to vector<8x128xbf16>
    %c4_156 = arith.constant 4 : index
    %c0_157 = arith.constant 0 : index
    %c0_158 = arith.constant 0 : index
    %168 = vector.load %arg4[%c4_156, %c0_157, %c0_158] : memref<25x128x256xbf16, #tpu.memory_space<vmem>>, vector<1x128x256xbf16>
    %169 = vector.shape_cast %168 : vector<1x128x256xbf16> to vector<128x256xbf16>
    %cst_159 = arith.constant dense<0.000000e+00> : vector<8x256xf32>
    %170 = tpu.matmul %167, %169, %cst_159 {dimension_numbers = #tpu.dot_dimension_numbers<[1], [0], [0], [1], [0, 0, 1, 1], [], []>} : vector<8x128xbf16>, vector<128x256xbf16>, vector<8x256xf32> -> vector<8x256xf32>
    %171 = arith.addf %137, %170 : vector<8x256xf32>
    %cst_160 = arith.constant 0.000000e+00 : f32
    %172 = vector.broadcast %cst_160 : f32 to vector<8x128xf32>
    %c6_161 = arith.constant 6 : index
    %c0_162 = arith.constant 0 : index
    %c0_163 = arith.constant 0 : index
    %173 = vector.load %arg1[%c6_161, %c0_162, %c0_163] : memref<36x8x256xbf16, #tpu.memory_space<vmem>>, vector<1x8x256xbf16>
    %174 = vector.shape_cast %173 : vector<1x8x256xbf16> to vector<8x256xbf16>
    %c0_164 = arith.constant 0 : index
    %c0_165 = arith.constant 0 : index
    %c0_166 = arith.constant 0 : index
    %175 = vector.load %arg2[%c0_164, %c0_165, %c0_166] : memref<4x256x128xbf16, #tpu.memory_space<vmem>>, vector<1x256x128xbf16>
    %176 = vector.shape_cast %175 : vector<1x256x128xbf16> to vector<256x128xbf16>
    %cst_167 = arith.constant dense<0.000000e+00> : vector<8x128xf32>
    %177 = tpu.matmul %174, %176, %cst_167 {dimension_numbers = #tpu.dot_dimension_numbers<[1], [0], [0], [1], [0, 0, 1, 1], [], []>} : vector<8x256xbf16>, vector<256x128xbf16>, vector<8x128xf32> -> vector<8x128xf32>
    %178 = arith.addf %172, %177 : vector<8x128xf32>
    %c7_168 = arith.constant 7 : index
    %c0_169 = arith.constant 0 : index
    %c0_170 = arith.constant 0 : index
    %179 = vector.load %arg1[%c7_168, %c0_169, %c0_170] : memref<36x8x256xbf16, #tpu.memory_space<vmem>>, vector<1x8x256xbf16>
    %180 = vector.shape_cast %179 : vector<1x8x256xbf16> to vector<8x256xbf16>
    %c1_171 = arith.constant 1 : index
    %c0_172 = arith.constant 0 : index
    %c0_173 = arith.constant 0 : index
    %181 = vector.load %arg2[%c1_171, %c0_172, %c0_173] : memref<4x256x128xbf16, #tpu.memory_space<vmem>>, vector<1x256x128xbf16>
    %182 = vector.shape_cast %181 : vector<1x256x128xbf16> to vector<256x128xbf16>
    %cst_174 = arith.constant dense<0.000000e+00> : vector<8x128xf32>
    %183 = tpu.matmul %180, %182, %cst_174 {dimension_numbers = #tpu.dot_dimension_numbers<[1], [0], [0], [1], [0, 0, 1, 1], [], []>} : vector<8x256xbf16>, vector<256x128xbf16>, vector<8x128xf32> -> vector<8x128xf32>
    %184 = arith.addf %178, %183 : vector<8x128xf32>
    %c12 = arith.constant 12 : index
    %c0_175 = arith.constant 0 : index
    %c0_176 = arith.constant 0 : index
    %185 = vector.load %arg1[%c12, %c0_175, %c0_176] : memref<36x8x256xbf16, #tpu.memory_space<vmem>>, vector<1x8x256xbf16>
    %186 = vector.shape_cast %185 : vector<1x8x256xbf16> to vector<8x256xbf16>
    %c2_177 = arith.constant 2 : index
    %c0_178 = arith.constant 0 : index
    %c0_179 = arith.constant 0 : index
    %187 = vector.load %arg2[%c2_177, %c0_178, %c0_179] : memref<4x256x128xbf16, #tpu.memory_space<vmem>>, vector<1x256x128xbf16>
    %188 = vector.shape_cast %187 : vector<1x256x128xbf16> to vector<256x128xbf16>
    %cst_180 = arith.constant dense<0.000000e+00> : vector<8x128xf32>
    %189 = tpu.matmul %186, %188, %cst_180 {dimension_numbers = #tpu.dot_dimension_numbers<[1], [0], [0], [1], [0, 0, 1, 1], [], []>} : vector<8x256xbf16>, vector<256x128xbf16>, vector<8x128xf32> -> vector<8x128xf32>
    %190 = arith.addf %184, %189 : vector<8x128xf32>
    %c13 = arith.constant 13 : index
    %c0_181 = arith.constant 0 : index
    %c0_182 = arith.constant 0 : index
    %191 = vector.load %arg1[%c13, %c0_181, %c0_182] : memref<36x8x256xbf16, #tpu.memory_space<vmem>>, vector<1x8x256xbf16>
    %192 = vector.shape_cast %191 : vector<1x8x256xbf16> to vector<8x256xbf16>
    %c3_183 = arith.constant 3 : index
    %c0_184 = arith.constant 0 : index
    %c0_185 = arith.constant 0 : index
    %193 = vector.load %arg2[%c3_183, %c0_184, %c0_185] : memref<4x256x128xbf16, #tpu.memory_space<vmem>>, vector<1x256x128xbf16>
    %194 = vector.shape_cast %193 : vector<1x256x128xbf16> to vector<256x128xbf16>
    %cst_186 = arith.constant dense<0.000000e+00> : vector<8x128xf32>
    %195 = tpu.matmul %192, %194, %cst_186 {dimension_numbers = #tpu.dot_dimension_numbers<[1], [0], [0], [1], [0, 0, 1, 1], [], []>} : vector<8x256xbf16>, vector<256x128xbf16>, vector<8x128xf32> -> vector<8x128xf32>
    %196 = arith.addf %190, %195 : vector<8x128xf32>
    %197 = vector.broadcast %0 : vector<1x128xf32> to vector<8x128xf32>
    %198 = arith.addf %196, %197 : vector<8x128xf32>
    %cst_187 = arith.constant 0.000000e+00 : f32
    %199 = vector.broadcast %cst_187 : f32 to vector<8x128xf32>
    %200 = arith.maximumf %198, %199 : vector<8x128xf32>
    %201 = arith.truncf %200 : vector<8x128xf32> to vector<8x128xbf16>
    %c5_188 = arith.constant 5 : index
    %c0_189 = arith.constant 0 : index
    %c0_190 = arith.constant 0 : index
    %202 = vector.load %arg4[%c5_188, %c0_189, %c0_190] : memref<25x128x256xbf16, #tpu.memory_space<vmem>>, vector<1x128x256xbf16>
    %203 = vector.shape_cast %202 : vector<1x128x256xbf16> to vector<128x256xbf16>
    %cst_191 = arith.constant dense<0.000000e+00> : vector<8x256xf32>
    %204 = tpu.matmul %201, %203, %cst_191 {dimension_numbers = #tpu.dot_dimension_numbers<[1], [0], [0], [1], [0, 0, 1, 1], [], []>} : vector<8x128xbf16>, vector<128x256xbf16>, vector<8x256xf32> -> vector<8x256xf32>
    %205 = arith.addf %171, %204 : vector<8x256xf32>
    %cst_192 = arith.constant 0.000000e+00 : f32
    %206 = vector.broadcast %cst_192 : f32 to vector<8x128xf32>
    %c7_193 = arith.constant 7 : index
    %c0_194 = arith.constant 0 : index
    %c0_195 = arith.constant 0 : index
    %207 = vector.load %arg1[%c7_193, %c0_194, %c0_195] : memref<36x8x256xbf16, #tpu.memory_space<vmem>>, vector<1x8x256xbf16>
    %208 = vector.shape_cast %207 : vector<1x8x256xbf16> to vector<8x256xbf16>
    %c0_196 = arith.constant 0 : index
    %c0_197 = arith.constant 0 : index
    %c0_198 = arith.constant 0 : index
    %209 = vector.load %arg2[%c0_196, %c0_197, %c0_198] : memref<4x256x128xbf16, #tpu.memory_space<vmem>>, vector<1x256x128xbf16>
    %210 = vector.shape_cast %209 : vector<1x256x128xbf16> to vector<256x128xbf16>
    %cst_199 = arith.constant dense<0.000000e+00> : vector<8x128xf32>
    %211 = tpu.matmul %208, %210, %cst_199 {dimension_numbers = #tpu.dot_dimension_numbers<[1], [0], [0], [1], [0, 0, 1, 1], [], []>} : vector<8x256xbf16>, vector<256x128xbf16>, vector<8x128xf32> -> vector<8x128xf32>
    %212 = arith.addf %206, %211 : vector<8x128xf32>
    %c8_200 = arith.constant 8 : index
    %c0_201 = arith.constant 0 : index
    %c0_202 = arith.constant 0 : index
    %213 = vector.load %arg1[%c8_200, %c0_201, %c0_202] : memref<36x8x256xbf16, #tpu.memory_space<vmem>>, vector<1x8x256xbf16>
    %214 = vector.shape_cast %213 : vector<1x8x256xbf16> to vector<8x256xbf16>
    %c1_203 = arith.constant 1 : index
    %c0_204 = arith.constant 0 : index
    %c0_205 = arith.constant 0 : index
    %215 = vector.load %arg2[%c1_203, %c0_204, %c0_205] : memref<4x256x128xbf16, #tpu.memory_space<vmem>>, vector<1x256x128xbf16>
    %216 = vector.shape_cast %215 : vector<1x256x128xbf16> to vector<256x128xbf16>
    %cst_206 = arith.constant dense<0.000000e+00> : vector<8x128xf32>
    %217 = tpu.matmul %214, %216, %cst_206 {dimension_numbers = #tpu.dot_dimension_numbers<[1], [0], [0], [1], [0, 0, 1, 1], [], []>} : vector<8x256xbf16>, vector<256x128xbf16>, vector<8x128xf32> -> vector<8x128xf32>
    %218 = arith.addf %212, %217 : vector<8x128xf32>
    %c13_207 = arith.constant 13 : index
    %c0_208 = arith.constant 0 : index
    %c0_209 = arith.constant 0 : index
    %219 = vector.load %arg1[%c13_207, %c0_208, %c0_209] : memref<36x8x256xbf16, #tpu.memory_space<vmem>>, vector<1x8x256xbf16>
    %220 = vector.shape_cast %219 : vector<1x8x256xbf16> to vector<8x256xbf16>
    %c2_210 = arith.constant 2 : index
    %c0_211 = arith.constant 0 : index
    %c0_212 = arith.constant 0 : index
    %221 = vector.load %arg2[%c2_210, %c0_211, %c0_212] : memref<4x256x128xbf16, #tpu.memory_space<vmem>>, vector<1x256x128xbf16>
    %222 = vector.shape_cast %221 : vector<1x256x128xbf16> to vector<256x128xbf16>
    %cst_213 = arith.constant dense<0.000000e+00> : vector<8x128xf32>
    %223 = tpu.matmul %220, %222, %cst_213 {dimension_numbers = #tpu.dot_dimension_numbers<[1], [0], [0], [1], [0, 0, 1, 1], [], []>} : vector<8x256xbf16>, vector<256x128xbf16>, vector<8x128xf32> -> vector<8x128xf32>
    %224 = arith.addf %218, %223 : vector<8x128xf32>
    %c14 = arith.constant 14 : index
    %c0_214 = arith.constant 0 : index
    %c0_215 = arith.constant 0 : index
    %225 = vector.load %arg1[%c14, %c0_214, %c0_215] : memref<36x8x256xbf16, #tpu.memory_space<vmem>>, vector<1x8x256xbf16>
    %226 = vector.shape_cast %225 : vector<1x8x256xbf16> to vector<8x256xbf16>
    %c3_216 = arith.constant 3 : index
    %c0_217 = arith.constant 0 : index
    %c0_218 = arith.constant 0 : index
    %227 = vector.load %arg2[%c3_216, %c0_217, %c0_218] : memref<4x256x128xbf16, #tpu.memory_space<vmem>>, vector<1x256x128xbf16>
    %228 = vector.shape_cast %227 : vector<1x256x128xbf16> to vector<256x128xbf16>
    %cst_219 = arith.constant dense<0.000000e+00> : vector<8x128xf32>
    %229 = tpu.matmul %226, %228, %cst_219 {dimension_numbers = #tpu.dot_dimension_numbers<[1], [0], [0], [1], [0, 0, 1, 1], [], []>} : vector<8x256xbf16>, vector<256x128xbf16>, vector<8x128xf32> -> vector<8x128xf32>
    %230 = arith.addf %224, %229 : vector<8x128xf32>
    %231 = vector.broadcast %0 : vector<1x128xf32> to vector<8x128xf32>
    %232 = arith.addf %230, %231 : vector<8x128xf32>
    %cst_220 = arith.constant 0.000000e+00 : f32
    %233 = vector.broadcast %cst_220 : f32 to vector<8x128xf32>
    %234 = arith.maximumf %232, %233 : vector<8x128xf32>
    %235 = arith.truncf %234 : vector<8x128xf32> to vector<8x128xbf16>
    %c6_221 = arith.constant 6 : index
    %c0_222 = arith.constant 0 : index
    %c0_223 = arith.constant 0 : index
    %236 = vector.load %arg4[%c6_221, %c0_222, %c0_223] : memref<25x128x256xbf16, #tpu.memory_space<vmem>>, vector<1x128x256xbf16>
    %237 = vector.shape_cast %236 : vector<1x128x256xbf16> to vector<128x256xbf16>
    %cst_224 = arith.constant dense<0.000000e+00> : vector<8x256xf32>
    %238 = tpu.matmul %235, %237, %cst_224 {dimension_numbers = #tpu.dot_dimension_numbers<[1], [0], [0], [1], [0, 0, 1, 1], [], []>} : vector<8x128xbf16>, vector<128x256xbf16>, vector<8x256xf32> -> vector<8x256xf32>
    %239 = arith.addf %205, %238 : vector<8x256xf32>
    %cst_225 = arith.constant 0.000000e+00 : f32
    %240 = vector.broadcast %cst_225 : f32 to vector<8x128xf32>
    %c8_226 = arith.constant 8 : index
    %c0_227 = arith.constant 0 : index
    %c0_228 = arith.constant 0 : index
    %241 = vector.load %arg1[%c8_226, %c0_227, %c0_228] : memref<36x8x256xbf16, #tpu.memory_space<vmem>>, vector<1x8x256xbf16>
    %242 = vector.shape_cast %241 : vector<1x8x256xbf16> to vector<8x256xbf16>
    %c0_229 = arith.constant 0 : index
    %c0_230 = arith.constant 0 : index
    %c0_231 = arith.constant 0 : index
    %243 = vector.load %arg2[%c0_229, %c0_230, %c0_231] : memref<4x256x128xbf16, #tpu.memory_space<vmem>>, vector<1x256x128xbf16>
    %244 = vector.shape_cast %243 : vector<1x256x128xbf16> to vector<256x128xbf16>
    %cst_232 = arith.constant dense<0.000000e+00> : vector<8x128xf32>
    %245 = tpu.matmul %242, %244, %cst_232 {dimension_numbers = #tpu.dot_dimension_numbers<[1], [0], [0], [1], [0, 0, 1, 1], [], []>} : vector<8x256xbf16>, vector<256x128xbf16>, vector<8x128xf32> -> vector<8x128xf32>
    %246 = arith.addf %240, %245 : vector<8x128xf32>
    %c9_233 = arith.constant 9 : index
    %c0_234 = arith.constant 0 : index
    %c0_235 = arith.constant 0 : index
    %247 = vector.load %arg1[%c9_233, %c0_234, %c0_235] : memref<36x8x256xbf16, #tpu.memory_space<vmem>>, vector<1x8x256xbf16>
    %248 = vector.shape_cast %247 : vector<1x8x256xbf16> to vector<8x256xbf16>
    %c1_236 = arith.constant 1 : index
    %c0_237 = arith.constant 0 : index
    %c0_238 = arith.constant 0 : index
    %249 = vector.load %arg2[%c1_236, %c0_237, %c0_238] : memref<4x256x128xbf16, #tpu.memory_space<vmem>>, vector<1x256x128xbf16>
    %250 = vector.shape_cast %249 : vector<1x256x128xbf16> to vector<256x128xbf16>
    %cst_239 = arith.constant dense<0.000000e+00> : vector<8x128xf32>
    %251 = tpu.matmul %248, %250, %cst_239 {dimension_numbers = #tpu.dot_dimension_numbers<[1], [0], [0], [1], [0, 0, 1, 1], [], []>} : vector<8x256xbf16>, vector<256x128xbf16>, vector<8x128xf32> -> vector<8x128xf32>
    %252 = arith.addf %246, %251 : vector<8x128xf32>
    %c14_240 = arith.constant 14 : index
    %c0_241 = arith.constant 0 : index
    %c0_242 = arith.constant 0 : index
    %253 = vector.load %arg1[%c14_240, %c0_241, %c0_242] : memref<36x8x256xbf16, #tpu.memory_space<vmem>>, vector<1x8x256xbf16>
    %254 = vector.shape_cast %253 : vector<1x8x256xbf16> to vector<8x256xbf16>
    %c2_243 = arith.constant 2 : index
    %c0_244 = arith.constant 0 : index
    %c0_245 = arith.constant 0 : index
    %255 = vector.load %arg2[%c2_243, %c0_244, %c0_245] : memref<4x256x128xbf16, #tpu.memory_space<vmem>>, vector<1x256x128xbf16>
    %256 = vector.shape_cast %255 : vector<1x256x128xbf16> to vector<256x128xbf16>
    %cst_246 = arith.constant dense<0.000000e+00> : vector<8x128xf32>
    %257 = tpu.matmul %254, %256, %cst_246 {dimension_numbers = #tpu.dot_dimension_numbers<[1], [0], [0], [1], [0, 0, 1, 1], [], []>} : vector<8x256xbf16>, vector<256x128xbf16>, vector<8x128xf32> -> vector<8x128xf32>
    %258 = arith.addf %252, %257 : vector<8x128xf32>
    %c15 = arith.constant 15 : index
    %c0_247 = arith.constant 0 : index
    %c0_248 = arith.constant 0 : index
    %259 = vector.load %arg1[%c15, %c0_247, %c0_248] : memref<36x8x256xbf16, #tpu.memory_space<vmem>>, vector<1x8x256xbf16>
    %260 = vector.shape_cast %259 : vector<1x8x256xbf16> to vector<8x256xbf16>
    %c3_249 = arith.constant 3 : index
    %c0_250 = arith.constant 0 : index
    %c0_251 = arith.constant 0 : index
    %261 = vector.load %arg2[%c3_249, %c0_250, %c0_251] : memref<4x256x128xbf16, #tpu.memory_space<vmem>>, vector<1x256x128xbf16>
    %262 = vector.shape_cast %261 : vector<1x256x128xbf16> to vector<256x128xbf16>
    %cst_252 = arith.constant dense<0.000000e+00> : vector<8x128xf32>
    %263 = tpu.matmul %260, %262, %cst_252 {dimension_numbers = #tpu.dot_dimension_numbers<[1], [0], [0], [1], [0, 0, 1, 1], [], []>} : vector<8x256xbf16>, vector<256x128xbf16>, vector<8x128xf32> -> vector<8x128xf32>
    %264 = arith.addf %258, %263 : vector<8x128xf32>
    %265 = vector.broadcast %0 : vector<1x128xf32> to vector<8x128xf32>
    %266 = arith.addf %264, %265 : vector<8x128xf32>
    %cst_253 = arith.constant 0.000000e+00 : f32
    %267 = vector.broadcast %cst_253 : f32 to vector<8x128xf32>
    %268 = arith.maximumf %266, %267 : vector<8x128xf32>
    %269 = arith.truncf %268 : vector<8x128xf32> to vector<8x128xbf16>
    %c7_254 = arith.constant 7 : index
    %c0_255 = arith.constant 0 : index
    %c0_256 = arith.constant 0 : index
    %270 = vector.load %arg4[%c7_254, %c0_255, %c0_256] : memref<25x128x256xbf16, #tpu.memory_space<vmem>>, vector<1x128x256xbf16>
    %271 = vector.shape_cast %270 : vector<1x128x256xbf16> to vector<128x256xbf16>
    %cst_257 = arith.constant dense<0.000000e+00> : vector<8x256xf32>
    %272 = tpu.matmul %269, %271, %cst_257 {dimension_numbers = #tpu.dot_dimension_numbers<[1], [0], [0], [1], [0, 0, 1, 1], [], []>} : vector<8x128xbf16>, vector<128x256xbf16>, vector<8x256xf32> -> vector<8x256xf32>
    %273 = arith.addf %239, %272 : vector<8x256xf32>
    %cst_258 = arith.constant 0.000000e+00 : f32
    %274 = vector.broadcast %cst_258 : f32 to vector<8x128xf32>
    %c9_259 = arith.constant 9 : index
    %c0_260 = arith.constant 0 : index
    %c0_261 = arith.constant 0 : index
    %275 = vector.load %arg1[%c9_259, %c0_260, %c0_261] : memref<36x8x256xbf16, #tpu.memory_space<vmem>>, vector<1x8x256xbf16>
    %276 = vector.shape_cast %275 : vector<1x8x256xbf16> to vector<8x256xbf16>
    %c0_262 = arith.constant 0 : index
    %c0_263 = arith.constant 0 : index
    %c0_264 = arith.constant 0 : index
    %277 = vector.load %arg2[%c0_262, %c0_263, %c0_264] : memref<4x256x128xbf16, #tpu.memory_space<vmem>>, vector<1x256x128xbf16>
    %278 = vector.shape_cast %277 : vector<1x256x128xbf16> to vector<256x128xbf16>
    %cst_265 = arith.constant dense<0.000000e+00> : vector<8x128xf32>
    %279 = tpu.matmul %276, %278, %cst_265 {dimension_numbers = #tpu.dot_dimension_numbers<[1], [0], [0], [1], [0, 0, 1, 1], [], []>} : vector<8x256xbf16>, vector<256x128xbf16>, vector<8x128xf32> -> vector<8x128xf32>
    %280 = arith.addf %274, %279 : vector<8x128xf32>
    %c10_266 = arith.constant 10 : index
    %c0_267 = arith.constant 0 : index
    %c0_268 = arith.constant 0 : index
    %281 = vector.load %arg1[%c10_266, %c0_267, %c0_268] : memref<36x8x256xbf16, #tpu.memory_space<vmem>>, vector<1x8x256xbf16>
    %282 = vector.shape_cast %281 : vector<1x8x256xbf16> to vector<8x256xbf16>
    %c1_269 = arith.constant 1 : index
    %c0_270 = arith.constant 0 : index
    %c0_271 = arith.constant 0 : index
    %283 = vector.load %arg2[%c1_269, %c0_270, %c0_271] : memref<4x256x128xbf16, #tpu.memory_space<vmem>>, vector<1x256x128xbf16>
    %284 = vector.shape_cast %283 : vector<1x256x128xbf16> to vector<256x128xbf16>
    %cst_272 = arith.constant dense<0.000000e+00> : vector<8x128xf32>
    %285 = tpu.matmul %282, %284, %cst_272 {dimension_numbers = #tpu.dot_dimension_numbers<[1], [0], [0], [1], [0, 0, 1, 1], [], []>} : vector<8x256xbf16>, vector<256x128xbf16>, vector<8x128xf32> -> vector<8x128xf32>
    %286 = arith.addf %280, %285 : vector<8x128xf32>
    %c15_273 = arith.constant 15 : index
    %c0_274 = arith.constant 0 : index
    %c0_275 = arith.constant 0 : index
    %287 = vector.load %arg1[%c15_273, %c0_274, %c0_275] : memref<36x8x256xbf16, #tpu.memory_space<vmem>>, vector<1x8x256xbf16>
    %288 = vector.shape_cast %287 : vector<1x8x256xbf16> to vector<8x256xbf16>
    %c2_276 = arith.constant 2 : index
    %c0_277 = arith.constant 0 : index
    %c0_278 = arith.constant 0 : index
    %289 = vector.load %arg2[%c2_276, %c0_277, %c0_278] : memref<4x256x128xbf16, #tpu.memory_space<vmem>>, vector<1x256x128xbf16>
    %290 = vector.shape_cast %289 : vector<1x256x128xbf16> to vector<256x128xbf16>
    %cst_279 = arith.constant dense<0.000000e+00> : vector<8x128xf32>
    %291 = tpu.matmul %288, %290, %cst_279 {dimension_numbers = #tpu.dot_dimension_numbers<[1], [0], [0], [1], [0, 0, 1, 1], [], []>} : vector<8x256xbf16>, vector<256x128xbf16>, vector<8x128xf32> -> vector<8x128xf32>
    %292 = arith.addf %286, %291 : vector<8x128xf32>
    %c16 = arith.constant 16 : index
    %c0_280 = arith.constant 0 : index
    %c0_281 = arith.constant 0 : index
    %293 = vector.load %arg1[%c16, %c0_280, %c0_281] : memref<36x8x256xbf16, #tpu.memory_space<vmem>>, vector<1x8x256xbf16>
    %294 = vector.shape_cast %293 : vector<1x8x256xbf16> to vector<8x256xbf16>
    %c3_282 = arith.constant 3 : index
    %c0_283 = arith.constant 0 : index
    %c0_284 = arith.constant 0 : index
    %295 = vector.load %arg2[%c3_282, %c0_283, %c0_284] : memref<4x256x128xbf16, #tpu.memory_space<vmem>>, vector<1x256x128xbf16>
    %296 = vector.shape_cast %295 : vector<1x256x128xbf16> to vector<256x128xbf16>
    %cst_285 = arith.constant dense<0.000000e+00> : vector<8x128xf32>
    %297 = tpu.matmul %294, %296, %cst_285 {dimension_numbers = #tpu.dot_dimension_numbers<[1], [0], [0], [1], [0, 0, 1, 1], [], []>} : vector<8x256xbf16>, vector<256x128xbf16>, vector<8x128xf32> -> vector<8x128xf32>
    %298 = arith.addf %292, %297 : vector<8x128xf32>
    %299 = vector.broadcast %0 : vector<1x128xf32> to vector<8x128xf32>
    %300 = arith.addf %298, %299 : vector<8x128xf32>
    %cst_286 = arith.constant 0.000000e+00 : f32
    %301 = vector.broadcast %cst_286 : f32 to vector<8x128xf32>
    %302 = arith.maximumf %300, %301 : vector<8x128xf32>
    %303 = arith.truncf %302 : vector<8x128xf32> to vector<8x128xbf16>
    %c8_287 = arith.constant 8 : index
    %c0_288 = arith.constant 0 : index
    %c0_289 = arith.constant 0 : index
    %304 = vector.load %arg4[%c8_287, %c0_288, %c0_289] : memref<25x128x256xbf16, #tpu.memory_space<vmem>>, vector<1x128x256xbf16>
    %305 = vector.shape_cast %304 : vector<1x128x256xbf16> to vector<128x256xbf16>
    %cst_290 = arith.constant dense<0.000000e+00> : vector<8x256xf32>
    %306 = tpu.matmul %303, %305, %cst_290 {dimension_numbers = #tpu.dot_dimension_numbers<[1], [0], [0], [1], [0, 0, 1, 1], [], []>} : vector<8x128xbf16>, vector<128x256xbf16>, vector<8x256xf32> -> vector<8x256xf32>
    %307 = arith.addf %273, %306 : vector<8x256xf32>
    %cst_291 = arith.constant 0.000000e+00 : f32
    %308 = vector.broadcast %cst_291 : f32 to vector<8x128xf32>
    %c10_292 = arith.constant 10 : index
    %c0_293 = arith.constant 0 : index
    %c0_294 = arith.constant 0 : index
    %309 = vector.load %arg1[%c10_292, %c0_293, %c0_294] : memref<36x8x256xbf16, #tpu.memory_space<vmem>>, vector<1x8x256xbf16>
    %310 = vector.shape_cast %309 : vector<1x8x256xbf16> to vector<8x256xbf16>
    %c0_295 = arith.constant 0 : index
    %c0_296 = arith.constant 0 : index
    %c0_297 = arith.constant 0 : index
    %311 = vector.load %arg2[%c0_295, %c0_296, %c0_297] : memref<4x256x128xbf16, #tpu.memory_space<vmem>>, vector<1x256x128xbf16>
    %312 = vector.shape_cast %311 : vector<1x256x128xbf16> to vector<256x128xbf16>
    %cst_298 = arith.constant dense<0.000000e+00> : vector<8x128xf32>
    %313 = tpu.matmul %310, %312, %cst_298 {dimension_numbers = #tpu.dot_dimension_numbers<[1], [0], [0], [1], [0, 0, 1, 1], [], []>} : vector<8x256xbf16>, vector<256x128xbf16>, vector<8x128xf32> -> vector<8x128xf32>
    %314 = arith.addf %308, %313 : vector<8x128xf32>
    %c11_299 = arith.constant 11 : index
    %c0_300 = arith.constant 0 : index
    %c0_301 = arith.constant 0 : index
    %315 = vector.load %arg1[%c11_299, %c0_300, %c0_301] : memref<36x8x256xbf16, #tpu.memory_space<vmem>>, vector<1x8x256xbf16>
    %316 = vector.shape_cast %315 : vector<1x8x256xbf16> to vector<8x256xbf16>
    %c1_302 = arith.constant 1 : index
    %c0_303 = arith.constant 0 : index
    %c0_304 = arith.constant 0 : index
    %317 = vector.load %arg2[%c1_302, %c0_303, %c0_304] : memref<4x256x128xbf16, #tpu.memory_space<vmem>>, vector<1x256x128xbf16>
    %318 = vector.shape_cast %317 : vector<1x256x128xbf16> to vector<256x128xbf16>
    %cst_305 = arith.constant dense<0.000000e+00> : vector<8x128xf32>
    %319 = tpu.matmul %316, %318, %cst_305 {dimension_numbers = #tpu.dot_dimension_numbers<[1], [0], [0], [1], [0, 0, 1, 1], [], []>} : vector<8x256xbf16>, vector<256x128xbf16>, vector<8x128xf32> -> vector<8x128xf32>
    %320 = arith.addf %314, %319 : vector<8x128xf32>
    %c16_306 = arith.constant 16 : index
    %c0_307 = arith.constant 0 : index
    %c0_308 = arith.constant 0 : index
    %321 = vector.load %arg1[%c16_306, %c0_307, %c0_308] : memref<36x8x256xbf16, #tpu.memory_space<vmem>>, vector<1x8x256xbf16>
    %322 = vector.shape_cast %321 : vector<1x8x256xbf16> to vector<8x256xbf16>
    %c2_309 = arith.constant 2 : index
    %c0_310 = arith.constant 0 : index
    %c0_311 = arith.constant 0 : index
    %323 = vector.load %arg2[%c2_309, %c0_310, %c0_311] : memref<4x256x128xbf16, #tpu.memory_space<vmem>>, vector<1x256x128xbf16>
    %324 = vector.shape_cast %323 : vector<1x256x128xbf16> to vector<256x128xbf16>
    %cst_312 = arith.constant dense<0.000000e+00> : vector<8x128xf32>
    %325 = tpu.matmul %322, %324, %cst_312 {dimension_numbers = #tpu.dot_dimension_numbers<[1], [0], [0], [1], [0, 0, 1, 1], [], []>} : vector<8x256xbf16>, vector<256x128xbf16>, vector<8x128xf32> -> vector<8x128xf32>
    %326 = arith.addf %320, %325 : vector<8x128xf32>
    %c17 = arith.constant 17 : index
    %c0_313 = arith.constant 0 : index
    %c0_314 = arith.constant 0 : index
    %327 = vector.load %arg1[%c17, %c0_313, %c0_314] : memref<36x8x256xbf16, #tpu.memory_space<vmem>>, vector<1x8x256xbf16>
    %328 = vector.shape_cast %327 : vector<1x8x256xbf16> to vector<8x256xbf16>
    %c3_315 = arith.constant 3 : index
    %c0_316 = arith.constant 0 : index
    %c0_317 = arith.constant 0 : index
    %329 = vector.load %arg2[%c3_315, %c0_316, %c0_317] : memref<4x256x128xbf16, #tpu.memory_space<vmem>>, vector<1x256x128xbf16>
    %330 = vector.shape_cast %329 : vector<1x256x128xbf16> to vector<256x128xbf16>
    %cst_318 = arith.constant dense<0.000000e+00> : vector<8x128xf32>
    %331 = tpu.matmul %328, %330, %cst_318 {dimension_numbers = #tpu.dot_dimension_numbers<[1], [0], [0], [1], [0, 0, 1, 1], [], []>} : vector<8x256xbf16>, vector<256x128xbf16>, vector<8x128xf32> -> vector<8x128xf32>
    %332 = arith.addf %326, %331 : vector<8x128xf32>
    %333 = vector.broadcast %0 : vector<1x128xf32> to vector<8x128xf32>
    %334 = arith.addf %332, %333 : vector<8x128xf32>
    %cst_319 = arith.constant 0.000000e+00 : f32
    %335 = vector.broadcast %cst_319 : f32 to vector<8x128xf32>
    %336 = arith.maximumf %334, %335 : vector<8x128xf32>
    %337 = arith.truncf %336 : vector<8x128xf32> to vector<8x128xbf16>
    %c9_320 = arith.constant 9 : index
    %c0_321 = arith.constant 0 : index
    %c0_322 = arith.constant 0 : index
    %338 = vector.load %arg4[%c9_320, %c0_321, %c0_322] : memref<25x128x256xbf16, #tpu.memory_space<vmem>>, vector<1x128x256xbf16>
    %339 = vector.shape_cast %338 : vector<1x128x256xbf16> to vector<128x256xbf16>
    %cst_323 = arith.constant dense<0.000000e+00> : vector<8x256xf32>
    %340 = tpu.matmul %337, %339, %cst_323 {dimension_numbers = #tpu.dot_dimension_numbers<[1], [0], [0], [1], [0, 0, 1, 1], [], []>} : vector<8x128xbf16>, vector<128x256xbf16>, vector<8x256xf32> -> vector<8x256xf32>
    %341 = arith.addf %307, %340 : vector<8x256xf32>
    %cst_324 = arith.constant 0.000000e+00 : f32
    %342 = vector.broadcast %cst_324 : f32 to vector<8x128xf32>
    %c12_325 = arith.constant 12 : index
    %c0_326 = arith.constant 0 : index
    %c0_327 = arith.constant 0 : index
    %343 = vector.load %arg1[%c12_325, %c0_326, %c0_327] : memref<36x8x256xbf16, #tpu.memory_space<vmem>>, vector<1x8x256xbf16>
    %344 = vector.shape_cast %343 : vector<1x8x256xbf16> to vector<8x256xbf16>
    %c0_328 = arith.constant 0 : index
    %c0_329 = arith.constant 0 : index
    %c0_330 = arith.constant 0 : index
    %345 = vector.load %arg2[%c0_328, %c0_329, %c0_330] : memref<4x256x128xbf16, #tpu.memory_space<vmem>>, vector<1x256x128xbf16>
    %346 = vector.shape_cast %345 : vector<1x256x128xbf16> to vector<256x128xbf16>
    %cst_331 = arith.constant dense<0.000000e+00> : vector<8x128xf32>
    %347 = tpu.matmul %344, %346, %cst_331 {dimension_numbers = #tpu.dot_dimension_numbers<[1], [0], [0], [1], [0, 0, 1, 1], [], []>} : vector<8x256xbf16>, vector<256x128xbf16>, vector<8x128xf32> -> vector<8x128xf32>
    %348 = arith.addf %342, %347 : vector<8x128xf32>
    %c13_332 = arith.constant 13 : index
    %c0_333 = arith.constant 0 : index
    %c0_334 = arith.constant 0 : index
    %349 = vector.load %arg1[%c13_332, %c0_333, %c0_334] : memref<36x8x256xbf16, #tpu.memory_space<vmem>>, vector<1x8x256xbf16>
    %350 = vector.shape_cast %349 : vector<1x8x256xbf16> to vector<8x256xbf16>
    %c1_335 = arith.constant 1 : index
    %c0_336 = arith.constant 0 : index
    %c0_337 = arith.constant 0 : index
    %351 = vector.load %arg2[%c1_335, %c0_336, %c0_337] : memref<4x256x128xbf16, #tpu.memory_space<vmem>>, vector<1x256x128xbf16>
    %352 = vector.shape_cast %351 : vector<1x256x128xbf16> to vector<256x128xbf16>
    %cst_338 = arith.constant dense<0.000000e+00> : vector<8x128xf32>
    %353 = tpu.matmul %350, %352, %cst_338 {dimension_numbers = #tpu.dot_dimension_numbers<[1], [0], [0], [1], [0, 0, 1, 1], [], []>} : vector<8x256xbf16>, vector<256x128xbf16>, vector<8x128xf32> -> vector<8x128xf32>
    %354 = arith.addf %348, %353 : vector<8x128xf32>
    %c18 = arith.constant 18 : index
    %c0_339 = arith.constant 0 : index
    %c0_340 = arith.constant 0 : index
    %355 = vector.load %arg1[%c18, %c0_339, %c0_340] : memref<36x8x256xbf16, #tpu.memory_space<vmem>>, vector<1x8x256xbf16>
    %356 = vector.shape_cast %355 : vector<1x8x256xbf16> to vector<8x256xbf16>
    %c2_341 = arith.constant 2 : index
    %c0_342 = arith.constant 0 : index
    %c0_343 = arith.constant 0 : index
    %357 = vector.load %arg2[%c2_341, %c0_342, %c0_343] : memref<4x256x128xbf16, #tpu.memory_space<vmem>>, vector<1x256x128xbf16>
    %358 = vector.shape_cast %357 : vector<1x256x128xbf16> to vector<256x128xbf16>
    %cst_344 = arith.constant dense<0.000000e+00> : vector<8x128xf32>
    %359 = tpu.matmul %356, %358, %cst_344 {dimension_numbers = #tpu.dot_dimension_numbers<[1], [0], [0], [1], [0, 0, 1, 1], [], []>} : vector<8x256xbf16>, vector<256x128xbf16>, vector<8x128xf32> -> vector<8x128xf32>
    %360 = arith.addf %354, %359 : vector<8x128xf32>
    %c19 = arith.constant 19 : index
    %c0_345 = arith.constant 0 : index
    %c0_346 = arith.constant 0 : index
    %361 = vector.load %arg1[%c19, %c0_345, %c0_346] : memref<36x8x256xbf16, #tpu.memory_space<vmem>>, vector<1x8x256xbf16>
    %362 = vector.shape_cast %361 : vector<1x8x256xbf16> to vector<8x256xbf16>
    %c3_347 = arith.constant 3 : index
    %c0_348 = arith.constant 0 : index
    %c0_349 = arith.constant 0 : index
    %363 = vector.load %arg2[%c3_347, %c0_348, %c0_349] : memref<4x256x128xbf16, #tpu.memory_space<vmem>>, vector<1x256x128xbf16>
    %364 = vector.shape_cast %363 : vector<1x256x128xbf16> to vector<256x128xbf16>
    %cst_350 = arith.constant dense<0.000000e+00> : vector<8x128xf32>
    %365 = tpu.matmul %362, %364, %cst_350 {dimension_numbers = #tpu.dot_dimension_numbers<[1], [0], [0], [1], [0, 0, 1, 1], [], []>} : vector<8x256xbf16>, vector<256x128xbf16>, vector<8x128xf32> -> vector<8x128xf32>
    %366 = arith.addf %360, %365 : vector<8x128xf32>
    %367 = vector.broadcast %0 : vector<1x128xf32> to vector<8x128xf32>
    %368 = arith.addf %366, %367 : vector<8x128xf32>
    %cst_351 = arith.constant 0.000000e+00 : f32
    %369 = vector.broadcast %cst_351 : f32 to vector<8x128xf32>
    %370 = arith.maximumf %368, %369 : vector<8x128xf32>
    %371 = arith.truncf %370 : vector<8x128xf32> to vector<8x128xbf16>
    %c10_352 = arith.constant 10 : index
    %c0_353 = arith.constant 0 : index
    %c0_354 = arith.constant 0 : index
    %372 = vector.load %arg4[%c10_352, %c0_353, %c0_354] : memref<25x128x256xbf16, #tpu.memory_space<vmem>>, vector<1x128x256xbf16>
    %373 = vector.shape_cast %372 : vector<1x128x256xbf16> to vector<128x256xbf16>
    %cst_355 = arith.constant dense<0.000000e+00> : vector<8x256xf32>
    %374 = tpu.matmul %371, %373, %cst_355 {dimension_numbers = #tpu.dot_dimension_numbers<[1], [0], [0], [1], [0, 0, 1, 1], [], []>} : vector<8x128xbf16>, vector<128x256xbf16>, vector<8x256xf32> -> vector<8x256xf32>
    %375 = arith.addf %341, %374 : vector<8x256xf32>
    %cst_356 = arith.constant 0.000000e+00 : f32
    %376 = vector.broadcast %cst_356 : f32 to vector<8x128xf32>
    %c13_357 = arith.constant 13 : index
    %c0_358 = arith.constant 0 : index
    %c0_359 = arith.constant 0 : index
    %377 = vector.load %arg1[%c13_357, %c0_358, %c0_359] : memref<36x8x256xbf16, #tpu.memory_space<vmem>>, vector<1x8x256xbf16>
    %378 = vector.shape_cast %377 : vector<1x8x256xbf16> to vector<8x256xbf16>
    %c0_360 = arith.constant 0 : index
    %c0_361 = arith.constant 0 : index
    %c0_362 = arith.constant 0 : index
    %379 = vector.load %arg2[%c0_360, %c0_361, %c0_362] : memref<4x256x128xbf16, #tpu.memory_space<vmem>>, vector<1x256x128xbf16>
    %380 = vector.shape_cast %379 : vector<1x256x128xbf16> to vector<256x128xbf16>
    %cst_363 = arith.constant dense<0.000000e+00> : vector<8x128xf32>
    %381 = tpu.matmul %378, %380, %cst_363 {dimension_numbers = #tpu.dot_dimension_numbers<[1], [0], [0], [1], [0, 0, 1, 1], [], []>} : vector<8x256xbf16>, vector<256x128xbf16>, vector<8x128xf32> -> vector<8x128xf32>
    %382 = arith.addf %376, %381 : vector<8x128xf32>
    %c14_364 = arith.constant 14 : index
    %c0_365 = arith.constant 0 : index
    %c0_366 = arith.constant 0 : index
    %383 = vector.load %arg1[%c14_364, %c0_365, %c0_366] : memref<36x8x256xbf16, #tpu.memory_space<vmem>>, vector<1x8x256xbf16>
    %384 = vector.shape_cast %383 : vector<1x8x256xbf16> to vector<8x256xbf16>
    %c1_367 = arith.constant 1 : index
    %c0_368 = arith.constant 0 : index
    %c0_369 = arith.constant 0 : index
    %385 = vector.load %arg2[%c1_367, %c0_368, %c0_369] : memref<4x256x128xbf16, #tpu.memory_space<vmem>>, vector<1x256x128xbf16>
    %386 = vector.shape_cast %385 : vector<1x256x128xbf16> to vector<256x128xbf16>
    %cst_370 = arith.constant dense<0.000000e+00> : vector<8x128xf32>
    %387 = tpu.matmul %384, %386, %cst_370 {dimension_numbers = #tpu.dot_dimension_numbers<[1], [0], [0], [1], [0, 0, 1, 1], [], []>} : vector<8x256xbf16>, vector<256x128xbf16>, vector<8x128xf32> -> vector<8x128xf32>
    %388 = arith.addf %382, %387 : vector<8x128xf32>
    %c19_371 = arith.constant 19 : index
    %c0_372 = arith.constant 0 : index
    %c0_373 = arith.constant 0 : index
    %389 = vector.load %arg1[%c19_371, %c0_372, %c0_373] : memref<36x8x256xbf16, #tpu.memory_space<vmem>>, vector<1x8x256xbf16>
    %390 = vector.shape_cast %389 : vector<1x8x256xbf16> to vector<8x256xbf16>
    %c2_374 = arith.constant 2 : index
    %c0_375 = arith.constant 0 : index
    %c0_376 = arith.constant 0 : index
    %391 = vector.load %arg2[%c2_374, %c0_375, %c0_376] : memref<4x256x128xbf16, #tpu.memory_space<vmem>>, vector<1x256x128xbf16>
    %392 = vector.shape_cast %391 : vector<1x256x128xbf16> to vector<256x128xbf16>
    %cst_377 = arith.constant dense<0.000000e+00> : vector<8x128xf32>
    %393 = tpu.matmul %390, %392, %cst_377 {dimension_numbers = #tpu.dot_dimension_numbers<[1], [0], [0], [1], [0, 0, 1, 1], [], []>} : vector<8x256xbf16>, vector<256x128xbf16>, vector<8x128xf32> -> vector<8x128xf32>
    %394 = arith.addf %388, %393 : vector<8x128xf32>
    %c20 = arith.constant 20 : index
    %c0_378 = arith.constant 0 : index
    %c0_379 = arith.constant 0 : index
    %395 = vector.load %arg1[%c20, %c0_378, %c0_379] : memref<36x8x256xbf16, #tpu.memory_space<vmem>>, vector<1x8x256xbf16>
    %396 = vector.shape_cast %395 : vector<1x8x256xbf16> to vector<8x256xbf16>
    %c3_380 = arith.constant 3 : index
    %c0_381 = arith.constant 0 : index
    %c0_382 = arith.constant 0 : index
    %397 = vector.load %arg2[%c3_380, %c0_381, %c0_382] : memref<4x256x128xbf16, #tpu.memory_space<vmem>>, vector<1x256x128xbf16>
    %398 = vector.shape_cast %397 : vector<1x256x128xbf16> to vector<256x128xbf16>
    %cst_383 = arith.constant dense<0.000000e+00> : vector<8x128xf32>
    %399 = tpu.matmul %396, %398, %cst_383 {dimension_numbers = #tpu.dot_dimension_numbers<[1], [0], [0], [1], [0, 0, 1, 1], [], []>} : vector<8x256xbf16>, vector<256x128xbf16>, vector<8x128xf32> -> vector<8x128xf32>
    %400 = arith.addf %394, %399 : vector<8x128xf32>
    %401 = vector.broadcast %0 : vector<1x128xf32> to vector<8x128xf32>
    %402 = arith.addf %400, %401 : vector<8x128xf32>
    %cst_384 = arith.constant 0.000000e+00 : f32
    %403 = vector.broadcast %cst_384 : f32 to vector<8x128xf32>
    %404 = arith.maximumf %402, %403 : vector<8x128xf32>
    %405 = arith.truncf %404 : vector<8x128xf32> to vector<8x128xbf16>
    %c11_385 = arith.constant 11 : index
    %c0_386 = arith.constant 0 : index
    %c0_387 = arith.constant 0 : index
    %406 = vector.load %arg4[%c11_385, %c0_386, %c0_387] : memref<25x128x256xbf16, #tpu.memory_space<vmem>>, vector<1x128x256xbf16>
    %407 = vector.shape_cast %406 : vector<1x128x256xbf16> to vector<128x256xbf16>
    %cst_388 = arith.constant dense<0.000000e+00> : vector<8x256xf32>
    %408 = tpu.matmul %405, %407, %cst_388 {dimension_numbers = #tpu.dot_dimension_numbers<[1], [0], [0], [1], [0, 0, 1, 1], [], []>} : vector<8x128xbf16>, vector<128x256xbf16>, vector<8x256xf32> -> vector<8x256xf32>
    %409 = arith.addf %375, %408 : vector<8x256xf32>
    %cst_389 = arith.constant 0.000000e+00 : f32
    %410 = vector.broadcast %cst_389 : f32 to vector<8x128xf32>
    %c14_390 = arith.constant 14 : index
    %c0_391 = arith.constant 0 : index
    %c0_392 = arith.constant 0 : index
    %411 = vector.load %arg1[%c14_390, %c0_391, %c0_392] : memref<36x8x256xbf16, #tpu.memory_space<vmem>>, vector<1x8x256xbf16>
    %412 = vector.shape_cast %411 : vector<1x8x256xbf16> to vector<8x256xbf16>
    %c0_393 = arith.constant 0 : index
    %c0_394 = arith.constant 0 : index
    %c0_395 = arith.constant 0 : index
    %413 = vector.load %arg2[%c0_393, %c0_394, %c0_395] : memref<4x256x128xbf16, #tpu.memory_space<vmem>>, vector<1x256x128xbf16>
    %414 = vector.shape_cast %413 : vector<1x256x128xbf16> to vector<256x128xbf16>
    %cst_396 = arith.constant dense<0.000000e+00> : vector<8x128xf32>
    %415 = tpu.matmul %412, %414, %cst_396 {dimension_numbers = #tpu.dot_dimension_numbers<[1], [0], [0], [1], [0, 0, 1, 1], [], []>} : vector<8x256xbf16>, vector<256x128xbf16>, vector<8x128xf32> -> vector<8x128xf32>
    %416 = arith.addf %410, %415 : vector<8x128xf32>
    %c15_397 = arith.constant 15 : index
    %c0_398 = arith.constant 0 : index
    %c0_399 = arith.constant 0 : index
    %417 = vector.load %arg1[%c15_397, %c0_398, %c0_399] : memref<36x8x256xbf16, #tpu.memory_space<vmem>>, vector<1x8x256xbf16>
    %418 = vector.shape_cast %417 : vector<1x8x256xbf16> to vector<8x256xbf16>
    %c1_400 = arith.constant 1 : index
    %c0_401 = arith.constant 0 : index
    %c0_402 = arith.constant 0 : index
    %419 = vector.load %arg2[%c1_400, %c0_401, %c0_402] : memref<4x256x128xbf16, #tpu.memory_space<vmem>>, vector<1x256x128xbf16>
    %420 = vector.shape_cast %419 : vector<1x256x128xbf16> to vector<256x128xbf16>
    %cst_403 = arith.constant dense<0.000000e+00> : vector<8x128xf32>
    %421 = tpu.matmul %418, %420, %cst_403 {dimension_numbers = #tpu.dot_dimension_numbers<[1], [0], [0], [1], [0, 0, 1, 1], [], []>} : vector<8x256xbf16>, vector<256x128xbf16>, vector<8x128xf32> -> vector<8x128xf32>
    %422 = arith.addf %416, %421 : vector<8x128xf32>
    %c20_404 = arith.constant 20 : index
    %c0_405 = arith.constant 0 : index
    %c0_406 = arith.constant 0 : index
    %423 = vector.load %arg1[%c20_404, %c0_405, %c0_406] : memref<36x8x256xbf16, #tpu.memory_space<vmem>>, vector<1x8x256xbf16>
    %424 = vector.shape_cast %423 : vector<1x8x256xbf16> to vector<8x256xbf16>
    %c2_407 = arith.constant 2 : index
    %c0_408 = arith.constant 0 : index
    %c0_409 = arith.constant 0 : index
    %425 = vector.load %arg2[%c2_407, %c0_408, %c0_409] : memref<4x256x128xbf16, #tpu.memory_space<vmem>>, vector<1x256x128xbf16>
    %426 = vector.shape_cast %425 : vector<1x256x128xbf16> to vector<256x128xbf16>
    %cst_410 = arith.constant dense<0.000000e+00> : vector<8x128xf32>
    %427 = tpu.matmul %424, %426, %cst_410 {dimension_numbers = #tpu.dot_dimension_numbers<[1], [0], [0], [1], [0, 0, 1, 1], [], []>} : vector<8x256xbf16>, vector<256x128xbf16>, vector<8x128xf32> -> vector<8x128xf32>
    %428 = arith.addf %422, %427 : vector<8x128xf32>
    %c21 = arith.constant 21 : index
    %c0_411 = arith.constant 0 : index
    %c0_412 = arith.constant 0 : index
    %429 = vector.load %arg1[%c21, %c0_411, %c0_412] : memref<36x8x256xbf16, #tpu.memory_space<vmem>>, vector<1x8x256xbf16>
    %430 = vector.shape_cast %429 : vector<1x8x256xbf16> to vector<8x256xbf16>
    %c3_413 = arith.constant 3 : index
    %c0_414 = arith.constant 0 : index
    %c0_415 = arith.constant 0 : index
    %431 = vector.load %arg2[%c3_413, %c0_414, %c0_415] : memref<4x256x128xbf16, #tpu.memory_space<vmem>>, vector<1x256x128xbf16>
    %432 = vector.shape_cast %431 : vector<1x256x128xbf16> to vector<256x128xbf16>
    %cst_416 = arith.constant dense<0.000000e+00> : vector<8x128xf32>
    %433 = tpu.matmul %430, %432, %cst_416 {dimension_numbers = #tpu.dot_dimension_numbers<[1], [0], [0], [1], [0, 0, 1, 1], [], []>} : vector<8x256xbf16>, vector<256x128xbf16>, vector<8x128xf32> -> vector<8x128xf32>
    %434 = arith.addf %428, %433 : vector<8x128xf32>
    %435 = vector.broadcast %0 : vector<1x128xf32> to vector<8x128xf32>
    %436 = arith.addf %434, %435 : vector<8x128xf32>
    %cst_417 = arith.constant 0.000000e+00 : f32
    %437 = vector.broadcast %cst_417 : f32 to vector<8x128xf32>
    %438 = arith.maximumf %436, %437 : vector<8x128xf32>
    %439 = arith.truncf %438 : vector<8x128xf32> to vector<8x128xbf16>
    %c12_418 = arith.constant 12 : index
    %c0_419 = arith.constant 0 : index
    %c0_420 = arith.constant 0 : index
    %440 = vector.load %arg4[%c12_418, %c0_419, %c0_420] : memref<25x128x256xbf16, #tpu.memory_space<vmem>>, vector<1x128x256xbf16>
    %441 = vector.shape_cast %440 : vector<1x128x256xbf16> to vector<128x256xbf16>
    %cst_421 = arith.constant dense<0.000000e+00> : vector<8x256xf32>
    %442 = tpu.matmul %439, %441, %cst_421 {dimension_numbers = #tpu.dot_dimension_numbers<[1], [0], [0], [1], [0, 0, 1, 1], [], []>} : vector<8x128xbf16>, vector<128x256xbf16>, vector<8x256xf32> -> vector<8x256xf32>
    %443 = arith.addf %409, %442 : vector<8x256xf32>
    %cst_422 = arith.constant 0.000000e+00 : f32
    %444 = vector.broadcast %cst_422 : f32 to vector<8x128xf32>
    %c15_423 = arith.constant 15 : index
    %c0_424 = arith.constant 0 : index
    %c0_425 = arith.constant 0 : index
    %445 = vector.load %arg1[%c15_423, %c0_424, %c0_425] : memref<36x8x256xbf16, #tpu.memory_space<vmem>>, vector<1x8x256xbf16>
    %446 = vector.shape_cast %445 : vector<1x8x256xbf16> to vector<8x256xbf16>
    %c0_426 = arith.constant 0 : index
    %c0_427 = arith.constant 0 : index
    %c0_428 = arith.constant 0 : index
    %447 = vector.load %arg2[%c0_426, %c0_427, %c0_428] : memref<4x256x128xbf16, #tpu.memory_space<vmem>>, vector<1x256x128xbf16>
    %448 = vector.shape_cast %447 : vector<1x256x128xbf16> to vector<256x128xbf16>
    %cst_429 = arith.constant dense<0.000000e+00> : vector<8x128xf32>
    %449 = tpu.matmul %446, %448, %cst_429 {dimension_numbers = #tpu.dot_dimension_numbers<[1], [0], [0], [1], [0, 0, 1, 1], [], []>} : vector<8x256xbf16>, vector<256x128xbf16>, vector<8x128xf32> -> vector<8x128xf32>
    %450 = arith.addf %444, %449 : vector<8x128xf32>
    %c16_430 = arith.constant 16 : index
    %c0_431 = arith.constant 0 : index
    %c0_432 = arith.constant 0 : index
    %451 = vector.load %arg1[%c16_430, %c0_431, %c0_432] : memref<36x8x256xbf16, #tpu.memory_space<vmem>>, vector<1x8x256xbf16>
    %452 = vector.shape_cast %451 : vector<1x8x256xbf16> to vector<8x256xbf16>
    %c1_433 = arith.constant 1 : index
    %c0_434 = arith.constant 0 : index
    %c0_435 = arith.constant 0 : index
    %453 = vector.load %arg2[%c1_433, %c0_434, %c0_435] : memref<4x256x128xbf16, #tpu.memory_space<vmem>>, vector<1x256x128xbf16>
    %454 = vector.shape_cast %453 : vector<1x256x128xbf16> to vector<256x128xbf16>
    %cst_436 = arith.constant dense<0.000000e+00> : vector<8x128xf32>
    %455 = tpu.matmul %452, %454, %cst_436 {dimension_numbers = #tpu.dot_dimension_numbers<[1], [0], [0], [1], [0, 0, 1, 1], [], []>} : vector<8x256xbf16>, vector<256x128xbf16>, vector<8x128xf32> -> vector<8x128xf32>
    %456 = arith.addf %450, %455 : vector<8x128xf32>
    %c21_437 = arith.constant 21 : index
    %c0_438 = arith.constant 0 : index
    %c0_439 = arith.constant 0 : index
    %457 = vector.load %arg1[%c21_437, %c0_438, %c0_439] : memref<36x8x256xbf16, #tpu.memory_space<vmem>>, vector<1x8x256xbf16>
    %458 = vector.shape_cast %457 : vector<1x8x256xbf16> to vector<8x256xbf16>
    %c2_440 = arith.constant 2 : index
    %c0_441 = arith.constant 0 : index
    %c0_442 = arith.constant 0 : index
    %459 = vector.load %arg2[%c2_440, %c0_441, %c0_442] : memref<4x256x128xbf16, #tpu.memory_space<vmem>>, vector<1x256x128xbf16>
    %460 = vector.shape_cast %459 : vector<1x256x128xbf16> to vector<256x128xbf16>
    %cst_443 = arith.constant dense<0.000000e+00> : vector<8x128xf32>
    %461 = tpu.matmul %458, %460, %cst_443 {dimension_numbers = #tpu.dot_dimension_numbers<[1], [0], [0], [1], [0, 0, 1, 1], [], []>} : vector<8x256xbf16>, vector<256x128xbf16>, vector<8x128xf32> -> vector<8x128xf32>
    %462 = arith.addf %456, %461 : vector<8x128xf32>
    %c22 = arith.constant 22 : index
    %c0_444 = arith.constant 0 : index
    %c0_445 = arith.constant 0 : index
    %463 = vector.load %arg1[%c22, %c0_444, %c0_445] : memref<36x8x256xbf16, #tpu.memory_space<vmem>>, vector<1x8x256xbf16>
    %464 = vector.shape_cast %463 : vector<1x8x256xbf16> to vector<8x256xbf16>
    %c3_446 = arith.constant 3 : index
    %c0_447 = arith.constant 0 : index
    %c0_448 = arith.constant 0 : index
    %465 = vector.load %arg2[%c3_446, %c0_447, %c0_448] : memref<4x256x128xbf16, #tpu.memory_space<vmem>>, vector<1x256x128xbf16>
    %466 = vector.shape_cast %465 : vector<1x256x128xbf16> to vector<256x128xbf16>
    %cst_449 = arith.constant dense<0.000000e+00> : vector<8x128xf32>
    %467 = tpu.matmul %464, %466, %cst_449 {dimension_numbers = #tpu.dot_dimension_numbers<[1], [0], [0], [1], [0, 0, 1, 1], [], []>} : vector<8x256xbf16>, vector<256x128xbf16>, vector<8x128xf32> -> vector<8x128xf32>
    %468 = arith.addf %462, %467 : vector<8x128xf32>
    %469 = vector.broadcast %0 : vector<1x128xf32> to vector<8x128xf32>
    %470 = arith.addf %468, %469 : vector<8x128xf32>
    %cst_450 = arith.constant 0.000000e+00 : f32
    %471 = vector.broadcast %cst_450 : f32 to vector<8x128xf32>
    %472 = arith.maximumf %470, %471 : vector<8x128xf32>
    %473 = arith.truncf %472 : vector<8x128xf32> to vector<8x128xbf16>
    %c13_451 = arith.constant 13 : index
    %c0_452 = arith.constant 0 : index
    %c0_453 = arith.constant 0 : index
    %474 = vector.load %arg4[%c13_451, %c0_452, %c0_453] : memref<25x128x256xbf16, #tpu.memory_space<vmem>>, vector<1x128x256xbf16>
    %475 = vector.shape_cast %474 : vector<1x128x256xbf16> to vector<128x256xbf16>
    %cst_454 = arith.constant dense<0.000000e+00> : vector<8x256xf32>
    %476 = tpu.matmul %473, %475, %cst_454 {dimension_numbers = #tpu.dot_dimension_numbers<[1], [0], [0], [1], [0, 0, 1, 1], [], []>} : vector<8x128xbf16>, vector<128x256xbf16>, vector<8x256xf32> -> vector<8x256xf32>
    %477 = arith.addf %443, %476 : vector<8x256xf32>
    %cst_455 = arith.constant 0.000000e+00 : f32
    %478 = vector.broadcast %cst_455 : f32 to vector<8x128xf32>
    %c16_456 = arith.constant 16 : index
    %c0_457 = arith.constant 0 : index
    %c0_458 = arith.constant 0 : index
    %479 = vector.load %arg1[%c16_456, %c0_457, %c0_458] : memref<36x8x256xbf16, #tpu.memory_space<vmem>>, vector<1x8x256xbf16>
    %480 = vector.shape_cast %479 : vector<1x8x256xbf16> to vector<8x256xbf16>
    %c0_459 = arith.constant 0 : index
    %c0_460 = arith.constant 0 : index
    %c0_461 = arith.constant 0 : index
    %481 = vector.load %arg2[%c0_459, %c0_460, %c0_461] : memref<4x256x128xbf16, #tpu.memory_space<vmem>>, vector<1x256x128xbf16>
    %482 = vector.shape_cast %481 : vector<1x256x128xbf16> to vector<256x128xbf16>
    %cst_462 = arith.constant dense<0.000000e+00> : vector<8x128xf32>
    %483 = tpu.matmul %480, %482, %cst_462 {dimension_numbers = #tpu.dot_dimension_numbers<[1], [0], [0], [1], [0, 0, 1, 1], [], []>} : vector<8x256xbf16>, vector<256x128xbf16>, vector<8x128xf32> -> vector<8x128xf32>
    %484 = arith.addf %478, %483 : vector<8x128xf32>
    %c17_463 = arith.constant 17 : index
    %c0_464 = arith.constant 0 : index
    %c0_465 = arith.constant 0 : index
    %485 = vector.load %arg1[%c17_463, %c0_464, %c0_465] : memref<36x8x256xbf16, #tpu.memory_space<vmem>>, vector<1x8x256xbf16>
    %486 = vector.shape_cast %485 : vector<1x8x256xbf16> to vector<8x256xbf16>
    %c1_466 = arith.constant 1 : index
    %c0_467 = arith.constant 0 : index
    %c0_468 = arith.constant 0 : index
    %487 = vector.load %arg2[%c1_466, %c0_467, %c0_468] : memref<4x256x128xbf16, #tpu.memory_space<vmem>>, vector<1x256x128xbf16>
    %488 = vector.shape_cast %487 : vector<1x256x128xbf16> to vector<256x128xbf16>
    %cst_469 = arith.constant dense<0.000000e+00> : vector<8x128xf32>
    %489 = tpu.matmul %486, %488, %cst_469 {dimension_numbers = #tpu.dot_dimension_numbers<[1], [0], [0], [1], [0, 0, 1, 1], [], []>} : vector<8x256xbf16>, vector<256x128xbf16>, vector<8x128xf32> -> vector<8x128xf32>
    %490 = arith.addf %484, %489 : vector<8x128xf32>
    %c22_470 = arith.constant 22 : index
    %c0_471 = arith.constant 0 : index
    %c0_472 = arith.constant 0 : index
    %491 = vector.load %arg1[%c22_470, %c0_471, %c0_472] : memref<36x8x256xbf16, #tpu.memory_space<vmem>>, vector<1x8x256xbf16>
    %492 = vector.shape_cast %491 : vector<1x8x256xbf16> to vector<8x256xbf16>
    %c2_473 = arith.constant 2 : index
    %c0_474 = arith.constant 0 : index
    %c0_475 = arith.constant 0 : index
    %493 = vector.load %arg2[%c2_473, %c0_474, %c0_475] : memref<4x256x128xbf16, #tpu.memory_space<vmem>>, vector<1x256x128xbf16>
    %494 = vector.shape_cast %493 : vector<1x256x128xbf16> to vector<256x128xbf16>
    %cst_476 = arith.constant dense<0.000000e+00> : vector<8x128xf32>
    %495 = tpu.matmul %492, %494, %cst_476 {dimension_numbers = #tpu.dot_dimension_numbers<[1], [0], [0], [1], [0, 0, 1, 1], [], []>} : vector<8x256xbf16>, vector<256x128xbf16>, vector<8x128xf32> -> vector<8x128xf32>
    %496 = arith.addf %490, %495 : vector<8x128xf32>
    %c23 = arith.constant 23 : index
    %c0_477 = arith.constant 0 : index
    %c0_478 = arith.constant 0 : index
    %497 = vector.load %arg1[%c23, %c0_477, %c0_478] : memref<36x8x256xbf16, #tpu.memory_space<vmem>>, vector<1x8x256xbf16>
    %498 = vector.shape_cast %497 : vector<1x8x256xbf16> to vector<8x256xbf16>
    %c3_479 = arith.constant 3 : index
    %c0_480 = arith.constant 0 : index
    %c0_481 = arith.constant 0 : index
    %499 = vector.load %arg2[%c3_479, %c0_480, %c0_481] : memref<4x256x128xbf16, #tpu.memory_space<vmem>>, vector<1x256x128xbf16>
    %500 = vector.shape_cast %499 : vector<1x256x128xbf16> to vector<256x128xbf16>
    %cst_482 = arith.constant dense<0.000000e+00> : vector<8x128xf32>
    %501 = tpu.matmul %498, %500, %cst_482 {dimension_numbers = #tpu.dot_dimension_numbers<[1], [0], [0], [1], [0, 0, 1, 1], [], []>} : vector<8x256xbf16>, vector<256x128xbf16>, vector<8x128xf32> -> vector<8x128xf32>
    %502 = arith.addf %496, %501 : vector<8x128xf32>
    %503 = vector.broadcast %0 : vector<1x128xf32> to vector<8x128xf32>
    %504 = arith.addf %502, %503 : vector<8x128xf32>
    %cst_483 = arith.constant 0.000000e+00 : f32
    %505 = vector.broadcast %cst_483 : f32 to vector<8x128xf32>
    %506 = arith.maximumf %504, %505 : vector<8x128xf32>
    %507 = arith.truncf %506 : vector<8x128xf32> to vector<8x128xbf16>
    %c14_484 = arith.constant 14 : index
    %c0_485 = arith.constant 0 : index
    %c0_486 = arith.constant 0 : index
    %508 = vector.load %arg4[%c14_484, %c0_485, %c0_486] : memref<25x128x256xbf16, #tpu.memory_space<vmem>>, vector<1x128x256xbf16>
    %509 = vector.shape_cast %508 : vector<1x128x256xbf16> to vector<128x256xbf16>
    %cst_487 = arith.constant dense<0.000000e+00> : vector<8x256xf32>
    %510 = tpu.matmul %507, %509, %cst_487 {dimension_numbers = #tpu.dot_dimension_numbers<[1], [0], [0], [1], [0, 0, 1, 1], [], []>} : vector<8x128xbf16>, vector<128x256xbf16>, vector<8x256xf32> -> vector<8x256xf32>
    %511 = arith.addf %477, %510 : vector<8x256xf32>
    %cst_488 = arith.constant 0.000000e+00 : f32
    %512 = vector.broadcast %cst_488 : f32 to vector<8x128xf32>
    %c18_489 = arith.constant 18 : index
    %c0_490 = arith.constant 0 : index
    %c0_491 = arith.constant 0 : index
    %513 = vector.load %arg1[%c18_489, %c0_490, %c0_491] : memref<36x8x256xbf16, #tpu.memory_space<vmem>>, vector<1x8x256xbf16>
    %514 = vector.shape_cast %513 : vector<1x8x256xbf16> to vector<8x256xbf16>
    %c0_492 = arith.constant 0 : index
    %c0_493 = arith.constant 0 : index
    %c0_494 = arith.constant 0 : index
    %515 = vector.load %arg2[%c0_492, %c0_493, %c0_494] : memref<4x256x128xbf16, #tpu.memory_space<vmem>>, vector<1x256x128xbf16>
    %516 = vector.shape_cast %515 : vector<1x256x128xbf16> to vector<256x128xbf16>
    %cst_495 = arith.constant dense<0.000000e+00> : vector<8x128xf32>
    %517 = tpu.matmul %514, %516, %cst_495 {dimension_numbers = #tpu.dot_dimension_numbers<[1], [0], [0], [1], [0, 0, 1, 1], [], []>} : vector<8x256xbf16>, vector<256x128xbf16>, vector<8x128xf32> -> vector<8x128xf32>
    %518 = arith.addf %512, %517 : vector<8x128xf32>
    %c19_496 = arith.constant 19 : index
    %c0_497 = arith.constant 0 : index
    %c0_498 = arith.constant 0 : index
    %519 = vector.load %arg1[%c19_496, %c0_497, %c0_498] : memref<36x8x256xbf16, #tpu.memory_space<vmem>>, vector<1x8x256xbf16>
    %520 = vector.shape_cast %519 : vector<1x8x256xbf16> to vector<8x256xbf16>
    %c1_499 = arith.constant 1 : index
    %c0_500 = arith.constant 0 : index
    %c0_501 = arith.constant 0 : index
    %521 = vector.load %arg2[%c1_499, %c0_500, %c0_501] : memref<4x256x128xbf16, #tpu.memory_space<vmem>>, vector<1x256x128xbf16>
    %522 = vector.shape_cast %521 : vector<1x256x128xbf16> to vector<256x128xbf16>
    %cst_502 = arith.constant dense<0.000000e+00> : vector<8x128xf32>
    %523 = tpu.matmul %520, %522, %cst_502 {dimension_numbers = #tpu.dot_dimension_numbers<[1], [0], [0], [1], [0, 0, 1, 1], [], []>} : vector<8x256xbf16>, vector<256x128xbf16>, vector<8x128xf32> -> vector<8x128xf32>
    %524 = arith.addf %518, %523 : vector<8x128xf32>
    %c24 = arith.constant 24 : index
    %c0_503 = arith.constant 0 : index
    %c0_504 = arith.constant 0 : index
    %525 = vector.load %arg1[%c24, %c0_503, %c0_504] : memref<36x8x256xbf16, #tpu.memory_space<vmem>>, vector<1x8x256xbf16>
    %526 = vector.shape_cast %525 : vector<1x8x256xbf16> to vector<8x256xbf16>
    %c2_505 = arith.constant 2 : index
    %c0_506 = arith.constant 0 : index
    %c0_507 = arith.constant 0 : index
    %527 = vector.load %arg2[%c2_505, %c0_506, %c0_507] : memref<4x256x128xbf16, #tpu.memory_space<vmem>>, vector<1x256x128xbf16>
    %528 = vector.shape_cast %527 : vector<1x256x128xbf16> to vector<256x128xbf16>
    %cst_508 = arith.constant dense<0.000000e+00> : vector<8x128xf32>
    %529 = tpu.matmul %526, %528, %cst_508 {dimension_numbers = #tpu.dot_dimension_numbers<[1], [0], [0], [1], [0, 0, 1, 1], [], []>} : vector<8x256xbf16>, vector<256x128xbf16>, vector<8x128xf32> -> vector<8x128xf32>
    %530 = arith.addf %524, %529 : vector<8x128xf32>
    %c25 = arith.constant 25 : index
    %c0_509 = arith.constant 0 : index
    %c0_510 = arith.constant 0 : index
    %531 = vector.load %arg1[%c25, %c0_509, %c0_510] : memref<36x8x256xbf16, #tpu.memory_space<vmem>>, vector<1x8x256xbf16>
    %532 = vector.shape_cast %531 : vector<1x8x256xbf16> to vector<8x256xbf16>
    %c3_511 = arith.constant 3 : index
    %c0_512 = arith.constant 0 : index
    %c0_513 = arith.constant 0 : index
    %533 = vector.load %arg2[%c3_511, %c0_512, %c0_513] : memref<4x256x128xbf16, #tpu.memory_space<vmem>>, vector<1x256x128xbf16>
    %534 = vector.shape_cast %533 : vector<1x256x128xbf16> to vector<256x128xbf16>
    %cst_514 = arith.constant dense<0.000000e+00> : vector<8x128xf32>
    %535 = tpu.matmul %532, %534, %cst_514 {dimension_numbers = #tpu.dot_dimension_numbers<[1], [0], [0], [1], [0, 0, 1, 1], [], []>} : vector<8x256xbf16>, vector<256x128xbf16>, vector<8x128xf32> -> vector<8x128xf32>
    %536 = arith.addf %530, %535 : vector<8x128xf32>
    %537 = vector.broadcast %0 : vector<1x128xf32> to vector<8x128xf32>
    %538 = arith.addf %536, %537 : vector<8x128xf32>
    %cst_515 = arith.constant 0.000000e+00 : f32
    %539 = vector.broadcast %cst_515 : f32 to vector<8x128xf32>
    %540 = arith.maximumf %538, %539 : vector<8x128xf32>
    %541 = arith.truncf %540 : vector<8x128xf32> to vector<8x128xbf16>
    %c15_516 = arith.constant 15 : index
    %c0_517 = arith.constant 0 : index
    %c0_518 = arith.constant 0 : index
    %542 = vector.load %arg4[%c15_516, %c0_517, %c0_518] : memref<25x128x256xbf16, #tpu.memory_space<vmem>>, vector<1x128x256xbf16>
    %543 = vector.shape_cast %542 : vector<1x128x256xbf16> to vector<128x256xbf16>
    %cst_519 = arith.constant dense<0.000000e+00> : vector<8x256xf32>
    %544 = tpu.matmul %541, %543, %cst_519 {dimension_numbers = #tpu.dot_dimension_numbers<[1], [0], [0], [1], [0, 0, 1, 1], [], []>} : vector<8x128xbf16>, vector<128x256xbf16>, vector<8x256xf32> -> vector<8x256xf32>
    %545 = arith.addf %511, %544 : vector<8x256xf32>
    %cst_520 = arith.constant 0.000000e+00 : f32
    %546 = vector.broadcast %cst_520 : f32 to vector<8x128xf32>
    %c19_521 = arith.constant 19 : index
    %c0_522 = arith.constant 0 : index
    %c0_523 = arith.constant 0 : index
    %547 = vector.load %arg1[%c19_521, %c0_522, %c0_523] : memref<36x8x256xbf16, #tpu.memory_space<vmem>>, vector<1x8x256xbf16>
    %548 = vector.shape_cast %547 : vector<1x8x256xbf16> to vector<8x256xbf16>
    %c0_524 = arith.constant 0 : index
    %c0_525 = arith.constant 0 : index
    %c0_526 = arith.constant 0 : index
    %549 = vector.load %arg2[%c0_524, %c0_525, %c0_526] : memref<4x256x128xbf16, #tpu.memory_space<vmem>>, vector<1x256x128xbf16>
    %550 = vector.shape_cast %549 : vector<1x256x128xbf16> to vector<256x128xbf16>
    %cst_527 = arith.constant dense<0.000000e+00> : vector<8x128xf32>
    %551 = tpu.matmul %548, %550, %cst_527 {dimension_numbers = #tpu.dot_dimension_numbers<[1], [0], [0], [1], [0, 0, 1, 1], [], []>} : vector<8x256xbf16>, vector<256x128xbf16>, vector<8x128xf32> -> vector<8x128xf32>
    %552 = arith.addf %546, %551 : vector<8x128xf32>
    %c20_528 = arith.constant 20 : index
    %c0_529 = arith.constant 0 : index
    %c0_530 = arith.constant 0 : index
    %553 = vector.load %arg1[%c20_528, %c0_529, %c0_530] : memref<36x8x256xbf16, #tpu.memory_space<vmem>>, vector<1x8x256xbf16>
    %554 = vector.shape_cast %553 : vector<1x8x256xbf16> to vector<8x256xbf16>
    %c1_531 = arith.constant 1 : index
    %c0_532 = arith.constant 0 : index
    %c0_533 = arith.constant 0 : index
    %555 = vector.load %arg2[%c1_531, %c0_532, %c0_533] : memref<4x256x128xbf16, #tpu.memory_space<vmem>>, vector<1x256x128xbf16>
    %556 = vector.shape_cast %555 : vector<1x256x128xbf16> to vector<256x128xbf16>
    %cst_534 = arith.constant dense<0.000000e+00> : vector<8x128xf32>
    %557 = tpu.matmul %554, %556, %cst_534 {dimension_numbers = #tpu.dot_dimension_numbers<[1], [0], [0], [1], [0, 0, 1, 1], [], []>} : vector<8x256xbf16>, vector<256x128xbf16>, vector<8x128xf32> -> vector<8x128xf32>
    %558 = arith.addf %552, %557 : vector<8x128xf32>
    %c25_535 = arith.constant 25 : index
    %c0_536 = arith.constant 0 : index
    %c0_537 = arith.constant 0 : index
    %559 = vector.load %arg1[%c25_535, %c0_536, %c0_537] : memref<36x8x256xbf16, #tpu.memory_space<vmem>>, vector<1x8x256xbf16>
    %560 = vector.shape_cast %559 : vector<1x8x256xbf16> to vector<8x256xbf16>
    %c2_538 = arith.constant 2 : index
    %c0_539 = arith.constant 0 : index
    %c0_540 = arith.constant 0 : index
    %561 = vector.load %arg2[%c2_538, %c0_539, %c0_540] : memref<4x256x128xbf16, #tpu.memory_space<vmem>>, vector<1x256x128xbf16>
    %562 = vector.shape_cast %561 : vector<1x256x128xbf16> to vector<256x128xbf16>
    %cst_541 = arith.constant dense<0.000000e+00> : vector<8x128xf32>
    %563 = tpu.matmul %560, %562, %cst_541 {dimension_numbers = #tpu.dot_dimension_numbers<[1], [0], [0], [1], [0, 0, 1, 1], [], []>} : vector<8x256xbf16>, vector<256x128xbf16>, vector<8x128xf32> -> vector<8x128xf32>
    %564 = arith.addf %558, %563 : vector<8x128xf32>
    %c26 = arith.constant 26 : index
    %c0_542 = arith.constant 0 : index
    %c0_543 = arith.constant 0 : index
    %565 = vector.load %arg1[%c26, %c0_542, %c0_543] : memref<36x8x256xbf16, #tpu.memory_space<vmem>>, vector<1x8x256xbf16>
    %566 = vector.shape_cast %565 : vector<1x8x256xbf16> to vector<8x256xbf16>
    %c3_544 = arith.constant 3 : index
    %c0_545 = arith.constant 0 : index
    %c0_546 = arith.constant 0 : index
    %567 = vector.load %arg2[%c3_544, %c0_545, %c0_546] : memref<4x256x128xbf16, #tpu.memory_space<vmem>>, vector<1x256x128xbf16>
    %568 = vector.shape_cast %567 : vector<1x256x128xbf16> to vector<256x128xbf16>
    %cst_547 = arith.constant dense<0.000000e+00> : vector<8x128xf32>
    %569 = tpu.matmul %566, %568, %cst_547 {dimension_numbers = #tpu.dot_dimension_numbers<[1], [0], [0], [1], [0, 0, 1, 1], [], []>} : vector<8x256xbf16>, vector<256x128xbf16>, vector<8x128xf32> -> vector<8x128xf32>
    %570 = arith.addf %564, %569 : vector<8x128xf32>
    %571 = vector.broadcast %0 : vector<1x128xf32> to vector<8x128xf32>
    %572 = arith.addf %570, %571 : vector<8x128xf32>
    %cst_548 = arith.constant 0.000000e+00 : f32
    %573 = vector.broadcast %cst_548 : f32 to vector<8x128xf32>
    %574 = arith.maximumf %572, %573 : vector<8x128xf32>
    %575 = arith.truncf %574 : vector<8x128xf32> to vector<8x128xbf16>
    %c16_549 = arith.constant 16 : index
    %c0_550 = arith.constant 0 : index
    %c0_551 = arith.constant 0 : index
    %576 = vector.load %arg4[%c16_549, %c0_550, %c0_551] : memref<25x128x256xbf16, #tpu.memory_space<vmem>>, vector<1x128x256xbf16>
    %577 = vector.shape_cast %576 : vector<1x128x256xbf16> to vector<128x256xbf16>
    %cst_552 = arith.constant dense<0.000000e+00> : vector<8x256xf32>
    %578 = tpu.matmul %575, %577, %cst_552 {dimension_numbers = #tpu.dot_dimension_numbers<[1], [0], [0], [1], [0, 0, 1, 1], [], []>} : vector<8x128xbf16>, vector<128x256xbf16>, vector<8x256xf32> -> vector<8x256xf32>
    %579 = arith.addf %545, %578 : vector<8x256xf32>
    %cst_553 = arith.constant 0.000000e+00 : f32
    %580 = vector.broadcast %cst_553 : f32 to vector<8x128xf32>
    %c20_554 = arith.constant 20 : index
    %c0_555 = arith.constant 0 : index
    %c0_556 = arith.constant 0 : index
    %581 = vector.load %arg1[%c20_554, %c0_555, %c0_556] : memref<36x8x256xbf16, #tpu.memory_space<vmem>>, vector<1x8x256xbf16>
    %582 = vector.shape_cast %581 : vector<1x8x256xbf16> to vector<8x256xbf16>
    %c0_557 = arith.constant 0 : index
    %c0_558 = arith.constant 0 : index
    %c0_559 = arith.constant 0 : index
    %583 = vector.load %arg2[%c0_557, %c0_558, %c0_559] : memref<4x256x128xbf16, #tpu.memory_space<vmem>>, vector<1x256x128xbf16>
    %584 = vector.shape_cast %583 : vector<1x256x128xbf16> to vector<256x128xbf16>
    %cst_560 = arith.constant dense<0.000000e+00> : vector<8x128xf32>
    %585 = tpu.matmul %582, %584, %cst_560 {dimension_numbers = #tpu.dot_dimension_numbers<[1], [0], [0], [1], [0, 0, 1, 1], [], []>} : vector<8x256xbf16>, vector<256x128xbf16>, vector<8x128xf32> -> vector<8x128xf32>
    %586 = arith.addf %580, %585 : vector<8x128xf32>
    %c21_561 = arith.constant 21 : index
    %c0_562 = arith.constant 0 : index
    %c0_563 = arith.constant 0 : index
    %587 = vector.load %arg1[%c21_561, %c0_562, %c0_563] : memref<36x8x256xbf16, #tpu.memory_space<vmem>>, vector<1x8x256xbf16>
    %588 = vector.shape_cast %587 : vector<1x8x256xbf16> to vector<8x256xbf16>
    %c1_564 = arith.constant 1 : index
    %c0_565 = arith.constant 0 : index
    %c0_566 = arith.constant 0 : index
    %589 = vector.load %arg2[%c1_564, %c0_565, %c0_566] : memref<4x256x128xbf16, #tpu.memory_space<vmem>>, vector<1x256x128xbf16>
    %590 = vector.shape_cast %589 : vector<1x256x128xbf16> to vector<256x128xbf16>
    %cst_567 = arith.constant dense<0.000000e+00> : vector<8x128xf32>
    %591 = tpu.matmul %588, %590, %cst_567 {dimension_numbers = #tpu.dot_dimension_numbers<[1], [0], [0], [1], [0, 0, 1, 1], [], []>} : vector<8x256xbf16>, vector<256x128xbf16>, vector<8x128xf32> -> vector<8x128xf32>
    %592 = arith.addf %586, %591 : vector<8x128xf32>
    %c26_568 = arith.constant 26 : index
    %c0_569 = arith.constant 0 : index
    %c0_570 = arith.constant 0 : index
    %593 = vector.load %arg1[%c26_568, %c0_569, %c0_570] : memref<36x8x256xbf16, #tpu.memory_space<vmem>>, vector<1x8x256xbf16>
    %594 = vector.shape_cast %593 : vector<1x8x256xbf16> to vector<8x256xbf16>
    %c2_571 = arith.constant 2 : index
    %c0_572 = arith.constant 0 : index
    %c0_573 = arith.constant 0 : index
    %595 = vector.load %arg2[%c2_571, %c0_572, %c0_573] : memref<4x256x128xbf16, #tpu.memory_space<vmem>>, vector<1x256x128xbf16>
    %596 = vector.shape_cast %595 : vector<1x256x128xbf16> to vector<256x128xbf16>
    %cst_574 = arith.constant dense<0.000000e+00> : vector<8x128xf32>
    %597 = tpu.matmul %594, %596, %cst_574 {dimension_numbers = #tpu.dot_dimension_numbers<[1], [0], [0], [1], [0, 0, 1, 1], [], []>} : vector<8x256xbf16>, vector<256x128xbf16>, vector<8x128xf32> -> vector<8x128xf32>
    %598 = arith.addf %592, %597 : vector<8x128xf32>
    %c27 = arith.constant 27 : index
    %c0_575 = arith.constant 0 : index
    %c0_576 = arith.constant 0 : index
    %599 = vector.load %arg1[%c27, %c0_575, %c0_576] : memref<36x8x256xbf16, #tpu.memory_space<vmem>>, vector<1x8x256xbf16>
    %600 = vector.shape_cast %599 : vector<1x8x256xbf16> to vector<8x256xbf16>
    %c3_577 = arith.constant 3 : index
    %c0_578 = arith.constant 0 : index
    %c0_579 = arith.constant 0 : index
    %601 = vector.load %arg2[%c3_577, %c0_578, %c0_579] : memref<4x256x128xbf16, #tpu.memory_space<vmem>>, vector<1x256x128xbf16>
    %602 = vector.shape_cast %601 : vector<1x256x128xbf16> to vector<256x128xbf16>
    %cst_580 = arith.constant dense<0.000000e+00> : vector<8x128xf32>
    %603 = tpu.matmul %600, %602, %cst_580 {dimension_numbers = #tpu.dot_dimension_numbers<[1], [0], [0], [1], [0, 0, 1, 1], [], []>} : vector<8x256xbf16>, vector<256x128xbf16>, vector<8x128xf32> -> vector<8x128xf32>
    %604 = arith.addf %598, %603 : vector<8x128xf32>
    %605 = vector.broadcast %0 : vector<1x128xf32> to vector<8x128xf32>
    %606 = arith.addf %604, %605 : vector<8x128xf32>
    %cst_581 = arith.constant 0.000000e+00 : f32
    %607 = vector.broadcast %cst_581 : f32 to vector<8x128xf32>
    %608 = arith.maximumf %606, %607 : vector<8x128xf32>
    %609 = arith.truncf %608 : vector<8x128xf32> to vector<8x128xbf16>
    %c17_582 = arith.constant 17 : index
    %c0_583 = arith.constant 0 : index
    %c0_584 = arith.constant 0 : index
    %610 = vector.load %arg4[%c17_582, %c0_583, %c0_584] : memref<25x128x256xbf16, #tpu.memory_space<vmem>>, vector<1x128x256xbf16>
    %611 = vector.shape_cast %610 : vector<1x128x256xbf16> to vector<128x256xbf16>
    %cst_585 = arith.constant dense<0.000000e+00> : vector<8x256xf32>
    %612 = tpu.matmul %609, %611, %cst_585 {dimension_numbers = #tpu.dot_dimension_numbers<[1], [0], [0], [1], [0, 0, 1, 1], [], []>} : vector<8x128xbf16>, vector<128x256xbf16>, vector<8x256xf32> -> vector<8x256xf32>
    %613 = arith.addf %579, %612 : vector<8x256xf32>
    %cst_586 = arith.constant 0.000000e+00 : f32
    %614 = vector.broadcast %cst_586 : f32 to vector<8x128xf32>
    %c21_587 = arith.constant 21 : index
    %c0_588 = arith.constant 0 : index
    %c0_589 = arith.constant 0 : index
    %615 = vector.load %arg1[%c21_587, %c0_588, %c0_589] : memref<36x8x256xbf16, #tpu.memory_space<vmem>>, vector<1x8x256xbf16>
    %616 = vector.shape_cast %615 : vector<1x8x256xbf16> to vector<8x256xbf16>
    %c0_590 = arith.constant 0 : index
    %c0_591 = arith.constant 0 : index
    %c0_592 = arith.constant 0 : index
    %617 = vector.load %arg2[%c0_590, %c0_591, %c0_592] : memref<4x256x128xbf16, #tpu.memory_space<vmem>>, vector<1x256x128xbf16>
    %618 = vector.shape_cast %617 : vector<1x256x128xbf16> to vector<256x128xbf16>
    %cst_593 = arith.constant dense<0.000000e+00> : vector<8x128xf32>
    %619 = tpu.matmul %616, %618, %cst_593 {dimension_numbers = #tpu.dot_dimension_numbers<[1], [0], [0], [1], [0, 0, 1, 1], [], []>} : vector<8x256xbf16>, vector<256x128xbf16>, vector<8x128xf32> -> vector<8x128xf32>
    %620 = arith.addf %614, %619 : vector<8x128xf32>
    %c22_594 = arith.constant 22 : index
    %c0_595 = arith.constant 0 : index
    %c0_596 = arith.constant 0 : index
    %621 = vector.load %arg1[%c22_594, %c0_595, %c0_596] : memref<36x8x256xbf16, #tpu.memory_space<vmem>>, vector<1x8x256xbf16>
    %622 = vector.shape_cast %621 : vector<1x8x256xbf16> to vector<8x256xbf16>
    %c1_597 = arith.constant 1 : index
    %c0_598 = arith.constant 0 : index
    %c0_599 = arith.constant 0 : index
    %623 = vector.load %arg2[%c1_597, %c0_598, %c0_599] : memref<4x256x128xbf16, #tpu.memory_space<vmem>>, vector<1x256x128xbf16>
    %624 = vector.shape_cast %623 : vector<1x256x128xbf16> to vector<256x128xbf16>
    %cst_600 = arith.constant dense<0.000000e+00> : vector<8x128xf32>
    %625 = tpu.matmul %622, %624, %cst_600 {dimension_numbers = #tpu.dot_dimension_numbers<[1], [0], [0], [1], [0, 0, 1, 1], [], []>} : vector<8x256xbf16>, vector<256x128xbf16>, vector<8x128xf32> -> vector<8x128xf32>
    %626 = arith.addf %620, %625 : vector<8x128xf32>
    %c27_601 = arith.constant 27 : index
    %c0_602 = arith.constant 0 : index
    %c0_603 = arith.constant 0 : index
    %627 = vector.load %arg1[%c27_601, %c0_602, %c0_603] : memref<36x8x256xbf16, #tpu.memory_space<vmem>>, vector<1x8x256xbf16>
    %628 = vector.shape_cast %627 : vector<1x8x256xbf16> to vector<8x256xbf16>
    %c2_604 = arith.constant 2 : index
    %c0_605 = arith.constant 0 : index
    %c0_606 = arith.constant 0 : index
    %629 = vector.load %arg2[%c2_604, %c0_605, %c0_606] : memref<4x256x128xbf16, #tpu.memory_space<vmem>>, vector<1x256x128xbf16>
    %630 = vector.shape_cast %629 : vector<1x256x128xbf16> to vector<256x128xbf16>
    %cst_607 = arith.constant dense<0.000000e+00> : vector<8x128xf32>
    %631 = tpu.matmul %628, %630, %cst_607 {dimension_numbers = #tpu.dot_dimension_numbers<[1], [0], [0], [1], [0, 0, 1, 1], [], []>} : vector<8x256xbf16>, vector<256x128xbf16>, vector<8x128xf32> -> vector<8x128xf32>
    %632 = arith.addf %626, %631 : vector<8x128xf32>
    %c28 = arith.constant 28 : index
    %c0_608 = arith.constant 0 : index
    %c0_609 = arith.constant 0 : index
    %633 = vector.load %arg1[%c28, %c0_608, %c0_609] : memref<36x8x256xbf16, #tpu.memory_space<vmem>>, vector<1x8x256xbf16>
    %634 = vector.shape_cast %633 : vector<1x8x256xbf16> to vector<8x256xbf16>
    %c3_610 = arith.constant 3 : index
    %c0_611 = arith.constant 0 : index
    %c0_612 = arith.constant 0 : index
    %635 = vector.load %arg2[%c3_610, %c0_611, %c0_612] : memref<4x256x128xbf16, #tpu.memory_space<vmem>>, vector<1x256x128xbf16>
    %636 = vector.shape_cast %635 : vector<1x256x128xbf16> to vector<256x128xbf16>
    %cst_613 = arith.constant dense<0.000000e+00> : vector<8x128xf32>
    %637 = tpu.matmul %634, %636, %cst_613 {dimension_numbers = #tpu.dot_dimension_numbers<[1], [0], [0], [1], [0, 0, 1, 1], [], []>} : vector<8x256xbf16>, vector<256x128xbf16>, vector<8x128xf32> -> vector<8x128xf32>
    %638 = arith.addf %632, %637 : vector<8x128xf32>
    %639 = vector.broadcast %0 : vector<1x128xf32> to vector<8x128xf32>
    %640 = arith.addf %638, %639 : vector<8x128xf32>
    %cst_614 = arith.constant 0.000000e+00 : f32
    %641 = vector.broadcast %cst_614 : f32 to vector<8x128xf32>
    %642 = arith.maximumf %640, %641 : vector<8x128xf32>
    %643 = arith.truncf %642 : vector<8x128xf32> to vector<8x128xbf16>
    %c18_615 = arith.constant 18 : index
    %c0_616 = arith.constant 0 : index
    %c0_617 = arith.constant 0 : index
    %644 = vector.load %arg4[%c18_615, %c0_616, %c0_617] : memref<25x128x256xbf16, #tpu.memory_space<vmem>>, vector<1x128x256xbf16>
    %645 = vector.shape_cast %644 : vector<1x128x256xbf16> to vector<128x256xbf16>
    %cst_618 = arith.constant dense<0.000000e+00> : vector<8x256xf32>
    %646 = tpu.matmul %643, %645, %cst_618 {dimension_numbers = #tpu.dot_dimension_numbers<[1], [0], [0], [1], [0, 0, 1, 1], [], []>} : vector<8x128xbf16>, vector<128x256xbf16>, vector<8x256xf32> -> vector<8x256xf32>
    %647 = arith.addf %613, %646 : vector<8x256xf32>
    %cst_619 = arith.constant 0.000000e+00 : f32
    %648 = vector.broadcast %cst_619 : f32 to vector<8x128xf32>
    %c22_620 = arith.constant 22 : index
    %c0_621 = arith.constant 0 : index
    %c0_622 = arith.constant 0 : index
    %649 = vector.load %arg1[%c22_620, %c0_621, %c0_622] : memref<36x8x256xbf16, #tpu.memory_space<vmem>>, vector<1x8x256xbf16>
    %650 = vector.shape_cast %649 : vector<1x8x256xbf16> to vector<8x256xbf16>
    %c0_623 = arith.constant 0 : index
    %c0_624 = arith.constant 0 : index
    %c0_625 = arith.constant 0 : index
    %651 = vector.load %arg2[%c0_623, %c0_624, %c0_625] : memref<4x256x128xbf16, #tpu.memory_space<vmem>>, vector<1x256x128xbf16>
    %652 = vector.shape_cast %651 : vector<1x256x128xbf16> to vector<256x128xbf16>
    %cst_626 = arith.constant dense<0.000000e+00> : vector<8x128xf32>
    %653 = tpu.matmul %650, %652, %cst_626 {dimension_numbers = #tpu.dot_dimension_numbers<[1], [0], [0], [1], [0, 0, 1, 1], [], []>} : vector<8x256xbf16>, vector<256x128xbf16>, vector<8x128xf32> -> vector<8x128xf32>
    %654 = arith.addf %648, %653 : vector<8x128xf32>
    %c23_627 = arith.constant 23 : index
    %c0_628 = arith.constant 0 : index
    %c0_629 = arith.constant 0 : index
    %655 = vector.load %arg1[%c23_627, %c0_628, %c0_629] : memref<36x8x256xbf16, #tpu.memory_space<vmem>>, vector<1x8x256xbf16>
    %656 = vector.shape_cast %655 : vector<1x8x256xbf16> to vector<8x256xbf16>
    %c1_630 = arith.constant 1 : index
    %c0_631 = arith.constant 0 : index
    %c0_632 = arith.constant 0 : index
    %657 = vector.load %arg2[%c1_630, %c0_631, %c0_632] : memref<4x256x128xbf16, #tpu.memory_space<vmem>>, vector<1x256x128xbf16>
    %658 = vector.shape_cast %657 : vector<1x256x128xbf16> to vector<256x128xbf16>
    %cst_633 = arith.constant dense<0.000000e+00> : vector<8x128xf32>
    %659 = tpu.matmul %656, %658, %cst_633 {dimension_numbers = #tpu.dot_dimension_numbers<[1], [0], [0], [1], [0, 0, 1, 1], [], []>} : vector<8x256xbf16>, vector<256x128xbf16>, vector<8x128xf32> -> vector<8x128xf32>
    %660 = arith.addf %654, %659 : vector<8x128xf32>
    %c28_634 = arith.constant 28 : index
    %c0_635 = arith.constant 0 : index
    %c0_636 = arith.constant 0 : index
    %661 = vector.load %arg1[%c28_634, %c0_635, %c0_636] : memref<36x8x256xbf16, #tpu.memory_space<vmem>>, vector<1x8x256xbf16>
    %662 = vector.shape_cast %661 : vector<1x8x256xbf16> to vector<8x256xbf16>
    %c2_637 = arith.constant 2 : index
    %c0_638 = arith.constant 0 : index
    %c0_639 = arith.constant 0 : index
    %663 = vector.load %arg2[%c2_637, %c0_638, %c0_639] : memref<4x256x128xbf16, #tpu.memory_space<vmem>>, vector<1x256x128xbf16>
    %664 = vector.shape_cast %663 : vector<1x256x128xbf16> to vector<256x128xbf16>
    %cst_640 = arith.constant dense<0.000000e+00> : vector<8x128xf32>
    %665 = tpu.matmul %662, %664, %cst_640 {dimension_numbers = #tpu.dot_dimension_numbers<[1], [0], [0], [1], [0, 0, 1, 1], [], []>} : vector<8x256xbf16>, vector<256x128xbf16>, vector<8x128xf32> -> vector<8x128xf32>
    %666 = arith.addf %660, %665 : vector<8x128xf32>
    %c29 = arith.constant 29 : index
    %c0_641 = arith.constant 0 : index
    %c0_642 = arith.constant 0 : index
    %667 = vector.load %arg1[%c29, %c0_641, %c0_642] : memref<36x8x256xbf16, #tpu.memory_space<vmem>>, vector<1x8x256xbf16>
    %668 = vector.shape_cast %667 : vector<1x8x256xbf16> to vector<8x256xbf16>
    %c3_643 = arith.constant 3 : index
    %c0_644 = arith.constant 0 : index
    %c0_645 = arith.constant 0 : index
    %669 = vector.load %arg2[%c3_643, %c0_644, %c0_645] : memref<4x256x128xbf16, #tpu.memory_space<vmem>>, vector<1x256x128xbf16>
    %670 = vector.shape_cast %669 : vector<1x256x128xbf16> to vector<256x128xbf16>
    %cst_646 = arith.constant dense<0.000000e+00> : vector<8x128xf32>
    %671 = tpu.matmul %668, %670, %cst_646 {dimension_numbers = #tpu.dot_dimension_numbers<[1], [0], [0], [1], [0, 0, 1, 1], [], []>} : vector<8x256xbf16>, vector<256x128xbf16>, vector<8x128xf32> -> vector<8x128xf32>
    %672 = arith.addf %666, %671 : vector<8x128xf32>
    %673 = vector.broadcast %0 : vector<1x128xf32> to vector<8x128xf32>
    %674 = arith.addf %672, %673 : vector<8x128xf32>
    %cst_647 = arith.constant 0.000000e+00 : f32
    %675 = vector.broadcast %cst_647 : f32 to vector<8x128xf32>
    %676 = arith.maximumf %674, %675 : vector<8x128xf32>
    %677 = arith.truncf %676 : vector<8x128xf32> to vector<8x128xbf16>
    %c19_648 = arith.constant 19 : index
    %c0_649 = arith.constant 0 : index
    %c0_650 = arith.constant 0 : index
    %678 = vector.load %arg4[%c19_648, %c0_649, %c0_650] : memref<25x128x256xbf16, #tpu.memory_space<vmem>>, vector<1x128x256xbf16>
    %679 = vector.shape_cast %678 : vector<1x128x256xbf16> to vector<128x256xbf16>
    %cst_651 = arith.constant dense<0.000000e+00> : vector<8x256xf32>
    %680 = tpu.matmul %677, %679, %cst_651 {dimension_numbers = #tpu.dot_dimension_numbers<[1], [0], [0], [1], [0, 0, 1, 1], [], []>} : vector<8x128xbf16>, vector<128x256xbf16>, vector<8x256xf32> -> vector<8x256xf32>
    %681 = arith.addf %647, %680 : vector<8x256xf32>
    %cst_652 = arith.constant 0.000000e+00 : f32
    %682 = vector.broadcast %cst_652 : f32 to vector<8x128xf32>
    %c24_653 = arith.constant 24 : index
    %c0_654 = arith.constant 0 : index
    %c0_655 = arith.constant 0 : index
    %683 = vector.load %arg1[%c24_653, %c0_654, %c0_655] : memref<36x8x256xbf16, #tpu.memory_space<vmem>>, vector<1x8x256xbf16>
    %684 = vector.shape_cast %683 : vector<1x8x256xbf16> to vector<8x256xbf16>
    %c0_656 = arith.constant 0 : index
    %c0_657 = arith.constant 0 : index
    %c0_658 = arith.constant 0 : index
    %685 = vector.load %arg2[%c0_656, %c0_657, %c0_658] : memref<4x256x128xbf16, #tpu.memory_space<vmem>>, vector<1x256x128xbf16>
    %686 = vector.shape_cast %685 : vector<1x256x128xbf16> to vector<256x128xbf16>
    %cst_659 = arith.constant dense<0.000000e+00> : vector<8x128xf32>
    %687 = tpu.matmul %684, %686, %cst_659 {dimension_numbers = #tpu.dot_dimension_numbers<[1], [0], [0], [1], [0, 0, 1, 1], [], []>} : vector<8x256xbf16>, vector<256x128xbf16>, vector<8x128xf32> -> vector<8x128xf32>
    %688 = arith.addf %682, %687 : vector<8x128xf32>
    %c25_660 = arith.constant 25 : index
    %c0_661 = arith.constant 0 : index
    %c0_662 = arith.constant 0 : index
    %689 = vector.load %arg1[%c25_660, %c0_661, %c0_662] : memref<36x8x256xbf16, #tpu.memory_space<vmem>>, vector<1x8x256xbf16>
    %690 = vector.shape_cast %689 : vector<1x8x256xbf16> to vector<8x256xbf16>
    %c1_663 = arith.constant 1 : index
    %c0_664 = arith.constant 0 : index
    %c0_665 = arith.constant 0 : index
    %691 = vector.load %arg2[%c1_663, %c0_664, %c0_665] : memref<4x256x128xbf16, #tpu.memory_space<vmem>>, vector<1x256x128xbf16>
    %692 = vector.shape_cast %691 : vector<1x256x128xbf16> to vector<256x128xbf16>
    %cst_666 = arith.constant dense<0.000000e+00> : vector<8x128xf32>
    %693 = tpu.matmul %690, %692, %cst_666 {dimension_numbers = #tpu.dot_dimension_numbers<[1], [0], [0], [1], [0, 0, 1, 1], [], []>} : vector<8x256xbf16>, vector<256x128xbf16>, vector<8x128xf32> -> vector<8x128xf32>
    %694 = arith.addf %688, %693 : vector<8x128xf32>
    %c30 = arith.constant 30 : index
    %c0_667 = arith.constant 0 : index
    %c0_668 = arith.constant 0 : index
    %695 = vector.load %arg1[%c30, %c0_667, %c0_668] : memref<36x8x256xbf16, #tpu.memory_space<vmem>>, vector<1x8x256xbf16>
    %696 = vector.shape_cast %695 : vector<1x8x256xbf16> to vector<8x256xbf16>
    %c2_669 = arith.constant 2 : index
    %c0_670 = arith.constant 0 : index
    %c0_671 = arith.constant 0 : index
    %697 = vector.load %arg2[%c2_669, %c0_670, %c0_671] : memref<4x256x128xbf16, #tpu.memory_space<vmem>>, vector<1x256x128xbf16>
    %698 = vector.shape_cast %697 : vector<1x256x128xbf16> to vector<256x128xbf16>
    %cst_672 = arith.constant dense<0.000000e+00> : vector<8x128xf32>
    %699 = tpu.matmul %696, %698, %cst_672 {dimension_numbers = #tpu.dot_dimension_numbers<[1], [0], [0], [1], [0, 0, 1, 1], [], []>} : vector<8x256xbf16>, vector<256x128xbf16>, vector<8x128xf32> -> vector<8x128xf32>
    %700 = arith.addf %694, %699 : vector<8x128xf32>
    %c31 = arith.constant 31 : index
    %c0_673 = arith.constant 0 : index
    %c0_674 = arith.constant 0 : index
    %701 = vector.load %arg1[%c31, %c0_673, %c0_674] : memref<36x8x256xbf16, #tpu.memory_space<vmem>>, vector<1x8x256xbf16>
    %702 = vector.shape_cast %701 : vector<1x8x256xbf16> to vector<8x256xbf16>
    %c3_675 = arith.constant 3 : index
    %c0_676 = arith.constant 0 : index
    %c0_677 = arith.constant 0 : index
    %703 = vector.load %arg2[%c3_675, %c0_676, %c0_677] : memref<4x256x128xbf16, #tpu.memory_space<vmem>>, vector<1x256x128xbf16>
    %704 = vector.shape_cast %703 : vector<1x256x128xbf16> to vector<256x128xbf16>
    %cst_678 = arith.constant dense<0.000000e+00> : vector<8x128xf32>
    %705 = tpu.matmul %702, %704, %cst_678 {dimension_numbers = #tpu.dot_dimension_numbers<[1], [0], [0], [1], [0, 0, 1, 1], [], []>} : vector<8x256xbf16>, vector<256x128xbf16>, vector<8x128xf32> -> vector<8x128xf32>
    %706 = arith.addf %700, %705 : vector<8x128xf32>
    %707 = vector.broadcast %0 : vector<1x128xf32> to vector<8x128xf32>
    %708 = arith.addf %706, %707 : vector<8x128xf32>
    %cst_679 = arith.constant 0.000000e+00 : f32
    %709 = vector.broadcast %cst_679 : f32 to vector<8x128xf32>
    %710 = arith.maximumf %708, %709 : vector<8x128xf32>
    %711 = arith.truncf %710 : vector<8x128xf32> to vector<8x128xbf16>
    %c20_680 = arith.constant 20 : index
    %c0_681 = arith.constant 0 : index
    %c0_682 = arith.constant 0 : index
    %712 = vector.load %arg4[%c20_680, %c0_681, %c0_682] : memref<25x128x256xbf16, #tpu.memory_space<vmem>>, vector<1x128x256xbf16>
    %713 = vector.shape_cast %712 : vector<1x128x256xbf16> to vector<128x256xbf16>
    %cst_683 = arith.constant dense<0.000000e+00> : vector<8x256xf32>
    %714 = tpu.matmul %711, %713, %cst_683 {dimension_numbers = #tpu.dot_dimension_numbers<[1], [0], [0], [1], [0, 0, 1, 1], [], []>} : vector<8x128xbf16>, vector<128x256xbf16>, vector<8x256xf32> -> vector<8x256xf32>
    %715 = arith.addf %681, %714 : vector<8x256xf32>
    %cst_684 = arith.constant 0.000000e+00 : f32
    %716 = vector.broadcast %cst_684 : f32 to vector<8x128xf32>
    %c25_685 = arith.constant 25 : index
    %c0_686 = arith.constant 0 : index
    %c0_687 = arith.constant 0 : index
    %717 = vector.load %arg1[%c25_685, %c0_686, %c0_687] : memref<36x8x256xbf16, #tpu.memory_space<vmem>>, vector<1x8x256xbf16>
    %718 = vector.shape_cast %717 : vector<1x8x256xbf16> to vector<8x256xbf16>
    %c0_688 = arith.constant 0 : index
    %c0_689 = arith.constant 0 : index
    %c0_690 = arith.constant 0 : index
    %719 = vector.load %arg2[%c0_688, %c0_689, %c0_690] : memref<4x256x128xbf16, #tpu.memory_space<vmem>>, vector<1x256x128xbf16>
    %720 = vector.shape_cast %719 : vector<1x256x128xbf16> to vector<256x128xbf16>
    %cst_691 = arith.constant dense<0.000000e+00> : vector<8x128xf32>
    %721 = tpu.matmul %718, %720, %cst_691 {dimension_numbers = #tpu.dot_dimension_numbers<[1], [0], [0], [1], [0, 0, 1, 1], [], []>} : vector<8x256xbf16>, vector<256x128xbf16>, vector<8x128xf32> -> vector<8x128xf32>
    %722 = arith.addf %716, %721 : vector<8x128xf32>
    %c26_692 = arith.constant 26 : index
    %c0_693 = arith.constant 0 : index
    %c0_694 = arith.constant 0 : index
    %723 = vector.load %arg1[%c26_692, %c0_693, %c0_694] : memref<36x8x256xbf16, #tpu.memory_space<vmem>>, vector<1x8x256xbf16>
    %724 = vector.shape_cast %723 : vector<1x8x256xbf16> to vector<8x256xbf16>
    %c1_695 = arith.constant 1 : index
    %c0_696 = arith.constant 0 : index
    %c0_697 = arith.constant 0 : index
    %725 = vector.load %arg2[%c1_695, %c0_696, %c0_697] : memref<4x256x128xbf16, #tpu.memory_space<vmem>>, vector<1x256x128xbf16>
    %726 = vector.shape_cast %725 : vector<1x256x128xbf16> to vector<256x128xbf16>
    %cst_698 = arith.constant dense<0.000000e+00> : vector<8x128xf32>
    %727 = tpu.matmul %724, %726, %cst_698 {dimension_numbers = #tpu.dot_dimension_numbers<[1], [0], [0], [1], [0, 0, 1, 1], [], []>} : vector<8x256xbf16>, vector<256x128xbf16>, vector<8x128xf32> -> vector<8x128xf32>
    %728 = arith.addf %722, %727 : vector<8x128xf32>
    %c31_699 = arith.constant 31 : index
    %c0_700 = arith.constant 0 : index
    %c0_701 = arith.constant 0 : index
    %729 = vector.load %arg1[%c31_699, %c0_700, %c0_701] : memref<36x8x256xbf16, #tpu.memory_space<vmem>>, vector<1x8x256xbf16>
    %730 = vector.shape_cast %729 : vector<1x8x256xbf16> to vector<8x256xbf16>
    %c2_702 = arith.constant 2 : index
    %c0_703 = arith.constant 0 : index
    %c0_704 = arith.constant 0 : index
    %731 = vector.load %arg2[%c2_702, %c0_703, %c0_704] : memref<4x256x128xbf16, #tpu.memory_space<vmem>>, vector<1x256x128xbf16>
    %732 = vector.shape_cast %731 : vector<1x256x128xbf16> to vector<256x128xbf16>
    %cst_705 = arith.constant dense<0.000000e+00> : vector<8x128xf32>
    %733 = tpu.matmul %730, %732, %cst_705 {dimension_numbers = #tpu.dot_dimension_numbers<[1], [0], [0], [1], [0, 0, 1, 1], [], []>} : vector<8x256xbf16>, vector<256x128xbf16>, vector<8x128xf32> -> vector<8x128xf32>
    %734 = arith.addf %728, %733 : vector<8x128xf32>
    %c32 = arith.constant 32 : index
    %c0_706 = arith.constant 0 : index
    %c0_707 = arith.constant 0 : index
    %735 = vector.load %arg1[%c32, %c0_706, %c0_707] : memref<36x8x256xbf16, #tpu.memory_space<vmem>>, vector<1x8x256xbf16>
    %736 = vector.shape_cast %735 : vector<1x8x256xbf16> to vector<8x256xbf16>
    %c3_708 = arith.constant 3 : index
    %c0_709 = arith.constant 0 : index
    %c0_710 = arith.constant 0 : index
    %737 = vector.load %arg2[%c3_708, %c0_709, %c0_710] : memref<4x256x128xbf16, #tpu.memory_space<vmem>>, vector<1x256x128xbf16>
    %738 = vector.shape_cast %737 : vector<1x256x128xbf16> to vector<256x128xbf16>
    %cst_711 = arith.constant dense<0.000000e+00> : vector<8x128xf32>
    %739 = tpu.matmul %736, %738, %cst_711 {dimension_numbers = #tpu.dot_dimension_numbers<[1], [0], [0], [1], [0, 0, 1, 1], [], []>} : vector<8x256xbf16>, vector<256x128xbf16>, vector<8x128xf32> -> vector<8x128xf32>
    %740 = arith.addf %734, %739 : vector<8x128xf32>
    %741 = vector.broadcast %0 : vector<1x128xf32> to vector<8x128xf32>
    %742 = arith.addf %740, %741 : vector<8x128xf32>
    %cst_712 = arith.constant 0.000000e+00 : f32
    %743 = vector.broadcast %cst_712 : f32 to vector<8x128xf32>
    %744 = arith.maximumf %742, %743 : vector<8x128xf32>
    %745 = arith.truncf %744 : vector<8x128xf32> to vector<8x128xbf16>
    %c21_713 = arith.constant 21 : index
    %c0_714 = arith.constant 0 : index
    %c0_715 = arith.constant 0 : index
    %746 = vector.load %arg4[%c21_713, %c0_714, %c0_715] : memref<25x128x256xbf16, #tpu.memory_space<vmem>>, vector<1x128x256xbf16>
    %747 = vector.shape_cast %746 : vector<1x128x256xbf16> to vector<128x256xbf16>
    %cst_716 = arith.constant dense<0.000000e+00> : vector<8x256xf32>
    %748 = tpu.matmul %745, %747, %cst_716 {dimension_numbers = #tpu.dot_dimension_numbers<[1], [0], [0], [1], [0, 0, 1, 1], [], []>} : vector<8x128xbf16>, vector<128x256xbf16>, vector<8x256xf32> -> vector<8x256xf32>
    %749 = arith.addf %715, %748 : vector<8x256xf32>
    %cst_717 = arith.constant 0.000000e+00 : f32
    %750 = vector.broadcast %cst_717 : f32 to vector<8x128xf32>
    %c26_718 = arith.constant 26 : index
    %c0_719 = arith.constant 0 : index
    %c0_720 = arith.constant 0 : index
    %751 = vector.load %arg1[%c26_718, %c0_719, %c0_720] : memref<36x8x256xbf16, #tpu.memory_space<vmem>>, vector<1x8x256xbf16>
    %752 = vector.shape_cast %751 : vector<1x8x256xbf16> to vector<8x256xbf16>
    %c0_721 = arith.constant 0 : index
    %c0_722 = arith.constant 0 : index
    %c0_723 = arith.constant 0 : index
    %753 = vector.load %arg2[%c0_721, %c0_722, %c0_723] : memref<4x256x128xbf16, #tpu.memory_space<vmem>>, vector<1x256x128xbf16>
    %754 = vector.shape_cast %753 : vector<1x256x128xbf16> to vector<256x128xbf16>
    %cst_724 = arith.constant dense<0.000000e+00> : vector<8x128xf32>
    %755 = tpu.matmul %752, %754, %cst_724 {dimension_numbers = #tpu.dot_dimension_numbers<[1], [0], [0], [1], [0, 0, 1, 1], [], []>} : vector<8x256xbf16>, vector<256x128xbf16>, vector<8x128xf32> -> vector<8x128xf32>
    %756 = arith.addf %750, %755 : vector<8x128xf32>
    %c27_725 = arith.constant 27 : index
    %c0_726 = arith.constant 0 : index
    %c0_727 = arith.constant 0 : index
    %757 = vector.load %arg1[%c27_725, %c0_726, %c0_727] : memref<36x8x256xbf16, #tpu.memory_space<vmem>>, vector<1x8x256xbf16>
    %758 = vector.shape_cast %757 : vector<1x8x256xbf16> to vector<8x256xbf16>
    %c1_728 = arith.constant 1 : index
    %c0_729 = arith.constant 0 : index
    %c0_730 = arith.constant 0 : index
    %759 = vector.load %arg2[%c1_728, %c0_729, %c0_730] : memref<4x256x128xbf16, #tpu.memory_space<vmem>>, vector<1x256x128xbf16>
    %760 = vector.shape_cast %759 : vector<1x256x128xbf16> to vector<256x128xbf16>
    %cst_731 = arith.constant dense<0.000000e+00> : vector<8x128xf32>
    %761 = tpu.matmul %758, %760, %cst_731 {dimension_numbers = #tpu.dot_dimension_numbers<[1], [0], [0], [1], [0, 0, 1, 1], [], []>} : vector<8x256xbf16>, vector<256x128xbf16>, vector<8x128xf32> -> vector<8x128xf32>
    %762 = arith.addf %756, %761 : vector<8x128xf32>
    %c32_732 = arith.constant 32 : index
    %c0_733 = arith.constant 0 : index
    %c0_734 = arith.constant 0 : index
    %763 = vector.load %arg1[%c32_732, %c0_733, %c0_734] : memref<36x8x256xbf16, #tpu.memory_space<vmem>>, vector<1x8x256xbf16>
    %764 = vector.shape_cast %763 : vector<1x8x256xbf16> to vector<8x256xbf16>
    %c2_735 = arith.constant 2 : index
    %c0_736 = arith.constant 0 : index
    %c0_737 = arith.constant 0 : index
    %765 = vector.load %arg2[%c2_735, %c0_736, %c0_737] : memref<4x256x128xbf16, #tpu.memory_space<vmem>>, vector<1x256x128xbf16>
    %766 = vector.shape_cast %765 : vector<1x256x128xbf16> to vector<256x128xbf16>
    %cst_738 = arith.constant dense<0.000000e+00> : vector<8x128xf32>
    %767 = tpu.matmul %764, %766, %cst_738 {dimension_numbers = #tpu.dot_dimension_numbers<[1], [0], [0], [1], [0, 0, 1, 1], [], []>} : vector<8x256xbf16>, vector<256x128xbf16>, vector<8x128xf32> -> vector<8x128xf32>
    %768 = arith.addf %762, %767 : vector<8x128xf32>
    %c33 = arith.constant 33 : index
    %c0_739 = arith.constant 0 : index
    %c0_740 = arith.constant 0 : index
    %769 = vector.load %arg1[%c33, %c0_739, %c0_740] : memref<36x8x256xbf16, #tpu.memory_space<vmem>>, vector<1x8x256xbf16>
    %770 = vector.shape_cast %769 : vector<1x8x256xbf16> to vector<8x256xbf16>
    %c3_741 = arith.constant 3 : index
    %c0_742 = arith.constant 0 : index
    %c0_743 = arith.constant 0 : index
    %771 = vector.load %arg2[%c3_741, %c0_742, %c0_743] : memref<4x256x128xbf16, #tpu.memory_space<vmem>>, vector<1x256x128xbf16>
    %772 = vector.shape_cast %771 : vector<1x256x128xbf16> to vector<256x128xbf16>
    %cst_744 = arith.constant dense<0.000000e+00> : vector<8x128xf32>
    %773 = tpu.matmul %770, %772, %cst_744 {dimension_numbers = #tpu.dot_dimension_numbers<[1], [0], [0], [1], [0, 0, 1, 1], [], []>} : vector<8x256xbf16>, vector<256x128xbf16>, vector<8x128xf32> -> vector<8x128xf32>
    %774 = arith.addf %768, %773 : vector<8x128xf32>
    %775 = vector.broadcast %0 : vector<1x128xf32> to vector<8x128xf32>
    %776 = arith.addf %774, %775 : vector<8x128xf32>
    %cst_745 = arith.constant 0.000000e+00 : f32
    %777 = vector.broadcast %cst_745 : f32 to vector<8x128xf32>
    %778 = arith.maximumf %776, %777 : vector<8x128xf32>
    %779 = arith.truncf %778 : vector<8x128xf32> to vector<8x128xbf16>
    %c22_746 = arith.constant 22 : index
    %c0_747 = arith.constant 0 : index
    %c0_748 = arith.constant 0 : index
    %780 = vector.load %arg4[%c22_746, %c0_747, %c0_748] : memref<25x128x256xbf16, #tpu.memory_space<vmem>>, vector<1x128x256xbf16>
    %781 = vector.shape_cast %780 : vector<1x128x256xbf16> to vector<128x256xbf16>
    %cst_749 = arith.constant dense<0.000000e+00> : vector<8x256xf32>
    %782 = tpu.matmul %779, %781, %cst_749 {dimension_numbers = #tpu.dot_dimension_numbers<[1], [0], [0], [1], [0, 0, 1, 1], [], []>} : vector<8x128xbf16>, vector<128x256xbf16>, vector<8x256xf32> -> vector<8x256xf32>
    %783 = arith.addf %749, %782 : vector<8x256xf32>
    %cst_750 = arith.constant 0.000000e+00 : f32
    %784 = vector.broadcast %cst_750 : f32 to vector<8x128xf32>
    %c27_751 = arith.constant 27 : index
    %c0_752 = arith.constant 0 : index
    %c0_753 = arith.constant 0 : index
    %785 = vector.load %arg1[%c27_751, %c0_752, %c0_753] : memref<36x8x256xbf16, #tpu.memory_space<vmem>>, vector<1x8x256xbf16>
    %786 = vector.shape_cast %785 : vector<1x8x256xbf16> to vector<8x256xbf16>
    %c0_754 = arith.constant 0 : index
    %c0_755 = arith.constant 0 : index
    %c0_756 = arith.constant 0 : index
    %787 = vector.load %arg2[%c0_754, %c0_755, %c0_756] : memref<4x256x128xbf16, #tpu.memory_space<vmem>>, vector<1x256x128xbf16>
    %788 = vector.shape_cast %787 : vector<1x256x128xbf16> to vector<256x128xbf16>
    %cst_757 = arith.constant dense<0.000000e+00> : vector<8x128xf32>
    %789 = tpu.matmul %786, %788, %cst_757 {dimension_numbers = #tpu.dot_dimension_numbers<[1], [0], [0], [1], [0, 0, 1, 1], [], []>} : vector<8x256xbf16>, vector<256x128xbf16>, vector<8x128xf32> -> vector<8x128xf32>
    %790 = arith.addf %784, %789 : vector<8x128xf32>
    %c28_758 = arith.constant 28 : index
    %c0_759 = arith.constant 0 : index
    %c0_760 = arith.constant 0 : index
    %791 = vector.load %arg1[%c28_758, %c0_759, %c0_760] : memref<36x8x256xbf16, #tpu.memory_space<vmem>>, vector<1x8x256xbf16>
    %792 = vector.shape_cast %791 : vector<1x8x256xbf16> to vector<8x256xbf16>
    %c1_761 = arith.constant 1 : index
    %c0_762 = arith.constant 0 : index
    %c0_763 = arith.constant 0 : index
    %793 = vector.load %arg2[%c1_761, %c0_762, %c0_763] : memref<4x256x128xbf16, #tpu.memory_space<vmem>>, vector<1x256x128xbf16>
    %794 = vector.shape_cast %793 : vector<1x256x128xbf16> to vector<256x128xbf16>
    %cst_764 = arith.constant dense<0.000000e+00> : vector<8x128xf32>
    %795 = tpu.matmul %792, %794, %cst_764 {dimension_numbers = #tpu.dot_dimension_numbers<[1], [0], [0], [1], [0, 0, 1, 1], [], []>} : vector<8x256xbf16>, vector<256x128xbf16>, vector<8x128xf32> -> vector<8x128xf32>
    %796 = arith.addf %790, %795 : vector<8x128xf32>
    %c33_765 = arith.constant 33 : index
    %c0_766 = arith.constant 0 : index
    %c0_767 = arith.constant 0 : index
    %797 = vector.load %arg1[%c33_765, %c0_766, %c0_767] : memref<36x8x256xbf16, #tpu.memory_space<vmem>>, vector<1x8x256xbf16>
    %798 = vector.shape_cast %797 : vector<1x8x256xbf16> to vector<8x256xbf16>
    %c2_768 = arith.constant 2 : index
    %c0_769 = arith.constant 0 : index
    %c0_770 = arith.constant 0 : index
    %799 = vector.load %arg2[%c2_768, %c0_769, %c0_770] : memref<4x256x128xbf16, #tpu.memory_space<vmem>>, vector<1x256x128xbf16>
    %800 = vector.shape_cast %799 : vector<1x256x128xbf16> to vector<256x128xbf16>
    %cst_771 = arith.constant dense<0.000000e+00> : vector<8x128xf32>
    %801 = tpu.matmul %798, %800, %cst_771 {dimension_numbers = #tpu.dot_dimension_numbers<[1], [0], [0], [1], [0, 0, 1, 1], [], []>} : vector<8x256xbf16>, vector<256x128xbf16>, vector<8x128xf32> -> vector<8x128xf32>
    %802 = arith.addf %796, %801 : vector<8x128xf32>
    %c34 = arith.constant 34 : index
    %c0_772 = arith.constant 0 : index
    %c0_773 = arith.constant 0 : index
    %803 = vector.load %arg1[%c34, %c0_772, %c0_773] : memref<36x8x256xbf16, #tpu.memory_space<vmem>>, vector<1x8x256xbf16>
    %804 = vector.shape_cast %803 : vector<1x8x256xbf16> to vector<8x256xbf16>
    %c3_774 = arith.constant 3 : index
    %c0_775 = arith.constant 0 : index
    %c0_776 = arith.constant 0 : index
    %805 = vector.load %arg2[%c3_774, %c0_775, %c0_776] : memref<4x256x128xbf16, #tpu.memory_space<vmem>>, vector<1x256x128xbf16>
    %806 = vector.shape_cast %805 : vector<1x256x128xbf16> to vector<256x128xbf16>
    %cst_777 = arith.constant dense<0.000000e+00> : vector<8x128xf32>
    %807 = tpu.matmul %804, %806, %cst_777 {dimension_numbers = #tpu.dot_dimension_numbers<[1], [0], [0], [1], [0, 0, 1, 1], [], []>} : vector<8x256xbf16>, vector<256x128xbf16>, vector<8x128xf32> -> vector<8x128xf32>
    %808 = arith.addf %802, %807 : vector<8x128xf32>
    %809 = vector.broadcast %0 : vector<1x128xf32> to vector<8x128xf32>
    %810 = arith.addf %808, %809 : vector<8x128xf32>
    %cst_778 = arith.constant 0.000000e+00 : f32
    %811 = vector.broadcast %cst_778 : f32 to vector<8x128xf32>
    %812 = arith.maximumf %810, %811 : vector<8x128xf32>
    %813 = arith.truncf %812 : vector<8x128xf32> to vector<8x128xbf16>
    %c23_779 = arith.constant 23 : index
    %c0_780 = arith.constant 0 : index
    %c0_781 = arith.constant 0 : index
    %814 = vector.load %arg4[%c23_779, %c0_780, %c0_781] : memref<25x128x256xbf16, #tpu.memory_space<vmem>>, vector<1x128x256xbf16>
    %815 = vector.shape_cast %814 : vector<1x128x256xbf16> to vector<128x256xbf16>
    %cst_782 = arith.constant dense<0.000000e+00> : vector<8x256xf32>
    %816 = tpu.matmul %813, %815, %cst_782 {dimension_numbers = #tpu.dot_dimension_numbers<[1], [0], [0], [1], [0, 0, 1, 1], [], []>} : vector<8x128xbf16>, vector<128x256xbf16>, vector<8x256xf32> -> vector<8x256xf32>
    %817 = arith.addf %783, %816 : vector<8x256xf32>
    %cst_783 = arith.constant 0.000000e+00 : f32
    %818 = vector.broadcast %cst_783 : f32 to vector<8x128xf32>
    %c28_784 = arith.constant 28 : index
    %c0_785 = arith.constant 0 : index
    %c0_786 = arith.constant 0 : index
    %819 = vector.load %arg1[%c28_784, %c0_785, %c0_786] : memref<36x8x256xbf16, #tpu.memory_space<vmem>>, vector<1x8x256xbf16>
    %820 = vector.shape_cast %819 : vector<1x8x256xbf16> to vector<8x256xbf16>
    %c0_787 = arith.constant 0 : index
    %c0_788 = arith.constant 0 : index
    %c0_789 = arith.constant 0 : index
    %821 = vector.load %arg2[%c0_787, %c0_788, %c0_789] : memref<4x256x128xbf16, #tpu.memory_space<vmem>>, vector<1x256x128xbf16>
    %822 = vector.shape_cast %821 : vector<1x256x128xbf16> to vector<256x128xbf16>
    %cst_790 = arith.constant dense<0.000000e+00> : vector<8x128xf32>
    %823 = tpu.matmul %820, %822, %cst_790 {dimension_numbers = #tpu.dot_dimension_numbers<[1], [0], [0], [1], [0, 0, 1, 1], [], []>} : vector<8x256xbf16>, vector<256x128xbf16>, vector<8x128xf32> -> vector<8x128xf32>
    %824 = arith.addf %818, %823 : vector<8x128xf32>
    %c29_791 = arith.constant 29 : index
    %c0_792 = arith.constant 0 : index
    %c0_793 = arith.constant 0 : index
    %825 = vector.load %arg1[%c29_791, %c0_792, %c0_793] : memref<36x8x256xbf16, #tpu.memory_space<vmem>>, vector<1x8x256xbf16>
    %826 = vector.shape_cast %825 : vector<1x8x256xbf16> to vector<8x256xbf16>
    %c1_794 = arith.constant 1 : index
    %c0_795 = arith.constant 0 : index
    %c0_796 = arith.constant 0 : index
    %827 = vector.load %arg2[%c1_794, %c0_795, %c0_796] : memref<4x256x128xbf16, #tpu.memory_space<vmem>>, vector<1x256x128xbf16>
    %828 = vector.shape_cast %827 : vector<1x256x128xbf16> to vector<256x128xbf16>
    %cst_797 = arith.constant dense<0.000000e+00> : vector<8x128xf32>
    %829 = tpu.matmul %826, %828, %cst_797 {dimension_numbers = #tpu.dot_dimension_numbers<[1], [0], [0], [1], [0, 0, 1, 1], [], []>} : vector<8x256xbf16>, vector<256x128xbf16>, vector<8x128xf32> -> vector<8x128xf32>
    %830 = arith.addf %824, %829 : vector<8x128xf32>
    %c34_798 = arith.constant 34 : index
    %c0_799 = arith.constant 0 : index
    %c0_800 = arith.constant 0 : index
    %831 = vector.load %arg1[%c34_798, %c0_799, %c0_800] : memref<36x8x256xbf16, #tpu.memory_space<vmem>>, vector<1x8x256xbf16>
    %832 = vector.shape_cast %831 : vector<1x8x256xbf16> to vector<8x256xbf16>
    %c2_801 = arith.constant 2 : index
    %c0_802 = arith.constant 0 : index
    %c0_803 = arith.constant 0 : index
    %833 = vector.load %arg2[%c2_801, %c0_802, %c0_803] : memref<4x256x128xbf16, #tpu.memory_space<vmem>>, vector<1x256x128xbf16>
    %834 = vector.shape_cast %833 : vector<1x256x128xbf16> to vector<256x128xbf16>
    %cst_804 = arith.constant dense<0.000000e+00> : vector<8x128xf32>
    %835 = tpu.matmul %832, %834, %cst_804 {dimension_numbers = #tpu.dot_dimension_numbers<[1], [0], [0], [1], [0, 0, 1, 1], [], []>} : vector<8x256xbf16>, vector<256x128xbf16>, vector<8x128xf32> -> vector<8x128xf32>
    %836 = arith.addf %830, %835 : vector<8x128xf32>
    %c35 = arith.constant 35 : index
    %c0_805 = arith.constant 0 : index
    %c0_806 = arith.constant 0 : index
    %837 = vector.load %arg1[%c35, %c0_805, %c0_806] : memref<36x8x256xbf16, #tpu.memory_space<vmem>>, vector<1x8x256xbf16>
    %838 = vector.shape_cast %837 : vector<1x8x256xbf16> to vector<8x256xbf16>
    %c3_807 = arith.constant 3 : index
    %c0_808 = arith.constant 0 : index
    %c0_809 = arith.constant 0 : index
    %839 = vector.load %arg2[%c3_807, %c0_808, %c0_809] : memref<4x256x128xbf16, #tpu.memory_space<vmem>>, vector<1x256x128xbf16>
    %840 = vector.shape_cast %839 : vector<1x256x128xbf16> to vector<256x128xbf16>
    %cst_810 = arith.constant dense<0.000000e+00> : vector<8x128xf32>
    %841 = tpu.matmul %838, %840, %cst_810 {dimension_numbers = #tpu.dot_dimension_numbers<[1], [0], [0], [1], [0, 0, 1, 1], [], []>} : vector<8x256xbf16>, vector<256x128xbf16>, vector<8x128xf32> -> vector<8x128xf32>
    %842 = arith.addf %836, %841 : vector<8x128xf32>
    %843 = vector.broadcast %0 : vector<1x128xf32> to vector<8x128xf32>
    %844 = arith.addf %842, %843 : vector<8x128xf32>
    %cst_811 = arith.constant 0.000000e+00 : f32
    %845 = vector.broadcast %cst_811 : f32 to vector<8x128xf32>
    %846 = arith.maximumf %844, %845 : vector<8x128xf32>
    %847 = arith.truncf %846 : vector<8x128xf32> to vector<8x128xbf16>
    %c24_812 = arith.constant 24 : index
    %c0_813 = arith.constant 0 : index
    %c0_814 = arith.constant 0 : index
    %848 = vector.load %arg4[%c24_812, %c0_813, %c0_814] : memref<25x128x256xbf16, #tpu.memory_space<vmem>>, vector<1x128x256xbf16>
    %849 = vector.shape_cast %848 : vector<1x128x256xbf16> to vector<128x256xbf16>
    %cst_815 = arith.constant dense<0.000000e+00> : vector<8x256xf32>
    %850 = tpu.matmul %847, %849, %cst_815 {dimension_numbers = #tpu.dot_dimension_numbers<[1], [0], [0], [1], [0, 0, 1, 1], [], []>} : vector<8x128xbf16>, vector<128x256xbf16>, vector<8x256xf32> -> vector<8x256xf32>
    %851 = arith.addf %817, %850 : vector<8x256xf32>
    %c0_816 = arith.constant 0 : index
    %c0_817 = arith.constant 0 : index
    %852 = vector.load %arg5[%c0_816, %c0_817] : memref<1x256xf32, #tpu.memory_space<vmem>>, vector<1x256xf32>
    %853 = vector.broadcast %852 : vector<1x256xf32> to vector<8x256xf32>
    %854 = arith.addf %851, %853 : vector<8x256xf32>
    %855 = math.tanh %854 : vector<8x256xf32>
    %856 = arith.truncf %855 : vector<8x256xf32> to vector<8x256xbf16>
    %c0_818 = arith.constant 0 : index
    %c0_819 = arith.constant 0 : index
    %857 = vector.load %arg6[%c0_818, %c0_819] : memref<256x128xbf16, #tpu.memory_space<vmem>>, vector<256x128xbf16>
    %cst_820 = arith.constant dense<0.000000e+00> : vector<8x128xf32>
    %858 = tpu.matmul %856, %857, %cst_820 {dimension_numbers = #tpu.dot_dimension_numbers<[1], [0], [0], [1], [0, 0, 1, 1], [], []>} : vector<8x256xbf16>, vector<256x128xbf16>, vector<8x128xf32> -> vector<8x128xf32>
    %c0_821 = arith.constant 0 : index
    %c0_822 = arith.constant 0 : index
    %859 = vector.load %arg7[%c0_821, %c0_822] : memref<1x128xf32, #tpu.memory_space<vmem>>, vector<1x128xf32>
    %860 = vector.broadcast %859 : vector<1x128xf32> to vector<8x128xf32>
    %861 = arith.addf %858, %860 : vector<8x128xf32>
    %c0_823 = arith.constant 0 : index
    %c0_824 = arith.constant 0 : index
    %862 = vector.load %arg8[%c0_823, %c0_824] : memref<8x128xf32, #tpu.memory_space<vmem>>, vector<8x128xf32>
    tpu.vector_store %arg8[%c0_823, %c0_824], %861 {strides = array<i32>} : memref<8x128xf32, #tpu.memory_space<vmem>>, vector<8x128xf32>,
    return
  }
  func.func @transform_0(%arg0: i32) -> (i32, i32, i32) {
    %c0_i32 = arith.constant 0 : i32
    %c0_i32_0 = arith.constant 0 : i32
    %c0_i32_1 = arith.constant 0 : i32
    return %c0_i32, %arg0, %c0_i32_0 : i32, i32, i32
  }
  func.func @transform_1(%arg0: i32) -> (i32, i32, i32) {
    %c0_i32 = arith.constant 0 : i32
    %c0_i32_0 = arith.constant 0 : i32
    %c0_i32_1 = arith.constant 0 : i32
    %c0_i32_2 = arith.constant 0 : i32
    return %c0_i32, %c0_i32_0, %c0_i32_1 : i32, i32, i32
  }
  func.func @transform_2(%arg0: i32) -> (i32, i32) {
    %c0_i32 = arith.constant 0 : i32
    %c0_i32_0 = arith.constant 0 : i32
    %c0_i32_1 = arith.constant 0 : i32
    return %c0_i32, %c0_i32_0 : i32, i32
  }
  func.func @transform_3(%arg0: i32) -> (i32, i32, i32) {
    %c0_i32 = arith.constant 0 : i32
    %c0_i32_0 = arith.constant 0 : i32
    %c0_i32_1 = arith.constant 0 : i32
    %c0_i32_2 = arith.constant 0 : i32
    return %c0_i32, %c0_i32_0, %c0_i32_1 : i32, i32, i32
  }
  func.func @transform_4(%arg0: i32) -> (i32, i32) {
    %c0_i32 = arith.constant 0 : i32
    %c0_i32_0 = arith.constant 0 : i32
    %c0_i32_1 = arith.constant 0 : i32
    return %c0_i32, %c0_i32_0 : i32, i32
  }
  func.func @transform_5(%arg0: i32) -> (i32, i32) {
    %c0_i32 = arith.constant 0 : i32
    %c0_i32_0 = arith.constant 0 : i32
    %c0_i32_1 = arith.constant 0 : i32
    return %c0_i32, %c0_i32_0 : i32, i32
  }
  func.func @transform_6(%arg0: i32) -> (i32, i32) {
    %c0_i32 = arith.constant 0 : i32
    %c0_i32_0 = arith.constant 0 : i32
    %c0_i32_1 = arith.constant 0 : i32
    return %c0_i32, %c0_i32_0 : i32, i32
  }
  func.func @transform_7(%arg0: i32) -> (i32, i32) {
    %c0_i32 = arith.constant 0 : i32
    %c0_i32_0 = arith.constant 0 : i32
    return %arg0, %c0_i32 : i32, i32
  }
}

</mosaic_0001>

<llo_original>
// kernel: transfer3_forward.1
$region0: #{transfer3_forward.1}
  #allocation0 [shape = 'u32[]', space=smem, size = 0x4, offset = 0x4, fixed_abs, tag = 'smem constant byte address 0x4 - core index']
  #allocation1 [shape = 'u32[72,128]{1,0:T(1,128)}', space=vmem, size = 0x9000, scoped, tag = 'internal scratch']
  %s0 = inlined_call_operand.vmem [shape: bf16[36,8,256], index: 0, kind: input, shape index: {}]
  %s1 = inlined_call_operand.hbm [shape: bf16[4,256,128], index: 1, kind: input, shape index: {}]
  %s2 = inlined_call_operand.hbm [shape: f32[1,128], index: 2, kind: input, shape index: {}]
  %s3 = inlined_call_operand.hbm [shape: bf16[25,128,256], index: 3, kind: input, shape index: {}]
  %s4 = inlined_call_operand.hbm [shape: f32[1,256], index: 4, kind: input, shape index: {}]
  %s5 = inlined_call_operand.hbm [shape: bf16[256,128], index: 5, kind: input, shape index: {}]
  %s6 = inlined_call_operand.hbm [shape: f32[1,128], index: 6, kind: input, shape index: {}]
  %s7 = inlined_call_operand.vmem [shape: f32[8,128], index: 7, kind: output, shape index: {}]
  %s8 = sld [smem:[#allocation0]]
  $region62: #{transfer3_forward.1} parent=0
    _
  %s10 = ssub.s32 1, %s8
  %s11 = scalar_select 0, %s10, %s8
  $region1: #{transfer3_forward.1} parent=0
    #allocation2 [shape = 'u8[262144]{0}', space=vmem, size = 0x40000, scoped, tag = 'input window, operand 1, single buffered']
    #allocation3 [shape = 's32[1]{0}', space=sflag, size = 0x4, scoped, tag = 'scoped memory for transfer3_forward.1']
    #allocation4 [shape = 'u8[512]{0}', space=vmem, size = 0x400, scoped, tag = 'input window, operand 2, single buffered']
    #allocation5 [shape = 's32[1]{0}', space=sflag, size = 0x4, scoped, tag = 'scoped memory for transfer3_forward.1']
    #allocation6 [shape = 'u8[1638400]{0}', space=vmem, size = 0x190000, scoped, tag = 'input window, operand 3, single buffered']
    #allocation7 [shape = 'u8[1024]{0}', space=vmem, size = 0x400, scoped, tag = 'input window, operand 4, single buffered']
    #allocation8 [shape = 's32[1]{0}', space=sflag, size = 0x4, scoped, tag = 'scoped memory for transfer3_forward.1']
    #allocation9 [shape = 'u8[65536]{0}', space=vmem, size = 0x10000, scoped, tag = 'input window, operand 5, single buffered']
    #allocation10 [shape = 'u8[512]{0}', space=vmem, size = 0x400, scoped, tag = 'input window, operand 6, single buffered']
    #allocation11 [shape = 's32[1]{0}', space=sflag, size = 0x4, scoped, tag = 'scoped memory for transfer3_forward.1']
    %12 = vsyncpa [#allocation3], 0
    %13 = vsyncpa [#allocation5], 0
    %14 = vsyncpa [#allocation8], 0
    %15 = vsyncpa [#allocation11], 0
    // Predicated region
    $region2: #{transfer3_forward.1} parent=1 // pred_check
      _
    $region3: #{transfer3_forward.1} parent=1 // pred_check_branch
      %17 = sbr.rel (0) target = $region5
    $region4: #{transfer3_forward.1} parent=1 // pred_region
      _
    $region5: #{transfer3_forward.1} parent=1 // pred_fallthru
      _
    // Predicated region
    $region6: #{transfer3_forward.1} parent=1 // pred_check
      _
    $region7: #{transfer3_forward.1} parent=1 // pred_check_branch
      %19 = sbr.rel (0) target = $region9
    $region8: #{transfer3_forward.1} parent=1 // pred_region
      %21 = vsyncadd [#allocation3], 0
      %s22 = sshll.u32 %s1, 4
      %s23 = int_to_ptr.hbm [resolvable:$true] %s22
      %s24 = sshll.u32 [#allocation2], 4
      %s25 = int_to_ptr.vmem [resolvable:$true] %s24
      %30 = dma.hbm_to_vmem [thread:$0]  %s23, 8192, %s25, [#allocation3], 64, 64, 4
    $region9: #{transfer3_forward.1} parent=1 // pred_fallthru
      _
    // Predicated region
    $region10: #{transfer3_forward.1} parent=1 // pred_check
      _
    $region11: #{transfer3_forward.1} parent=1 // pred_check_branch
      %32 = sbr.rel (0) target = $region13
    $region12: #{transfer3_forward.1} parent=1 // pred_region
      %34 = vsyncadd [#allocation5], 0
      %s36 = sshll.u32 %s2, 4
      %s37 = int_to_ptr.hbm [resolvable:$true] %s36
      %s38 = sshll.u32 [#allocation4], 4
      %s39 = int_to_ptr.vmem [resolvable:$true] %s38
      %41 = dma.hbm_to_vmem [thread:$0]  %s37, 16, %s39, [#allocation5]
    $region13: #{transfer3_forward.1} parent=1 // pred_fallthru
      _
    // Predicated region
    $region14: #{transfer3_forward.1} parent=1 // pred_check
      _
    $region15: #{transfer3_forward.1} parent=1 // pred_check_branch
      %43 = sbr.rel (0) target = $region17
    $region16: #{transfer3_forward.1} parent=1 // pred_region
      %45 = vsyncadd [#allocation5], 0
      %s46 = sshll.u32 %s3, 4
      %s47 = int_to_ptr.hbm [resolvable:$true] %s46
      %s48 = sshll.u32 [#allocation6], 4
      %s49 = int_to_ptr.vmem [resolvable:$true] %s48
      %54 = dma.hbm_to_vmem [thread:$0]  %s47, 51200, %s49, [#allocation5], 128, 128, 8
    $region17: #{transfer3_forward.1} parent=1 // pred_fallthru
      _
    // Predicated region
    $region18: #{transfer3_forward.1} parent=1 // pred_check
      _
    $region19: #{transfer3_forward.1} parent=1 // pred_check_branch
      %56 = sbr.rel (0) target = $region21
    $region20: #{transfer3_forward.1} parent=1 // pred_region
      %58 = vsyncadd [#allocation8], 0
      %s60 = sshll.u32 %s4, 4
      %s61 = int_to_ptr.hbm [resolvable:$true] %s60
      %s62 = sshll.u32 [#allocation7], 4
      %s63 = int_to_ptr.vmem [resolvable:$true] %s62
      %65 = dma.hbm_to_vmem [thread:$0]  %s61, 32, %s63, [#allocation8]
    $region21: #{transfer3_forward.1} parent=1 // pred_fallthru
      _
    // Predicated region
    $region22: #{transfer3_forward.1} parent=1 // pred_check
      _
    $region23: #{transfer3_forward.1} parent=1 // pred_check_branch
      %67 = sbr.rel (0) target = $region25
    $region24: #{transfer3_forward.1} parent=1 // pred_region
      %69 = vsyncadd [#allocation8], 0
      %s70 = sshll.u32 %s5, 4
      %s71 = int_to_ptr.hbm [resolvable:$true] %s70
      %s72 = sshll.u32 [#allocation9], 4
      %s73 = int_to_ptr.vmem [resolvable:$true] %s72
      %78 = dma.hbm_to_vmem [thread:$0]  %s71, 2048, %s73, [#allocation8], 64, 64, 4
    $region25: #{transfer3_forward.1} parent=1 // pred_fallthru
      _
    // Predicated region
    $region26: #{transfer3_forward.1} parent=1 // pred_check
      _
    $region27: #{transfer3_forward.1} parent=1 // pred_check_branch
      %80 = sbr.rel (0) target = $region29
    $region28: #{transfer3_forward.1} parent=1 // pred_region
      %82 = vsyncadd [#allocation11], 0
      %s84 = sshll.u32 %s6, 4
      %s85 = int_to_ptr.hbm [resolvable:$true] %s84
      %s86 = sshll.u32 [#allocation10], 4
      %s87 = int_to_ptr.vmem [resolvable:$true] %s86
      %89 = dma.hbm_to_vmem [thread:$0]  %s85, 16, %s87, [#allocation11]
    $region29: #{transfer3_forward.1} parent=1 // pred_fallthru
      _
    // Predicated region
    $region30: #{transfer3_forward.1} parent=1 // pred_check
      _
    $region31: #{transfer3_forward.1} parent=1 // pred_check_branch
      %91 = sbr.rel (0) target = $region33
    $region32: #{transfer3_forward.1} parent=1 // pred_region
      %93 = dma.done [#allocation3], 8192
    $region33: #{transfer3_forward.1} parent=1 // pred_fallthru
      _
    // Predicated region
    $region34: #{transfer3_forward.1} parent=1 // pred_check
      _
    $region35: #{transfer3_forward.1} parent=1 // pred_check_branch
      %95 = sbr.rel (0) target = $region37
    $region36: #{transfer3_forward.1} parent=1 // pred_region
      %97 = dma.done [#allocation5], 16
    $region37: #{transfer3_forward.1} parent=1 // pred_fallthru
      _
    // Predicated region
    $region38: #{transfer3_forward.1} parent=1 // pred_check
      _
    $region39: #{transfer3_forward.1} parent=1 // pred_check_branch
      %99 = sbr.rel (0) target = $region41
    $region40: #{transfer3_forward.1} parent=1 // pred_region
      %101 = dma.done [#allocation5], 51200
    $region41: #{transfer3_forward.1} parent=1 // pred_fallthru
      _
    // Predicated region
    $region42: #{transfer3_forward.1} parent=1 // pred_check
      _
    $region43: #{transfer3_forward.1} parent=1 // pred_check_branch
      %103 = sbr.rel (0) target = $region45
    $region44: #{transfer3_forward.1} parent=1 // pred_region
      %105 = dma.done [#allocation8], 32
    $region45: #{transfer3_forward.1} parent=1 // pred_fallthru
      _
    // Predicated region
    $region46: #{transfer3_forward.1} parent=1 // pred_check
      _
    $region47: #{transfer3_forward.1} parent=1 // pred_check_branch
      %107 = sbr.rel (0) target = $region49
    $region48: #{transfer3_forward.1} parent=1 // pred_region
      %109 = dma.done [#allocation8], 2048
    $region49: #{transfer3_forward.1} parent=1 // pred_fallthru
      _
    // Predicated region
    $region50: #{transfer3_forward.1} parent=1 // pred_check
      _
    $region51: #{transfer3_forward.1} parent=1 // pred_check_branch
      %111 = sbr.rel (0) target = $region53
    $region52: #{transfer3_forward.1} parent=1 // pred_region
      %113 = dma.done [#allocation11], 16
    $region53: #{transfer3_forward.1} parent=1 // pred_fallthru
      _
    %v114 = vld [vmem:[#allocation4] sm:$0x1]
    %v115 = vld [vmem:[%s0] sm:$0xff]
    %v116 = vld [vmem:[#allocation2] sm:$0xf]
    %v117 = vld [vmem:[#allocation2 + $0x4] sm:$0xf]
    %v118 = vld [vmem:[#allocation2 + $0x8] sm:$0xf]
    %v119 = vld [vmem:[#allocation2 + $0xc] sm:$0xf]
    %v120 = vld [vmem:[#allocation2 + $0x10] sm:$0xf]
    %v121 = vld [vmem:[#allocation2 + $0x14] sm:$0xf]
    %v122 = vld [vmem:[#allocation2 + $0x18] sm:$0xf]
    %v123 = vld [vmem:[#allocation2 + $0x1c] sm:$0xf]
    %v124 = vld [vmem:[#allocation2 + $0x20] sm:$0xf]
    %v125 = vld [vmem:[#allocation2 + $0x24] sm:$0xf]
    %v126 = vld [vmem:[#allocation2 + $0x28] sm:$0xf]
    %v127 = vld [vmem:[#allocation2 + $0x2c] sm:$0xf]
    %v128 = vld [vmem:[#allocation2 + $0x30] sm:$0xf]
    %v129 = vld [vmem:[#allocation2 + $0x34] sm:$0xf]
    %v130 = vld [vmem:[#allocation2 + $0x38] sm:$0xf]
    %v131 = vld [vmem:[#allocation2 + $0x3c] sm:$0xf]
    %v132 = vld [vmem:[#allocation2 + $0x40] sm:$0xf]
    %v133 = vld [vmem:[#allocation2 + $0x44] sm:$0xf]
    %v134 = vld [vmem:[#allocation2 + $0x48] sm:$0xf]
    %v135 = vld [vmem:[#allocation2 + $0x4c] sm:$0xf]
    %v136 = vld [vmem:[#allocation2 + $0x50] sm:$0xf]
    %v137 = vld [vmem:[#allocation2 + $0x54] sm:$0xf]
    %v138 = vld [vmem:[#allocation2 + $0x58] sm:$0xf]
    %v139 = vld [vmem:[#allocation2 + $0x5c] sm:$0xf]
    %v140 = vld [vmem:[#allocation2 + $0x60] sm:$0xf]
    %v141 = vld [vmem:[#allocation2 + $0x64] sm:$0xf]
    %v142 = vld [vmem:[#allocation2 + $0x68] sm:$0xf]
    %v143 = vld [vmem:[#allocation2 + $0x6c] sm:$0xf]
    %v144 = vld [vmem:[#allocation2 + $0x70] sm:$0xf]
    %v145 = vld [vmem:[#allocation2 + $0x74] sm:$0xf]
    %v146 = vld [vmem:[#allocation2 + $0x78] sm:$0xf]
    %v147 = vld [vmem:[#allocation2 + $0x7c] sm:$0xf]
    %s148 = scalar_lea.vmem %s0, 8
    %v149 = vld [vmem:[%s148] sm:$0xff]
    %s150 = scalar_lea.vmem [#allocation2], 128
    %v151 = vld [vmem:[%s150] sm:$0xf]
    %v152 = vld [vmem:[%s150 + $0x4] sm:$0xf]
    %v153 = vld [vmem:[%s150 + $0x8] sm:$0xf]
    %v154 = vld [vmem:[%s150 + $0xc] sm:$0xf]
    %v155 = vld [vmem:[%s150 + $0x10] sm:$0xf]
    %v156 = vld [vmem:[%s150 + $0x14] sm:$0xf]
    %v157 = vld [vmem:[%s150 + $0x18] sm:$0xf]
    %v158 = vld [vmem:[%s150 + $0x1c] sm:$0xf]
    %v159 = vld [vmem:[%s150 + $0x20] sm:$0xf]
    %v160 = vld [vmem:[%s150 + $0x24] sm:$0xf]
    %v161 = vld [vmem:[%s150 + $0x28] sm:$0xf]
    %v162 = vld [vmem:[%s150 + $0x2c] sm:$0xf]
    %v163 = vld [vmem:[%s150 + $0x30] sm:$0xf]
    %v164 = vld [vmem:[%s150 + $0x34] sm:$0xf]
    %v165 = vld [vmem:[%s150 + $0x38] sm:$0xf]
    %v166 = vld [vmem:[%s150 + $0x3c] sm:$0xf]
    %v167 = vld [vmem:[%s150 + $0x40] sm:$0xf]
    %v168 = vld [vmem:[%s150 + $0x44] sm:$0xf]
    %v169 = vld [vmem:[%s150 + $0x48] sm:$0xf]
    %v170 = vld [vmem:[%s150 + $0x4c] sm:$0xf]
    %v171 = vld [vmem:[%s150 + $0x50] sm:$0xf]
    %v172 = vld [vmem:[%s150 + $0x54] sm:$0xf]
    %v173 = vld [vmem:[%s150 + $0x58] sm:$0xf]
    %v174 = vld [vmem:[%s150 + $0x5c] sm:$0xf]
    %v175 = vld [vmem:[%s150 + $0x60] sm:$0xf]
    %v176 = vld [vmem:[%s150 + $0x64] sm:$0xf]
    %v177 = vld [vmem:[%s150 + $0x68] sm:$0xf]
    %v178 = vld [vmem:[%s150 + $0x6c] sm:$0xf]
    %v179 = vld [vmem:[%s150 + $0x70] sm:$0xf]
    %v180 = vld [vmem:[%s150 + $0x74] sm:$0xf]
    %v181 = vld [vmem:[%s150 + $0x78] sm:$0xf]
    %v182 = vld [vmem:[%s150 + $0x7c] sm:$0xf]
    %v184 = vunpack.c.l.b16 %v149
    %v185 = vunpack.c.h.b16 %v149
    %v186 = vpack.c.b16 %v184, %v184
    %v187 = vpack.c.b16 %v185, %v185
    %v222 = vunpack.c.l.b16 %v151
    %v223 = vunpack.c.l.b16 %v152
    %v224 = vunpack.c.l.b16 %v153
    %v225 = vunpack.c.l.b16 %v154
    %v226 = vunpack.c.l.b16 %v155
    %v227 = vunpack.c.l.b16 %v156
    %v228 = vunpack.c.l.b16 %v157
    %v229 = vunpack.c.l.b16 %v158
    %v230 = vunpack.c.l.b16 %v159
    %v231 = vunpack.c.l.b16 %v160
    %v232 = vunpack.c.l.b16 %v161
    %v233 = vunpack.c.l.b16 %v162
    %v234 = vunpack.c.l.b16 %v163
    %v235 = vunpack.c.l.b16 %v164
    %v236 = vunpack.c.l.b16 %v165
    %v237 = vunpack.c.l.b16 %v166
    %v238 = vunpack.c.l.b16 %v167
    %v239 = vunpack.c.l.b16 %v168
    %v240 = vunpack.c.l.b16 %v169
    %v241 = vunpack.c.l.b16 %v170
    %v242 = vunpack.c.l.b16 %v171
    %v243 = vunpack.c.l.b16 %v172
    %v244 = vunpack.c.l.b16 %v173
    %v245 = vunpack.c.l.b16 %v174
    %v246 = vunpack.c.l.b16 %v175
    %v247 = vunpack.c.l.b16 %v176
    %v248 = vunpack.c.l.b16 %v177
    %v249 = vunpack.c.l.b16 %v178
    %v250 = vunpack.c.l.b16 %v179
    %v251 = vunpack.c.l.b16 %v180
    %v252 = vunpack.c.l.b16 %v181
    %v253 = vunpack.c.l.b16 %v182
    %v254 = vpack.c.b16 %v223, %v222
    %v255 = vpack.c.b16 %v225, %v224
    %v256 = vpack.c.b16 %v227, %v226
    %v257 = vpack.c.b16 %v229, %v228
    %v258 = vpack.c.b16 %v231, %v230
    %v259 = vpack.c.b16 %v233, %v232
    %v260 = vpack.c.b16 %v235, %v234
    %v261 = vpack.c.b16 %v237, %v236
    %v262 = vpack.c.b16 %v239, %v238
    %v263 = vpack.c.b16 %v241, %v240
    %v264 = vpack.c.b16 %v243, %v242
    %v265 = vpack.c.b16 %v245, %v244
    %v266 = vpack.c.b16 %v247, %v246
    %v267 = vpack.c.b16 %v249, %v248
    %v268 = vpack.c.b16 %v251, %v250
    %v269 = vpack.c.b16 %v253, %v252
    %286 = vmatpush.bf16.msra.mxu0 %v261
    %287 = vmatpush.bf16.msra.mxu0 %v260
    %288 = vmatpush.bf16.msra.mxu0 %v259
    %289 = vmatpush.bf16.msra.mxu0 %v258
    %290 = vmatpush.bf16.msra.mxu0 %v257
    %291 = vmatpush.bf16.msra.mxu0 %v256
    %292 = vmatpush.bf16.msra.mxu0 %v255
    %293 = vmatpush.bf16.msra.mxu0 %v254
    %294 = vmatmul.bf16.gmra.mxu0 %v186
    %v295 = vpop.f32.mrf.mxu0
    %v296 = vadd.f32 0.0, %v295
    %v297 = vpop.f32.mrf.mxu0
    %298 = vdwg.mxu0
    %299 = vmatpush.bf16.msra.mxu0 %v269
    %300 = vmatpush.bf16.msra.mxu0 %v268
    %301 = vmatpush.bf16.msra.mxu0 %v267
    %302 = vmatpush.bf16.msra.mxu0 %v266
    %303 = vmatpush.bf16.msra.mxu0 %v265
    %304 = vmatpush.bf16.msra.mxu0 %v264
    %305 = vmatpush.bf16.msra.mxu0 %v263
    %306 = vmatpush.bf16.msra.mxu0 %v262
    %307 = vmatmul.bf16.gmra.mxu0 %v187
    %v308 = vpop.f32.mrf.mxu0
    %v309 = vadd.f32 %v296, %v308
    %v310 = vpop.f32.mrf.mxu0
    %311 = vdwg.mxu0
    %v313 = vunpack.c.l.b16 %v115
    %v314 = vunpack.c.h.b16 %v115
    %v315 = vpack.c.b16 %v313, %v313
    %v316 = vpack.c.b16 %v314, %v314
    %v351 = vunpack.c.l.b16 %v116
    %v352 = vunpack.c.l.b16 %v117
    %v353 = vunpack.c.l.b16 %v118
    %v354 = vunpack.c.l.b16 %v119
    %v355 = vunpack.c.l.b16 %v120
    %v356 = vunpack.c.l.b16 %v121
    %v357 = vunpack.c.l.b16 %v122
    %v358 = vunpack.c.l.b16 %v123
    %v359 = vunpack.c.l.b16 %v124
    %v360 = vunpack.c.l.b16 %v125
    %v361 = vunpack.c.l.b16 %v126
    %v362 = vunpack.c.l.b16 %v127
    %v363 = vunpack.c.l.b16 %v128
    %v364 = vunpack.c.l.b16 %v129
    %v365 = vunpack.c.l.b16 %v130
    %v366 = vunpack.c.l.b16 %v131
    %v367 = vunpack.c.l.b16 %v132
    %v368 = vunpack.c.l.b16 %v133
    %v369 = vunpack.c.l.b16 %v134
    %v370 = vunpack.c.l.b16 %v135
    %v371 = vunpack.c.l.b16 %v136
    %v372 = vunpack.c.l.b16 %v137
    %v373 = vunpack.c.l.b16 %v138
    %v374 = vunpack.c.l.b16 %v139
    %v375 = vunpack.c.l.b16 %v140
    %v376 = vunpack.c.l.b16 %v141
    %v377 = vunpack.c.l.b16 %v142
    %v378 = vunpack.c.l.b16 %v143
    %v379 = vunpack.c.l.b16 %v144
    %v380 = vunpack.c.l.b16 %v145
    %v381 = vunpack.c.l.b16 %v146
    %v382 = vunpack.c.l.b16 %v147
    %v383 = vpack.c.b16 %v352, %v351
    %v384 = vpack.c.b16 %v354, %v353
    %v385 = vpack.c.b16 %v356, %v355
    %v386 = vpack.c.b16 %v358, %v357
    %v387 = vpack.c.b16 %v360, %v359
    %v388 = vpack.c.b16 %v362, %v361
    %v389 = vpack.c.b16 %v364, %v363
    %v390 = vpack.c.b16 %v366, %v365
    %v391 = vpack.c.b16 %v368, %v367
    %v392 = vpack.c.b16 %v370, %v369
    %v393 = vpack.c.b16 %v372, %v371
    %v394 = vpack.c.b16 %v374, %v373
    %v395 = vpack.c.b16 %v376, %v375
    %v396 = vpack.c.b16 %v378, %v377
    %v397 = vpack.c.b16 %v380, %v379
    %v398 = vpack.c.b16 %v382, %v381
    %415 = vmatpush.bf16.msra.mxu0 %v390
    %416 = vmatpush.bf16.msra.mxu0 %v389
    %417 = vmatpush.bf16.msra.mxu0 %v388
    %418 = vmatpush.bf16.msra.mxu0 %v387
    %419 = vmatpush.bf16.msra.mxu0 %v386
    %420 = vmatpush.bf16.msra.mxu0 %v385
    %421 = vmatpush.bf16.msra.mxu0 %v384
    %422 = vmatpush.bf16.msra.mxu0 %v383
    %423 = vmatmul.bf16.gmra.mxu0 %v315
    %v424 = vpop.f32.mrf.mxu0
    %v425 = vadd.f32 %v309, %v424
    %v426 = vpop.f32.mrf.mxu0
    %427 = vdwg.mxu0
    %428 = vmatpush.bf16.msra.mxu0 %v398
    %429 = vmatpush.bf16.msra.mxu0 %v397
    %430 = vmatpush.bf16.msra.mxu0 %v396
    %431 = vmatpush.bf16.msra.mxu0 %v395
    %432 = vmatpush.bf16.msra.mxu0 %v394
    %433 = vmatpush.bf16.msra.mxu0 %v393
    %434 = vmatpush.bf16.msra.mxu0 %v392
    %435 = vmatpush.bf16.msra.mxu0 %v391
    %436 = vmatmul.bf16.gmra.mxu0 %v316
    %v437 = vpop.f32.mrf.mxu0
    %v438 = vadd.f32 %v425, %v437
    %v439 = vpop.f32.mrf.mxu0
    %440 = vdwg.mxu0
    %s441 = scalar_lea.vmem %s0, 48
    %v442 = vld [vmem:[%s441] sm:$0xff]
    %s443 = scalar_lea.vmem [#allocation2], 256
    %v444 = vld [vmem:[%s443] sm:$0xf]
    %v445 = vld [vmem:[%s443 + $0x4] sm:$0xf]
    %v446 = vld [vmem:[%s443 + $0x8] sm:$0xf]
    %v447 = vld [vmem:[%s443 + $0xc] sm:$0xf]
    %v448 = vld [vmem:[%s443 + $0x10] sm:$0xf]
    %v449 = vld [vmem:[%s443 + $0x14] sm:$0xf]
    %v450 = vld [vmem:[%s443 + $0x18] sm:$0xf]
    %v451 = vld [vmem:[%s443 + $0x1c] sm:$0xf]
    %v452 = vld [vmem:[%s443 + $0x20] sm:$0xf]
    %v453 = vld [vmem:[%s443 + $0x24] sm:$0xf]
    %v454 = vld [vmem:[%s443 + $0x28] sm:$0xf]
    %v455 = vld [vmem:[%s443 + $0x2c] sm:$0xf]
    %v456 = vld [vmem:[%s443 + $0x30] sm:$0xf]
    %v457 = vld [vmem:[%s443 + $0x34] sm:$0xf]
    %v458 = vld [vmem:[%s443 + $0x38] sm:$0xf]
    %v459 = vld [vmem:[%s443 + $0x3c] sm:$0xf]
    %v460 = vld [vmem:[%s443 + $0x40] sm:$0xf]
    %v461 = vld [vmem:[%s443 + $0x44] sm:$0xf]
    %v462 = vld [vmem:[%s443 + $0x48] sm:$0xf]
    %v463 = vld [vmem:[%s443 + $0x4c] sm:$0xf]
    %v464 = vld [vmem:[%s443 + $0x50] sm:$0xf]
    %v465 = vld [vmem:[%s443 + $0x54] sm:$0xf]
    %v466 = vld [vmem:[%s443 + $0x58] sm:$0xf]
    %v467 = vld [vmem:[%s443 + $0x5c] sm:$0xf]
    %v468 = vld [vmem:[%s443 + $0x60] sm:$0xf]
    %v469 = vld [vmem:[%s443 + $0x64] sm:$0xf]
    %v470 = vld [vmem:[%s443 + $0x68] sm:$0xf]
    %v471 = vld [vmem:[%s443 + $0x6c] sm:$0xf]
    %v472 = vld [vmem:[%s443 + $0x70] sm:$0xf]
    %v473 = vld [vmem:[%s443 + $0x74] sm:$0xf]
    %v474 = vld [vmem:[%s443 + $0x78] sm:$0xf]
    %v475 = vld [vmem:[%s443 + $0x7c] sm:$0xf]
    %v477 = vunpack.c.l.b16 %v442
    %v478 = vunpack.c.h.b16 %v442
    %v479 = vpack.c.b16 %v477, %v477
    %v480 = vpack.c.b16 %v478, %v478
    %v515 = vunpack.c.l.b16 %v444
    %v516 = vunpack.c.l.b16 %v445
    %v517 = vunpack.c.l.b16 %v446
    %v518 = vunpack.c.l.b16 %v447
    %v519 = vunpack.c.l.b16 %v448
    %v520 = vunpack.c.l.b16 %v449
    %v521 = vunpack.c.l.b16 %v450
    %v522 = vunpack.c.l.b16 %v451
    %v523 = vunpack.c.l.b16 %v452
    %v524 = vunpack.c.l.b16 %v453
    %v525 = vunpack.c.l.b16 %v454
    %v526 = vunpack.c.l.b16 %v455
    %v527 = vunpack.c.l.b16 %v456
    %v528 = vunpack.c.l.b16 %v457
    %v529 = vunpack.c.l.b16 %v458
    %v530 = vunpack.c.l.b16 %v459
    %v531 = vunpack.c.l.b16 %v460
    %v532 = vunpack.c.l.b16 %v461
    %v533 = vunpack.c.l.b16 %v462
    %v534 = vunpack.c.l.b16 %v463
    %v535 = vunpack.c.l.b16 %v464
    %v536 = vunpack.c.l.b16 %v465
    %v537 = vunpack.c.l.b16 %v466
    %v538 = vunpack.c.l.b16 %v467
    %v539 = vunpack.c.l.b16 %v468
    %v540 = vunpack.c.l.b16 %v469
    %v541 = vunpack.c.l.b16 %v470
    %v542 = vunpack.c.l.b16 %v471
    %v543 = vunpack.c.l.b16 %v472
    %v544 = vunpack.c.l.b16 %v473
    %v545 = vunpack.c.l.b16 %v474
    %v546 = vunpack.c.l.b16 %v475
    %v547 = vpack.c.b16 %v516, %v515
    %v548 = vpack.c.b16 %v518, %v517
    %v549 = vpack.c.b16 %v520, %v519
    %v550 = vpack.c.b16 %v522, %v521
    %v551 = vpack.c.b16 %v524, %v523
    %v552 = vpack.c.b16 %v526, %v525
    %v553 = vpack.c.b16 %v528, %v527
    %v554 = vpack.c.b16 %v530, %v529
    %v555 = vpack.c.b16 %v532, %v531
    %v556 = vpack.c.b16 %v534, %v533
    %v557 = vpack.c.b16 %v536, %v535
    %v558 = vpack.c.b16 %v538, %v537
    %v559 = vpack.c.b16 %v540, %v539
    %v560 = vpack.c.b16 %v542, %v541
    %v561 = vpack.c.b16 %v544, %v543
    %v562 = vpack.c.b16 %v546, %v545
    %579 = vmatpush.bf16.msra.mxu0 %v554
    %580 = vmatpush.bf16.msra.mxu0 %v553
    %581 = vmatpush.bf16.msra.mxu0 %v552
    %582 = vmatpush.bf16.msra.mxu0 %v551
    %583 = vmatpush.bf16.msra.mxu0 %v550
    %584 = vmatpush.bf16.msra.mxu0 %v549
    %585 = vmatpush.bf16.msra.mxu0 %v548
    %586 = vmatpush.bf16.msra.mxu0 %v547
    %587 = vmatmul.bf16.gmra.mxu0 %v479
    %v588 = vpop.f32.mrf.mxu0
    %v589 = vadd.f32 0.0, %v588
    %v590 = vpop.f32.mrf.mxu0
    %591 = vdwg.mxu0
    %592 = vmatpush.bf16.msra.mxu0 %v562
    %593 = vmatpush.bf16.msra.mxu0 %v561
    %594 = vmatpush.bf16.msra.mxu0 %v560
    %595 = vmatpush.bf16.msra.mxu0 %v559
    %596 = vmatpush.bf16.msra.mxu0 %v558
    %597 = vmatpush.bf16.msra.mxu0 %v557
    %598 = vmatpush.bf16.msra.mxu0 %v556
    %599 = vmatpush.bf16.msra.mxu0 %v555
    %600 = vmatmul.bf16.gmra.mxu0 %v480
    %v601 = vpop.f32.mrf.mxu0
    %v602 = vadd.f32 %v589, %v601
    %v603 = vpop.f32.mrf.mxu0
    %604 = vdwg.mxu0
    %v605 = vadd.f32 %v438, %v602
    %s606 = scalar_lea.vmem %s0, 56
    %v607 = vld [vmem:[%s606] sm:$0xff]
    %s608 = scalar_lea.vmem [#allocation2], 384
    %v609 = vld [vmem:[%s608] sm:$0xf]
    %v610 = vld [vmem:[%s608 + $0x4] sm:$0xf]
    %v611 = vld [vmem:[%s608 + $0x8] sm:$0xf]
    %v612 = vld [vmem:[%s608 + $0xc] sm:$0xf]
    %v613 = vld [vmem:[%s608 + $0x10] sm:$0xf]
    %v614 = vld [vmem:[%s608 + $0x14] sm:$0xf]
    %v615 = vld [vmem:[%s608 + $0x18] sm:$0xf]
    %v616 = vld [vmem:[%s608 + $0x1c] sm:$0xf]
    %v617 = vld [vmem:[%s608 + $0x20] sm:$0xf]
    %v618 = vld [vmem:[%s608 + $0x24] sm:$0xf]
    %v619 = vld [vmem:[%s608 + $0x28] sm:$0xf]
    %v620 = vld [vmem:[%s608 + $0x2c] sm:$0xf]
    %v621 = vld [vmem:[%s608 + $0x30] sm:$0xf]
    %v622 = vld [vmem:[%s608 + $0x34] sm:$0xf]
    %v623 = vld [vmem:[%s608 + $0x38] sm:$0xf]
    %v624 = vld [vmem:[%s608 + $0x3c] sm:$0xf]
    %v625 = vld [vmem:[%s608 + $0x40] sm:$0xf]
    %v626 = vld [vmem:[%s608 + $0x44] sm:$0xf]
    %v627 = vld [vmem:[%s608 + $0x48] sm:$0xf]
    %v628 = vld [vmem:[%s608 + $0x4c] sm:$0xf]
    %v629 = vld [vmem:[%s608 + $0x50] sm:$0xf]
    %v630 = vld [vmem:[%s608 + $0x54] sm:$0xf]
    %v631 = vld [vmem:[%s608 + $0x58] sm:$0xf]
    %v632 = vld [vmem:[%s608 + $0x5c] sm:$0xf]
    %v633 = vld [vmem:[%s608 + $0x60] sm:$0xf]
    %v634 = vld [vmem:[%s608 + $0x64] sm:$0xf]
    %v635 = vld [vmem:[%s608 + $0x68] sm:$0xf]
    %v636 = vld [vmem:[%s608 + $0x6c] sm:$0xf]
    %v637 = vld [vmem:[%s608 + $0x70] sm:$0xf]
    %v638 = vld [vmem:[%s608 + $0x74] sm:$0xf]
    %v639 = vld [vmem:[%s608 + $0x78] sm:$0xf]
    %v640 = vld [vmem:[%s608 + $0x7c] sm:$0xf]
    %v642 = vunpack.c.l.b16 %v607
    %v643 = vunpack.c.h.b16 %v607
    %v644 = vpack.c.b16 %v642, %v642
    %v645 = vpack.c.b16 %v643, %v643
    %v680 = vunpack.c.l.b16 %v609
    %v681 = vunpack.c.l.b16 %v610
    %v682 = vunpack.c.l.b16 %v611
    %v683 = vunpack.c.l.b16 %v612
    %v684 = vunpack.c.l.b16 %v613
    %v685 = vunpack.c.l.b16 %v614
    %v686 = vunpack.c.l.b16 %v615
    %v687 = vunpack.c.l.b16 %v616
    %v688 = vunpack.c.l.b16 %v617
    %v689 = vunpack.c.l.b16 %v618
    %v690 = vunpack.c.l.b16 %v619
    %v691 = vunpack.c.l.b16 %v620
    %v692 = vunpack.c.l.b16 %v621
    %v693 = vunpack.c.l.b16 %v622
    %v694 = vunpack.c.l.b16 %v623
    %v695 = vunpack.c.l.b16 %v624
    %v696 = vunpack.c.l.b16 %v625
    %v697 = vunpack.c.l.b16 %v626
    %v698 = vunpack.c.l.b16 %v627
    %v699 = vunpack.c.l.b16 %v628
    %v700 = vunpack.c.l.b16 %v629
    %v701 = vunpack.c.l.b16 %v630
    %v702 = vunpack.c.l.b16 %v631
    %v703 = vunpack.c.l.b16 %v632
    %v704 = vunpack.c.l.b16 %v633
    %v705 = vunpack.c.l.b16 %v634
    %v706 = vunpack.c.l.b16 %v635
    %v707 = vunpack.c.l.b16 %v636
    %v708 = vunpack.c.l.b16 %v637
    %v709 = vunpack.c.l.b16 %v638
    %v710 = vunpack.c.l.b16 %v639
    %v711 = vunpack.c.l.b16 %v640
    %v712 = vpack.c.b16 %v681, %v680
    %v713 = vpack.c.b16 %v683, %v682
    %v714 = vpack.c.b16 %v685, %v684
    %v715 = vpack.c.b16 %v687, %v686
    %v716 = vpack.c.b16 %v689, %v688
    %v717 = vpack.c.b16 %v691, %v690
    %v718 = vpack.c.b16 %v693, %v692
    %v719 = vpack.c.b16 %v695, %v694
    %v720 = vpack.c.b16 %v697, %v696
    %v721 = vpack.c.b16 %v699, %v698
    %v722 = vpack.c.b16 %v701, %v700
    %v723 = vpack.c.b16 %v703, %v702
    %v724 = vpack.c.b16 %v705, %v704
    %v725 = vpack.c.b16 %v707, %v706
    %v726 = vpack.c.b16 %v709, %v708
    %v727 = vpack.c.b16 %v711, %v710
    %744 = vmatpush.bf16.msra.mxu0 %v719
    %745 = vmatpush.bf16.msra.mxu0 %v718
    %746 = vmatpush.bf16.msra.mxu0 %v717
    %747 = vmatpush.bf16.msra.mxu0 %v716
    %748 = vmatpush.bf16.msra.mxu0 %v715
    %749 = vmatpush.bf16.msra.mxu0 %v714
    %750 = vmatpush.bf16.msra.mxu0 %v713
    %751 = vmatpush.bf16.msra.mxu0 %v712
    %752 = vmatmul.bf16.gmra.mxu0 %v644
    %v753 = vpop.f32.mrf.mxu0
    %v754 = vadd.f32 0.0, %v753
    %v755 = vpop.f32.mrf.mxu0
    %756 = vdwg.mxu0
    %757 = vmatpush.bf16.msra.mxu0 %v727
    %758 = vmatpush.bf16.msra.mxu0 %v726
    %759 = vmatpush.bf16.msra.mxu0 %v725
    %760 = vmatpush.bf16.msra.mxu0 %v724
    %761 = vmatpush.bf16.msra.mxu0 %v723
    %762 = vmatpush.bf16.msra.mxu0 %v722
    %763 = vmatpush.bf16.msra.mxu0 %v721
    %764 = vmatpush.bf16.msra.mxu0 %v720
    %765 = vmatmul.bf16.gmra.mxu0 %v645
    %v766 = vpop.f32.mrf.mxu0
    %v767 = vadd.f32 %v754, %v766
    %v768 = vpop.f32.mrf.mxu0
    %769 = vdwg.mxu0
    %v770 = vadd.f32 %v605, %v767
    %v772 = vperm.slane %v114, 0
    %v774 = vadd.f32 %v770, %v772
    %v775 = vmax.f32 %v774, 0.0
    %v776 = vpack.c.bf16 %v775, %v775
    %v777 = vld [vmem:[#allocation6] sm:$0xff]
    %v778 = vld [vmem:[#allocation6 + $0x8] sm:$0xff]
    %v779 = vld [vmem:[#allocation6 + $0x10] sm:$0xff]
    %v780 = vld [vmem:[#allocation6 + $0x18] sm:$0xff]
    %v781 = vld [vmem:[#allocation6 + $0x20] sm:$0xff]
    %v782 = vld [vmem:[#allocation6 + $0x28] sm:$0xff]
    %v783 = vld [vmem:[#allocation6 + $0x30] sm:$0xff]
    %v784 = vld [vmem:[#allocation6 + $0x38] sm:$0xff]
    %v785 = vld [vmem:[#allocation6 + $0x40] sm:$0xff]
    %v786 = vld [vmem:[#allocation6 + $0x48] sm:$0xff]
    %v787 = vld [vmem:[#allocation6 + $0x50] sm:$0xff]
    %v788 = vld [vmem:[#allocation6 + $0x58] sm:$0xff]
    %v789 = vld [vmem:[#allocation6 + $0x60] sm:$0xff]
    %v790 = vld [vmem:[#allocation6 + $0x68] sm:$0xff]
    %v791 = vld [vmem:[#allocation6 + $0x70] sm:$0xff]
    %v792 = vld [vmem:[#allocation6 + $0x78] sm:$0xff]
    %s793 = scalar_lea.vmem %s0, 16
    %v794 = vld [vmem:[%s793] sm:$0xff]
    %v796 = vunpack.c.l.b16 %v794
    %v797 = vunpack.c.h.b16 %v794
    %v798 = vpack.c.b16 %v796, %v796
    %v799 = vpack.c.b16 %v797, %v797
    %802 = vmatpush.bf16.msra.mxu0 %v261
    %803 = vmatpush.bf16.msra.mxu0 %v260
    %804 = vmatpush.bf16.msra.mxu0 %v259
    %805 = vmatpush.bf16.msra.mxu0 %v258
    %806 = vmatpush.bf16.msra.mxu0 %v257
    %807 = vmatpush.bf16.msra.mxu0 %v256
    %808 = vmatpush.bf16.msra.mxu0 %v255
    %809 = vmatpush.bf16.msra.mxu0 %v254
    %810 = vmatmul.bf16.gmra.mxu0 %v798
    %v811 = vpop.f32.mrf.mxu0
    %v812 = vadd.f32 0.0, %v811
    %v813 = vpop.f32.mrf.mxu0
    %814 = vdwg.mxu0
    %815 = vmatpush.bf16.msra.mxu0 %v269
    %816 = vmatpush.bf16.msra.mxu0 %v268
    %817 = vmatpush.bf16.msra.mxu0 %v267
    %818 = vmatpush.bf16.msra.mxu0 %v266
    %819 = vmatpush.bf16.msra.mxu0 %v265
    %820 = vmatpush.bf16.msra.mxu0 %v264
    %821 = vmatpush.bf16.msra.mxu0 %v263
    %822 = vmatpush.bf16.msra.mxu0 %v262
    %823 = vmatmul.bf16.gmra.mxu0 %v799
    %v824 = vpop.f32.mrf.mxu0
    %v825 = vadd.f32 %v812, %v824
    %v826 = vpop.f32.mrf.mxu0
    %827 = vdwg.mxu0
    %828 = vmatpush.bf16.msra.mxu0 %v390
    %829 = vmatpush.bf16.msra.mxu0 %v389
    %830 = vmatpush.bf16.msra.mxu0 %v388
    %831 = vmatpush.bf16.msra.mxu0 %v387
    %832 = vmatpush.bf16.msra.mxu0 %v386
    %833 = vmatpush.bf16.msra.mxu0 %v385
    %834 = vmatpush.bf16.msra.mxu0 %v384
    %835 = vmatpush.bf16.msra.mxu0 %v383
    %836 = vmatmul.bf16.gmra.mxu0 %v186
    %v837 = vpop.f32.mrf.mxu0
    %v838 = vadd.f32 %v825, %v837
    %v839 = vpop.f32.mrf.mxu0
    %840 = vdwg.mxu0
    %841 = vmatpush.bf16.msra.mxu0 %v398
    %842 = vmatpush.bf16.msra.mxu0 %v397
    %843 = vmatpush.bf16.msra.mxu0 %v396
    %844 = vmatpush.bf16.msra.mxu0 %v395
    %845 = vmatpush.bf16.msra.mxu0 %v394
    %846 = vmatpush.bf16.msra.mxu0 %v393
    %847 = vmatpush.bf16.msra.mxu0 %v392
    %848 = vmatpush.bf16.msra.mxu0 %v391
    %849 = vmatmul.bf16.gmra.mxu0 %v187
    %v850 = vpop.f32.mrf.mxu0
    %v851 = vadd.f32 %v838, %v850
    %v852 = vpop.f32.mrf.mxu0
    %853 = vdwg.mxu0
    %854 = vmatpush.bf16.msra.mxu0 %v554
    %855 = vmatpush.bf16.msra.mxu0 %v553
    %856 = vmatpush.bf16.msra.mxu0 %v552
    %857 = vmatpush.bf16.msra.mxu0 %v551
    %858 = vmatpush.bf16.msra.mxu0 %v550
    %859 = vmatpush.bf16.msra.mxu0 %v549
    %860 = vmatpush.bf16.msra.mxu0 %v548
    %861 = vmatpush.bf16.msra.mxu0 %v547
    %862 = vmatmul.bf16.gmra.mxu0 %v644
    %v863 = vpop.f32.mrf.mxu0
    %v864 = vadd.f32 0.0, %v863
    %v865 = vpop.f32.mrf.mxu0
    %866 = vdwg.mxu0
    %867 = vmatpush.bf16.msra.mxu0 %v562
    %868 = vmatpush.bf16.msra.mxu0 %v561
    %869 = vmatpush.bf16.msra.mxu0 %v560
    %870 = vmatpush.bf16.msra.mxu0 %v559
    %871 = vmatpush.bf16.msra.mxu0 %v558
    %872 = vmatpush.bf16.msra.mxu0 %v557
    %873 = vmatpush.bf16.msra.mxu0 %v556
    %874 = vmatpush.bf16.msra.mxu0 %v555
    %875 = vmatmul.bf16.gmra.mxu0 %v645
    %v876 = vpop.f32.mrf.mxu0
    %v877 = vadd.f32 %v864, %v876
    %v878 = vpop.f32.mrf.mxu0
    %879 = vdwg.mxu0
    %v880 = vadd.f32 %v851, %v877
    %s881 = scalar_lea.vmem %s0, 64
    %v882 = vld [vmem:[%s881] sm:$0xff]
    %v884 = vunpack.c.l.b16 %v882
    %v885 = vunpack.c.h.b16 %v882
    %v886 = vpack.c.b16 %v884, %v884
    %v887 = vpack.c.b16 %v885, %v885
    %890 = vmatpush.bf16.msra.mxu0 %v719
    %891 = vmatpush.bf16.msra.mxu0 %v718
    %892 = vmatpush.bf16.msra.mxu0 %v717
    %893 = vmatpush.bf16.msra.mxu0 %v716
    %894 = vmatpush.bf16.msra.mxu0 %v715
    %895 = vmatpush.bf16.msra.mxu0 %v714
    %896 = vmatpush.bf16.msra.mxu0 %v713
    %897 = vmatpush.bf16.msra.mxu0 %v712
    %898 = vmatmul.bf16.gmra.mxu0 %v886
    %v899 = vpop.f32.mrf.mxu0
    %v900 = vadd.f32 0.0, %v899
    %v901 = vpop.f32.mrf.mxu0
    %902 = vdwg.mxu0
    %903 = vmatpush.bf16.msra.mxu0 %v727
    %904 = vmatpush.bf16.msra.mxu0 %v726
    %905 = vmatpush.bf16.msra.mxu0 %v725
    %906 = vmatpush.bf16.msra.mxu0 %v724
    %907 = vmatpush.bf16.msra.mxu0 %v723
    %908 = vmatpush.bf16.msra.mxu0 %v722
    %909 = vmatpush.bf16.msra.mxu0 %v721
    %910 = vmatpush.bf16.msra.mxu0 %v720
    %911 = vmatmul.bf16.gmra.mxu0 %v887
    %v912 = vpop.f32.mrf.mxu0
    %v913 = vadd.f32 %v900, %v912
    %v914 = vpop.f32.mrf.mxu0
    %915 = vdwg.mxu0
    %v916 = vadd.f32 %v880, %v913
    %v917 = vadd.f32 %v916, %v772
    %v918 = vmax.f32 %v917, 0.0
    %v919 = vpack.c.bf16 %v918, %v918
    %s920 = scalar_lea.vmem [#allocation6], 128
    %v921 = vld [vmem:[%s920] sm:$0xff]
    %v922 = vld [vmem:[%s920 + $0x8] sm:$0xff]
    %v923 = vld [vmem:[%s920 + $0x10] sm:$0xff]
    %v924 = vld [vmem:[%s920 + $0x18] sm:$0xff]
    %v925 = vld [vmem:[%s920 + $0x20] sm:$0xff]
    %v926 = vld [vmem:[%s920 + $0x28] sm:$0xff]
    %v927 = vld [vmem:[%s920 + $0x30] sm:$0xff]
    %v928 = vld [vmem:[%s920 + $0x38] sm:$0xff]
    %v929 = vld [vmem:[%s920 + $0x40] sm:$0xff]
    %v930 = vld [vmem:[%s920 + $0x48] sm:$0xff]
    %v931 = vld [vmem:[%s920 + $0x50] sm:$0xff]
    %v932 = vld [vmem:[%s920 + $0x58] sm:$0xff]
    %v933 = vld [vmem:[%s920 + $0x60] sm:$0xff]
    %v934 = vld [vmem:[%s920 + $0x68] sm:$0xff]
    %v935 = vld [vmem:[%s920 + $0x70] sm:$0xff]
    %v936 = vld [vmem:[%s920 + $0x78] sm:$0xff]
    %v953 = vunpack.c.l.b16 %v921
    %v954 = vunpack.c.h.b16 %v921
    %v955 = vunpack.c.l.b16 %v922
    %v956 = vunpack.c.h.b16 %v922
    %v957 = vunpack.c.l.b16 %v923
    %v958 = vunpack.c.h.b16 %v923
    %v959 = vunpack.c.l.b16 %v924
    %v960 = vunpack.c.h.b16 %v924
    %v961 = vunpack.c.l.b16 %v925
    %v962 = vunpack.c.h.b16 %v925
    %v963 = vunpack.c.l.b16 %v926
    %v964 = vunpack.c.h.b16 %v926
    %v965 = vunpack.c.l.b16 %v927
    %v966 = vunpack.c.h.b16 %v927
    %v967 = vunpack.c.l.b16 %v928
    %v968 = vunpack.c.h.b16 %v928
    %v969 = vunpack.c.l.b16 %v929
    %v970 = vunpack.c.h.b16 %v929
    %v971 = vunpack.c.l.b16 %v930
    %v972 = vunpack.c.h.b16 %v930
    %v973 = vunpack.c.l.b16 %v931
    %v974 = vunpack.c.h.b16 %v931
    %v975 = vunpack.c.l.b16 %v932
    %v976 = vunpack.c.h.b16 %v932
    %v977 = vunpack.c.l.b16 %v933
    %v978 = vunpack.c.h.b16 %v933
    %v979 = vunpack.c.l.b16 %v934
    %v980 = vunpack.c.h.b16 %v934
    %v981 = vunpack.c.l.b16 %v935
    %v982 = vunpack.c.h.b16 %v935
    %v983 = vunpack.c.l.b16 %v936
    %v984 = vunpack.c.h.b16 %v936
    %v985 = vpack.c.b16 %v955, %v953
    %v986 = vpack.c.b16 %v956, %v954
    %v987 = vpack.c.b16 %v959, %v957
    %v988 = vpack.c.b16 %v960, %v958
    %v989 = vpack.c.b16 %v963, %v961
    %v990 = vpack.c.b16 %v964, %v962
    %v991 = vpack.c.b16 %v967, %v965
    %v992 = vpack.c.b16 %v968, %v966
    %v993 = vpack.c.b16 %v971, %v969
    %v994 = vpack.c.b16 %v972, %v970
    %v995 = vpack.c.b16 %v975, %v973
    %v996 = vpack.c.b16 %v976, %v974
    %v997 = vpack.c.b16 %v979, %v977
    %v998 = vpack.c.b16 %v980, %v978
    %v999 = vpack.c.b16 %v983, %v981
    %v1000 = vpack.c.b16 %v984, %v982
    %1017 = vmatpush.bf16.msra.mxu0 %v999
    %1018 = vmatpush.bf16.msra.mxu0 %v997
    %1019 = vmatpush.bf16.msra.mxu0 %v995
    %1020 = vmatpush.bf16.msra.mxu0 %v993
    %1021 = vmatpush.bf16.msra.mxu0 %v991
    %1022 = vmatpush.bf16.msra.mxu0 %v989
    %1023 = vmatpush.bf16.msra.mxu0 %v987
    %1024 = vmatpush.bf16.msra.mxu0 %v985
    %1025 = vmatmul.bf16.gmra.mxu0 %v919
    %v1026 = vpop.f32.mrf.mxu0
    %v1027 = vadd.f32 0.0, %v1026
    %v1028 = vpop.f32.mrf.mxu0
    %1029 = vdwg.mxu0
    %1030 = vmatpush.bf16.msra.mxu0 %v1000
    %1031 = vmatpush.bf16.msra.mxu0 %v998
    %1032 = vmatpush.bf16.msra.mxu0 %v996
    %1033 = vmatpush.bf16.msra.mxu0 %v994
    %1034 = vmatpush.bf16.msra.mxu0 %v992
    %1035 = vmatpush.bf16.msra.mxu0 %v990
    %1036 = vmatpush.bf16.msra.mxu0 %v988
    %1037 = vmatpush.bf16.msra.mxu0 %v986
    %1038 = vmatmul.bf16.gmra.mxu0 %v919
    %v1039 = vpop.f32.mrf.mxu0
    %v1040 = vadd.f32 0.0, %v1039
    %v1041 = vpop.f32.mrf.mxu0
    %1042 = vdwg.mxu0
    %v1059 = vunpack.c.l.b16 %v777
    %v1060 = vunpack.c.h.b16 %v777
    %v1061 = vunpack.c.l.b16 %v778
    %v1062 = vunpack.c.h.b16 %v778
    %v1063 = vunpack.c.l.b16 %v779
    %v1064 = vunpack.c.h.b16 %v779
    %v1065 = vunpack.c.l.b16 %v780
    %v1066 = vunpack.c.h.b16 %v780
    %v1067 = vunpack.c.l.b16 %v781
    %v1068 = vunpack.c.h.b16 %v781
    %v1069 = vunpack.c.l.b16 %v782
    %v1070 = vunpack.c.h.b16 %v782
    %v1071 = vunpack.c.l.b16 %v783
    %v1072 = vunpack.c.h.b16 %v783
    %v1073 = vunpack.c.l.b16 %v784
    %v1074 = vunpack.c.h.b16 %v784
    %v1075 = vunpack.c.l.b16 %v785
    %v1076 = vunpack.c.h.b16 %v785
    %v1077 = vunpack.c.l.b16 %v786
    %v1078 = vunpack.c.h.b16 %v786
    %v1079 = vunpack.c.l.b16 %v787
    %v1080 = vunpack.c.h.b16 %v787
    %v1081 = vunpack.c.l.b16 %v788
    %v1082 = vunpack.c.h.b16 %v788
    %v1083 = vunpack.c.l.b16 %v789
    %v1084 = vunpack.c.h.b16 %v789
    %v1085 = vunpack.c.l.b16 %v790
    %v1086 = vunpack.c.h.b16 %v790
    %v1087 = vunpack.c.l.b16 %v791
    %v1088 = vunpack.c.h.b16 %v791
    %v1089 = vunpack.c.l.b16 %v792
    %v1090 = vunpack.c.h.b16 %v792
    %v1091 = vpack.c.b16 %v1061, %v1059
    %v1092 = vpack.c.b16 %v1062, %v1060
    %v1093 = vpack.c.b16 %v1065, %v1063
    %v1094 = vpack.c.b16 %v1066, %v1064
    %v1095 = vpack.c.b16 %v1069, %v1067
    %v1096 = vpack.c.b16 %v1070, %v1068
    %v1097 = vpack.c.b16 %v1073, %v1071
    %v1098 = vpack.c.b16 %v1074, %v1072
    %v1099 = vpack.c.b16 %v1077, %v1075
    %v1100 = vpack.c.b16 %v1078, %v1076
    %v1101 = vpack.c.b16 %v1081, %v1079
    %v1102 = vpack.c.b16 %v1082, %v1080
    %v1103 = vpack.c.b16 %v1085, %v1083
    %v1104 = vpack.c.b16 %v1086, %v1084
    %v1105 = vpack.c.b16 %v1089, %v1087
    %v1106 = vpack.c.b16 %v1090, %v1088
    %1123 = vmatpush.bf16.msra.mxu0 %v1105
    %1124 = vmatpush.bf16.msra.mxu0 %v1103
    %1125 = vmatpush.bf16.msra.mxu0 %v1101
    %1126 = vmatpush.bf16.msra.mxu0 %v1099
    %1127 = vmatpush.bf16.msra.mxu0 %v1097
    %1128 = vmatpush.bf16.msra.mxu0 %v1095
    %1129 = vmatpush.bf16.msra.mxu0 %v1093
    %1130 = vmatpush.bf16.msra.mxu0 %v1091
    %1131 = vmatmul.bf16.gmra.mxu0 %v776
    %v1132 = vpop.f32.mrf.mxu0
    %v1133 = vadd.f32 %v1027, %v1132
    %v1134 = vpop.f32.mrf.mxu0
    %1135 = vdwg.mxu0
    %1136 = vmatpush.bf16.msra.mxu0 %v1106
    %1137 = vmatpush.bf16.msra.mxu0 %v1104
    %1138 = vmatpush.bf16.msra.mxu0 %v1102
    %1139 = vmatpush.bf16.msra.mxu0 %v1100
    %1140 = vmatpush.bf16.msra.mxu0 %v1098
    %1141 = vmatpush.bf16.msra.mxu0 %v1096
    %1142 = vmatpush.bf16.msra.mxu0 %v1094
    %1143 = vmatpush.bf16.msra.mxu0 %v1092
    %1144 = vmatmul.bf16.gmra.mxu0 %v776
    %v1145 = vpop.f32.mrf.mxu0
    %v1146 = vadd.f32 %v1040, %v1145
    %v1147 = vpop.f32.mrf.mxu0
    %1148 = vdwg.mxu0
    %s1149 = scalar_lea.vmem %s0, 24
    %v1150 = vld [vmem:[%s1149] sm:$0xff]
    %v1152 = vunpack.c.l.b16 %v1150
    %v1153 = vunpack.c.h.b16 %v1150
    %v1154 = vpack.c.b16 %v1152, %v1152
    %v1155 = vpack.c.b16 %v1153, %v1153
    %1158 = vmatpush.bf16.msra.mxu0 %v261
    %1159 = vmatpush.bf16.msra.mxu0 %v260
    %1160 = vmatpush.bf16.msra.mxu0 %v259
    %1161 = vmatpush.bf16.msra.mxu0 %v258
    %1162 = vmatpush.bf16.msra.mxu0 %v257
    %1163 = vmatpush.bf16.msra.mxu0 %v256
    %1164 = vmatpush.bf16.msra.mxu0 %v255
    %1165 = vmatpush.bf16.msra.mxu0 %v254
    %1166 = vmatmul.bf16.gmra.mxu0 %v1154
    %v1167 = vpop.f32.mrf.mxu0
    %v1168 = vadd.f32 0.0, %v1167
    %v1169 = vpop.f32.mrf.mxu0
    %1170 = vdwg.mxu0
    %1171 = vmatpush.bf16.msra.mxu0 %v269
    %1172 = vmatpush.bf16.msra.mxu0 %v268
    %1173 = vmatpush.bf16.msra.mxu0 %v267
    %1174 = vmatpush.bf16.msra.mxu0 %v266
    %1175 = vmatpush.bf16.msra.mxu0 %v265
    %1176 = vmatpush.bf16.msra.mxu0 %v264
    %1177 = vmatpush.bf16.msra.mxu0 %v263
    %1178 = vmatpush.bf16.msra.mxu0 %v262
    %1179 = vmatmul.bf16.gmra.mxu0 %v1155
    %v1180 = vpop.f32.mrf.mxu0
    %v1181 = vadd.f32 %v1168, %v1180
    %v1182 = vpop.f32.mrf.mxu0
    %1183 = vdwg.mxu0
    %1184 = vmatpush.bf16.msra.mxu0 %v390
    %1185 = vmatpush.bf16.msra.mxu0 %v389
    %1186 = vmatpush.bf16.msra.mxu0 %v388
    %1187 = vmatpush.bf16.msra.mxu0 %v387
    %1188 = vmatpush.bf16.msra.mxu0 %v386
    %1189 = vmatpush.bf16.msra.mxu0 %v385
    %1190 = vmatpush.bf16.msra.mxu0 %v384
    %1191 = vmatpush.bf16.msra.mxu0 %v383
    %1192 = vmatmul.bf16.gmra.mxu0 %v798
    %v1193 = vpop.f32.mrf.mxu0
    %v1194 = vadd.f32 %v1181, %v1193
    %v1195 = vpop.f32.mrf.mxu0
    %1196 = vdwg.mxu0
    %1197 = vmatpush.bf16.msra.mxu0 %v398
    %1198 = vmatpush.bf16.msra.mxu0 %v397
    %1199 = vmatpush.bf16.msra.mxu0 %v396
    %1200 = vmatpush.bf16.msra.mxu0 %v395
    %1201 = vmatpush.bf16.msra.mxu0 %v394
    %1202 = vmatpush.bf16.msra.mxu0 %v393
    %1203 = vmatpush.bf16.msra.mxu0 %v392
    %1204 = vmatpush.bf16.msra.mxu0 %v391
    %1205 = vmatmul.bf16.gmra.mxu0 %v799
    %v1206 = vpop.f32.mrf.mxu0
    %v1207 = vadd.f32 %v1194, %v1206
    %v1208 = vpop.f32.mrf.mxu0
    %1209 = vdwg.mxu0
    %1210 = vmatpush.bf16.msra.mxu0 %v554
    %1211 = vmatpush.bf16.msra.mxu0 %v553
    %1212 = vmatpush.bf16.msra.mxu0 %v552
    %1213 = vmatpush.bf16.msra.mxu0 %v551
    %1214 = vmatpush.bf16.msra.mxu0 %v550
    %1215 = vmatpush.bf16.msra.mxu0 %v549
    %1216 = vmatpush.bf16.msra.mxu0 %v548
    %1217 = vmatpush.bf16.msra.mxu0 %v547
    %1218 = vmatmul.bf16.gmra.mxu0 %v886
    %v1219 = vpop.f32.mrf.mxu0
    %v1220 = vadd.f32 0.0, %v1219
    %v1221 = vpop.f32.mrf.mxu0
    %1222 = vdwg.mxu0
    %1223 = vmatpush.bf16.msra.mxu0 %v562
    %1224 = vmatpush.bf16.msra.mxu0 %v561
    %1225 = vmatpush.bf16.msra.mxu0 %v560
    %1226 = vmatpush.bf16.msra.mxu0 %v559
    %1227 = vmatpush.bf16.msra.mxu0 %v558
    %1228 = vmatpush.bf16.msra.mxu0 %v557
    %1229 = vmatpush.bf16.msra.mxu0 %v556
    %1230 = vmatpush.bf16.msra.mxu0 %v555
    %1231 = vmatmul.bf16.gmra.mxu0 %v887
    %v1232 = vpop.f32.mrf.mxu0
    %v1233 = vadd.f32 %v1220, %v1232
    %v1234 = vpop.f32.mrf.mxu0
    %1235 = vdwg.mxu0
    %v1236 = vadd.f32 %v1207, %v1233
    %s1237 = scalar_lea.vmem %s0, 72
    %v1238 = vld [vmem:[%s1237] sm:$0xff]
    %v1240 = vunpack.c.l.b16 %v1238
    %v1241 = vunpack.c.h.b16 %v1238
    %v1242 = vpack.c.b16 %v1240, %v1240
    %v1243 = vpack.c.b16 %v1241, %v1241
    %1246 = vmatpush.bf16.msra.mxu0 %v719
    %1247 = vmatpush.bf16.msra.mxu0 %v718
    %1248 = vmatpush.bf16.msra.mxu0 %v717
    %1249 = vmatpush.bf16.msra.mxu0 %v716
    %1250 = vmatpush.bf16.msra.mxu0 %v715
    %1251 = vmatpush.bf16.msra.mxu0 %v714
    %1252 = vmatpush.bf16.msra.mxu0 %v713
    %1253 = vmatpush.bf16.msra.mxu0 %v712
    %1254 = vmatmul.bf16.gmra.mxu0 %v1242
    %v1255 = vpop.f32.mrf.mxu0
    %v1256 = vadd.f32 0.0, %v1255
    %v1257 = vpop.f32.mrf.mxu0
    %1258 = vdwg.mxu0
    %1259 = vmatpush.bf16.msra.mxu0 %v727
    %1260 = vmatpush.bf16.msra.mxu0 %v726
    %1261 = vmatpush.bf16.msra.mxu0 %v725
    %1262 = vmatpush.bf16.msra.mxu0 %v724
    %1263 = vmatpush.bf16.msra.mxu0 %v723
    %1264 = vmatpush.bf16.msra.mxu0 %v722
    %1265 = vmatpush.bf16.msra.mxu0 %v721
    %1266 = vmatpush.bf16.msra.mxu0 %v720
    %1267 = vmatmul.bf16.gmra.mxu0 %v1243
    %v1268 = vpop.f32.mrf.mxu0
    %v1269 = vadd.f32 %v1256, %v1268
    %v1270 = vpop.f32.mrf.mxu0
    %1271 = vdwg.mxu0
    %v1272 = vadd.f32 %v1236, %v1269
    %v1273 = vadd.f32 %v1272, %v772
    %v1274 = vmax.f32 %v1273, 0.0
    %v1275 = vpack.c.bf16 %v1274, %v1274
    %s1276 = scalar_lea.vmem [#allocation6], 256
    %v1277 = vld [vmem:[%s1276] sm:$0xff]
    %v1278 = vld [vmem:[%s1276 + $0x8] sm:$0xff]
    %v1279 = vld [vmem:[%s1276 + $0x10] sm:$0xff]
    %v1280 = vld [vmem:[%s1276 + $0x18] sm:$0xff]
    %v1281 = vld [vmem:[%s1276 + $0x20] sm:$0xff]
    %v1282 = vld [vmem:[%s1276 + $0x28] sm:$0xff]
    %v1283 = vld [vmem:[%s1276 + $0x30] sm:$0xff]
    %v1284 = vld [vmem:[%s1276 + $0x38] sm:$0xff]
    %v1285 = vld [vmem:[%s1276 + $0x40] sm:$0xff]
    %v1286 = vld [vmem:[%s1276 + $0x48] sm:$0xff]
    %v1287 = vld [vmem:[%s1276 + $0x50] sm:$0xff]
    %v1288 = vld [vmem:[%s1276 + $0x58] sm:$0xff]
    %v1289 = vld [vmem:[%s1276 + $0x60] sm:$0xff]
    %v1290 = vld [vmem:[%s1276 + $0x68] sm:$0xff]
    %v1291 = vld [vmem:[%s1276 + $0x70] sm:$0xff]
    %v1292 = vld [vmem:[%s1276 + $0x78] sm:$0xff]
    %v1309 = vunpack.c.l.b16 %v1277
    %v1310 = vunpack.c.h.b16 %v1277
    %v1311 = vunpack.c.l.b16 %v1278
    %v1312 = vunpack.c.h.b16 %v1278
    %v1313 = vunpack.c.l.b16 %v1279
    %v1314 = vunpack.c.h.b16 %v1279
    %v1315 = vunpack.c.l.b16 %v1280
    %v1316 = vunpack.c.h.b16 %v1280
    %v1317 = vunpack.c.l.b16 %v1281
    %v1318 = vunpack.c.h.b16 %v1281
    %v1319 = vunpack.c.l.b16 %v1282
    %v1320 = vunpack.c.h.b16 %v1282
    %v1321 = vunpack.c.l.b16 %v1283
    %v1322 = vunpack.c.h.b16 %v1283
    %v1323 = vunpack.c.l.b16 %v1284
    %v1324 = vunpack.c.h.b16 %v1284
    %v1325 = vunpack.c.l.b16 %v1285
    %v1326 = vunpack.c.h.b16 %v1285
    %v1327 = vunpack.c.l.b16 %v1286
    %v1328 = vunpack.c.h.b16 %v1286
    %v1329 = vunpack.c.l.b16 %v1287
    %v1330 = vunpack.c.h.b16 %v1287
    %v1331 = vunpack.c.l.b16 %v1288
    %v1332 = vunpack.c.h.b16 %v1288
    %v1333 = vunpack.c.l.b16 %v1289
    %v1334 = vunpack.c.h.b16 %v1289
    %v1335 = vunpack.c.l.b16 %v1290
    %v1336 = vunpack.c.h.b16 %v1290
    %v1337 = vunpack.c.l.b16 %v1291
    %v1338 = vunpack.c.h.b16 %v1291
    %v1339 = vunpack.c.l.b16 %v1292
    %v1340 = vunpack.c.h.b16 %v1292
    %v1341 = vpack.c.b16 %v1311, %v1309
    %v1342 = vpack.c.b16 %v1312, %v1310
    %v1343 = vpack.c.b16 %v1315, %v1313
    %v1344 = vpack.c.b16 %v1316, %v1314
    %v1345 = vpack.c.b16 %v1319, %v1317
    %v1346 = vpack.c.b16 %v1320, %v1318
    %v1347 = vpack.c.b16 %v1323, %v1321
    %v1348 = vpack.c.b16 %v1324, %v1322
    %v1349 = vpack.c.b16 %v1327, %v1325
    %v1350 = vpack.c.b16 %v1328, %v1326
    %v1351 = vpack.c.b16 %v1331, %v1329
    %v1352 = vpack.c.b16 %v1332, %v1330
    %v1353 = vpack.c.b16 %v1335, %v1333
    %v1354 = vpack.c.b16 %v1336, %v1334
    %v1355 = vpack.c.b16 %v1339, %v1337
    %v1356 = vpack.c.b16 %v1340, %v1338
    %1373 = vmatpush.bf16.msra.mxu0 %v1355
    %1374 = vmatpush.bf16.msra.mxu0 %v1353
    %1375 = vmatpush.bf16.msra.mxu0 %v1351
    %1376 = vmatpush.bf16.msra.mxu0 %v1349
    %1377 = vmatpush.bf16.msra.mxu0 %v1347
    %1378 = vmatpush.bf16.msra.mxu0 %v1345
    %1379 = vmatpush.bf16.msra.mxu0 %v1343
    %1380 = vmatpush.bf16.msra.mxu0 %v1341
    %1381 = vmatmul.bf16.gmra.mxu0 %v1275
    %v1382 = vpop.f32.mrf.mxu0
    %v1383 = vadd.f32 0.0, %v1382
    %v1384 = vpop.f32.mrf.mxu0
    %1385 = vdwg.mxu0
    %1386 = vmatpush.bf16.msra.mxu0 %v1356
    %1387 = vmatpush.bf16.msra.mxu0 %v1354
    %1388 = vmatpush.bf16.msra.mxu0 %v1352
    %1389 = vmatpush.bf16.msra.mxu0 %v1350
    %1390 = vmatpush.bf16.msra.mxu0 %v1348
    %1391 = vmatpush.bf16.msra.mxu0 %v1346
    %1392 = vmatpush.bf16.msra.mxu0 %v1344
    %1393 = vmatpush.bf16.msra.mxu0 %v1342
    %1394 = vmatmul.bf16.gmra.mxu0 %v1275
    %v1395 = vpop.f32.mrf.mxu0
    %v1396 = vadd.f32 0.0, %v1395
    %v1397 = vpop.f32.mrf.mxu0
    %1398 = vdwg.mxu0
    %v1399 = vadd.f32 %v1133, %v1383
    %v1400 = vadd.f32 %v1146, %v1396
    %s1401 = scalar_lea.vmem %s0, 32
    %v1402 = vld [vmem:[%s1401] sm:$0xff]
    %v1404 = vunpack.c.l.b16 %v1402
    %v1405 = vunpack.c.h.b16 %v1402
    %v1406 = vpack.c.b16 %v1404, %v1404
    %v1407 = vpack.c.b16 %v1405, %v1405
    %1410 = vmatpush.bf16.msra.mxu0 %v261
    %1411 = vmatpush.bf16.msra.mxu0 %v260
    %1412 = vmatpush.bf16.msra.mxu0 %v259
    %1413 = vmatpush.bf16.msra.mxu0 %v258
    %1414 = vmatpush.bf16.msra.mxu0 %v257
    %1415 = vmatpush.bf16.msra.mxu0 %v256
    %1416 = vmatpush.bf16.msra.mxu0 %v255
    %1417 = vmatpush.bf16.msra.mxu0 %v254
    %1418 = vmatmul.bf16.gmra.mxu0 %v1406
    %v1419 = vpop.f32.mrf.mxu0
    %v1420 = vadd.f32 0.0, %v1419
    %v1421 = vpop.f32.mrf.mxu0
    %1422 = vdwg.mxu0
    %1423 = vmatpush.bf16.msra.mxu0 %v269
    %1424 = vmatpush.bf16.msra.mxu0 %v268
    %1425 = vmatpush.bf16.msra.mxu0 %v267
    %1426 = vmatpush.bf16.msra.mxu0 %v266
    %1427 = vmatpush.bf16.msra.mxu0 %v265
    %1428 = vmatpush.bf16.msra.mxu0 %v264
    %1429 = vmatpush.bf16.msra.mxu0 %v263
    %1430 = vmatpush.bf16.msra.mxu0 %v262
    %1431 = vmatmul.bf16.gmra.mxu0 %v1407
    %v1432 = vpop.f32.mrf.mxu0
    %v1433 = vadd.f32 %v1420, %v1432
    %v1434 = vpop.f32.mrf.mxu0
    %1435 = vdwg.mxu0
    %1436 = vmatpush.bf16.msra.mxu0 %v390
    %1437 = vmatpush.bf16.msra.mxu0 %v389
    %1438 = vmatpush.bf16.msra.mxu0 %v388
    %1439 = vmatpush.bf16.msra.mxu0 %v387
    %1440 = vmatpush.bf16.msra.mxu0 %v386
    %1441 = vmatpush.bf16.msra.mxu0 %v385
    %1442 = vmatpush.bf16.msra.mxu0 %v384
    %1443 = vmatpush.bf16.msra.mxu0 %v383
    %1444 = vmatmul.bf16.gmra.mxu0 %v1154
    %v1445 = vpop.f32.mrf.mxu0
    %v1446 = vadd.f32 %v1433, %v1445
    %v1447 = vpop.f32.mrf.mxu0
    %1448 = vdwg.mxu0
    %1449 = vmatpush.bf16.msra.mxu0 %v398
    %1450 = vmatpush.bf16.msra.mxu0 %v397
    %1451 = vmatpush.bf16.msra.mxu0 %v396
    %1452 = vmatpush.bf16.msra.mxu0 %v395
    %1453 = vmatpush.bf16.msra.mxu0 %v394
    %1454 = vmatpush.bf16.msra.mxu0 %v393
    %1455 = vmatpush.bf16.msra.mxu0 %v392
    %1456 = vmatpush.bf16.msra.mxu0 %v391
    %1457 = vmatmul.bf16.gmra.mxu0 %v1155
    %v1458 = vpop.f32.mrf.mxu0
    %v1459 = vadd.f32 %v1446, %v1458
    %v1460 = vpop.f32.mrf.mxu0
    %1461 = vdwg.mxu0
    %1462 = vmatpush.bf16.msra.mxu0 %v554
    %1463 = vmatpush.bf16.msra.mxu0 %v553
    %1464 = vmatpush.bf16.msra.mxu0 %v552
    %1465 = vmatpush.bf16.msra.mxu0 %v551
    %1466 = vmatpush.bf16.msra.mxu0 %v550
    %1467 = vmatpush.bf16.msra.mxu0 %v549
    %1468 = vmatpush.bf16.msra.mxu0 %v548
    %1469 = vmatpush.bf16.msra.mxu0 %v547
    %1470 = vmatmul.bf16.gmra.mxu0 %v1242
    %v1471 = vpop.f32.mrf.mxu0
    %v1472 = vadd.f32 0.0, %v1471
    %v1473 = vpop.f32.mrf.mxu0
    %1474 = vdwg.mxu0
    %1475 = vmatpush.bf16.msra.mxu0 %v562
    %1476 = vmatpush.bf16.msra.mxu0 %v561
    %1477 = vmatpush.bf16.msra.mxu0 %v560
    %1478 = vmatpush.bf16.msra.mxu0 %v559
    %1479 = vmatpush.bf16.msra.mxu0 %v558
    %1480 = vmatpush.bf16.msra.mxu0 %v557
    %1481 = vmatpush.bf16.msra.mxu0 %v556
    %1482 = vmatpush.bf16.msra.mxu0 %v555
    %1483 = vmatmul.bf16.gmra.mxu0 %v1243
    %v1484 = vpop.f32.mrf.mxu0
    %v1485 = vadd.f32 %v1472, %v1484
    %v1486 = vpop.f32.mrf.mxu0
    %1487 = vdwg.mxu0
    %v1488 = vadd.f32 %v1459, %v1485
    %s1489 = scalar_lea.vmem %s0, 80
    %v1490 = vld [vmem:[%s1489] sm:$0xff]
    %v1492 = vunpack.c.l.b16 %v1490
    %v1493 = vunpack.c.h.b16 %v1490
    %v1494 = vpack.c.b16 %v1492, %v1492
    %v1495 = vpack.c.b16 %v1493, %v1493
    %1498 = vmatpush.bf16.msra.mxu0 %v719
    %1499 = vmatpush.bf16.msra.mxu0 %v718
    %1500 = vmatpush.bf16.msra.mxu0 %v717
    %1501 = vmatpush.bf16.msra.mxu0 %v716
    %1502 = vmatpush.bf16.msra.mxu0 %v715
    %1503 = vmatpush.bf16.msra.mxu0 %v714
    %1504 = vmatpush.bf16.msra.mxu0 %v713
    %1505 = vmatpush.bf16.msra.mxu0 %v712
    %1506 = vmatmul.bf16.gmra.mxu0 %v1494
    %v1507 = vpop.f32.mrf.mxu0
    %v1508 = vadd.f32 0.0, %v1507
    %v1509 = vpop.f32.mrf.mxu0
    %1510 = vdwg.mxu0
    %1511 = vmatpush.bf16.msra.mxu0 %v727
    %1512 = vmatpush.bf16.msra.mxu0 %v726
    %1513 = vmatpush.bf16.msra.mxu0 %v725
    %1514 = vmatpush.bf16.msra.mxu0 %v724
    %1515 = vmatpush.bf16.msra.mxu0 %v723
    %1516 = vmatpush.bf16.msra.mxu0 %v722
    %1517 = vmatpush.bf16.msra.mxu0 %v721
    %1518 = vmatpush.bf16.msra.mxu0 %v720
    %1519 = vmatmul.bf16.gmra.mxu0 %v1495
    %v1520 = vpop.f32.mrf.mxu0
    %v1521 = vadd.f32 %v1508, %v1520
    %v1522 = vpop.f32.mrf.mxu0
    %1523 = vdwg.mxu0
    %v1524 = vadd.f32 %v1488, %v1521
    %v1525 = vadd.f32 %v1524, %v772
    %v1526 = vmax.f32 %v1525, 0.0
    %v1527 = vpack.c.bf16 %v1526, %v1526
    %s1528 = scalar_lea.vmem [#allocation6], 384
    %v1529 = vld [vmem:[%s1528] sm:$0xff]
    %v1530 = vld [vmem:[%s1528 + $0x8] sm:$0xff]
    %v1531 = vld [vmem:[%s1528 + $0x10] sm:$0xff]
    %v1532 = vld [vmem:[%s1528 + $0x18] sm:$0xff]
    %v1533 = vld [vmem:[%s1528 + $0x20] sm:$0xff]
    %v1534 = vld [vmem:[%s1528 + $0x28] sm:$0xff]
    %v1535 = vld [vmem:[%s1528 + $0x30] sm:$0xff]
    %v1536 = vld [vmem:[%s1528 + $0x38] sm:$0xff]
    %v1537 = vld [vmem:[%s1528 + $0x40] sm:$0xff]
    %v1538 = vld [vmem:[%s1528 + $0x48] sm:$0xff]
    %v1539 = vld [vmem:[%s1528 + $0x50] sm:$0xff]
    %v1540 = vld [vmem:[%s1528 + $0x58] sm:$0xff]
    %v1541 = vld [vmem:[%s1528 + $0x60] sm:$0xff]
    %v1542 = vld [vmem:[%s1528 + $0x68] sm:$0xff]
    %v1543 = vld [vmem:[%s1528 + $0x70] sm:$0xff]
    %v1544 = vld [vmem:[%s1528 + $0x78] sm:$0xff]
    %v1561 = vunpack.c.l.b16 %v1529
    %v1562 = vunpack.c.h.b16 %v1529
    %v1563 = vunpack.c.l.b16 %v1530
    %v1564 = vunpack.c.h.b16 %v1530
    %v1565 = vunpack.c.l.b16 %v1531
    %v1566 = vunpack.c.h.b16 %v1531
    %v1567 = vunpack.c.l.b16 %v1532
    %v1568 = vunpack.c.h.b16 %v1532
    %v1569 = vunpack.c.l.b16 %v1533
    %v1570 = vunpack.c.h.b16 %v1533
    %v1571 = vunpack.c.l.b16 %v1534
    %v1572 = vunpack.c.h.b16 %v1534
    %v1573 = vunpack.c.l.b16 %v1535
    %v1574 = vunpack.c.h.b16 %v1535
    %v1575 = vunpack.c.l.b16 %v1536
    %v1576 = vunpack.c.h.b16 %v1536
    %v1577 = vunpack.c.l.b16 %v1537
    %v1578 = vunpack.c.h.b16 %v1537
    %v1579 = vunpack.c.l.b16 %v1538
    %v1580 = vunpack.c.h.b16 %v1538
    %v1581 = vunpack.c.l.b16 %v1539
    %v1582 = vunpack.c.h.b16 %v1539
    %v1583 = vunpack.c.l.b16 %v1540
    %v1584 = vunpack.c.h.b16 %v1540
    %v1585 = vunpack.c.l.b16 %v1541
    %v1586 = vunpack.c.h.b16 %v1541
    %v1587 = vunpack.c.l.b16 %v1542
    %v1588 = vunpack.c.h.b16 %v1542
    %v1589 = vunpack.c.l.b16 %v1543
    %v1590 = vunpack.c.h.b16 %v1543
    %v1591 = vunpack.c.l.b16 %v1544
    %v1592 = vunpack.c.h.b16 %v1544
    %v1593 = vpack.c.b16 %v1563, %v1561
    %v1594 = vpack.c.b16 %v1564, %v1562
    %v1595 = vpack.c.b16 %v1567, %v1565
    %v1596 = vpack.c.b16 %v1568, %v1566
    %v1597 = vpack.c.b16 %v1571, %v1569
    %v1598 = vpack.c.b16 %v1572, %v1570
    %v1599 = vpack.c.b16 %v1575, %v1573
    %v1600 = vpack.c.b16 %v1576, %v1574
    %v1601 = vpack.c.b16 %v1579, %v1577
    %v1602 = vpack.c.b16 %v1580, %v1578
    %v1603 = vpack.c.b16 %v1583, %v1581
    %v1604 = vpack.c.b16 %v1584, %v1582
    %v1605 = vpack.c.b16 %v1587, %v1585
    %v1606 = vpack.c.b16 %v1588, %v1586
    %v1607 = vpack.c.b16 %v1591, %v1589
    %v1608 = vpack.c.b16 %v1592, %v1590
    %1625 = vmatpush.bf16.msra.mxu0 %v1607
    %1626 = vmatpush.bf16.msra.mxu0 %v1605
    %1627 = vmatpush.bf16.msra.mxu0 %v1603
    %1628 = vmatpush.bf16.msra.mxu0 %v1601
    %1629 = vmatpush.bf16.msra.mxu0 %v1599
    %1630 = vmatpush.bf16.msra.mxu0 %v1597
    %1631 = vmatpush.bf16.msra.mxu0 %v1595
    %1632 = vmatpush.bf16.msra.mxu0 %v1593
    %1633 = vmatmul.bf16.gmra.mxu0 %v1527
    %v1634 = vpop.f32.mrf.mxu0
    %v1635 = vadd.f32 0.0, %v1634
    %v1636 = vpop.f32.mrf.mxu0
    %1637 = vdwg.mxu0
    %1638 = vmatpush.bf16.msra.mxu0 %v1608
    %1639 = vmatpush.bf16.msra.mxu0 %v1606
    %1640 = vmatpush.bf16.msra.mxu0 %v1604
    %1641 = vmatpush.bf16.msra.mxu0 %v1602
    %1642 = vmatpush.bf16.msra.mxu0 %v1600
    %1643 = vmatpush.bf16.msra.mxu0 %v1598
    %1644 = vmatpush.bf16.msra.mxu0 %v1596
    %1645 = vmatpush.bf16.msra.mxu0 %v1594
    %1646 = vmatmul.bf16.gmra.mxu0 %v1527
    %v1647 = vpop.f32.mrf.mxu0
    %v1648 = vadd.f32 0.0, %v1647
    %v1649 = vpop.f32.mrf.mxu0
    %1650 = vdwg.mxu0
    %v1651 = vadd.f32 %v1399, %v1635
    %v1652 = vadd.f32 %v1400, %v1648
    %s1653 = scalar_lea.vmem %s0, 40
    %v1654 = vld [vmem:[%s1653] sm:$0xff]
    %v1656 = vunpack.c.l.b16 %v1654
    %v1657 = vunpack.c.h.b16 %v1654
    %v1658 = vpack.c.b16 %v1656, %v1656
    %v1659 = vpack.c.b16 %v1657, %v1657
    %1662 = vmatpush.bf16.msra.mxu0 %v261
    %1663 = vmatpush.bf16.msra.mxu0 %v260
    %1664 = vmatpush.bf16.msra.mxu0 %v259
    %1665 = vmatpush.bf16.msra.mxu0 %v258
    %1666 = vmatpush.bf16.msra.mxu0 %v257
    %1667 = vmatpush.bf16.msra.mxu0 %v256
    %1668 = vmatpush.bf16.msra.mxu0 %v255
    %1669 = vmatpush.bf16.msra.mxu0 %v254
    %1670 = vmatmul.bf16.gmra.mxu0 %v1658
    %v1671 = vpop.f32.mrf.mxu0
    %v1672 = vadd.f32 0.0, %v1671
    %v1673 = vpop.f32.mrf.mxu0
    %1674 = vdwg.mxu0
    %1675 = vmatpush.bf16.msra.mxu0 %v269
    %1676 = vmatpush.bf16.msra.mxu0 %v268
    %1677 = vmatpush.bf16.msra.mxu0 %v267
    %1678 = vmatpush.bf16.msra.mxu0 %v266
    %1679 = vmatpush.bf16.msra.mxu0 %v265
    %1680 = vmatpush.bf16.msra.mxu0 %v264
    %1681 = vmatpush.bf16.msra.mxu0 %v263
    %1682 = vmatpush.bf16.msra.mxu0 %v262
    %1683 = vmatmul.bf16.gmra.mxu0 %v1659
    %v1684 = vpop.f32.mrf.mxu0
    %v1685 = vadd.f32 %v1672, %v1684
    %v1686 = vpop.f32.mrf.mxu0
    %1687 = vdwg.mxu0
    %1688 = vmatpush.bf16.msra.mxu0 %v390
    %1689 = vmatpush.bf16.msra.mxu0 %v389
    %1690 = vmatpush.bf16.msra.mxu0 %v388
    %1691 = vmatpush.bf16.msra.mxu0 %v387
    %1692 = vmatpush.bf16.msra.mxu0 %v386
    %1693 = vmatpush.bf16.msra.mxu0 %v385
    %1694 = vmatpush.bf16.msra.mxu0 %v384
    %1695 = vmatpush.bf16.msra.mxu0 %v383
    %1696 = vmatmul.bf16.gmra.mxu0 %v1406
    %v1697 = vpop.f32.mrf.mxu0
    %v1698 = vadd.f32 %v1685, %v1697
    %v1699 = vpop.f32.mrf.mxu0
    %1700 = vdwg.mxu0
    %1701 = vmatpush.bf16.msra.mxu0 %v398
    %1702 = vmatpush.bf16.msra.mxu0 %v397
    %1703 = vmatpush.bf16.msra.mxu0 %v396
    %1704 = vmatpush.bf16.msra.mxu0 %v395
    %1705 = vmatpush.bf16.msra.mxu0 %v394
    %1706 = vmatpush.bf16.msra.mxu0 %v393
    %1707 = vmatpush.bf16.msra.mxu0 %v392
    %1708 = vmatpush.bf16.msra.mxu0 %v391
    %1709 = vmatmul.bf16.gmra.mxu0 %v1407
    %v1710 = vpop.f32.mrf.mxu0
    %v1711 = vadd.f32 %v1698, %v1710
    %v1712 = vpop.f32.mrf.mxu0
    %1713 = vdwg.mxu0
    %1714 = vmatpush.bf16.msra.mxu0 %v554
    %1715 = vmatpush.bf16.msra.mxu0 %v553
    %1716 = vmatpush.bf16.msra.mxu0 %v552
    %1717 = vmatpush.bf16.msra.mxu0 %v551
    %1718 = vmatpush.bf16.msra.mxu0 %v550
    %1719 = vmatpush.bf16.msra.mxu0 %v549
    %1720 = vmatpush.bf16.msra.mxu0 %v548
    %1721 = vmatpush.bf16.msra.mxu0 %v547
    %1722 = vmatmul.bf16.gmra.mxu0 %v1494
    %v1723 = vpop.f32.mrf.mxu0
    %v1724 = vadd.f32 0.0, %v1723
    %v1725 = vpop.f32.mrf.mxu0
    %1726 = vdwg.mxu0
    %1727 = vmatpush.bf16.msra.mxu0 %v562
    %1728 = vmatpush.bf16.msra.mxu0 %v561
    %1729 = vmatpush.bf16.msra.mxu0 %v560
    %1730 = vmatpush.bf16.msra.mxu0 %v559
    %1731 = vmatpush.bf16.msra.mxu0 %v558
    %1732 = vmatpush.bf16.msra.mxu0 %v557
    %1733 = vmatpush.bf16.msra.mxu0 %v556
    %1734 = vmatpush.bf16.msra.mxu0 %v555
    %1735 = vmatmul.bf16.gmra.mxu0 %v1495
    %v1736 = vpop.f32.mrf.mxu0
    %v1737 = vadd.f32 %v1724, %v1736
    %v1738 = vpop.f32.mrf.mxu0
    %1739 = vdwg.mxu0
    %v1740 = vadd.f32 %v1711, %v1737
    %s1741 = scalar_lea.vmem %s0, 88
    %v1742 = vld [vmem:[%s1741] sm:$0xff]
    %v1744 = vunpack.c.l.b16 %v1742
    %v1745 = vunpack.c.h.b16 %v1742
    %v1746 = vpack.c.b16 %v1744, %v1744
    %v1747 = vpack.c.b16 %v1745, %v1745
    %1750 = vmatpush.bf16.msra.mxu0 %v719
    %1751 = vmatpush.bf16.msra.mxu0 %v718
    %1752 = vmatpush.bf16.msra.mxu0 %v717
    %1753 = vmatpush.bf16.msra.mxu0 %v716
    %1754 = vmatpush.bf16.msra.mxu0 %v715
    %1755 = vmatpush.bf16.msra.mxu0 %v714
    %1756 = vmatpush.bf16.msra.mxu0 %v713
    %1757 = vmatpush.bf16.msra.mxu0 %v712
    %1758 = vmatmul.bf16.gmra.mxu0 %v1746
    %v1759 = vpop.f32.mrf.mxu0
    %v1760 = vadd.f32 0.0, %v1759
    %v1761 = vpop.f32.mrf.mxu0
    %1762 = vdwg.mxu0
    %1763 = vmatpush.bf16.msra.mxu0 %v727
    %1764 = vmatpush.bf16.msra.mxu0 %v726
    %1765 = vmatpush.bf16.msra.mxu0 %v725
    %1766 = vmatpush.bf16.msra.mxu0 %v724
    %1767 = vmatpush.bf16.msra.mxu0 %v723
    %1768 = vmatpush.bf16.msra.mxu0 %v722
    %1769 = vmatpush.bf16.msra.mxu0 %v721
    %1770 = vmatpush.bf16.msra.mxu0 %v720
    %1771 = vmatmul.bf16.gmra.mxu0 %v1747
    %v1772 = vpop.f32.mrf.mxu0
    %v1773 = vadd.f32 %v1760, %v1772
    %v1774 = vpop.f32.mrf.mxu0
    %1775 = vdwg.mxu0
    %v1776 = vadd.f32 %v1740, %v1773
    %v1777 = vadd.f32 %v1776, %v772
    %v1778 = vmax.f32 %v1777, 0.0
    %v1779 = vpack.c.bf16 %v1778, %v1778
    %s1780 = scalar_lea.vmem [#allocation6], 512
    %v1781 = vld [vmem:[%s1780] sm:$0xff]
    %v1782 = vld [vmem:[%s1780 + $0x8] sm:$0xff]
    %v1783 = vld [vmem:[%s1780 + $0x10] sm:$0xff]
    %v1784 = vld [vmem:[%s1780 + $0x18] sm:$0xff]
    %v1785 = vld [vmem:[%s1780 + $0x20] sm:$0xff]
    %v1786 = vld [vmem:[%s1780 + $0x28] sm:$0xff]
    %v1787 = vld [vmem:[%s1780 + $0x30] sm:$0xff]
    %v1788 = vld [vmem:[%s1780 + $0x38] sm:$0xff]
    %v1789 = vld [vmem:[%s1780 + $0x40] sm:$0xff]
    %v1790 = vld [vmem:[%s1780 + $0x48] sm:$0xff]
    %v1791 = vld [vmem:[%s1780 + $0x50] sm:$0xff]
    %v1792 = vld [vmem:[%s1780 + $0x58] sm:$0xff]
    %v1793 = vld [vmem:[%s1780 + $0x60] sm:$0xff]
    %v1794 = vld [vmem:[%s1780 + $0x68] sm:$0xff]
    %v1795 = vld [vmem:[%s1780 + $0x70] sm:$0xff]
    %v1796 = vld [vmem:[%s1780 + $0x78] sm:$0xff]
    %v1813 = vunpack.c.l.b16 %v1781
    %v1814 = vunpack.c.h.b16 %v1781
    %v1815 = vunpack.c.l.b16 %v1782
    %v1816 = vunpack.c.h.b16 %v1782
    %v1817 = vunpack.c.l.b16 %v1783
    %v1818 = vunpack.c.h.b16 %v1783
    %v1819 = vunpack.c.l.b16 %v1784
    %v1820 = vunpack.c.h.b16 %v1784
    %v1821 = vunpack.c.l.b16 %v1785
    %v1822 = vunpack.c.h.b16 %v1785
    %v1823 = vunpack.c.l.b16 %v1786
    %v1824 = vunpack.c.h.b16 %v1786
    %v1825 = vunpack.c.l.b16 %v1787
    %v1826 = vunpack.c.h.b16 %v1787
    %v1827 = vunpack.c.l.b16 %v1788
    %v1828 = vunpack.c.h.b16 %v1788
    %v1829 = vunpack.c.l.b16 %v1789
    %v1830 = vunpack.c.h.b16 %v1789
    %v1831 = vunpack.c.l.b16 %v1790
    %v1832 = vunpack.c.h.b16 %v1790
    %v1833 = vunpack.c.l.b16 %v1791
    %v1834 = vunpack.c.h.b16 %v1791
    %v1835 = vunpack.c.l.b16 %v1792
    %v1836 = vunpack.c.h.b16 %v1792
    %v1837 = vunpack.c.l.b16 %v1793
    %v1838 = vunpack.c.h.b16 %v1793
    %v1839 = vunpack.c.l.b16 %v1794
    %v1840 = vunpack.c.h.b16 %v1794
    %v1841 = vunpack.c.l.b16 %v1795
    %v1842 = vunpack.c.h.b16 %v1795
    %v1843 = vunpack.c.l.b16 %v1796
    %v1844 = vunpack.c.h.b16 %v1796
    %v1845 = vpack.c.b16 %v1815, %v1813
    %v1846 = vpack.c.b16 %v1816, %v1814
    %v1847 = vpack.c.b16 %v1819, %v1817
    %v1848 = vpack.c.b16 %v1820, %v1818
    %v1849 = vpack.c.b16 %v1823, %v1821
    %v1850 = vpack.c.b16 %v1824, %v1822
    %v1851 = vpack.c.b16 %v1827, %v1825
    %v1852 = vpack.c.b16 %v1828, %v1826
    %v1853 = vpack.c.b16 %v1831, %v1829
    %v1854 = vpack.c.b16 %v1832, %v1830
    %v1855 = vpack.c.b16 %v1835, %v1833
    %v1856 = vpack.c.b16 %v1836, %v1834
    %v1857 = vpack.c.b16 %v1839, %v1837
    %v1858 = vpack.c.b16 %v1840, %v1838
    %v1859 = vpack.c.b16 %v1843, %v1841
    %v1860 = vpack.c.b16 %v1844, %v1842
    %1877 = vmatpush.bf16.msra.mxu0 %v1859
    %1878 = vmatpush.bf16.msra.mxu0 %v1857
    %1879 = vmatpush.bf16.msra.mxu0 %v1855
    %1880 = vmatpush.bf16.msra.mxu0 %v1853
    %1881 = vmatpush.bf16.msra.mxu0 %v1851
    %1882 = vmatpush.bf16.msra.mxu0 %v1849
    %1883 = vmatpush.bf16.msra.mxu0 %v1847
    %1884 = vmatpush.bf16.msra.mxu0 %v1845
    %1885 = vmatmul.bf16.gmra.mxu0 %v1779
    %v1886 = vpop.f32.mrf.mxu0
    %v1887 = vadd.f32 0.0, %v1886
    %v1888 = vpop.f32.mrf.mxu0
    %1889 = vdwg.mxu0
    %1890 = vmatpush.bf16.msra.mxu0 %v1860
    %1891 = vmatpush.bf16.msra.mxu0 %v1858
    %1892 = vmatpush.bf16.msra.mxu0 %v1856
    %1893 = vmatpush.bf16.msra.mxu0 %v1854
    %1894 = vmatpush.bf16.msra.mxu0 %v1852
    %1895 = vmatpush.bf16.msra.mxu0 %v1850
    %1896 = vmatpush.bf16.msra.mxu0 %v1848
    %1897 = vmatpush.bf16.msra.mxu0 %v1846
    %1898 = vmatmul.bf16.gmra.mxu0 %v1779
    %v1899 = vpop.f32.mrf.mxu0
    %v1900 = vadd.f32 0.0, %v1899
    %v1901 = vpop.f32.mrf.mxu0
    %1902 = vdwg.mxu0
    %v1903 = vadd.f32 %v1651, %v1887
    %v1904 = vadd.f32 %v1652, %v1900
    %1905 = vmatpush.bf16.msra.mxu0 %v261
    %1906 = vmatpush.bf16.msra.mxu0 %v260
    %1907 = vmatpush.bf16.msra.mxu0 %v259
    %1908 = vmatpush.bf16.msra.mxu0 %v258
    %1909 = vmatpush.bf16.msra.mxu0 %v257
    %1910 = vmatpush.bf16.msra.mxu0 %v256
    %1911 = vmatpush.bf16.msra.mxu0 %v255
    %1912 = vmatpush.bf16.msra.mxu0 %v254
    %1913 = vmatmul.bf16.gmra.mxu0 %v644
    %v1914 = vpop.f32.mrf.mxu0
    %v1915 = vadd.f32 0.0, %v1914
    %v1916 = vpop.f32.mrf.mxu0
    %1917 = vdwg.mxu0
    %1918 = vmatpush.bf16.msra.mxu0 %v269
    %1919 = vmatpush.bf16.msra.mxu0 %v268
    %1920 = vmatpush.bf16.msra.mxu0 %v267
    %1921 = vmatpush.bf16.msra.mxu0 %v266
    %1922 = vmatpush.bf16.msra.mxu0 %v265
    %1923 = vmatpush.bf16.msra.mxu0 %v264
    %1924 = vmatpush.bf16.msra.mxu0 %v263
    %1925 = vmatpush.bf16.msra.mxu0 %v262
    %1926 = vmatmul.bf16.gmra.mxu0 %v645
    %v1927 = vpop.f32.mrf.mxu0
    %v1928 = vadd.f32 %v1915, %v1927
    %v1929 = vpop.f32.mrf.mxu0
    %1930 = vdwg.mxu0
    %1931 = vmatpush.bf16.msra.mxu0 %v390
    %1932 = vmatpush.bf16.msra.mxu0 %v389
    %1933 = vmatpush.bf16.msra.mxu0 %v388
    %1934 = vmatpush.bf16.msra.mxu0 %v387
    %1935 = vmatpush.bf16.msra.mxu0 %v386
    %1936 = vmatpush.bf16.msra.mxu0 %v385
    %1937 = vmatpush.bf16.msra.mxu0 %v384
    %1938 = vmatpush.bf16.msra.mxu0 %v383
    %1939 = vmatmul.bf16.gmra.mxu0 %v479
    %v1940 = vpop.f32.mrf.mxu0
    %v1941 = vadd.f32 %v1928, %v1940
    %v1942 = vpop.f32.mrf.mxu0
    %1943 = vdwg.mxu0
    %1944 = vmatpush.bf16.msra.mxu0 %v398
    %1945 = vmatpush.bf16.msra.mxu0 %v397
    %1946 = vmatpush.bf16.msra.mxu0 %v396
    %1947 = vmatpush.bf16.msra.mxu0 %v395
    %1948 = vmatpush.bf16.msra.mxu0 %v394
    %1949 = vmatpush.bf16.msra.mxu0 %v393
    %1950 = vmatpush.bf16.msra.mxu0 %v392
    %1951 = vmatpush.bf16.msra.mxu0 %v391
    %1952 = vmatmul.bf16.gmra.mxu0 %v480
    %v1953 = vpop.f32.mrf.mxu0
    %v1954 = vadd.f32 %v1941, %v1953
    %v1955 = vpop.f32.mrf.mxu0
    %1956 = vdwg.mxu0
    %s1957 = scalar_lea.vmem %s0, 96
    %v1958 = vld [vmem:[%s1957] sm:$0xff]
    %v1960 = vunpack.c.l.b16 %v1958
    %v1961 = vunpack.c.h.b16 %v1958
    %v1962 = vpack.c.b16 %v1960, %v1960
    %v1963 = vpack.c.b16 %v1961, %v1961
    %1966 = vmatpush.bf16.msra.mxu0 %v554
    %1967 = vmatpush.bf16.msra.mxu0 %v553
    %1968 = vmatpush.bf16.msra.mxu0 %v552
    %1969 = vmatpush.bf16.msra.mxu0 %v551
    %1970 = vmatpush.bf16.msra.mxu0 %v550
    %1971 = vmatpush.bf16.msra.mxu0 %v549
    %1972 = vmatpush.bf16.msra.mxu0 %v548
    %1973 = vmatpush.bf16.msra.mxu0 %v547
    %1974 = vmatmul.bf16.gmra.mxu0 %v1962
    %v1975 = vpop.f32.mrf.mxu0
    %v1976 = vadd.f32 0.0, %v1975
    %v1977 = vpop.f32.mrf.mxu0
    %1978 = vdwg.mxu0
    %1979 = vmatpush.bf16.msra.mxu0 %v562
    %1980 = vmatpush.bf16.msra.mxu0 %v561
    %1981 = vmatpush.bf16.msra.mxu0 %v560
    %1982 = vmatpush.bf16.msra.mxu0 %v559
    %1983 = vmatpush.bf16.msra.mxu0 %v558
    %1984 = vmatpush.bf16.msra.mxu0 %v557
    %1985 = vmatpush.bf16.msra.mxu0 %v556
    %1986 = vmatpush.bf16.msra.mxu0 %v555
    %1987 = vmatmul.bf16.gmra.mxu0 %v1963
    %v1988 = vpop.f32.mrf.mxu0
    %v1989 = vadd.f32 %v1976, %v1988
    %v1990 = vpop.f32.mrf.mxu0
    %1991 = vdwg.mxu0
    %v1992 = vadd.f32 %v1954, %v1989
    %s1993 = scalar_lea.vmem %s0, 104
    %v1994 = vld [vmem:[%s1993] sm:$0xff]
    %v1996 = vunpack.c.l.b16 %v1994
    %v1997 = vunpack.c.h.b16 %v1994
    %v1998 = vpack.c.b16 %v1996, %v1996
    %v1999 = vpack.c.b16 %v1997, %v1997
    %2002 = vmatpush.bf16.msra.mxu0 %v719
    %2003 = vmatpush.bf16.msra.mxu0 %v718
    %2004 = vmatpush.bf16.msra.mxu0 %v717
    %2005 = vmatpush.bf16.msra.mxu0 %v716
    %2006 = vmatpush.bf16.msra.mxu0 %v715
    %2007 = vmatpush.bf16.msra.mxu0 %v714
    %2008 = vmatpush.bf16.msra.mxu0 %v713
    %2009 = vmatpush.bf16.msra.mxu0 %v712
    %2010 = vmatmul.bf16.gmra.mxu0 %v1998
    %v2011 = vpop.f32.mrf.mxu0
    %v2012 = vadd.f32 0.0, %v2011
    %v2013 = vpop.f32.mrf.mxu0
    %2014 = vdwg.mxu0
    %2015 = vmatpush.bf16.msra.mxu0 %v727
    %2016 = vmatpush.bf16.msra.mxu0 %v726
    %2017 = vmatpush.bf16.msra.mxu0 %v725
    %2018 = vmatpush.bf16.msra.mxu0 %v724
    %2019 = vmatpush.bf16.msra.mxu0 %v723
    %2020 = vmatpush.bf16.msra.mxu0 %v722
    %2021 = vmatpush.bf16.msra.mxu0 %v721
    %2022 = vmatpush.bf16.msra.mxu0 %v720
    %2023 = vmatmul.bf16.gmra.mxu0 %v1999
    %v2024 = vpop.f32.mrf.mxu0
    %v2025 = vadd.f32 %v2012, %v2024
    %v2026 = vpop.f32.mrf.mxu0
    %2027 = vdwg.mxu0
    %v2028 = vadd.f32 %v1992, %v2025
    %v2029 = vadd.f32 %v2028, %v772
    %v2030 = vmax.f32 %v2029, 0.0
    %v2031 = vpack.c.bf16 %v2030, %v2030
    %s2032 = scalar_lea.vmem [#allocation6], 640
    %v2033 = vld [vmem:[%s2032] sm:$0xff]
    %v2034 = vld [vmem:[%s2032 + $0x8] sm:$0xff]
    %v2035 = vld [vmem:[%s2032 + $0x10] sm:$0xff]
    %v2036 = vld [vmem:[%s2032 + $0x18] sm:$0xff]
    %v2037 = vld [vmem:[%s2032 + $0x20] sm:$0xff]
    %v2038 = vld [vmem:[%s2032 + $0x28] sm:$0xff]
    %v2039 = vld [vmem:[%s2032 + $0x30] sm:$0xff]
    %v2040 = vld [vmem:[%s2032 + $0x38] sm:$0xff]
    %v2041 = vld [vmem:[%s2032 + $0x40] sm:$0xff]
    %v2042 = vld [vmem:[%s2032 + $0x48] sm:$0xff]
    %v2043 = vld [vmem:[%s2032 + $0x50] sm:$0xff]
    %v2044 = vld [vmem:[%s2032 + $0x58] sm:$0xff]
    %v2045 = vld [vmem:[%s2032 + $0x60] sm:$0xff]
    %v2046 = vld [vmem:[%s2032 + $0x68] sm:$0xff]
    %v2047 = vld [vmem:[%s2032 + $0x70] sm:$0xff]
    %v2048 = vld [vmem:[%s2032 + $0x78] sm:$0xff]
    %v2065 = vunpack.c.l.b16 %v2033
    %v2066 = vunpack.c.h.b16 %v2033
    %v2067 = vunpack.c.l.b16 %v2034
    %v2068 = vunpack.c.h.b16 %v2034
    %v2069 = vunpack.c.l.b16 %v2035
    %v2070 = vunpack.c.h.b16 %v2035
    %v2071 = vunpack.c.l.b16 %v2036
    %v2072 = vunpack.c.h.b16 %v2036
    %v2073 = vunpack.c.l.b16 %v2037
    %v2074 = vunpack.c.h.b16 %v2037
    %v2075 = vunpack.c.l.b16 %v2038
    %v2076 = vunpack.c.h.b16 %v2038
    %v2077 = vunpack.c.l.b16 %v2039
    %v2078 = vunpack.c.h.b16 %v2039
    %v2079 = vunpack.c.l.b16 %v2040
    %v2080 = vunpack.c.h.b16 %v2040
    %v2081 = vunpack.c.l.b16 %v2041
    %v2082 = vunpack.c.h.b16 %v2041
    %v2083 = vunpack.c.l.b16 %v2042
    %v2084 = vunpack.c.h.b16 %v2042
    %v2085 = vunpack.c.l.b16 %v2043
    %v2086 = vunpack.c.h.b16 %v2043
    %v2087 = vunpack.c.l.b16 %v2044
    %v2088 = vunpack.c.h.b16 %v2044
    %v2089 = vunpack.c.l.b16 %v2045
    %v2090 = vunpack.c.h.b16 %v2045
    %v2091 = vunpack.c.l.b16 %v2046
    %v2092 = vunpack.c.h.b16 %v2046
    %v2093 = vunpack.c.l.b16 %v2047
    %v2094 = vunpack.c.h.b16 %v2047
    %v2095 = vunpack.c.l.b16 %v2048
    %v2096 = vunpack.c.h.b16 %v2048
    %v2097 = vpack.c.b16 %v2067, %v2065
    %v2098 = vpack.c.b16 %v2068, %v2066
    %v2099 = vpack.c.b16 %v2071, %v2069
    %v2100 = vpack.c.b16 %v2072, %v2070
    %v2101 = vpack.c.b16 %v2075, %v2073
    %v2102 = vpack.c.b16 %v2076, %v2074
    %v2103 = vpack.c.b16 %v2079, %v2077
    %v2104 = vpack.c.b16 %v2080, %v2078
    %v2105 = vpack.c.b16 %v2083, %v2081
    %v2106 = vpack.c.b16 %v2084, %v2082
    %v2107 = vpack.c.b16 %v2087, %v2085
    %v2108 = vpack.c.b16 %v2088, %v2086
    %v2109 = vpack.c.b16 %v2091, %v2089
    %v2110 = vpack.c.b16 %v2092, %v2090
    %v2111 = vpack.c.b16 %v2095, %v2093
    %v2112 = vpack.c.b16 %v2096, %v2094
    %2129 = vmatpush.bf16.msra.mxu0 %v2111
    %2130 = vmatpush.bf16.msra.mxu0 %v2109
    %2131 = vmatpush.bf16.msra.mxu0 %v2107
    %2132 = vmatpush.bf16.msra.mxu0 %v2105
    %2133 = vmatpush.bf16.msra.mxu0 %v2103
    %2134 = vmatpush.bf16.msra.mxu0 %v2101
    %2135 = vmatpush.bf16.msra.mxu0 %v2099
    %2136 = vmatpush.bf16.msra.mxu0 %v2097
    %2137 = vmatmul.bf16.gmra.mxu0 %v2031
    %v2138 = vpop.f32.mrf.mxu0
    %v2139 = vadd.f32 0.0, %v2138
    %v2140 = vpop.f32.mrf.mxu0
    %2141 = vdwg.mxu0
    %2142 = vmatpush.bf16.msra.mxu0 %v2112
    %2143 = vmatpush.bf16.msra.mxu0 %v2110
    %2144 = vmatpush.bf16.msra.mxu0 %v2108
    %2145 = vmatpush.bf16.msra.mxu0 %v2106
    %2146 = vmatpush.bf16.msra.mxu0 %v2104
    %2147 = vmatpush.bf16.msra.mxu0 %v2102
    %2148 = vmatpush.bf16.msra.mxu0 %v2100
    %2149 = vmatpush.bf16.msra.mxu0 %v2098
    %2150 = vmatmul.bf16.gmra.mxu0 %v2031
    %v2151 = vpop.f32.mrf.mxu0
    %v2152 = vadd.f32 0.0, %v2151
    %v2153 = vpop.f32.mrf.mxu0
    %2154 = vdwg.mxu0
    %v2155 = vadd.f32 %v1903, %v2139
    %v2156 = vadd.f32 %v1904, %v2152
    %2157 = vmatpush.bf16.msra.mxu0 %v261
    %2158 = vmatpush.bf16.msra.mxu0 %v260
    %2159 = vmatpush.bf16.msra.mxu0 %v259
    %2160 = vmatpush.bf16.msra.mxu0 %v258
    %2161 = vmatpush.bf16.msra.mxu0 %v257
    %2162 = vmatpush.bf16.msra.mxu0 %v256
    %2163 = vmatpush.bf16.msra.mxu0 %v255
    %2164 = vmatpush.bf16.msra.mxu0 %v254
    %2165 = vmatmul.bf16.gmra.mxu0 %v886
    %v2166 = vpop.f32.mrf.mxu0
    %v2167 = vadd.f32 0.0, %v2166
    %v2168 = vpop.f32.mrf.mxu0
    %2169 = vdwg.mxu0
    %2170 = vmatpush.bf16.msra.mxu0 %v269
    %2171 = vmatpush.bf16.msra.mxu0 %v268
    %2172 = vmatpush.bf16.msra.mxu0 %v267
    %2173 = vmatpush.bf16.msra.mxu0 %v266
    %2174 = vmatpush.bf16.msra.mxu0 %v265
    %2175 = vmatpush.bf16.msra.mxu0 %v264
    %2176 = vmatpush.bf16.msra.mxu0 %v263
    %2177 = vmatpush.bf16.msra.mxu0 %v262
    %2178 = vmatmul.bf16.gmra.mxu0 %v887
    %v2179 = vpop.f32.mrf.mxu0
    %v2180 = vadd.f32 %v2167, %v2179
    %v2181 = vpop.f32.mrf.mxu0
    %2182 = vdwg.mxu0
    %2183 = vmatpush.bf16.msra.mxu0 %v390
    %2184 = vmatpush.bf16.msra.mxu0 %v389
    %2185 = vmatpush.bf16.msra.mxu0 %v388
    %2186 = vmatpush.bf16.msra.mxu0 %v387
    %2187 = vmatpush.bf16.msra.mxu0 %v386
    %2188 = vmatpush.bf16.msra.mxu0 %v385
    %2189 = vmatpush.bf16.msra.mxu0 %v384
    %2190 = vmatpush.bf16.msra.mxu0 %v383
    %2191 = vmatmul.bf16.gmra.mxu0 %v644
    %v2192 = vpop.f32.mrf.mxu0
    %v2193 = vadd.f32 %v2180, %v2192
    %v2194 = vpop.f32.mrf.mxu0
    %2195 = vdwg.mxu0
    %2196 = vmatpush.bf16.msra.mxu0 %v398
    %2197 = vmatpush.bf16.msra.mxu0 %v397
    %2198 = vmatpush.bf16.msra.mxu0 %v396
    %2199 = vmatpush.bf16.msra.mxu0 %v395
    %2200 = vmatpush.bf16.msra.mxu0 %v394
    %2201 = vmatpush.bf16.msra.mxu0 %v393
    %2202 = vmatpush.bf16.msra.mxu0 %v392
    %2203 = vmatpush.bf16.msra.mxu0 %v391
    %2204 = vmatmul.bf16.gmra.mxu0 %v645
    %v2205 = vpop.f32.mrf.mxu0
    %v2206 = vadd.f32 %v2193, %v2205
    %v2207 = vpop.f32.mrf.mxu0
    %2208 = vdwg.mxu0
    %2209 = vmatpush.bf16.msra.mxu0 %v554
    %2210 = vmatpush.bf16.msra.mxu0 %v553
    %2211 = vmatpush.bf16.msra.mxu0 %v552
    %2212 = vmatpush.bf16.msra.mxu0 %v551
    %2213 = vmatpush.bf16.msra.mxu0 %v550
    %2214 = vmatpush.bf16.msra.mxu0 %v549
    %2215 = vmatpush.bf16.msra.mxu0 %v548
    %2216 = vmatpush.bf16.msra.mxu0 %v547
    %2217 = vmatmul.bf16.gmra.mxu0 %v1998
    %v2218 = vpop.f32.mrf.mxu0
    %v2219 = vadd.f32 0.0, %v2218
    %v2220 = vpop.f32.mrf.mxu0
    %2221 = vdwg.mxu0
    %2222 = vmatpush.bf16.msra.mxu0 %v562
    %2223 = vmatpush.bf16.msra.mxu0 %v561
    %2224 = vmatpush.bf16.msra.mxu0 %v560
    %2225 = vmatpush.bf16.msra.mxu0 %v559
    %2226 = vmatpush.bf16.msra.mxu0 %v558
    %2227 = vmatpush.bf16.msra.mxu0 %v557
    %2228 = vmatpush.bf16.msra.mxu0 %v556
    %2229 = vmatpush.bf16.msra.mxu0 %v555
    %2230 = vmatmul.bf16.gmra.mxu0 %v1999
    %v2231 = vpop.f32.mrf.mxu0
    %v2232 = vadd.f32 %v2219, %v2231
    %v2233 = vpop.f32.mrf.mxu0
    %2234 = vdwg.mxu0
    %v2235 = vadd.f32 %v2206, %v2232
    %s2236 = scalar_lea.vmem %s0, 112
    %v2237 = vld [vmem:[%s2236] sm:$0xff]
    %v2239 = vunpack.c.l.b16 %v2237
    %v2240 = vunpack.c.h.b16 %v2237
    %v2241 = vpack.c.b16 %v2239, %v2239
    %v2242 = vpack.c.b16 %v2240, %v2240
    %2245 = vmatpush.bf16.msra.mxu0 %v719
    %2246 = vmatpush.bf16.msra.mxu0 %v718
    %2247 = vmatpush.bf16.msra.mxu0 %v717
    %2248 = vmatpush.bf16.msra.mxu0 %v716
    %2249 = vmatpush.bf16.msra.mxu0 %v715
    %2250 = vmatpush.bf16.msra.mxu0 %v714
    %2251 = vmatpush.bf16.msra.mxu0 %v713
    %2252 = vmatpush.bf16.msra.mxu0 %v712
    %2253 = vmatmul.bf16.gmra.mxu0 %v2241
    %v2254 = vpop.f32.mrf.mxu0
    %v2255 = vadd.f32 0.0, %v2254
    %v2256 = vpop.f32.mrf.mxu0
    %2257 = vdwg.mxu0
    %2258 = vmatpush.bf16.msra.mxu0 %v727
    %2259 = vmatpush.bf16.msra.mxu0 %v726
    %2260 = vmatpush.bf16.msra.mxu0 %v725
    %2261 = vmatpush.bf16.msra.mxu0 %v724
    %2262 = vmatpush.bf16.msra.mxu0 %v723
    %2263 = vmatpush.bf16.msra.mxu0 %v722
    %2264 = vmatpush.bf16.msra.mxu0 %v721
    %2265 = vmatpush.bf16.msra.mxu0 %v720
    %2266 = vmatmul.bf16.gmra.mxu0 %v2242
    %v2267 = vpop.f32.mrf.mxu0
    %v2268 = vadd.f32 %v2255, %v2267
    %v2269 = vpop.f32.mrf.mxu0
    %2270 = vdwg.mxu0
    %v2271 = vadd.f32 %v2235, %v2268
    %v2272 = vadd.f32 %v2271, %v772
    %v2273 = vmax.f32 %v2272, 0.0
    %v2274 = vpack.c.bf16 %v2273, %v2273
    %s2275 = scalar_lea.vmem [#allocation6], 768
    %v2276 = vld [vmem:[%s2275] sm:$0xff]
    %v2277 = vld [vmem:[%s2275 + $0x8] sm:$0xff]
    %v2278 = vld [vmem:[%s2275 + $0x10] sm:$0xff]
    %v2279 = vld [vmem:[%s2275 + $0x18] sm:$0xff]
    %v2280 = vld [vmem:[%s2275 + $0x20] sm:$0xff]
    %v2281 = vld [vmem:[%s2275 + $0x28] sm:$0xff]
    %v2282 = vld [vmem:[%s2275 + $0x30] sm:$0xff]
    %v2283 = vld [vmem:[%s2275 + $0x38] sm:$0xff]
    %v2284 = vld [vmem:[%s2275 + $0x40] sm:$0xff]
    %v2285 = vld [vmem:[%s2275 + $0x48] sm:$0xff]
    %v2286 = vld [vmem:[%s2275 + $0x50] sm:$0xff]
    %v2287 = vld [vmem:[%s2275 + $0x58] sm:$0xff]
    %v2288 = vld [vmem:[%s2275 + $0x60] sm:$0xff]
    %v2289 = vld [vmem:[%s2275 + $0x68] sm:$0xff]
    %v2290 = vld [vmem:[%s2275 + $0x70] sm:$0xff]
    %v2291 = vld [vmem:[%s2275 + $0x78] sm:$0xff]
    %v2308 = vunpack.c.l.b16 %v2276
    %v2309 = vunpack.c.h.b16 %v2276
    %v2310 = vunpack.c.l.b16 %v2277
    %v2311 = vunpack.c.h.b16 %v2277
    %v2312 = vunpack.c.l.b16 %v2278
    %v2313 = vunpack.c.h.b16 %v2278
    %v2314 = vunpack.c.l.b16 %v2279
    %v2315 = vunpack.c.h.b16 %v2279
    %v2316 = vunpack.c.l.b16 %v2280
    %v2317 = vunpack.c.h.b16 %v2280
    %v2318 = vunpack.c.l.b16 %v2281
    %v2319 = vunpack.c.h.b16 %v2281
    %v2320 = vunpack.c.l.b16 %v2282
    %v2321 = vunpack.c.h.b16 %v2282
    %v2322 = vunpack.c.l.b16 %v2283
    %v2323 = vunpack.c.h.b16 %v2283
    %v2324 = vunpack.c.l.b16 %v2284
    %v2325 = vunpack.c.h.b16 %v2284
    %v2326 = vunpack.c.l.b16 %v2285
    %v2327 = vunpack.c.h.b16 %v2285
    %v2328 = vunpack.c.l.b16 %v2286
    %v2329 = vunpack.c.h.b16 %v2286
    %v2330 = vunpack.c.l.b16 %v2287
    %v2331 = vunpack.c.h.b16 %v2287
    %v2332 = vunpack.c.l.b16 %v2288
    %v2333 = vunpack.c.h.b16 %v2288
    %v2334 = vunpack.c.l.b16 %v2289
    %v2335 = vunpack.c.h.b16 %v2289
    %v2336 = vunpack.c.l.b16 %v2290
    %v2337 = vunpack.c.h.b16 %v2290
    %v2338 = vunpack.c.l.b16 %v2291
    %v2339 = vunpack.c.h.b16 %v2291
    %v2340 = vpack.c.b16 %v2310, %v2308
    %v2341 = vpack.c.b16 %v2311, %v2309
    %v2342 = vpack.c.b16 %v2314, %v2312
    %v2343 = vpack.c.b16 %v2315, %v2313
    %v2344 = vpack.c.b16 %v2318, %v2316
    %v2345 = vpack.c.b16 %v2319, %v2317
    %v2346 = vpack.c.b16 %v2322, %v2320
    %v2347 = vpack.c.b16 %v2323, %v2321
    %v2348 = vpack.c.b16 %v2326, %v2324
    %v2349 = vpack.c.b16 %v2327, %v2325
    %v2350 = vpack.c.b16 %v2330, %v2328
    %v2351 = vpack.c.b16 %v2331, %v2329
    %v2352 = vpack.c.b16 %v2334, %v2332
    %v2353 = vpack.c.b16 %v2335, %v2333
    %v2354 = vpack.c.b16 %v2338, %v2336
    %v2355 = vpack.c.b16 %v2339, %v2337
    %2372 = vmatpush.bf16.msra.mxu0 %v2354
    %2373 = vmatpush.bf16.msra.mxu0 %v2352
    %2374 = vmatpush.bf16.msra.mxu0 %v2350
    %2375 = vmatpush.bf16.msra.mxu0 %v2348
    %2376 = vmatpush.bf16.msra.mxu0 %v2346
    %2377 = vmatpush.bf16.msra.mxu0 %v2344
    %2378 = vmatpush.bf16.msra.mxu0 %v2342
    %2379 = vmatpush.bf16.msra.mxu0 %v2340
    %2380 = vmatmul.bf16.gmra.mxu0 %v2274
    %v2381 = vpop.f32.mrf.mxu0
    %v2382 = vadd.f32 0.0, %v2381
    %v2383 = vpop.f32.mrf.mxu0
    %2384 = vdwg.mxu0
    %2385 = vmatpush.bf16.msra.mxu0 %v2355
    %2386 = vmatpush.bf16.msra.mxu0 %v2353
    %2387 = vmatpush.bf16.msra.mxu0 %v2351
    %2388 = vmatpush.bf16.msra.mxu0 %v2349
    %2389 = vmatpush.bf16.msra.mxu0 %v2347
    %2390 = vmatpush.bf16.msra.mxu0 %v2345
    %2391 = vmatpush.bf16.msra.mxu0 %v2343
    %2392 = vmatpush.bf16.msra.mxu0 %v2341
    %2393 = vmatmul.bf16.gmra.mxu0 %v2274
    %v2394 = vpop.f32.mrf.mxu0
    %v2395 = vadd.f32 0.0, %v2394
    %v2396 = vpop.f32.mrf.mxu0
    %2397 = vdwg.mxu0
    %v2398 = vadd.f32 %v2155, %v2382
    %v2399 = vadd.f32 %v2156, %v2395
    %2400 = vmatpush.bf16.msra.mxu0 %v261
    %2401 = vmatpush.bf16.msra.mxu0 %v260
    %2402 = vmatpush.bf16.msra.mxu0 %v259
    %2403 = vmatpush.bf16.msra.mxu0 %v258
    %2404 = vmatpush.bf16.msra.mxu0 %v257
    %2405 = vmatpush.bf16.msra.mxu0 %v256
    %2406 = vmatpush.bf16.msra.mxu0 %v255
    %2407 = vmatpush.bf16.msra.mxu0 %v254
    %2408 = vmatmul.bf16.gmra.mxu0 %v1242
    %v2409 = vpop.f32.mrf.mxu0
    %v2410 = vadd.f32 0.0, %v2409
    %v2411 = vpop.f32.mrf.mxu0
    %2412 = vdwg.mxu0
    %2413 = vmatpush.bf16.msra.mxu0 %v269
    %2414 = vmatpush.bf16.msra.mxu0 %v268
    %2415 = vmatpush.bf16.msra.mxu0 %v267
    %2416 = vmatpush.bf16.msra.mxu0 %v266
    %2417 = vmatpush.bf16.msra.mxu0 %v265
    %2418 = vmatpush.bf16.msra.mxu0 %v264
    %2419 = vmatpush.bf16.msra.mxu0 %v263
    %2420 = vmatpush.bf16.msra.mxu0 %v262
    %2421 = vmatmul.bf16.gmra.mxu0 %v1243
    %v2422 = vpop.f32.mrf.mxu0
    %v2423 = vadd.f32 %v2410, %v2422
    %v2424 = vpop.f32.mrf.mxu0
    %2425 = vdwg.mxu0
    %2426 = vmatpush.bf16.msra.mxu0 %v390
    %2427 = vmatpush.bf16.msra.mxu0 %v389
    %2428 = vmatpush.bf16.msra.mxu0 %v388
    %2429 = vmatpush.bf16.msra.mxu0 %v387
    %2430 = vmatpush.bf16.msra.mxu0 %v386
    %2431 = vmatpush.bf16.msra.mxu0 %v385
    %2432 = vmatpush.bf16.msra.mxu0 %v384
    %2433 = vmatpush.bf16.msra.mxu0 %v383
    %2434 = vmatmul.bf16.gmra.mxu0 %v886
    %v2435 = vpop.f32.mrf.mxu0
    %v2436 = vadd.f32 %v2423, %v2435
    %v2437 = vpop.f32.mrf.mxu0
    %2438 = vdwg.mxu0
    %2439 = vmatpush.bf16.msra.mxu0 %v398
    %2440 = vmatpush.bf16.msra.mxu0 %v397
    %2441 = vmatpush.bf16.msra.mxu0 %v396
    %2442 = vmatpush.bf16.msra.mxu0 %v395
    %2443 = vmatpush.bf16.msra.mxu0 %v394
    %2444 = vmatpush.bf16.msra.mxu0 %v393
    %2445 = vmatpush.bf16.msra.mxu0 %v392
    %2446 = vmatpush.bf16.msra.mxu0 %v391
    %2447 = vmatmul.bf16.gmra.mxu0 %v887
    %v2448 = vpop.f32.mrf.mxu0
    %v2449 = vadd.f32 %v2436, %v2448
    %v2450 = vpop.f32.mrf.mxu0
    %2451 = vdwg.mxu0
    %2452 = vmatpush.bf16.msra.mxu0 %v554
    %2453 = vmatpush.bf16.msra.mxu0 %v553
    %2454 = vmatpush.bf16.msra.mxu0 %v552
    %2455 = vmatpush.bf16.msra.mxu0 %v551
    %2456 = vmatpush.bf16.msra.mxu0 %v550
    %2457 = vmatpush.bf16.msra.mxu0 %v549
    %2458 = vmatpush.bf16.msra.mxu0 %v548
    %2459 = vmatpush.bf16.msra.mxu0 %v547
    %2460 = vmatmul.bf16.gmra.mxu0 %v2241
    %v2461 = vpop.f32.mrf.mxu0
    %v2462 = vadd.f32 0.0, %v2461
    %v2463 = vpop.f32.mrf.mxu0
    %2464 = vdwg.mxu0
    %2465 = vmatpush.bf16.msra.mxu0 %v562
    %2466 = vmatpush.bf16.msra.mxu0 %v561
    %2467 = vmatpush.bf16.msra.mxu0 %v560
    %2468 = vmatpush.bf16.msra.mxu0 %v559
    %2469 = vmatpush.bf16.msra.mxu0 %v558
    %2470 = vmatpush.bf16.msra.mxu0 %v557
    %2471 = vmatpush.bf16.msra.mxu0 %v556
    %2472 = vmatpush.bf16.msra.mxu0 %v555
    %2473 = vmatmul.bf16.gmra.mxu0 %v2242
    %v2474 = vpop.f32.mrf.mxu0
    %v2475 = vadd.f32 %v2462, %v2474
    %v2476 = vpop.f32.mrf.mxu0
    %2477 = vdwg.mxu0
    %v2478 = vadd.f32 %v2449, %v2475
    %s2479 = scalar_lea.vmem %s0, 120
    %v2480 = vld [vmem:[%s2479] sm:$0xff]
    %v2482 = vunpack.c.l.b16 %v2480
    %v2483 = vunpack.c.h.b16 %v2480
    %v2484 = vpack.c.b16 %v2482, %v2482
    %v2485 = vpack.c.b16 %v2483, %v2483
    %2488 = vmatpush.bf16.msra.mxu0 %v719
    %2489 = vmatpush.bf16.msra.mxu0 %v718
    %2490 = vmatpush.bf16.msra.mxu0 %v717
    %2491 = vmatpush.bf16.msra.mxu0 %v716
    %2492 = vmatpush.bf16.msra.mxu0 %v715
    %2493 = vmatpush.bf16.msra.mxu0 %v714
    %2494 = vmatpush.bf16.msra.mxu0 %v713
    %2495 = vmatpush.bf16.msra.mxu0 %v712
    %2496 = vmatmul.bf16.gmra.mxu0 %v2484
    %v2497 = vpop.f32.mrf.mxu0
    %v2498 = vadd.f32 0.0, %v2497
    %v2499 = vpop.f32.mrf.mxu0
    %2500 = vdwg.mxu0
    %2501 = vmatpush.bf16.msra.mxu0 %v727
    %2502 = vmatpush.bf16.msra.mxu0 %v726
    %2503 = vmatpush.bf16.msra.mxu0 %v725
    %2504 = vmatpush.bf16.msra.mxu0 %v724
    %2505 = vmatpush.bf16.msra.mxu0 %v723
    %2506 = vmatpush.bf16.msra.mxu0 %v722
    %2507 = vmatpush.bf16.msra.mxu0 %v721
    %2508 = vmatpush.bf16.msra.mxu0 %v720
    %2509 = vmatmul.bf16.gmra.mxu0 %v2485
    %v2510 = vpop.f32.mrf.mxu0
    %v2511 = vadd.f32 %v2498, %v2510
    %v2512 = vpop.f32.mrf.mxu0
    %2513 = vdwg.mxu0
    %v2514 = vadd.f32 %v2478, %v2511
    %v2515 = vadd.f32 %v2514, %v772
    %v2516 = vmax.f32 %v2515, 0.0
    %v2517 = vpack.c.bf16 %v2516, %v2516
    %s2518 = scalar_lea.vmem [#allocation6], 896
    %v2519 = vld [vmem:[%s2518] sm:$0xff]
    %v2520 = vld [vmem:[%s2518 + $0x8] sm:$0xff]
    %v2521 = vld [vmem:[%s2518 + $0x10] sm:$0xff]
    %v2522 = vld [vmem:[%s2518 + $0x18] sm:$0xff]
    %v2523 = vld [vmem:[%s2518 + $0x20] sm:$0xff]
    %v2524 = vld [vmem:[%s2518 + $0x28] sm:$0xff]
    %v2525 = vld [vmem:[%s2518 + $0x30] sm:$0xff]
    %v2526 = vld [vmem:[%s2518 + $0x38] sm:$0xff]
    %v2527 = vld [vmem:[%s2518 + $0x40] sm:$0xff]
    %v2528 = vld [vmem:[%s2518 + $0x48] sm:$0xff]
    %v2529 = vld [vmem:[%s2518 + $0x50] sm:$0xff]
    %v2530 = vld [vmem:[%s2518 + $0x58] sm:$0xff]
    %v2531 = vld [vmem:[%s2518 + $0x60] sm:$0xff]
    %v2532 = vld [vmem:[%s2518 + $0x68] sm:$0xff]
    %v2533 = vld [vmem:[%s2518 + $0x70] sm:$0xff]
    %v2534 = vld [vmem:[%s2518 + $0x78] sm:$0xff]
    %v2551 = vunpack.c.l.b16 %v2519
    %v2552 = vunpack.c.h.b16 %v2519
    %v2553 = vunpack.c.l.b16 %v2520
    %v2554 = vunpack.c.h.b16 %v2520
    %v2555 = vunpack.c.l.b16 %v2521
    %v2556 = vunpack.c.h.b16 %v2521
    %v2557 = vunpack.c.l.b16 %v2522
    %v2558 = vunpack.c.h.b16 %v2522
    %v2559 = vunpack.c.l.b16 %v2523
    %v2560 = vunpack.c.h.b16 %v2523
    %v2561 = vunpack.c.l.b16 %v2524
    %v2562 = vunpack.c.h.b16 %v2524
    %v2563 = vunpack.c.l.b16 %v2525
    %v2564 = vunpack.c.h.b16 %v2525
    %v2565 = vunpack.c.l.b16 %v2526
    %v2566 = vunpack.c.h.b16 %v2526
    %v2567 = vunpack.c.l.b16 %v2527
    %v2568 = vunpack.c.h.b16 %v2527
    %v2569 = vunpack.c.l.b16 %v2528
    %v2570 = vunpack.c.h.b16 %v2528
    %v2571 = vunpack.c.l.b16 %v2529
    %v2572 = vunpack.c.h.b16 %v2529
    %v2573 = vunpack.c.l.b16 %v2530
    %v2574 = vunpack.c.h.b16 %v2530
    %v2575 = vunpack.c.l.b16 %v2531
    %v2576 = vunpack.c.h.b16 %v2531
    %v2577 = vunpack.c.l.b16 %v2532
    %v2578 = vunpack.c.h.b16 %v2532
    %v2579 = vunpack.c.l.b16 %v2533
    %v2580 = vunpack.c.h.b16 %v2533
    %v2581 = vunpack.c.l.b16 %v2534
    %v2582 = vunpack.c.h.b16 %v2534
    %v2583 = vpack.c.b16 %v2553, %v2551
    %v2584 = vpack.c.b16 %v2554, %v2552
    %v2585 = vpack.c.b16 %v2557, %v2555
    %v2586 = vpack.c.b16 %v2558, %v2556
    %v2587 = vpack.c.b16 %v2561, %v2559
    %v2588 = vpack.c.b16 %v2562, %v2560
    %v2589 = vpack.c.b16 %v2565, %v2563
    %v2590 = vpack.c.b16 %v2566, %v2564
    %v2591 = vpack.c.b16 %v2569, %v2567
    %v2592 = vpack.c.b16 %v2570, %v2568
    %v2593 = vpack.c.b16 %v2573, %v2571
    %v2594 = vpack.c.b16 %v2574, %v2572
    %v2595 = vpack.c.b16 %v2577, %v2575
    %v2596 = vpack.c.b16 %v2578, %v2576
    %v2597 = vpack.c.b16 %v2581, %v2579
    %v2598 = vpack.c.b16 %v2582, %v2580
    %2615 = vmatpush.bf16.msra.mxu0 %v2597
    %2616 = vmatpush.bf16.msra.mxu0 %v2595
    %2617 = vmatpush.bf16.msra.mxu0 %v2593
    %2618 = vmatpush.bf16.msra.mxu0 %v2591
    %2619 = vmatpush.bf16.msra.mxu0 %v2589
    %2620 = vmatpush.bf16.msra.mxu0 %v2587
    %2621 = vmatpush.bf16.msra.mxu0 %v2585
    %2622 = vmatpush.bf16.msra.mxu0 %v2583
    %2623 = vmatmul.bf16.gmra.mxu0 %v2517
    %v2624 = vpop.f32.mrf.mxu0
    %v2625 = vadd.f32 0.0, %v2624
    %v2626 = vpop.f32.mrf.mxu0
    %2627 = vdwg.mxu0
    %2628 = vmatpush.bf16.msra.mxu0 %v2598
    %2629 = vmatpush.bf16.msra.mxu0 %v2596
    %2630 = vmatpush.bf16.msra.mxu0 %v2594
    %2631 = vmatpush.bf16.msra.mxu0 %v2592
    %2632 = vmatpush.bf16.msra.mxu0 %v2590
    %2633 = vmatpush.bf16.msra.mxu0 %v2588
    %2634 = vmatpush.bf16.msra.mxu0 %v2586
    %2635 = vmatpush.bf16.msra.mxu0 %v2584
    %2636 = vmatmul.bf16.gmra.mxu0 %v2517
    %v2637 = vpop.f32.mrf.mxu0
    %v2638 = vadd.f32 0.0, %v2637
    %v2639 = vpop.f32.mrf.mxu0
    %2640 = vdwg.mxu0
    %v2641 = vadd.f32 %v2398, %v2625
    %v2642 = vadd.f32 %v2399, %v2638
    %2643 = vmatpush.bf16.msra.mxu0 %v261
    %2644 = vmatpush.bf16.msra.mxu0 %v260
    %2645 = vmatpush.bf16.msra.mxu0 %v259
    %2646 = vmatpush.bf16.msra.mxu0 %v258
    %2647 = vmatpush.bf16.msra.mxu0 %v257
    %2648 = vmatpush.bf16.msra.mxu0 %v256
    %2649 = vmatpush.bf16.msra.mxu0 %v255
    %2650 = vmatpush.bf16.msra.mxu0 %v254
    %2651 = vmatmul.bf16.gmra.mxu0 %v1494
    %v2652 = vpop.f32.mrf.mxu0
    %v2653 = vadd.f32 0.0, %v2652
    %v2654 = vpop.f32.mrf.mxu0
    %2655 = vdwg.mxu0
    %2656 = vmatpush.bf16.msra.mxu0 %v269
    %2657 = vmatpush.bf16.msra.mxu0 %v268
    %2658 = vmatpush.bf16.msra.mxu0 %v267
    %2659 = vmatpush.bf16.msra.mxu0 %v266
    %2660 = vmatpush.bf16.msra.mxu0 %v265
    %2661 = vmatpush.bf16.msra.mxu0 %v264
    %2662 = vmatpush.bf16.msra.mxu0 %v263
    %2663 = vmatpush.bf16.msra.mxu0 %v262
    %2664 = vmatmul.bf16.gmra.mxu0 %v1495
    %v2665 = vpop.f32.mrf.mxu0
    %v2666 = vadd.f32 %v2653, %v2665
    %v2667 = vpop.f32.mrf.mxu0
    %2668 = vdwg.mxu0
    %2669 = vmatpush.bf16.msra.mxu0 %v390
    %2670 = vmatpush.bf16.msra.mxu0 %v389
    %2671 = vmatpush.bf16.msra.mxu0 %v388
    %2672 = vmatpush.bf16.msra.mxu0 %v387
    %2673 = vmatpush.bf16.msra.mxu0 %v386
    %2674 = vmatpush.bf16.msra.mxu0 %v385
    %2675 = vmatpush.bf16.msra.mxu0 %v384
    %2676 = vmatpush.bf16.msra.mxu0 %v383
    %2677 = vmatmul.bf16.gmra.mxu0 %v1242
    %v2678 = vpop.f32.mrf.mxu0
    %v2679 = vadd.f32 %v2666, %v2678
    %v2680 = vpop.f32.mrf.mxu0
    %2681 = vdwg.mxu0
    %2682 = vmatpush.bf16.msra.mxu0 %v398
    %2683 = vmatpush.bf16.msra.mxu0 %v397
    %2684 = vmatpush.bf16.msra.mxu0 %v396
    %2685 = vmatpush.bf16.msra.mxu0 %v395
    %2686 = vmatpush.bf16.msra.mxu0 %v394
    %2687 = vmatpush.bf16.msra.mxu0 %v393
    %2688 = vmatpush.bf16.msra.mxu0 %v392
    %2689 = vmatpush.bf16.msra.mxu0 %v391
    %2690 = vmatmul.bf16.gmra.mxu0 %v1243
    %v2691 = vpop.f32.mrf.mxu0
    %v2692 = vadd.f32 %v2679, %v2691
    %v2693 = vpop.f32.mrf.mxu0
    %2694 = vdwg.mxu0
    %2695 = vmatpush.bf16.msra.mxu0 %v554
    %2696 = vmatpush.bf16.msra.mxu0 %v553
    %2697 = vmatpush.bf16.msra.mxu0 %v552
    %2698 = vmatpush.bf16.msra.mxu0 %v551
    %2699 = vmatpush.bf16.msra.mxu0 %v550
    %2700 = vmatpush.bf16.msra.mxu0 %v549
    %2701 = vmatpush.bf16.msra.mxu0 %v548
    %2702 = vmatpush.bf16.msra.mxu0 %v547
    %2703 = vmatmul.bf16.gmra.mxu0 %v2484
    %v2704 = vpop.f32.mrf.mxu0
    %v2705 = vadd.f32 0.0, %v2704
    %v2706 = vpop.f32.mrf.mxu0
    %2707 = vdwg.mxu0
    %2708 = vmatpush.bf16.msra.mxu0 %v562
    %2709 = vmatpush.bf16.msra.mxu0 %v561
    %2710 = vmatpush.bf16.msra.mxu0 %v560
    %2711 = vmatpush.bf16.msra.mxu0 %v559
    %2712 = vmatpush.bf16.msra.mxu0 %v558
    %2713 = vmatpush.bf16.msra.mxu0 %v557
    %2714 = vmatpush.bf16.msra.mxu0 %v556
    %2715 = vmatpush.bf16.msra.mxu0 %v555
    %2716 = vmatmul.bf16.gmra.mxu0 %v2485
    %v2717 = vpop.f32.mrf.mxu0
    %v2718 = vadd.f32 %v2705, %v2717
    %v2719 = vpop.f32.mrf.mxu0
    %2720 = vdwg.mxu0
    %v2721 = vadd.f32 %v2692, %v2718
    %s2722 = scalar_lea.vmem %s0, 128
    %v2723 = vld [vmem:[%s2722] sm:$0xff]
    %v2725 = vunpack.c.l.b16 %v2723
    %v2726 = vunpack.c.h.b16 %v2723
    %v2727 = vpack.c.b16 %v2725, %v2725
    %v2728 = vpack.c.b16 %v2726, %v2726
    %2731 = vmatpush.bf16.msra.mxu0 %v719
    %2732 = vmatpush.bf16.msra.mxu0 %v718
    %2733 = vmatpush.bf16.msra.mxu0 %v717
    %2734 = vmatpush.bf16.msra.mxu0 %v716
    %2735 = vmatpush.bf16.msra.mxu0 %v715
    %2736 = vmatpush.bf16.msra.mxu0 %v714
    %2737 = vmatpush.bf16.msra.mxu0 %v713
    %2738 = vmatpush.bf16.msra.mxu0 %v712
    %2739 = vmatmul.bf16.gmra.mxu0 %v2727
    %v2740 = vpop.f32.mrf.mxu0
    %v2741 = vadd.f32 0.0, %v2740
    %v2742 = vpop.f32.mrf.mxu0
    %2743 = vdwg.mxu0
    %2744 = vmatpush.bf16.msra.mxu0 %v727
    %2745 = vmatpush.bf16.msra.mxu0 %v726
    %2746 = vmatpush.bf16.msra.mxu0 %v725
    %2747 = vmatpush.bf16.msra.mxu0 %v724
    %2748 = vmatpush.bf16.msra.mxu0 %v723
    %2749 = vmatpush.bf16.msra.mxu0 %v722
    %2750 = vmatpush.bf16.msra.mxu0 %v721
    %2751 = vmatpush.bf16.msra.mxu0 %v720
    %2752 = vmatmul.bf16.gmra.mxu0 %v2728
    %v2753 = vpop.f32.mrf.mxu0
    %v2754 = vadd.f32 %v2741, %v2753
    %v2755 = vpop.f32.mrf.mxu0
    %2756 = vdwg.mxu0
    %v2757 = vadd.f32 %v2721, %v2754
    %v2758 = vadd.f32 %v2757, %v772
    %v2759 = vmax.f32 %v2758, 0.0
    %v2760 = vpack.c.bf16 %v2759, %v2759
    %s2761 = scalar_lea.vmem [#allocation6], 1024
    %v2762 = vld [vmem:[%s2761] sm:$0xff]
    %v2763 = vld [vmem:[%s2761 + $0x8] sm:$0xff]
    %v2764 = vld [vmem:[%s2761 + $0x10] sm:$0xff]
    %v2765 = vld [vmem:[%s2761 + $0x18] sm:$0xff]
    %v2766 = vld [vmem:[%s2761 + $0x20] sm:$0xff]
    %v2767 = vld [vmem:[%s2761 + $0x28] sm:$0xff]
    %v2768 = vld [vmem:[%s2761 + $0x30] sm:$0xff]
    %v2769 = vld [vmem:[%s2761 + $0x38] sm:$0xff]
    %v2770 = vld [vmem:[%s2761 + $0x40] sm:$0xff]
    %v2771 = vld [vmem:[%s2761 + $0x48] sm:$0xff]
    %v2772 = vld [vmem:[%s2761 + $0x50] sm:$0xff]
    %v2773 = vld [vmem:[%s2761 + $0x58] sm:$0xff]
    %v2774 = vld [vmem:[%s2761 + $0x60] sm:$0xff]
    %v2775 = vld [vmem:[%s2761 + $0x68] sm:$0xff]
    %v2776 = vld [vmem:[%s2761 + $0x70] sm:$0xff]
    %v2777 = vld [vmem:[%s2761 + $0x78] sm:$0xff]
    %v2794 = vunpack.c.l.b16 %v2762
    %v2795 = vunpack.c.h.b16 %v2762
    %v2796 = vunpack.c.l.b16 %v2763
    %v2797 = vunpack.c.h.b16 %v2763
    %v2798 = vunpack.c.l.b16 %v2764
    %v2799 = vunpack.c.h.b16 %v2764
    %v2800 = vunpack.c.l.b16 %v2765
    %v2801 = vunpack.c.h.b16 %v2765
    %v2802 = vunpack.c.l.b16 %v2766
    %v2803 = vunpack.c.h.b16 %v2766
    %v2804 = vunpack.c.l.b16 %v2767
    %v2805 = vunpack.c.h.b16 %v2767
    %v2806 = vunpack.c.l.b16 %v2768
    %v2807 = vunpack.c.h.b16 %v2768
    %v2808 = vunpack.c.l.b16 %v2769
    %v2809 = vunpack.c.h.b16 %v2769
    %v2810 = vunpack.c.l.b16 %v2770
    %v2811 = vunpack.c.h.b16 %v2770
    %v2812 = vunpack.c.l.b16 %v2771
    %v2813 = vunpack.c.h.b16 %v2771
    %v2814 = vunpack.c.l.b16 %v2772
    %v2815 = vunpack.c.h.b16 %v2772
    %v2816 = vunpack.c.l.b16 %v2773
    %v2817 = vunpack.c.h.b16 %v2773
    %v2818 = vunpack.c.l.b16 %v2774
    %v2819 = vunpack.c.h.b16 %v2774
    %v2820 = vunpack.c.l.b16 %v2775
    %v2821 = vunpack.c.h.b16 %v2775
    %v2822 = vunpack.c.l.b16 %v2776
    %v2823 = vunpack.c.h.b16 %v2776
    %v2824 = vunpack.c.l.b16 %v2777
    %v2825 = vunpack.c.h.b16 %v2777
    %v2826 = vpack.c.b16 %v2796, %v2794
    %v2827 = vpack.c.b16 %v2797, %v2795
    %v2828 = vpack.c.b16 %v2800, %v2798
    %v2829 = vpack.c.b16 %v2801, %v2799
    %v2830 = vpack.c.b16 %v2804, %v2802
    %v2831 = vpack.c.b16 %v2805, %v2803
    %v2832 = vpack.c.b16 %v2808, %v2806
    %v2833 = vpack.c.b16 %v2809, %v2807
    %v2834 = vpack.c.b16 %v2812, %v2810
    %v2835 = vpack.c.b16 %v2813, %v2811
    %v2836 = vpack.c.b16 %v2816, %v2814
    %v2837 = vpack.c.b16 %v2817, %v2815
    %v2838 = vpack.c.b16 %v2820, %v2818
    %v2839 = vpack.c.b16 %v2821, %v2819
    %v2840 = vpack.c.b16 %v2824, %v2822
    %v2841 = vpack.c.b16 %v2825, %v2823
    %2858 = vmatpush.bf16.msra.mxu0 %v2840
    %2859 = vmatpush.bf16.msra.mxu0 %v2838
    %2860 = vmatpush.bf16.msra.mxu0 %v2836
    %2861 = vmatpush.bf16.msra.mxu0 %v2834
    %2862 = vmatpush.bf16.msra.mxu0 %v2832
    %2863 = vmatpush.bf16.msra.mxu0 %v2830
    %2864 = vmatpush.bf16.msra.mxu0 %v2828
    %2865 = vmatpush.bf16.msra.mxu0 %v2826
    %2866 = vmatmul.bf16.gmra.mxu0 %v2760
    %v2867 = vpop.f32.mrf.mxu0
    %v2868 = vadd.f32 0.0, %v2867
    %v2869 = vpop.f32.mrf.mxu0
    %2870 = vdwg.mxu0
    %2871 = vmatpush.bf16.msra.mxu0 %v2841
    %2872 = vmatpush.bf16.msra.mxu0 %v2839
    %2873 = vmatpush.bf16.msra.mxu0 %v2837
    %2874 = vmatpush.bf16.msra.mxu0 %v2835
    %2875 = vmatpush.bf16.msra.mxu0 %v2833
    %2876 = vmatpush.bf16.msra.mxu0 %v2831
    %2877 = vmatpush.bf16.msra.mxu0 %v2829
    %2878 = vmatpush.bf16.msra.mxu0 %v2827
    %2879 = vmatmul.bf16.gmra.mxu0 %v2760
    %v2880 = vpop.f32.mrf.mxu0
    %v2881 = vadd.f32 0.0, %v2880
    %v2882 = vpop.f32.mrf.mxu0
    %2883 = vdwg.mxu0
    %v2884 = vadd.f32 %v2641, %v2868
    %v2885 = vadd.f32 %v2642, %v2881
    %2886 = vmatpush.bf16.msra.mxu0 %v261
    %2887 = vmatpush.bf16.msra.mxu0 %v260
    %2888 = vmatpush.bf16.msra.mxu0 %v259
    %2889 = vmatpush.bf16.msra.mxu0 %v258
    %2890 = vmatpush.bf16.msra.mxu0 %v257
    %2891 = vmatpush.bf16.msra.mxu0 %v256
    %2892 = vmatpush.bf16.msra.mxu0 %v255
    %2893 = vmatpush.bf16.msra.mxu0 %v254
    %2894 = vmatmul.bf16.gmra.mxu0 %v1746
    %v2895 = vpop.f32.mrf.mxu0
    %v2896 = vadd.f32 0.0, %v2895
    %v2897 = vpop.f32.mrf.mxu0
    %2898 = vdwg.mxu0
    %2899 = vmatpush.bf16.msra.mxu0 %v269
    %2900 = vmatpush.bf16.msra.mxu0 %v268
    %2901 = vmatpush.bf16.msra.mxu0 %v267
    %2902 = vmatpush.bf16.msra.mxu0 %v266
    %2903 = vmatpush.bf16.msra.mxu0 %v265
    %2904 = vmatpush.bf16.msra.mxu0 %v264
    %2905 = vmatpush.bf16.msra.mxu0 %v263
    %2906 = vmatpush.bf16.msra.mxu0 %v262
    %2907 = vmatmul.bf16.gmra.mxu0 %v1747
    %v2908 = vpop.f32.mrf.mxu0
    %v2909 = vadd.f32 %v2896, %v2908
    %v2910 = vpop.f32.mrf.mxu0
    %2911 = vdwg.mxu0
    %2912 = vmatpush.bf16.msra.mxu0 %v390
    %2913 = vmatpush.bf16.msra.mxu0 %v389
    %2914 = vmatpush.bf16.msra.mxu0 %v388
    %2915 = vmatpush.bf16.msra.mxu0 %v387
    %2916 = vmatpush.bf16.msra.mxu0 %v386
    %2917 = vmatpush.bf16.msra.mxu0 %v385
    %2918 = vmatpush.bf16.msra.mxu0 %v384
    %2919 = vmatpush.bf16.msra.mxu0 %v383
    %2920 = vmatmul.bf16.gmra.mxu0 %v1494
    %v2921 = vpop.f32.mrf.mxu0
    %v2922 = vadd.f32 %v2909, %v2921
    %v2923 = vpop.f32.mrf.mxu0
    %2924 = vdwg.mxu0
    %2925 = vmatpush.bf16.msra.mxu0 %v398
    %2926 = vmatpush.bf16.msra.mxu0 %v397
    %2927 = vmatpush.bf16.msra.mxu0 %v396
    %2928 = vmatpush.bf16.msra.mxu0 %v395
    %2929 = vmatpush.bf16.msra.mxu0 %v394
    %2930 = vmatpush.bf16.msra.mxu0 %v393
    %2931 = vmatpush.bf16.msra.mxu0 %v392
    %2932 = vmatpush.bf16.msra.mxu0 %v391
    %2933 = vmatmul.bf16.gmra.mxu0 %v1495
    %v2934 = vpop.f32.mrf.mxu0
    %v2935 = vadd.f32 %v2922, %v2934
    %v2936 = vpop.f32.mrf.mxu0
    %2937 = vdwg.mxu0
    %2938 = vmatpush.bf16.msra.mxu0 %v554
    %2939 = vmatpush.bf16.msra.mxu0 %v553
    %2940 = vmatpush.bf16.msra.mxu0 %v552
    %2941 = vmatpush.bf16.msra.mxu0 %v551
    %2942 = vmatpush.bf16.msra.mxu0 %v550
    %2943 = vmatpush.bf16.msra.mxu0 %v549
    %2944 = vmatpush.bf16.msra.mxu0 %v548
    %2945 = vmatpush.bf16.msra.mxu0 %v547
    %2946 = vmatmul.bf16.gmra.mxu0 %v2727
    %v2947 = vpop.f32.mrf.mxu0
    %v2948 = vadd.f32 0.0, %v2947
    %v2949 = vpop.f32.mrf.mxu0
    %2950 = vdwg.mxu0
    %2951 = vmatpush.bf16.msra.mxu0 %v562
    %2952 = vmatpush.bf16.msra.mxu0 %v561
    %2953 = vmatpush.bf16.msra.mxu0 %v560
    %2954 = vmatpush.bf16.msra.mxu0 %v559
    %2955 = vmatpush.bf16.msra.mxu0 %v558
    %2956 = vmatpush.bf16.msra.mxu0 %v557
    %2957 = vmatpush.bf16.msra.mxu0 %v556
    %2958 = vmatpush.bf16.msra.mxu0 %v555
    %2959 = vmatmul.bf16.gmra.mxu0 %v2728
    %v2960 = vpop.f32.mrf.mxu0
    %v2961 = vadd.f32 %v2948, %v2960
    %v2962 = vpop.f32.mrf.mxu0
    %2963 = vdwg.mxu0
    %v2964 = vadd.f32 %v2935, %v2961
    %s2965 = scalar_lea.vmem %s0, 136
    %v2966 = vld [vmem:[%s2965] sm:$0xff]
    %v2968 = vunpack.c.l.b16 %v2966
    %v2969 = vunpack.c.h.b16 %v2966
    %v2970 = vpack.c.b16 %v2968, %v2968
    %v2971 = vpack.c.b16 %v2969, %v2969
    %2974 = vmatpush.bf16.msra.mxu0 %v719
    %2975 = vmatpush.bf16.msra.mxu0 %v718
    %2976 = vmatpush.bf16.msra.mxu0 %v717
    %2977 = vmatpush.bf16.msra.mxu0 %v716
    %2978 = vmatpush.bf16.msra.mxu0 %v715
    %2979 = vmatpush.bf16.msra.mxu0 %v714
    %2980 = vmatpush.bf16.msra.mxu0 %v713
    %2981 = vmatpush.bf16.msra.mxu0 %v712
    %2982 = vmatmul.bf16.gmra.mxu0 %v2970
    %v2983 = vpop.f32.mrf.mxu0
    %v2984 = vadd.f32 0.0, %v2983
    %v2985 = vpop.f32.mrf.mxu0
    %2986 = vdwg.mxu0
    %2987 = vmatpush.bf16.msra.mxu0 %v727
    %2988 = vmatpush.bf16.msra.mxu0 %v726
    %2989 = vmatpush.bf16.msra.mxu0 %v725
    %2990 = vmatpush.bf16.msra.mxu0 %v724
    %2991 = vmatpush.bf16.msra.mxu0 %v723
    %2992 = vmatpush.bf16.msra.mxu0 %v722
    %2993 = vmatpush.bf16.msra.mxu0 %v721
    %2994 = vmatpush.bf16.msra.mxu0 %v720
    %2995 = vmatmul.bf16.gmra.mxu0 %v2971
    %v2996 = vpop.f32.mrf.mxu0
    %v2997 = vadd.f32 %v2984, %v2996
    %v2998 = vpop.f32.mrf.mxu0
    %2999 = vdwg.mxu0
    %v3000 = vadd.f32 %v2964, %v2997
    %v3001 = vadd.f32 %v3000, %v772
    %v3002 = vmax.f32 %v3001, 0.0
    %v3003 = vpack.c.bf16 %v3002, %v3002
    %s3004 = scalar_lea.vmem [#allocation6], 1152
    %v3005 = vld [vmem:[%s3004] sm:$0xff]
    %v3006 = vld [vmem:[%s3004 + $0x8] sm:$0xff]
    %v3007 = vld [vmem:[%s3004 + $0x10] sm:$0xff]
    %v3008 = vld [vmem:[%s3004 + $0x18] sm:$0xff]
    %v3009 = vld [vmem:[%s3004 + $0x20] sm:$0xff]
    %v3010 = vld [vmem:[%s3004 + $0x28] sm:$0xff]
    %v3011 = vld [vmem:[%s3004 + $0x30] sm:$0xff]
    %v3012 = vld [vmem:[%s3004 + $0x38] sm:$0xff]
    %v3013 = vld [vmem:[%s3004 + $0x40] sm:$0xff]
    %v3014 = vld [vmem:[%s3004 + $0x48] sm:$0xff]
    %v3015 = vld [vmem:[%s3004 + $0x50] sm:$0xff]
    %v3016 = vld [vmem:[%s3004 + $0x58] sm:$0xff]
    %v3017 = vld [vmem:[%s3004 + $0x60] sm:$0xff]
    %v3018 = vld [vmem:[%s3004 + $0x68] sm:$0xff]
    %v3019 = vld [vmem:[%s3004 + $0x70] sm:$0xff]
    %v3020 = vld [vmem:[%s3004 + $0x78] sm:$0xff]
    %v3037 = vunpack.c.l.b16 %v3005
    %v3038 = vunpack.c.h.b16 %v3005
    %v3039 = vunpack.c.l.b16 %v3006
    %v3040 = vunpack.c.h.b16 %v3006
    %v3041 = vunpack.c.l.b16 %v3007
    %v3042 = vunpack.c.h.b16 %v3007
    %v3043 = vunpack.c.l.b16 %v3008
    %v3044 = vunpack.c.h.b16 %v3008
    %v3045 = vunpack.c.l.b16 %v3009
    %v3046 = vunpack.c.h.b16 %v3009
    %v3047 = vunpack.c.l.b16 %v3010
    %v3048 = vunpack.c.h.b16 %v3010
    %v3049 = vunpack.c.l.b16 %v3011
    %v3050 = vunpack.c.h.b16 %v3011
    %v3051 = vunpack.c.l.b16 %v3012
    %v3052 = vunpack.c.h.b16 %v3012
    %v3053 = vunpack.c.l.b16 %v3013
    %v3054 = vunpack.c.h.b16 %v3013
    %v3055 = vunpack.c.l.b16 %v3014
    %v3056 = vunpack.c.h.b16 %v3014
    %v3057 = vunpack.c.l.b16 %v3015
    %v3058 = vunpack.c.h.b16 %v3015
    %v3059 = vunpack.c.l.b16 %v3016
    %v3060 = vunpack.c.h.b16 %v3016
    %v3061 = vunpack.c.l.b16 %v3017
    %v3062 = vunpack.c.h.b16 %v3017
    %v3063 = vunpack.c.l.b16 %v3018
    %v3064 = vunpack.c.h.b16 %v3018
    %v3065 = vunpack.c.l.b16 %v3019
    %v3066 = vunpack.c.h.b16 %v3019
    %v3067 = vunpack.c.l.b16 %v3020
    %v3068 = vunpack.c.h.b16 %v3020
    %v3069 = vpack.c.b16 %v3039, %v3037
    %v3070 = vpack.c.b16 %v3040, %v3038
    %v3071 = vpack.c.b16 %v3043, %v3041
    %v3072 = vpack.c.b16 %v3044, %v3042
    %v3073 = vpack.c.b16 %v3047, %v3045
    %v3074 = vpack.c.b16 %v3048, %v3046
    %v3075 = vpack.c.b16 %v3051, %v3049
    %v3076 = vpack.c.b16 %v3052, %v3050
    %v3077 = vpack.c.b16 %v3055, %v3053
    %v3078 = vpack.c.b16 %v3056, %v3054
    %v3079 = vpack.c.b16 %v3059, %v3057
    %v3080 = vpack.c.b16 %v3060, %v3058
    %v3081 = vpack.c.b16 %v3063, %v3061
    %v3082 = vpack.c.b16 %v3064, %v3062
    %v3083 = vpack.c.b16 %v3067, %v3065
    %v3084 = vpack.c.b16 %v3068, %v3066
    %3101 = vmatpush.bf16.msra.mxu0 %v3083
    %3102 = vmatpush.bf16.msra.mxu0 %v3081
    %3103 = vmatpush.bf16.msra.mxu0 %v3079
    %3104 = vmatpush.bf16.msra.mxu0 %v3077
    %3105 = vmatpush.bf16.msra.mxu0 %v3075
    %3106 = vmatpush.bf16.msra.mxu0 %v3073
    %3107 = vmatpush.bf16.msra.mxu0 %v3071
    %3108 = vmatpush.bf16.msra.mxu0 %v3069
    %3109 = vmatmul.bf16.gmra.mxu0 %v3003
    %v3110 = vpop.f32.mrf.mxu0
    %v3111 = vadd.f32 0.0, %v3110
    %v3112 = vpop.f32.mrf.mxu0
    %3113 = vdwg.mxu0
    %3114 = vmatpush.bf16.msra.mxu0 %v3084
    %3115 = vmatpush.bf16.msra.mxu0 %v3082
    %3116 = vmatpush.bf16.msra.mxu0 %v3080
    %3117 = vmatpush.bf16.msra.mxu0 %v3078
    %3118 = vmatpush.bf16.msra.mxu0 %v3076
    %3119 = vmatpush.bf16.msra.mxu0 %v3074
    %3120 = vmatpush.bf16.msra.mxu0 %v3072
    %3121 = vmatpush.bf16.msra.mxu0 %v3070
    %3122 = vmatmul.bf16.gmra.mxu0 %v3003
    %v3123 = vpop.f32.mrf.mxu0
    %v3124 = vadd.f32 0.0, %v3123
    %v3125 = vpop.f32.mrf.mxu0
    %3126 = vdwg.mxu0
    %v3127 = vadd.f32 %v2884, %v3111
    %v3128 = vadd.f32 %v2885, %v3124
    %3129 = vmatpush.bf16.msra.mxu0 %v261
    %3130 = vmatpush.bf16.msra.mxu0 %v260
    %3131 = vmatpush.bf16.msra.mxu0 %v259
    %3132 = vmatpush.bf16.msra.mxu0 %v258
    %3133 = vmatpush.bf16.msra.mxu0 %v257
    %3134 = vmatpush.bf16.msra.mxu0 %v256
    %3135 = vmatpush.bf16.msra.mxu0 %v255
    %3136 = vmatpush.bf16.msra.mxu0 %v254
    %3137 = vmatmul.bf16.gmra.mxu0 %v1998
    %v3138 = vpop.f32.mrf.mxu0
    %v3139 = vadd.f32 0.0, %v3138
    %v3140 = vpop.f32.mrf.mxu0
    %3141 = vdwg.mxu0
    %3142 = vmatpush.bf16.msra.mxu0 %v269
    %3143 = vmatpush.bf16.msra.mxu0 %v268
    %3144 = vmatpush.bf16.msra.mxu0 %v267
    %3145 = vmatpush.bf16.msra.mxu0 %v266
    %3146 = vmatpush.bf16.msra.mxu0 %v265
    %3147 = vmatpush.bf16.msra.mxu0 %v264
    %3148 = vmatpush.bf16.msra.mxu0 %v263
    %3149 = vmatpush.bf16.msra.mxu0 %v262
    %3150 = vmatmul.bf16.gmra.mxu0 %v1999
    %v3151 = vpop.f32.mrf.mxu0
    %v3152 = vadd.f32 %v3139, %v3151
    %v3153 = vpop.f32.mrf.mxu0
    %3154 = vdwg.mxu0
    %3155 = vmatpush.bf16.msra.mxu0 %v390
    %3156 = vmatpush.bf16.msra.mxu0 %v389
    %3157 = vmatpush.bf16.msra.mxu0 %v388
    %3158 = vmatpush.bf16.msra.mxu0 %v387
    %3159 = vmatpush.bf16.msra.mxu0 %v386
    %3160 = vmatpush.bf16.msra.mxu0 %v385
    %3161 = vmatpush.bf16.msra.mxu0 %v384
    %3162 = vmatpush.bf16.msra.mxu0 %v383
    %3163 = vmatmul.bf16.gmra.mxu0 %v1962
    %v3164 = vpop.f32.mrf.mxu0
    %v3165 = vadd.f32 %v3152, %v3164
    %v3166 = vpop.f32.mrf.mxu0
    %3167 = vdwg.mxu0
    %3168 = vmatpush.bf16.msra.mxu0 %v398
    %3169 = vmatpush.bf16.msra.mxu0 %v397
    %3170 = vmatpush.bf16.msra.mxu0 %v396
    %3171 = vmatpush.bf16.msra.mxu0 %v395
    %3172 = vmatpush.bf16.msra.mxu0 %v394
    %3173 = vmatpush.bf16.msra.mxu0 %v393
    %3174 = vmatpush.bf16.msra.mxu0 %v392
    %3175 = vmatpush.bf16.msra.mxu0 %v391
    %3176 = vmatmul.bf16.gmra.mxu0 %v1963
    %v3177 = vpop.f32.mrf.mxu0
    %v3178 = vadd.f32 %v3165, %v3177
    %v3179 = vpop.f32.mrf.mxu0
    %3180 = vdwg.mxu0
    %s3181 = scalar_lea.vmem %s0, 144
    %v3182 = vld [vmem:[%s3181] sm:$0xff]
    %v3184 = vunpack.c.l.b16 %v3182
    %v3185 = vunpack.c.h.b16 %v3182
    %v3186 = vpack.c.b16 %v3184, %v3184
    %v3187 = vpack.c.b16 %v3185, %v3185
    %3190 = vmatpush.bf16.msra.mxu0 %v554
    %3191 = vmatpush.bf16.msra.mxu0 %v553
    %3192 = vmatpush.bf16.msra.mxu0 %v552
    %3193 = vmatpush.bf16.msra.mxu0 %v551
    %3194 = vmatpush.bf16.msra.mxu0 %v550
    %3195 = vmatpush.bf16.msra.mxu0 %v549
    %3196 = vmatpush.bf16.msra.mxu0 %v548
    %3197 = vmatpush.bf16.msra.mxu0 %v547
    %3198 = vmatmul.bf16.gmra.mxu0 %v3186
    %v3199 = vpop.f32.mrf.mxu0
    %v3200 = vadd.f32 0.0, %v3199
    %v3201 = vpop.f32.mrf.mxu0
    %3202 = vdwg.mxu0
    %3203 = vmatpush.bf16.msra.mxu0 %v562
    %3204 = vmatpush.bf16.msra.mxu0 %v561
    %3205 = vmatpush.bf16.msra.mxu0 %v560
    %3206 = vmatpush.bf16.msra.mxu0 %v559
    %3207 = vmatpush.bf16.msra.mxu0 %v558
    %3208 = vmatpush.bf16.msra.mxu0 %v557
    %3209 = vmatpush.bf16.msra.mxu0 %v556
    %3210 = vmatpush.bf16.msra.mxu0 %v555
    %3211 = vmatmul.bf16.gmra.mxu0 %v3187
    %v3212 = vpop.f32.mrf.mxu0
    %v3213 = vadd.f32 %v3200, %v3212
    %v3214 = vpop.f32.mrf.mxu0
    %3215 = vdwg.mxu0
    %v3216 = vadd.f32 %v3178, %v3213
    %s3217 = scalar_lea.vmem %s0, 152
    %v3218 = vld [vmem:[%s3217] sm:$0xff]
    %v3220 = vunpack.c.l.b16 %v3218
    %v3221 = vunpack.c.h.b16 %v3218
    %v3222 = vpack.c.b16 %v3220, %v3220
    %v3223 = vpack.c.b16 %v3221, %v3221
    %3226 = vmatpush.bf16.msra.mxu0 %v719
    %3227 = vmatpush.bf16.msra.mxu0 %v718
    %3228 = vmatpush.bf16.msra.mxu0 %v717
    %3229 = vmatpush.bf16.msra.mxu0 %v716
    %3230 = vmatpush.bf16.msra.mxu0 %v715
    %3231 = vmatpush.bf16.msra.mxu0 %v714
    %3232 = vmatpush.bf16.msra.mxu0 %v713
    %3233 = vmatpush.bf16.msra.mxu0 %v712
    %3234 = vmatmul.bf16.gmra.mxu0 %v3222
    %v3235 = vpop.f32.mrf.mxu0
    %v3236 = vadd.f32 0.0, %v3235
    %v3237 = vpop.f32.mrf.mxu0
    %3238 = vdwg.mxu0
    %3239 = vmatpush.bf16.msra.mxu0 %v727
    %3240 = vmatpush.bf16.msra.mxu0 %v726
    %3241 = vmatpush.bf16.msra.mxu0 %v725
    %3242 = vmatpush.bf16.msra.mxu0 %v724
    %3243 = vmatpush.bf16.msra.mxu0 %v723
    %3244 = vmatpush.bf16.msra.mxu0 %v722
    %3245 = vmatpush.bf16.msra.mxu0 %v721
    %3246 = vmatpush.bf16.msra.mxu0 %v720
    %3247 = vmatmul.bf16.gmra.mxu0 %v3223
    %v3248 = vpop.f32.mrf.mxu0
    %v3249 = vadd.f32 %v3236, %v3248
    %v3250 = vpop.f32.mrf.mxu0
    %3251 = vdwg.mxu0
    %v3252 = vadd.f32 %v3216, %v3249
    %v3253 = vadd.f32 %v3252, %v772
    %v3254 = vmax.f32 %v3253, 0.0
    %v3255 = vpack.c.bf16 %v3254, %v3254
    %s3256 = scalar_lea.vmem [#allocation6], 1280
    %v3257 = vld [vmem:[%s3256] sm:$0xff]
    %v3258 = vld [vmem:[%s3256 + $0x8] sm:$0xff]
    %v3259 = vld [vmem:[%s3256 + $0x10] sm:$0xff]
    %v3260 = vld [vmem:[%s3256 + $0x18] sm:$0xff]
    %v3261 = vld [vmem:[%s3256 + $0x20] sm:$0xff]
    %v3262 = vld [vmem:[%s3256 + $0x28] sm:$0xff]
    %v3263 = vld [vmem:[%s3256 + $0x30] sm:$0xff]
    %v3264 = vld [vmem:[%s3256 + $0x38] sm:$0xff]
    %v3265 = vld [vmem:[%s3256 + $0x40] sm:$0xff]
    %v3266 = vld [vmem:[%s3256 + $0x48] sm:$0xff]
    %v3267 = vld [vmem:[%s3256 + $0x50] sm:$0xff]
    %v3268 = vld [vmem:[%s3256 + $0x58] sm:$0xff]
    %v3269 = vld [vmem:[%s3256 + $0x60] sm:$0xff]
    %v3270 = vld [vmem:[%s3256 + $0x68] sm:$0xff]
    %v3271 = vld [vmem:[%s3256 + $0x70] sm:$0xff]
    %v3272 = vld [vmem:[%s3256 + $0x78] sm:$0xff]
    %v3289 = vunpack.c.l.b16 %v3257
    %v3290 = vunpack.c.h.b16 %v3257
    %v3291 = vunpack.c.l.b16 %v3258
    %v3292 = vunpack.c.h.b16 %v3258
    %v3293 = vunpack.c.l.b16 %v3259
    %v3294 = vunpack.c.h.b16 %v3259
    %v3295 = vunpack.c.l.b16 %v3260
    %v3296 = vunpack.c.h.b16 %v3260
    %v3297 = vunpack.c.l.b16 %v3261
    %v3298 = vunpack.c.h.b16 %v3261
    %v3299 = vunpack.c.l.b16 %v3262
    %v3300 = vunpack.c.h.b16 %v3262
    %v3301 = vunpack.c.l.b16 %v3263
    %v3302 = vunpack.c.h.b16 %v3263
    %v3303 = vunpack.c.l.b16 %v3264
    %v3304 = vunpack.c.h.b16 %v3264
    %v3305 = vunpack.c.l.b16 %v3265
    %v3306 = vunpack.c.h.b16 %v3265
    %v3307 = vunpack.c.l.b16 %v3266
    %v3308 = vunpack.c.h.b16 %v3266
    %v3309 = vunpack.c.l.b16 %v3267
    %v3310 = vunpack.c.h.b16 %v3267
    %v3311 = vunpack.c.l.b16 %v3268
    %v3312 = vunpack.c.h.b16 %v3268
    %v3313 = vunpack.c.l.b16 %v3269
    %v3314 = vunpack.c.h.b16 %v3269
    %v3315 = vunpack.c.l.b16 %v3270
    %v3316 = vunpack.c.h.b16 %v3270
    %v3317 = vunpack.c.l.b16 %v3271
    %v3318 = vunpack.c.h.b16 %v3271
    %v3319 = vunpack.c.l.b16 %v3272
    %v3320 = vunpack.c.h.b16 %v3272
    %v3321 = vpack.c.b16 %v3291, %v3289
    %v3322 = vpack.c.b16 %v3292, %v3290
    %v3323 = vpack.c.b16 %v3295, %v3293
    %v3324 = vpack.c.b16 %v3296, %v3294
    %v3325 = vpack.c.b16 %v3299, %v3297
    %v3326 = vpack.c.b16 %v3300, %v3298
    %v3327 = vpack.c.b16 %v3303, %v3301
    %v3328 = vpack.c.b16 %v3304, %v3302
    %v3329 = vpack.c.b16 %v3307, %v3305
    %v3330 = vpack.c.b16 %v3308, %v3306
    %v3331 = vpack.c.b16 %v3311, %v3309
    %v3332 = vpack.c.b16 %v3312, %v3310
    %v3333 = vpack.c.b16 %v3315, %v3313
    %v3334 = vpack.c.b16 %v3316, %v3314
    %v3335 = vpack.c.b16 %v3319, %v3317
    %v3336 = vpack.c.b16 %v3320, %v3318
    %3353 = vmatpush.bf16.msra.mxu0 %v3335
    %3354 = vmatpush.bf16.msra.mxu0 %v3333
    %3355 = vmatpush.bf16.msra.mxu0 %v3331
    %3356 = vmatpush.bf16.msra.mxu0 %v3329
    %3357 = vmatpush.bf16.msra.mxu0 %v3327
    %3358 = vmatpush.bf16.msra.mxu0 %v3325
    %3359 = vmatpush.bf16.msra.mxu0 %v3323
    %3360 = vmatpush.bf16.msra.mxu0 %v3321
    %3361 = vmatmul.bf16.gmra.mxu0 %v3255
    %v3362 = vpop.f32.mrf.mxu0
    %v3363 = vadd.f32 0.0, %v3362
    %v3364 = vpop.f32.mrf.mxu0
    %3365 = vdwg.mxu0
    %3366 = vmatpush.bf16.msra.mxu0 %v3336
    %3367 = vmatpush.bf16.msra.mxu0 %v3334
    %3368 = vmatpush.bf16.msra.mxu0 %v3332
    %3369 = vmatpush.bf16.msra.mxu0 %v3330
    %3370 = vmatpush.bf16.msra.mxu0 %v3328
    %3371 = vmatpush.bf16.msra.mxu0 %v3326
    %3372 = vmatpush.bf16.msra.mxu0 %v3324
    %3373 = vmatpush.bf16.msra.mxu0 %v3322
    %3374 = vmatmul.bf16.gmra.mxu0 %v3255
    %v3375 = vpop.f32.mrf.mxu0
    %v3376 = vadd.f32 0.0, %v3375
    %v3377 = vpop.f32.mrf.mxu0
    %3378 = vdwg.mxu0
    %v3379 = vadd.f32 %v3127, %v3363
    %v3380 = vadd.f32 %v3128, %v3376
    %3381 = vmatpush.bf16.msra.mxu0 %v261
    %3382 = vmatpush.bf16.msra.mxu0 %v260
    %3383 = vmatpush.bf16.msra.mxu0 %v259
    %3384 = vmatpush.bf16.msra.mxu0 %v258
    %3385 = vmatpush.bf16.msra.mxu0 %v257
    %3386 = vmatpush.bf16.msra.mxu0 %v256
    %3387 = vmatpush.bf16.msra.mxu0 %v255
    %3388 = vmatpush.bf16.msra.mxu0 %v254
    %3389 = vmatmul.bf16.gmra.mxu0 %v2241
    %v3390 = vpop.f32.mrf.mxu0
    %v3391 = vadd.f32 0.0, %v3390
    %v3392 = vpop.f32.mrf.mxu0
    %3393 = vdwg.mxu0
    %3394 = vmatpush.bf16.msra.mxu0 %v269
    %3395 = vmatpush.bf16.msra.mxu0 %v268
    %3396 = vmatpush.bf16.msra.mxu0 %v267
    %3397 = vmatpush.bf16.msra.mxu0 %v266
    %3398 = vmatpush.bf16.msra.mxu0 %v265
    %3399 = vmatpush.bf16.msra.mxu0 %v264
    %3400 = vmatpush.bf16.msra.mxu0 %v263
    %3401 = vmatpush.bf16.msra.mxu0 %v262
    %3402 = vmatmul.bf16.gmra.mxu0 %v2242
    %v3403 = vpop.f32.mrf.mxu0
    %v3404 = vadd.f32 %v3391, %v3403
    %v3405 = vpop.f32.mrf.mxu0
    %3406 = vdwg.mxu0
    %3407 = vmatpush.bf16.msra.mxu0 %v390
    %3408 = vmatpush.bf16.msra.mxu0 %v389
    %3409 = vmatpush.bf16.msra.mxu0 %v388
    %3410 = vmatpush.bf16.msra.mxu0 %v387
    %3411 = vmatpush.bf16.msra.mxu0 %v386
    %3412 = vmatpush.bf16.msra.mxu0 %v385
    %3413 = vmatpush.bf16.msra.mxu0 %v384
    %3414 = vmatpush.bf16.msra.mxu0 %v383
    %3415 = vmatmul.bf16.gmra.mxu0 %v1998
    %v3416 = vpop.f32.mrf.mxu0
    %v3417 = vadd.f32 %v3404, %v3416
    %v3418 = vpop.f32.mrf.mxu0
    %3419 = vdwg.mxu0
    %3420 = vmatpush.bf16.msra.mxu0 %v398
    %3421 = vmatpush.bf16.msra.mxu0 %v397
    %3422 = vmatpush.bf16.msra.mxu0 %v396
    %3423 = vmatpush.bf16.msra.mxu0 %v395
    %3424 = vmatpush.bf16.msra.mxu0 %v394
    %3425 = vmatpush.bf16.msra.mxu0 %v393
    %3426 = vmatpush.bf16.msra.mxu0 %v392
    %3427 = vmatpush.bf16.msra.mxu0 %v391
    %3428 = vmatmul.bf16.gmra.mxu0 %v1999
    %v3429 = vpop.f32.mrf.mxu0
    %v3430 = vadd.f32 %v3417, %v3429
    %v3431 = vpop.f32.mrf.mxu0
    %3432 = vdwg.mxu0
    %3433 = vmatpush.bf16.msra.mxu0 %v554
    %3434 = vmatpush.bf16.msra.mxu0 %v553
    %3435 = vmatpush.bf16.msra.mxu0 %v552
    %3436 = vmatpush.bf16.msra.mxu0 %v551
    %3437 = vmatpush.bf16.msra.mxu0 %v550
    %3438 = vmatpush.bf16.msra.mxu0 %v549
    %3439 = vmatpush.bf16.msra.mxu0 %v548
    %3440 = vmatpush.bf16.msra.mxu0 %v547
    %3441 = vmatmul.bf16.gmra.mxu0 %v3222
    %v3442 = vpop.f32.mrf.mxu0
    %v3443 = vadd.f32 0.0, %v3442
    %v3444 = vpop.f32.mrf.mxu0
    %3445 = vdwg.mxu0
    %3446 = vmatpush.bf16.msra.mxu0 %v562
    %3447 = vmatpush.bf16.msra.mxu0 %v561
    %3448 = vmatpush.bf16.msra.mxu0 %v560
    %3449 = vmatpush.bf16.msra.mxu0 %v559
    %3450 = vmatpush.bf16.msra.mxu0 %v558
    %3451 = vmatpush.bf16.msra.mxu0 %v557
    %3452 = vmatpush.bf16.msra.mxu0 %v556
    %3453 = vmatpush.bf16.msra.mxu0 %v555
    %3454 = vmatmul.bf16.gmra.mxu0 %v3223
    %v3455 = vpop.f32.mrf.mxu0
    %v3456 = vadd.f32 %v3443, %v3455
    %v3457 = vpop.f32.mrf.mxu0
    %3458 = vdwg.mxu0
    %v3459 = vadd.f32 %v3430, %v3456
    %s3460 = scalar_lea.vmem %s0, 160
    %v3461 = vld [vmem:[%s3460] sm:$0xff]
    %v3463 = vunpack.c.l.b16 %v3461
    %v3464 = vunpack.c.h.b16 %v3461
    %v3465 = vpack.c.b16 %v3463, %v3463
    %v3466 = vpack.c.b16 %v3464, %v3464
    %3469 = vmatpush.bf16.msra.mxu0 %v719
    %3470 = vmatpush.bf16.msra.mxu0 %v718
    %3471 = vmatpush.bf16.msra.mxu0 %v717
    %3472 = vmatpush.bf16.msra.mxu0 %v716
    %3473 = vmatpush.bf16.msra.mxu0 %v715
    %3474 = vmatpush.bf16.msra.mxu0 %v714
    %3475 = vmatpush.bf16.msra.mxu0 %v713
    %3476 = vmatpush.bf16.msra.mxu0 %v712
    %3477 = vmatmul.bf16.gmra.mxu0 %v3465
    %v3478 = vpop.f32.mrf.mxu0
    %v3479 = vadd.f32 0.0, %v3478
    %v3480 = vpop.f32.mrf.mxu0
    %3481 = vdwg.mxu0
    %3482 = vmatpush.bf16.msra.mxu0 %v727
    %3483 = vmatpush.bf16.msra.mxu0 %v726
    %3484 = vmatpush.bf16.msra.mxu0 %v725
    %3485 = vmatpush.bf16.msra.mxu0 %v724
    %3486 = vmatpush.bf16.msra.mxu0 %v723
    %3487 = vmatpush.bf16.msra.mxu0 %v722
    %3488 = vmatpush.bf16.msra.mxu0 %v721
    %3489 = vmatpush.bf16.msra.mxu0 %v720
    %3490 = vmatmul.bf16.gmra.mxu0 %v3466
    %v3491 = vpop.f32.mrf.mxu0
    %v3492 = vadd.f32 %v3479, %v3491
    %v3493 = vpop.f32.mrf.mxu0
    %3494 = vdwg.mxu0
    %v3495 = vadd.f32 %v3459, %v3492
    %v3496 = vadd.f32 %v3495, %v772
    %v3497 = vmax.f32 %v3496, 0.0
    %v3498 = vpack.c.bf16 %v3497, %v3497
    %s3499 = scalar_lea.vmem [#allocation6], 1408
    %v3500 = vld [vmem:[%s3499] sm:$0xff]
    %v3501 = vld [vmem:[%s3499 + $0x8] sm:$0xff]
    %v3502 = vld [vmem:[%s3499 + $0x10] sm:$0xff]
    %v3503 = vld [vmem:[%s3499 + $0x18] sm:$0xff]
    %v3504 = vld [vmem:[%s3499 + $0x20] sm:$0xff]
    %v3505 = vld [vmem:[%s3499 + $0x28] sm:$0xff]
    %v3506 = vld [vmem:[%s3499 + $0x30] sm:$0xff]
    %v3507 = vld [vmem:[%s3499 + $0x38] sm:$0xff]
    %v3508 = vld [vmem:[%s3499 + $0x40] sm:$0xff]
    %v3509 = vld [vmem:[%s3499 + $0x48] sm:$0xff]
    %v3510 = vld [vmem:[%s3499 + $0x50] sm:$0xff]
    %v3511 = vld [vmem:[%s3499 + $0x58] sm:$0xff]
    %v3512 = vld [vmem:[%s3499 + $0x60] sm:$0xff]
    %v3513 = vld [vmem:[%s3499 + $0x68] sm:$0xff]
    %v3514 = vld [vmem:[%s3499 + $0x70] sm:$0xff]
    %v3515 = vld [vmem:[%s3499 + $0x78] sm:$0xff]
    %v3532 = vunpack.c.l.b16 %v3500
    %v3533 = vunpack.c.h.b16 %v3500
    %v3534 = vunpack.c.l.b16 %v3501
    %v3535 = vunpack.c.h.b16 %v3501
    %v3536 = vunpack.c.l.b16 %v3502
    %v3537 = vunpack.c.h.b16 %v3502
    %v3538 = vunpack.c.l.b16 %v3503
    %v3539 = vunpack.c.h.b16 %v3503
    %v3540 = vunpack.c.l.b16 %v3504
    %v3541 = vunpack.c.h.b16 %v3504
    %v3542 = vunpack.c.l.b16 %v3505
    %v3543 = vunpack.c.h.b16 %v3505
    %v3544 = vunpack.c.l.b16 %v3506
    %v3545 = vunpack.c.h.b16 %v3506
    %v3546 = vunpack.c.l.b16 %v3507
    %v3547 = vunpack.c.h.b16 %v3507
    %v3548 = vunpack.c.l.b16 %v3508
    %v3549 = vunpack.c.h.b16 %v3508
    %v3550 = vunpack.c.l.b16 %v3509
    %v3551 = vunpack.c.h.b16 %v3509
    %v3552 = vunpack.c.l.b16 %v3510
    %v3553 = vunpack.c.h.b16 %v3510
    %v3554 = vunpack.c.l.b16 %v3511
    %v3555 = vunpack.c.h.b16 %v3511
    %v3556 = vunpack.c.l.b16 %v3512
    %v3557 = vunpack.c.h.b16 %v3512
    %v3558 = vunpack.c.l.b16 %v3513
    %v3559 = vunpack.c.h.b16 %v3513
    %v3560 = vunpack.c.l.b16 %v3514
    %v3561 = vunpack.c.h.b16 %v3514
    %v3562 = vunpack.c.l.b16 %v3515
    %v3563 = vunpack.c.h.b16 %v3515
    %v3564 = vpack.c.b16 %v3534, %v3532
    %v3565 = vpack.c.b16 %v3535, %v3533
    %v3566 = vpack.c.b16 %v3538, %v3536
    %v3567 = vpack.c.b16 %v3539, %v3537
    %v3568 = vpack.c.b16 %v3542, %v3540
    %v3569 = vpack.c.b16 %v3543, %v3541
    %v3570 = vpack.c.b16 %v3546, %v3544
    %v3571 = vpack.c.b16 %v3547, %v3545
    %v3572 = vpack.c.b16 %v3550, %v3548
    %v3573 = vpack.c.b16 %v3551, %v3549
    %v3574 = vpack.c.b16 %v3554, %v3552
    %v3575 = vpack.c.b16 %v3555, %v3553
    %v3576 = vpack.c.b16 %v3558, %v3556
    %v3577 = vpack.c.b16 %v3559, %v3557
    %v3578 = vpack.c.b16 %v3562, %v3560
    %v3579 = vpack.c.b16 %v3563, %v3561
    %3596 = vmatpush.bf16.msra.mxu0 %v3578
    %3597 = vmatpush.bf16.msra.mxu0 %v3576
    %3598 = vmatpush.bf16.msra.mxu0 %v3574
    %3599 = vmatpush.bf16.msra.mxu0 %v3572
    %3600 = vmatpush.bf16.msra.mxu0 %v3570
    %3601 = vmatpush.bf16.msra.mxu0 %v3568
    %3602 = vmatpush.bf16.msra.mxu0 %v3566
    %3603 = vmatpush.bf16.msra.mxu0 %v3564
    %3604 = vmatmul.bf16.gmra.mxu0 %v3498
    %v3605 = vpop.f32.mrf.mxu0
    %v3606 = vadd.f32 0.0, %v3605
    %v3607 = vpop.f32.mrf.mxu0
    %3608 = vdwg.mxu0
    %3609 = vmatpush.bf16.msra.mxu0 %v3579
    %3610 = vmatpush.bf16.msra.mxu0 %v3577
    %3611 = vmatpush.bf16.msra.mxu0 %v3575
    %3612 = vmatpush.bf16.msra.mxu0 %v3573
    %3613 = vmatpush.bf16.msra.mxu0 %v3571
    %3614 = vmatpush.bf16.msra.mxu0 %v3569
    %3615 = vmatpush.bf16.msra.mxu0 %v3567
    %3616 = vmatpush.bf16.msra.mxu0 %v3565
    %3617 = vmatmul.bf16.gmra.mxu0 %v3498
    %v3618 = vpop.f32.mrf.mxu0
    %v3619 = vadd.f32 0.0, %v3618
    %v3620 = vpop.f32.mrf.mxu0
    %3621 = vdwg.mxu0
    %v3622 = vadd.f32 %v3379, %v3606
    %v3623 = vadd.f32 %v3380, %v3619
    %3624 = vmatpush.bf16.msra.mxu0 %v261
    %3625 = vmatpush.bf16.msra.mxu0 %v260
    %3626 = vmatpush.bf16.msra.mxu0 %v259
    %3627 = vmatpush.bf16.msra.mxu0 %v258
    %3628 = vmatpush.bf16.msra.mxu0 %v257
    %3629 = vmatpush.bf16.msra.mxu0 %v256
    %3630 = vmatpush.bf16.msra.mxu0 %v255
    %3631 = vmatpush.bf16.msra.mxu0 %v254
    %3632 = vmatmul.bf16.gmra.mxu0 %v2484
    %v3633 = vpop.f32.mrf.mxu0
    %v3634 = vadd.f32 0.0, %v3633
    %v3635 = vpop.f32.mrf.mxu0
    %3636 = vdwg.mxu0
    %3637 = vmatpush.bf16.msra.mxu0 %v269
    %3638 = vmatpush.bf16.msra.mxu0 %v268
    %3639 = vmatpush.bf16.msra.mxu0 %v267
    %3640 = vmatpush.bf16.msra.mxu0 %v266
    %3641 = vmatpush.bf16.msra.mxu0 %v265
    %3642 = vmatpush.bf16.msra.mxu0 %v264
    %3643 = vmatpush.bf16.msra.mxu0 %v263
    %3644 = vmatpush.bf16.msra.mxu0 %v262
    %3645 = vmatmul.bf16.gmra.mxu0 %v2485
    %v3646 = vpop.f32.mrf.mxu0
    %v3647 = vadd.f32 %v3634, %v3646
    %v3648 = vpop.f32.mrf.mxu0
    %3649 = vdwg.mxu0
    %3650 = vmatpush.bf16.msra.mxu0 %v390
    %3651 = vmatpush.bf16.msra.mxu0 %v389
    %3652 = vmatpush.bf16.msra.mxu0 %v388
    %3653 = vmatpush.bf16.msra.mxu0 %v387
    %3654 = vmatpush.bf16.msra.mxu0 %v386
    %3655 = vmatpush.bf16.msra.mxu0 %v385
    %3656 = vmatpush.bf16.msra.mxu0 %v384
    %3657 = vmatpush.bf16.msra.mxu0 %v383
    %3658 = vmatmul.bf16.gmra.mxu0 %v2241
    %v3659 = vpop.f32.mrf.mxu0
    %v3660 = vadd.f32 %v3647, %v3659
    %v3661 = vpop.f32.mrf.mxu0
    %3662 = vdwg.mxu0
    %3663 = vmatpush.bf16.msra.mxu0 %v398
    %3664 = vmatpush.bf16.msra.mxu0 %v397
    %3665 = vmatpush.bf16.msra.mxu0 %v396
    %3666 = vmatpush.bf16.msra.mxu0 %v395
    %3667 = vmatpush.bf16.msra.mxu0 %v394
    %3668 = vmatpush.bf16.msra.mxu0 %v393
    %3669 = vmatpush.bf16.msra.mxu0 %v392
    %3670 = vmatpush.bf16.msra.mxu0 %v391
    %3671 = vmatmul.bf16.gmra.mxu0 %v2242
    %v3672 = vpop.f32.mrf.mxu0
    %v3673 = vadd.f32 %v3660, %v3672
    %v3674 = vpop.f32.mrf.mxu0
    %3675 = vdwg.mxu0
    %3676 = vmatpush.bf16.msra.mxu0 %v554
    %3677 = vmatpush.bf16.msra.mxu0 %v553
    %3678 = vmatpush.bf16.msra.mxu0 %v552
    %3679 = vmatpush.bf16.msra.mxu0 %v551
    %3680 = vmatpush.bf16.msra.mxu0 %v550
    %3681 = vmatpush.bf16.msra.mxu0 %v549
    %3682 = vmatpush.bf16.msra.mxu0 %v548
    %3683 = vmatpush.bf16.msra.mxu0 %v547
    %3684 = vmatmul.bf16.gmra.mxu0 %v3465
    %v3685 = vpop.f32.mrf.mxu0
    %v3686 = vadd.f32 0.0, %v3685
    %v3687 = vpop.f32.mrf.mxu0
    %3688 = vdwg.mxu0
    %3689 = vmatpush.bf16.msra.mxu0 %v562
    %3690 = vmatpush.bf16.msra.mxu0 %v561
    %3691 = vmatpush.bf16.msra.mxu0 %v560
    %3692 = vmatpush.bf16.msra.mxu0 %v559
    %3693 = vmatpush.bf16.msra.mxu0 %v558
    %3694 = vmatpush.bf16.msra.mxu0 %v557
    %3695 = vmatpush.bf16.msra.mxu0 %v556
    %3696 = vmatpush.bf16.msra.mxu0 %v555
    %3697 = vmatmul.bf16.gmra.mxu0 %v3466
    %v3698 = vpop.f32.mrf.mxu0
    %v3699 = vadd.f32 %v3686, %v3698
    %v3700 = vpop.f32.mrf.mxu0
    %3701 = vdwg.mxu0
    %v3702 = vadd.f32 %v3673, %v3699
    %s3703 = scalar_lea.vmem %s0, 168
    %v3704 = vld [vmem:[%s3703] sm:$0xff]
    %v3706 = vunpack.c.l.b16 %v3704
    %v3707 = vunpack.c.h.b16 %v3704
    %v3708 = vpack.c.b16 %v3706, %v3706
    %v3709 = vpack.c.b16 %v3707, %v3707
    %3712 = vmatpush.bf16.msra.mxu0 %v719
    %3713 = vmatpush.bf16.msra.mxu0 %v718
    %3714 = vmatpush.bf16.msra.mxu0 %v717
    %3715 = vmatpush.bf16.msra.mxu0 %v716
    %3716 = vmatpush.bf16.msra.mxu0 %v715
    %3717 = vmatpush.bf16.msra.mxu0 %v714
    %3718 = vmatpush.bf16.msra.mxu0 %v713
    %3719 = vmatpush.bf16.msra.mxu0 %v712
    %3720 = vmatmul.bf16.gmra.mxu0 %v3708
    %v3721 = vpop.f32.mrf.mxu0
    %v3722 = vadd.f32 0.0, %v3721
    %v3723 = vpop.f32.mrf.mxu0
    %3724 = vdwg.mxu0
    %3725 = vmatpush.bf16.msra.mxu0 %v727
    %3726 = vmatpush.bf16.msra.mxu0 %v726
    %3727 = vmatpush.bf16.msra.mxu0 %v725
    %3728 = vmatpush.bf16.msra.mxu0 %v724
    %3729 = vmatpush.bf16.msra.mxu0 %v723
    %3730 = vmatpush.bf16.msra.mxu0 %v722
    %3731 = vmatpush.bf16.msra.mxu0 %v721
    %3732 = vmatpush.bf16.msra.mxu0 %v720
    %3733 = vmatmul.bf16.gmra.mxu0 %v3709
    %v3734 = vpop.f32.mrf.mxu0
    %v3735 = vadd.f32 %v3722, %v3734
    %v3736 = vpop.f32.mrf.mxu0
    %3737 = vdwg.mxu0
    %v3738 = vadd.f32 %v3702, %v3735
    %v3739 = vadd.f32 %v3738, %v772
    %v3740 = vmax.f32 %v3739, 0.0
    %v3741 = vpack.c.bf16 %v3740, %v3740
    %s3742 = scalar_lea.vmem [#allocation6], 1536
    %v3743 = vld [vmem:[%s3742] sm:$0xff]
    %v3744 = vld [vmem:[%s3742 + $0x8] sm:$0xff]
    %v3745 = vld [vmem:[%s3742 + $0x10] sm:$0xff]
    %v3746 = vld [vmem:[%s3742 + $0x18] sm:$0xff]
    %v3747 = vld [vmem:[%s3742 + $0x20] sm:$0xff]
    %v3748 = vld [vmem:[%s3742 + $0x28] sm:$0xff]
    %v3749 = vld [vmem:[%s3742 + $0x30] sm:$0xff]
    %v3750 = vld [vmem:[%s3742 + $0x38] sm:$0xff]
    %v3751 = vld [vmem:[%s3742 + $0x40] sm:$0xff]
    %v3752 = vld [vmem:[%s3742 + $0x48] sm:$0xff]
    %v3753 = vld [vmem:[%s3742 + $0x50] sm:$0xff]
    %v3754 = vld [vmem:[%s3742 + $0x58] sm:$0xff]
    %v3755 = vld [vmem:[%s3742 + $0x60] sm:$0xff]
    %v3756 = vld [vmem:[%s3742 + $0x68] sm:$0xff]
    %v3757 = vld [vmem:[%s3742 + $0x70] sm:$0xff]
    %v3758 = vld [vmem:[%s3742 + $0x78] sm:$0xff]
    %v3775 = vunpack.c.l.b16 %v3743
    %v3776 = vunpack.c.h.b16 %v3743
    %v3777 = vunpack.c.l.b16 %v3744
    %v3778 = vunpack.c.h.b16 %v3744
    %v3779 = vunpack.c.l.b16 %v3745
    %v3780 = vunpack.c.h.b16 %v3745
    %v3781 = vunpack.c.l.b16 %v3746
    %v3782 = vunpack.c.h.b16 %v3746
    %v3783 = vunpack.c.l.b16 %v3747
    %v3784 = vunpack.c.h.b16 %v3747
    %v3785 = vunpack.c.l.b16 %v3748
    %v3786 = vunpack.c.h.b16 %v3748
    %v3787 = vunpack.c.l.b16 %v3749
    %v3788 = vunpack.c.h.b16 %v3749
    %v3789 = vunpack.c.l.b16 %v3750
    %v3790 = vunpack.c.h.b16 %v3750
    %v3791 = vunpack.c.l.b16 %v3751
    %v3792 = vunpack.c.h.b16 %v3751
    %v3793 = vunpack.c.l.b16 %v3752
    %v3794 = vunpack.c.h.b16 %v3752
    %v3795 = vunpack.c.l.b16 %v3753
    %v3796 = vunpack.c.h.b16 %v3753
    %v3797 = vunpack.c.l.b16 %v3754
    %v3798 = vunpack.c.h.b16 %v3754
    %v3799 = vunpack.c.l.b16 %v3755
    %v3800 = vunpack.c.h.b16 %v3755
    %v3801 = vunpack.c.l.b16 %v3756
    %v3802 = vunpack.c.h.b16 %v3756
    %v3803 = vunpack.c.l.b16 %v3757
    %v3804 = vunpack.c.h.b16 %v3757
    %v3805 = vunpack.c.l.b16 %v3758
    %v3806 = vunpack.c.h.b16 %v3758
    %v3807 = vpack.c.b16 %v3777, %v3775
    %v3808 = vpack.c.b16 %v3778, %v3776
    %v3809 = vpack.c.b16 %v3781, %v3779
    %v3810 = vpack.c.b16 %v3782, %v3780
    %v3811 = vpack.c.b16 %v3785, %v3783
    %v3812 = vpack.c.b16 %v3786, %v3784
    %v3813 = vpack.c.b16 %v3789, %v3787
    %v3814 = vpack.c.b16 %v3790, %v3788
    %v3815 = vpack.c.b16 %v3793, %v3791
    %v3816 = vpack.c.b16 %v3794, %v3792
    %v3817 = vpack.c.b16 %v3797, %v3795
    %v3818 = vpack.c.b16 %v3798, %v3796
    %v3819 = vpack.c.b16 %v3801, %v3799
    %v3820 = vpack.c.b16 %v3802, %v3800
    %v3821 = vpack.c.b16 %v3805, %v3803
    %v3822 = vpack.c.b16 %v3806, %v3804
    %3839 = vmatpush.bf16.msra.mxu0 %v3821
    %3840 = vmatpush.bf16.msra.mxu0 %v3819
    %3841 = vmatpush.bf16.msra.mxu0 %v3817
    %3842 = vmatpush.bf16.msra.mxu0 %v3815
    %3843 = vmatpush.bf16.msra.mxu0 %v3813
    %3844 = vmatpush.bf16.msra.mxu0 %v3811
    %3845 = vmatpush.bf16.msra.mxu0 %v3809
    %3846 = vmatpush.bf16.msra.mxu0 %v3807
    %3847 = vmatmul.bf16.gmra.mxu0 %v3741
    %v3848 = vpop.f32.mrf.mxu0
    %v3849 = vadd.f32 0.0, %v3848
    %v3850 = vpop.f32.mrf.mxu0
    %3851 = vdwg.mxu0
    %3852 = vmatpush.bf16.msra.mxu0 %v3822
    %3853 = vmatpush.bf16.msra.mxu0 %v3820
    %3854 = vmatpush.bf16.msra.mxu0 %v3818
    %3855 = vmatpush.bf16.msra.mxu0 %v3816
    %3856 = vmatpush.bf16.msra.mxu0 %v3814
    %3857 = vmatpush.bf16.msra.mxu0 %v3812
    %3858 = vmatpush.bf16.msra.mxu0 %v3810
    %3859 = vmatpush.bf16.msra.mxu0 %v3808
    %3860 = vmatmul.bf16.gmra.mxu0 %v3741
    %v3861 = vpop.f32.mrf.mxu0
    %v3862 = vadd.f32 0.0, %v3861
    %v3863 = vpop.f32.mrf.mxu0
    %3864 = vdwg.mxu0
    %v3865 = vadd.f32 %v3622, %v3849
    %v3866 = vadd.f32 %v3623, %v3862
    %3867 = vmatpush.bf16.msra.mxu0 %v261
    %3868 = vmatpush.bf16.msra.mxu0 %v260
    %3869 = vmatpush.bf16.msra.mxu0 %v259
    %3870 = vmatpush.bf16.msra.mxu0 %v258
    %3871 = vmatpush.bf16.msra.mxu0 %v257
    %3872 = vmatpush.bf16.msra.mxu0 %v256
    %3873 = vmatpush.bf16.msra.mxu0 %v255
    %3874 = vmatpush.bf16.msra.mxu0 %v254
    %3875 = vmatmul.bf16.gmra.mxu0 %v2727
    %v3876 = vpop.f32.mrf.mxu0
    %v3877 = vadd.f32 0.0, %v3876
    %v3878 = vpop.f32.mrf.mxu0
    %3879 = vdwg.mxu0
    %3880 = vmatpush.bf16.msra.mxu0 %v269
    %3881 = vmatpush.bf16.msra.mxu0 %v268
    %3882 = vmatpush.bf16.msra.mxu0 %v267
    %3883 = vmatpush.bf16.msra.mxu0 %v266
    %3884 = vmatpush.bf16.msra.mxu0 %v265
    %3885 = vmatpush.bf16.msra.mxu0 %v264
    %3886 = vmatpush.bf16.msra.mxu0 %v263
    %3887 = vmatpush.bf16.msra.mxu0 %v262
    %3888 = vmatmul.bf16.gmra.mxu0 %v2728
    %v3889 = vpop.f32.mrf.mxu0
    %v3890 = vadd.f32 %v3877, %v3889
    %v3891 = vpop.f32.mrf.mxu0
    %3892 = vdwg.mxu0
    %3893 = vmatpush.bf16.msra.mxu0 %v390
    %3894 = vmatpush.bf16.msra.mxu0 %v389
    %3895 = vmatpush.bf16.msra.mxu0 %v388
    %3896 = vmatpush.bf16.msra.mxu0 %v387
    %3897 = vmatpush.bf16.msra.mxu0 %v386
    %3898 = vmatpush.bf16.msra.mxu0 %v385
    %3899 = vmatpush.bf16.msra.mxu0 %v384
    %3900 = vmatpush.bf16.msra.mxu0 %v383
    %3901 = vmatmul.bf16.gmra.mxu0 %v2484
    %v3902 = vpop.f32.mrf.mxu0
    %v3903 = vadd.f32 %v3890, %v3902
    %v3904 = vpop.f32.mrf.mxu0
    %3905 = vdwg.mxu0
    %3906 = vmatpush.bf16.msra.mxu0 %v398
    %3907 = vmatpush.bf16.msra.mxu0 %v397
    %3908 = vmatpush.bf16.msra.mxu0 %v396
    %3909 = vmatpush.bf16.msra.mxu0 %v395
    %3910 = vmatpush.bf16.msra.mxu0 %v394
    %3911 = vmatpush.bf16.msra.mxu0 %v393
    %3912 = vmatpush.bf16.msra.mxu0 %v392
    %3913 = vmatpush.bf16.msra.mxu0 %v391
    %3914 = vmatmul.bf16.gmra.mxu0 %v2485
    %v3915 = vpop.f32.mrf.mxu0
    %v3916 = vadd.f32 %v3903, %v3915
    %v3917 = vpop.f32.mrf.mxu0
    %3918 = vdwg.mxu0
    %3919 = vmatpush.bf16.msra.mxu0 %v554
    %3920 = vmatpush.bf16.msra.mxu0 %v553
    %3921 = vmatpush.bf16.msra.mxu0 %v552
    %3922 = vmatpush.bf16.msra.mxu0 %v551
    %3923 = vmatpush.bf16.msra.mxu0 %v550
    %3924 = vmatpush.bf16.msra.mxu0 %v549
    %3925 = vmatpush.bf16.msra.mxu0 %v548
    %3926 = vmatpush.bf16.msra.mxu0 %v547
    %3927 = vmatmul.bf16.gmra.mxu0 %v3708
    %v3928 = vpop.f32.mrf.mxu0
    %v3929 = vadd.f32 0.0, %v3928
    %v3930 = vpop.f32.mrf.mxu0
    %3931 = vdwg.mxu0
    %3932 = vmatpush.bf16.msra.mxu0 %v562
    %3933 = vmatpush.bf16.msra.mxu0 %v561
    %3934 = vmatpush.bf16.msra.mxu0 %v560
    %3935 = vmatpush.bf16.msra.mxu0 %v559
    %3936 = vmatpush.bf16.msra.mxu0 %v558
    %3937 = vmatpush.bf16.msra.mxu0 %v557
    %3938 = vmatpush.bf16.msra.mxu0 %v556
    %3939 = vmatpush.bf16.msra.mxu0 %v555
    %3940 = vmatmul.bf16.gmra.mxu0 %v3709
    %v3941 = vpop.f32.mrf.mxu0
    %v3942 = vadd.f32 %v3929, %v3941
    %v3943 = vpop.f32.mrf.mxu0
    %3944 = vdwg.mxu0
    %v3945 = vadd.f32 %v3916, %v3942
    %s3946 = scalar_lea.vmem %s0, 176
    %v3947 = vld [vmem:[%s3946] sm:$0xff]
    %v3949 = vunpack.c.l.b16 %v3947
    %v3950 = vunpack.c.h.b16 %v3947
    %v3951 = vpack.c.b16 %v3949, %v3949
    %v3952 = vpack.c.b16 %v3950, %v3950
    %3955 = vmatpush.bf16.msra.mxu0 %v719
    %3956 = vmatpush.bf16.msra.mxu0 %v718
    %3957 = vmatpush.bf16.msra.mxu0 %v717
    %3958 = vmatpush.bf16.msra.mxu0 %v716
    %3959 = vmatpush.bf16.msra.mxu0 %v715
    %3960 = vmatpush.bf16.msra.mxu0 %v714
    %3961 = vmatpush.bf16.msra.mxu0 %v713
    %3962 = vmatpush.bf16.msra.mxu0 %v712
    %3963 = vmatmul.bf16.gmra.mxu0 %v3951
    %v3964 = vpop.f32.mrf.mxu0
    %v3965 = vadd.f32 0.0, %v3964
    %v3966 = vpop.f32.mrf.mxu0
    %3967 = vdwg.mxu0
    %3968 = vmatpush.bf16.msra.mxu0 %v727
    %3969 = vmatpush.bf16.msra.mxu0 %v726
    %3970 = vmatpush.bf16.msra.mxu0 %v725
    %3971 = vmatpush.bf16.msra.mxu0 %v724
    %3972 = vmatpush.bf16.msra.mxu0 %v723
    %3973 = vmatpush.bf16.msra.mxu0 %v722
    %3974 = vmatpush.bf16.msra.mxu0 %v721
    %3975 = vmatpush.bf16.msra.mxu0 %v720
    %3976 = vmatmul.bf16.gmra.mxu0 %v3952
    %v3977 = vpop.f32.mrf.mxu0
    %v3978 = vadd.f32 %v3965, %v3977
    %v3979 = vpop.f32.mrf.mxu0
    %3980 = vdwg.mxu0
    %v3981 = vadd.f32 %v3945, %v3978
    %v3982 = vadd.f32 %v3981, %v772
    %v3983 = vmax.f32 %v3982, 0.0
    %v3984 = vpack.c.bf16 %v3983, %v3983
    %s3985 = scalar_lea.vmem [#allocation6], 1664
    %v3986 = vld [vmem:[%s3985] sm:$0xff]
    %v3987 = vld [vmem:[%s3985 + $0x8] sm:$0xff]
    %v3988 = vld [vmem:[%s3985 + $0x10] sm:$0xff]
    %v3989 = vld [vmem:[%s3985 + $0x18] sm:$0xff]
    %v3990 = vld [vmem:[%s3985 + $0x20] sm:$0xff]
    %v3991 = vld [vmem:[%s3985 + $0x28] sm:$0xff]
    %v3992 = vld [vmem:[%s3985 + $0x30] sm:$0xff]
    %v3993 = vld [vmem:[%s3985 + $0x38] sm:$0xff]
    %v3994 = vld [vmem:[%s3985 + $0x40] sm:$0xff]
    %v3995 = vld [vmem:[%s3985 + $0x48] sm:$0xff]
    %v3996 = vld [vmem:[%s3985 + $0x50] sm:$0xff]
    %v3997 = vld [vmem:[%s3985 + $0x58] sm:$0xff]
    %v3998 = vld [vmem:[%s3985 + $0x60] sm:$0xff]
    %v3999 = vld [vmem:[%s3985 + $0x68] sm:$0xff]
    %v4000 = vld [vmem:[%s3985 + $0x70] sm:$0xff]
    %v4001 = vld [vmem:[%s3985 + $0x78] sm:$0xff]
    %v4018 = vunpack.c.l.b16 %v3986
    %v4019 = vunpack.c.h.b16 %v3986
    %v4020 = vunpack.c.l.b16 %v3987
    %v4021 = vunpack.c.h.b16 %v3987
    %v4022 = vunpack.c.l.b16 %v3988
    %v4023 = vunpack.c.h.b16 %v3988
    %v4024 = vunpack.c.l.b16 %v3989
    %v4025 = vunpack.c.h.b16 %v3989
    %v4026 = vunpack.c.l.b16 %v3990
    %v4027 = vunpack.c.h.b16 %v3990
    %v4028 = vunpack.c.l.b16 %v3991
    %v4029 = vunpack.c.h.b16 %v3991
    %v4030 = vunpack.c.l.b16 %v3992
    %v4031 = vunpack.c.h.b16 %v3992
    %v4032 = vunpack.c.l.b16 %v3993
    %v4033 = vunpack.c.h.b16 %v3993
    %v4034 = vunpack.c.l.b16 %v3994
    %v4035 = vunpack.c.h.b16 %v3994
    %v4036 = vunpack.c.l.b16 %v3995
    %v4037 = vunpack.c.h.b16 %v3995
    %v4038 = vunpack.c.l.b16 %v3996
    %v4039 = vunpack.c.h.b16 %v3996
    %v4040 = vunpack.c.l.b16 %v3997
    %v4041 = vunpack.c.h.b16 %v3997
    %v4042 = vunpack.c.l.b16 %v3998
    %v4043 = vunpack.c.h.b16 %v3998
    %v4044 = vunpack.c.l.b16 %v3999
    %v4045 = vunpack.c.h.b16 %v3999
    %v4046 = vunpack.c.l.b16 %v4000
    %v4047 = vunpack.c.h.b16 %v4000
    %v4048 = vunpack.c.l.b16 %v4001
    %v4049 = vunpack.c.h.b16 %v4001
    %v4050 = vpack.c.b16 %v4020, %v4018
    %v4051 = vpack.c.b16 %v4021, %v4019
    %v4052 = vpack.c.b16 %v4024, %v4022
    %v4053 = vpack.c.b16 %v4025, %v4023
    %v4054 = vpack.c.b16 %v4028, %v4026
    %v4055 = vpack.c.b16 %v4029, %v4027
    %v4056 = vpack.c.b16 %v4032, %v4030
    %v4057 = vpack.c.b16 %v4033, %v4031
    %v4058 = vpack.c.b16 %v4036, %v4034
    %v4059 = vpack.c.b16 %v4037, %v4035
    %v4060 = vpack.c.b16 %v4040, %v4038
    %v4061 = vpack.c.b16 %v4041, %v4039
    %v4062 = vpack.c.b16 %v4044, %v4042
    %v4063 = vpack.c.b16 %v4045, %v4043
    %v4064 = vpack.c.b16 %v4048, %v4046
    %v4065 = vpack.c.b16 %v4049, %v4047
    %4082 = vmatpush.bf16.msra.mxu0 %v4064
    %4083 = vmatpush.bf16.msra.mxu0 %v4062
    %4084 = vmatpush.bf16.msra.mxu0 %v4060
    %4085 = vmatpush.bf16.msra.mxu0 %v4058
    %4086 = vmatpush.bf16.msra.mxu0 %v4056
    %4087 = vmatpush.bf16.msra.mxu0 %v4054
    %4088 = vmatpush.bf16.msra.mxu0 %v4052
    %4089 = vmatpush.bf16.msra.mxu0 %v4050
    %4090 = vmatmul.bf16.gmra.mxu0 %v3984
    %v4091 = vpop.f32.mrf.mxu0
    %v4092 = vadd.f32 0.0, %v4091
    %v4093 = vpop.f32.mrf.mxu0
    %4094 = vdwg.mxu0
    %4095 = vmatpush.bf16.msra.mxu0 %v4065
    %4096 = vmatpush.bf16.msra.mxu0 %v4063
    %4097 = vmatpush.bf16.msra.mxu0 %v4061
    %4098 = vmatpush.bf16.msra.mxu0 %v4059
    %4099 = vmatpush.bf16.msra.mxu0 %v4057
    %4100 = vmatpush.bf16.msra.mxu0 %v4055
    %4101 = vmatpush.bf16.msra.mxu0 %v4053
    %4102 = vmatpush.bf16.msra.mxu0 %v4051
    %4103 = vmatmul.bf16.gmra.mxu0 %v3984
    %v4104 = vpop.f32.mrf.mxu0
    %v4105 = vadd.f32 0.0, %v4104
    %v4106 = vpop.f32.mrf.mxu0
    %4107 = vdwg.mxu0
    %v4108 = vadd.f32 %v3865, %v4092
    %v4109 = vadd.f32 %v3866, %v4105
    %4110 = vmatpush.bf16.msra.mxu0 %v261
    %4111 = vmatpush.bf16.msra.mxu0 %v260
    %4112 = vmatpush.bf16.msra.mxu0 %v259
    %4113 = vmatpush.bf16.msra.mxu0 %v258
    %4114 = vmatpush.bf16.msra.mxu0 %v257
    %4115 = vmatpush.bf16.msra.mxu0 %v256
    %4116 = vmatpush.bf16.msra.mxu0 %v255
    %4117 = vmatpush.bf16.msra.mxu0 %v254
    %4118 = vmatmul.bf16.gmra.mxu0 %v2970
    %v4119 = vpop.f32.mrf.mxu0
    %v4120 = vadd.f32 0.0, %v4119
    %v4121 = vpop.f32.mrf.mxu0
    %4122 = vdwg.mxu0
    %4123 = vmatpush.bf16.msra.mxu0 %v269
    %4124 = vmatpush.bf16.msra.mxu0 %v268
    %4125 = vmatpush.bf16.msra.mxu0 %v267
    %4126 = vmatpush.bf16.msra.mxu0 %v266
    %4127 = vmatpush.bf16.msra.mxu0 %v265
    %4128 = vmatpush.bf16.msra.mxu0 %v264
    %4129 = vmatpush.bf16.msra.mxu0 %v263
    %4130 = vmatpush.bf16.msra.mxu0 %v262
    %4131 = vmatmul.bf16.gmra.mxu0 %v2971
    %v4132 = vpop.f32.mrf.mxu0
    %v4133 = vadd.f32 %v4120, %v4132
    %v4134 = vpop.f32.mrf.mxu0
    %4135 = vdwg.mxu0
    %4136 = vmatpush.bf16.msra.mxu0 %v390
    %4137 = vmatpush.bf16.msra.mxu0 %v389
    %4138 = vmatpush.bf16.msra.mxu0 %v388
    %4139 = vmatpush.bf16.msra.mxu0 %v387
    %4140 = vmatpush.bf16.msra.mxu0 %v386
    %4141 = vmatpush.bf16.msra.mxu0 %v385
    %4142 = vmatpush.bf16.msra.mxu0 %v384
    %4143 = vmatpush.bf16.msra.mxu0 %v383
    %4144 = vmatmul.bf16.gmra.mxu0 %v2727
    %v4145 = vpop.f32.mrf.mxu0
    %v4146 = vadd.f32 %v4133, %v4145
    %v4147 = vpop.f32.mrf.mxu0
    %4148 = vdwg.mxu0
    %4149 = vmatpush.bf16.msra.mxu0 %v398
    %4150 = vmatpush.bf16.msra.mxu0 %v397
    %4151 = vmatpush.bf16.msra.mxu0 %v396
    %4152 = vmatpush.bf16.msra.mxu0 %v395
    %4153 = vmatpush.bf16.msra.mxu0 %v394
    %4154 = vmatpush.bf16.msra.mxu0 %v393
    %4155 = vmatpush.bf16.msra.mxu0 %v392
    %4156 = vmatpush.bf16.msra.mxu0 %v391
    %4157 = vmatmul.bf16.gmra.mxu0 %v2728
    %v4158 = vpop.f32.mrf.mxu0
    %v4159 = vadd.f32 %v4146, %v4158
    %v4160 = vpop.f32.mrf.mxu0
    %4161 = vdwg.mxu0
    %4162 = vmatpush.bf16.msra.mxu0 %v554
    %4163 = vmatpush.bf16.msra.mxu0 %v553
    %4164 = vmatpush.bf16.msra.mxu0 %v552
    %4165 = vmatpush.bf16.msra.mxu0 %v551
    %4166 = vmatpush.bf16.msra.mxu0 %v550
    %4167 = vmatpush.bf16.msra.mxu0 %v549
    %4168 = vmatpush.bf16.msra.mxu0 %v548
    %4169 = vmatpush.bf16.msra.mxu0 %v547
    %4170 = vmatmul.bf16.gmra.mxu0 %v3951
    %v4171 = vpop.f32.mrf.mxu0
    %v4172 = vadd.f32 0.0, %v4171
    %v4173 = vpop.f32.mrf.mxu0
    %4174 = vdwg.mxu0
    %4175 = vmatpush.bf16.msra.mxu0 %v562
    %4176 = vmatpush.bf16.msra.mxu0 %v561
    %4177 = vmatpush.bf16.msra.mxu0 %v560
    %4178 = vmatpush.bf16.msra.mxu0 %v559
    %4179 = vmatpush.bf16.msra.mxu0 %v558
    %4180 = vmatpush.bf16.msra.mxu0 %v557
    %4181 = vmatpush.bf16.msra.mxu0 %v556
    %4182 = vmatpush.bf16.msra.mxu0 %v555
    %4183 = vmatmul.bf16.gmra.mxu0 %v3952
    %v4184 = vpop.f32.mrf.mxu0
    %v4185 = vadd.f32 %v4172, %v4184
    %v4186 = vpop.f32.mrf.mxu0
    %4187 = vdwg.mxu0
    %v4188 = vadd.f32 %v4159, %v4185
    %s4189 = scalar_lea.vmem %s0, 184
    %v4190 = vld [vmem:[%s4189] sm:$0xff]
    %v4192 = vunpack.c.l.b16 %v4190
    %v4193 = vunpack.c.h.b16 %v4190
    %v4194 = vpack.c.b16 %v4192, %v4192
    %v4195 = vpack.c.b16 %v4193, %v4193
    %4198 = vmatpush.bf16.msra.mxu0 %v719
    %4199 = vmatpush.bf16.msra.mxu0 %v718
    %4200 = vmatpush.bf16.msra.mxu0 %v717
    %4201 = vmatpush.bf16.msra.mxu0 %v716
    %4202 = vmatpush.bf16.msra.mxu0 %v715
    %4203 = vmatpush.bf16.msra.mxu0 %v714
    %4204 = vmatpush.bf16.msra.mxu0 %v713
    %4205 = vmatpush.bf16.msra.mxu0 %v712
    %4206 = vmatmul.bf16.gmra.mxu0 %v4194
    %v4207 = vpop.f32.mrf.mxu0
    %v4208 = vadd.f32 0.0, %v4207
    %v4209 = vpop.f32.mrf.mxu0
    %4210 = vdwg.mxu0
    %4211 = vmatpush.bf16.msra.mxu0 %v727
    %4212 = vmatpush.bf16.msra.mxu0 %v726
    %4213 = vmatpush.bf16.msra.mxu0 %v725
    %4214 = vmatpush.bf16.msra.mxu0 %v724
    %4215 = vmatpush.bf16.msra.mxu0 %v723
    %4216 = vmatpush.bf16.msra.mxu0 %v722
    %4217 = vmatpush.bf16.msra.mxu0 %v721
    %4218 = vmatpush.bf16.msra.mxu0 %v720
    %4219 = vmatmul.bf16.gmra.mxu0 %v4195
    %v4220 = vpop.f32.mrf.mxu0
    %v4221 = vadd.f32 %v4208, %v4220
    %v4222 = vpop.f32.mrf.mxu0
    %4223 = vdwg.mxu0
    %v4224 = vadd.f32 %v4188, %v4221
    %v4225 = vadd.f32 %v4224, %v772
    %v4226 = vmax.f32 %v4225, 0.0
    %v4227 = vpack.c.bf16 %v4226, %v4226
    %s4228 = scalar_lea.vmem [#allocation6], 1792
    %v4229 = vld [vmem:[%s4228] sm:$0xff]
    %v4230 = vld [vmem:[%s4228 + $0x8] sm:$0xff]
    %v4231 = vld [vmem:[%s4228 + $0x10] sm:$0xff]
    %v4232 = vld [vmem:[%s4228 + $0x18] sm:$0xff]
    %v4233 = vld [vmem:[%s4228 + $0x20] sm:$0xff]
    %v4234 = vld [vmem:[%s4228 + $0x28] sm:$0xff]
    %v4235 = vld [vmem:[%s4228 + $0x30] sm:$0xff]
    %v4236 = vld [vmem:[%s4228 + $0x38] sm:$0xff]
    %v4237 = vld [vmem:[%s4228 + $0x40] sm:$0xff]
    %v4238 = vld [vmem:[%s4228 + $0x48] sm:$0xff]
    %v4239 = vld [vmem:[%s4228 + $0x50] sm:$0xff]
    %v4240 = vld [vmem:[%s4228 + $0x58] sm:$0xff]
    %v4241 = vld [vmem:[%s4228 + $0x60] sm:$0xff]
    %v4242 = vld [vmem:[%s4228 + $0x68] sm:$0xff]
    %v4243 = vld [vmem:[%s4228 + $0x70] sm:$0xff]
    %v4244 = vld [vmem:[%s4228 + $0x78] sm:$0xff]
    %v4261 = vunpack.c.l.b16 %v4229
    %v4262 = vunpack.c.h.b16 %v4229
    %v4263 = vunpack.c.l.b16 %v4230
    %v4264 = vunpack.c.h.b16 %v4230
    %v4265 = vunpack.c.l.b16 %v4231
    %v4266 = vunpack.c.h.b16 %v4231
    %v4267 = vunpack.c.l.b16 %v4232
    %v4268 = vunpack.c.h.b16 %v4232
    %v4269 = vunpack.c.l.b16 %v4233
    %v4270 = vunpack.c.h.b16 %v4233
    %v4271 = vunpack.c.l.b16 %v4234
    %v4272 = vunpack.c.h.b16 %v4234
    %v4273 = vunpack.c.l.b16 %v4235
    %v4274 = vunpack.c.h.b16 %v4235
    %v4275 = vunpack.c.l.b16 %v4236
    %v4276 = vunpack.c.h.b16 %v4236
    %v4277 = vunpack.c.l.b16 %v4237
    %v4278 = vunpack.c.h.b16 %v4237
    %v4279 = vunpack.c.l.b16 %v4238
    %v4280 = vunpack.c.h.b16 %v4238
    %v4281 = vunpack.c.l.b16 %v4239
    %v4282 = vunpack.c.h.b16 %v4239
    %v4283 = vunpack.c.l.b16 %v4240
    %v4284 = vunpack.c.h.b16 %v4240
    %v4285 = vunpack.c.l.b16 %v4241
    %v4286 = vunpack.c.h.b16 %v4241
    %v4287 = vunpack.c.l.b16 %v4242
    %v4288 = vunpack.c.h.b16 %v4242
    %v4289 = vunpack.c.l.b16 %v4243
    %v4290 = vunpack.c.h.b16 %v4243
    %v4291 = vunpack.c.l.b16 %v4244
    %v4292 = vunpack.c.h.b16 %v4244
    %v4293 = vpack.c.b16 %v4263, %v4261
    %v4294 = vpack.c.b16 %v4264, %v4262
    %v4295 = vpack.c.b16 %v4267, %v4265
    %v4296 = vpack.c.b16 %v4268, %v4266
    %v4297 = vpack.c.b16 %v4271, %v4269
    %v4298 = vpack.c.b16 %v4272, %v4270
    %v4299 = vpack.c.b16 %v4275, %v4273
    %v4300 = vpack.c.b16 %v4276, %v4274
    %v4301 = vpack.c.b16 %v4279, %v4277
    %v4302 = vpack.c.b16 %v4280, %v4278
    %v4303 = vpack.c.b16 %v4283, %v4281
    %v4304 = vpack.c.b16 %v4284, %v4282
    %v4305 = vpack.c.b16 %v4287, %v4285
    %v4306 = vpack.c.b16 %v4288, %v4286
    %v4307 = vpack.c.b16 %v4291, %v4289
    %v4308 = vpack.c.b16 %v4292, %v4290
    %4325 = vmatpush.bf16.msra.mxu0 %v4307
    %4326 = vmatpush.bf16.msra.mxu0 %v4305
    %4327 = vmatpush.bf16.msra.mxu0 %v4303
    %4328 = vmatpush.bf16.msra.mxu0 %v4301
    %4329 = vmatpush.bf16.msra.mxu0 %v4299
    %4330 = vmatpush.bf16.msra.mxu0 %v4297
    %4331 = vmatpush.bf16.msra.mxu0 %v4295
    %4332 = vmatpush.bf16.msra.mxu0 %v4293
    %4333 = vmatmul.bf16.gmra.mxu0 %v4227
    %v4334 = vpop.f32.mrf.mxu0
    %v4335 = vadd.f32 0.0, %v4334
    %v4336 = vpop.f32.mrf.mxu0
    %4337 = vdwg.mxu0
    %4338 = vmatpush.bf16.msra.mxu0 %v4308
    %4339 = vmatpush.bf16.msra.mxu0 %v4306
    %4340 = vmatpush.bf16.msra.mxu0 %v4304
    %4341 = vmatpush.bf16.msra.mxu0 %v4302
    %4342 = vmatpush.bf16.msra.mxu0 %v4300
    %4343 = vmatpush.bf16.msra.mxu0 %v4298
    %4344 = vmatpush.bf16.msra.mxu0 %v4296
    %4345 = vmatpush.bf16.msra.mxu0 %v4294
    %4346 = vmatmul.bf16.gmra.mxu0 %v4227
    %v4347 = vpop.f32.mrf.mxu0
    %v4348 = vadd.f32 0.0, %v4347
    %v4349 = vpop.f32.mrf.mxu0
    %4350 = vdwg.mxu0
    %v4351 = vadd.f32 %v4108, %v4335
    %v4352 = vadd.f32 %v4109, %v4348
    %4353 = vmatpush.bf16.msra.mxu0 %v261
    %4354 = vmatpush.bf16.msra.mxu0 %v260
    %4355 = vmatpush.bf16.msra.mxu0 %v259
    %4356 = vmatpush.bf16.msra.mxu0 %v258
    %4357 = vmatpush.bf16.msra.mxu0 %v257
    %4358 = vmatpush.bf16.msra.mxu0 %v256
    %4359 = vmatpush.bf16.msra.mxu0 %v255
    %4360 = vmatpush.bf16.msra.mxu0 %v254
    %4361 = vmatmul.bf16.gmra.mxu0 %v3222
    %v4362 = vpop.f32.mrf.mxu0
    %v4363 = vadd.f32 0.0, %v4362
    %v4364 = vpop.f32.mrf.mxu0
    %4365 = vdwg.mxu0
    %4366 = vmatpush.bf16.msra.mxu0 %v269
    %4367 = vmatpush.bf16.msra.mxu0 %v268
    %4368 = vmatpush.bf16.msra.mxu0 %v267
    %4369 = vmatpush.bf16.msra.mxu0 %v266
    %4370 = vmatpush.bf16.msra.mxu0 %v265
    %4371 = vmatpush.bf16.msra.mxu0 %v264
    %4372 = vmatpush.bf16.msra.mxu0 %v263
    %4373 = vmatpush.bf16.msra.mxu0 %v262
    %4374 = vmatmul.bf16.gmra.mxu0 %v3223
    %v4375 = vpop.f32.mrf.mxu0
    %v4376 = vadd.f32 %v4363, %v4375
    %v4377 = vpop.f32.mrf.mxu0
    %4378 = vdwg.mxu0
    %4379 = vmatpush.bf16.msra.mxu0 %v390
    %4380 = vmatpush.bf16.msra.mxu0 %v389
    %4381 = vmatpush.bf16.msra.mxu0 %v388
    %4382 = vmatpush.bf16.msra.mxu0 %v387
    %4383 = vmatpush.bf16.msra.mxu0 %v386
    %4384 = vmatpush.bf16.msra.mxu0 %v385
    %4385 = vmatpush.bf16.msra.mxu0 %v384
    %4386 = vmatpush.bf16.msra.mxu0 %v383
    %4387 = vmatmul.bf16.gmra.mxu0 %v3186
    %v4388 = vpop.f32.mrf.mxu0
    %v4389 = vadd.f32 %v4376, %v4388
    %v4390 = vpop.f32.mrf.mxu0
    %4391 = vdwg.mxu0
    %4392 = vmatpush.bf16.msra.mxu0 %v398
    %4393 = vmatpush.bf16.msra.mxu0 %v397
    %4394 = vmatpush.bf16.msra.mxu0 %v396
    %4395 = vmatpush.bf16.msra.mxu0 %v395
    %4396 = vmatpush.bf16.msra.mxu0 %v394
    %4397 = vmatpush.bf16.msra.mxu0 %v393
    %4398 = vmatpush.bf16.msra.mxu0 %v392
    %4399 = vmatpush.bf16.msra.mxu0 %v391
    %4400 = vmatmul.bf16.gmra.mxu0 %v3187
    %v4401 = vpop.f32.mrf.mxu0
    %v4402 = vadd.f32 %v4389, %v4401
    %v4403 = vpop.f32.mrf.mxu0
    %4404 = vdwg.mxu0
    %s4405 = scalar_lea.vmem %s0, 192
    %v4406 = vld [vmem:[%s4405] sm:$0xff]
    %v4408 = vunpack.c.l.b16 %v4406
    %v4409 = vunpack.c.h.b16 %v4406
    %v4410 = vpack.c.b16 %v4408, %v4408
    %v4411 = vpack.c.b16 %v4409, %v4409
    %4414 = vmatpush.bf16.msra.mxu0 %v554
    %4415 = vmatpush.bf16.msra.mxu0 %v553
    %4416 = vmatpush.bf16.msra.mxu0 %v552
    %4417 = vmatpush.bf16.msra.mxu0 %v551
    %4418 = vmatpush.bf16.msra.mxu0 %v550
    %4419 = vmatpush.bf16.msra.mxu0 %v549
    %4420 = vmatpush.bf16.msra.mxu0 %v548
    %4421 = vmatpush.bf16.msra.mxu0 %v547
    %4422 = vmatmul.bf16.gmra.mxu0 %v4410
    %v4423 = vpop.f32.mrf.mxu0
    %v4424 = vadd.f32 0.0, %v4423
    %v4425 = vpop.f32.mrf.mxu0
    %4426 = vdwg.mxu0
    %4427 = vmatpush.bf16.msra.mxu0 %v562
    %4428 = vmatpush.bf16.msra.mxu0 %v561
    %4429 = vmatpush.bf16.msra.mxu0 %v560
    %4430 = vmatpush.bf16.msra.mxu0 %v559
    %4431 = vmatpush.bf16.msra.mxu0 %v558
    %4432 = vmatpush.bf16.msra.mxu0 %v557
    %4433 = vmatpush.bf16.msra.mxu0 %v556
    %4434 = vmatpush.bf16.msra.mxu0 %v555
    %4435 = vmatmul.bf16.gmra.mxu0 %v4411
    %v4436 = vpop.f32.mrf.mxu0
    %v4437 = vadd.f32 %v4424, %v4436
    %v4438 = vpop.f32.mrf.mxu0
    %4439 = vdwg.mxu0
    %v4440 = vadd.f32 %v4402, %v4437
    %s4441 = scalar_lea.vmem %s0, 200
    %v4442 = vld [vmem:[%s4441] sm:$0xff]
    %v4444 = vunpack.c.l.b16 %v4442
    %v4445 = vunpack.c.h.b16 %v4442
    %v4446 = vpack.c.b16 %v4444, %v4444
    %v4447 = vpack.c.b16 %v4445, %v4445
    %4450 = vmatpush.bf16.msra.mxu0 %v719
    %4451 = vmatpush.bf16.msra.mxu0 %v718
    %4452 = vmatpush.bf16.msra.mxu0 %v717
    %4453 = vmatpush.bf16.msra.mxu0 %v716
    %4454 = vmatpush.bf16.msra.mxu0 %v715
    %4455 = vmatpush.bf16.msra.mxu0 %v714
    %4456 = vmatpush.bf16.msra.mxu0 %v713
    %4457 = vmatpush.bf16.msra.mxu0 %v712
    %4458 = vmatmul.bf16.gmra.mxu0 %v4446
    %v4459 = vpop.f32.mrf.mxu0
    %v4460 = vadd.f32 0.0, %v4459
    %v4461 = vpop.f32.mrf.mxu0
    %4462 = vdwg.mxu0
    %4463 = vmatpush.bf16.msra.mxu0 %v727
    %4464 = vmatpush.bf16.msra.mxu0 %v726
    %4465 = vmatpush.bf16.msra.mxu0 %v725
    %4466 = vmatpush.bf16.msra.mxu0 %v724
    %4467 = vmatpush.bf16.msra.mxu0 %v723
    %4468 = vmatpush.bf16.msra.mxu0 %v722
    %4469 = vmatpush.bf16.msra.mxu0 %v721
    %4470 = vmatpush.bf16.msra.mxu0 %v720
    %4471 = vmatmul.bf16.gmra.mxu0 %v4447
    %v4472 = vpop.f32.mrf.mxu0
    %v4473 = vadd.f32 %v4460, %v4472
    %v4474 = vpop.f32.mrf.mxu0
    %4475 = vdwg.mxu0
    %v4476 = vadd.f32 %v4440, %v4473
    %v4477 = vadd.f32 %v4476, %v772
    %v4478 = vmax.f32 %v4477, 0.0
    %v4479 = vpack.c.bf16 %v4478, %v4478
    %s4480 = scalar_lea.vmem [#allocation6], 1920
    %v4481 = vld [vmem:[%s4480] sm:$0xff]
    %v4482 = vld [vmem:[%s4480 + $0x8] sm:$0xff]
    %v4483 = vld [vmem:[%s4480 + $0x10] sm:$0xff]
    %v4484 = vld [vmem:[%s4480 + $0x18] sm:$0xff]
    %v4485 = vld [vmem:[%s4480 + $0x20] sm:$0xff]
    %v4486 = vld [vmem:[%s4480 + $0x28] sm:$0xff]
    %v4487 = vld [vmem:[%s4480 + $0x30] sm:$0xff]
    %v4488 = vld [vmem:[%s4480 + $0x38] sm:$0xff]
    %v4489 = vld [vmem:[%s4480 + $0x40] sm:$0xff]
    %v4490 = vld [vmem:[%s4480 + $0x48] sm:$0xff]
    %v4491 = vld [vmem:[%s4480 + $0x50] sm:$0xff]
    %v4492 = vld [vmem:[%s4480 + $0x58] sm:$0xff]
    %v4493 = vld [vmem:[%s4480 + $0x60] sm:$0xff]
    %v4494 = vld [vmem:[%s4480 + $0x68] sm:$0xff]
    %v4495 = vld [vmem:[%s4480 + $0x70] sm:$0xff]
    %v4496 = vld [vmem:[%s4480 + $0x78] sm:$0xff]
    %v4513 = vunpack.c.l.b16 %v4481
    %v4514 = vunpack.c.h.b16 %v4481
    %v4515 = vunpack.c.l.b16 %v4482
    %v4516 = vunpack.c.h.b16 %v4482
    %v4517 = vunpack.c.l.b16 %v4483
    %v4518 = vunpack.c.h.b16 %v4483
    %v4519 = vunpack.c.l.b16 %v4484
    %v4520 = vunpack.c.h.b16 %v4484
    %v4521 = vunpack.c.l.b16 %v4485
    %v4522 = vunpack.c.h.b16 %v4485
    %v4523 = vunpack.c.l.b16 %v4486
    %v4524 = vunpack.c.h.b16 %v4486
    %v4525 = vunpack.c.l.b16 %v4487
    %v4526 = vunpack.c.h.b16 %v4487
    %v4527 = vunpack.c.l.b16 %v4488
    %v4528 = vunpack.c.h.b16 %v4488
    %v4529 = vunpack.c.l.b16 %v4489
    %v4530 = vunpack.c.h.b16 %v4489
    %v4531 = vunpack.c.l.b16 %v4490
    %v4532 = vunpack.c.h.b16 %v4490
    %v4533 = vunpack.c.l.b16 %v4491
    %v4534 = vunpack.c.h.b16 %v4491
    %v4535 = vunpack.c.l.b16 %v4492
    %v4536 = vunpack.c.h.b16 %v4492
    %v4537 = vunpack.c.l.b16 %v4493
    %v4538 = vunpack.c.h.b16 %v4493
    %v4539 = vunpack.c.l.b16 %v4494
    %v4540 = vunpack.c.h.b16 %v4494
    %v4541 = vunpack.c.l.b16 %v4495
    %v4542 = vunpack.c.h.b16 %v4495
    %v4543 = vunpack.c.l.b16 %v4496
    %v4544 = vunpack.c.h.b16 %v4496
    %v4545 = vpack.c.b16 %v4515, %v4513
    %v4546 = vpack.c.b16 %v4516, %v4514
    %v4547 = vpack.c.b16 %v4519, %v4517
    %v4548 = vpack.c.b16 %v4520, %v4518
    %v4549 = vpack.c.b16 %v4523, %v4521
    %v4550 = vpack.c.b16 %v4524, %v4522
    %v4551 = vpack.c.b16 %v4527, %v4525
    %v4552 = vpack.c.b16 %v4528, %v4526
    %v4553 = vpack.c.b16 %v4531, %v4529
    %v4554 = vpack.c.b16 %v4532, %v4530
    %v4555 = vpack.c.b16 %v4535, %v4533
    %v4556 = vpack.c.b16 %v4536, %v4534
    %v4557 = vpack.c.b16 %v4539, %v4537
    %v4558 = vpack.c.b16 %v4540, %v4538
    %v4559 = vpack.c.b16 %v4543, %v4541
    %v4560 = vpack.c.b16 %v4544, %v4542
    %4577 = vmatpush.bf16.msra.mxu0 %v4559
    %4578 = vmatpush.bf16.msra.mxu0 %v4557
    %4579 = vmatpush.bf16.msra.mxu0 %v4555
    %4580 = vmatpush.bf16.msra.mxu0 %v4553
    %4581 = vmatpush.bf16.msra.mxu0 %v4551
    %4582 = vmatpush.bf16.msra.mxu0 %v4549
    %4583 = vmatpush.bf16.msra.mxu0 %v4547
    %4584 = vmatpush.bf16.msra.mxu0 %v4545
    %4585 = vmatmul.bf16.gmra.mxu0 %v4479
    %v4586 = vpop.f32.mrf.mxu0
    %v4587 = vadd.f32 0.0, %v4586
    %v4588 = vpop.f32.mrf.mxu0
    %4589 = vdwg.mxu0
    %4590 = vmatpush.bf16.msra.mxu0 %v4560
    %4591 = vmatpush.bf16.msra.mxu0 %v4558
    %4592 = vmatpush.bf16.msra.mxu0 %v4556
    %4593 = vmatpush.bf16.msra.mxu0 %v4554
    %4594 = vmatpush.bf16.msra.mxu0 %v4552
    %4595 = vmatpush.bf16.msra.mxu0 %v4550
    %4596 = vmatpush.bf16.msra.mxu0 %v4548
    %4597 = vmatpush.bf16.msra.mxu0 %v4546
    %4598 = vmatmul.bf16.gmra.mxu0 %v4479
    %v4599 = vpop.f32.mrf.mxu0
    %v4600 = vadd.f32 0.0, %v4599
    %v4601 = vpop.f32.mrf.mxu0
    %4602 = vdwg.mxu0
    %v4603 = vadd.f32 %v4351, %v4587
    %v4604 = vadd.f32 %v4352, %v4600
    %4605 = vmatpush.bf16.msra.mxu0 %v261
    %4606 = vmatpush.bf16.msra.mxu0 %v260
    %4607 = vmatpush.bf16.msra.mxu0 %v259
    %4608 = vmatpush.bf16.msra.mxu0 %v258
    %4609 = vmatpush.bf16.msra.mxu0 %v257
    %4610 = vmatpush.bf16.msra.mxu0 %v256
    %4611 = vmatpush.bf16.msra.mxu0 %v255
    %4612 = vmatpush.bf16.msra.mxu0 %v254
    %4613 = vmatmul.bf16.gmra.mxu0 %v3465
    %v4614 = vpop.f32.mrf.mxu0
    %v4615 = vadd.f32 0.0, %v4614
    %v4616 = vpop.f32.mrf.mxu0
    %4617 = vdwg.mxu0
    %4618 = vmatpush.bf16.msra.mxu0 %v269
    %4619 = vmatpush.bf16.msra.mxu0 %v268
    %4620 = vmatpush.bf16.msra.mxu0 %v267
    %4621 = vmatpush.bf16.msra.mxu0 %v266
    %4622 = vmatpush.bf16.msra.mxu0 %v265
    %4623 = vmatpush.bf16.msra.mxu0 %v264
    %4624 = vmatpush.bf16.msra.mxu0 %v263
    %4625 = vmatpush.bf16.msra.mxu0 %v262
    %4626 = vmatmul.bf16.gmra.mxu0 %v3466
    %v4627 = vpop.f32.mrf.mxu0
    %v4628 = vadd.f32 %v4615, %v4627
    %v4629 = vpop.f32.mrf.mxu0
    %4630 = vdwg.mxu0
    %4631 = vmatpush.bf16.msra.mxu0 %v390
    %4632 = vmatpush.bf16.msra.mxu0 %v389
    %4633 = vmatpush.bf16.msra.mxu0 %v388
    %4634 = vmatpush.bf16.msra.mxu0 %v387
    %4635 = vmatpush.bf16.msra.mxu0 %v386
    %4636 = vmatpush.bf16.msra.mxu0 %v385
    %4637 = vmatpush.bf16.msra.mxu0 %v384
    %4638 = vmatpush.bf16.msra.mxu0 %v383
    %4639 = vmatmul.bf16.gmra.mxu0 %v3222
    %v4640 = vpop.f32.mrf.mxu0
    %v4641 = vadd.f32 %v4628, %v4640
    %v4642 = vpop.f32.mrf.mxu0
    %4643 = vdwg.mxu0
    %4644 = vmatpush.bf16.msra.mxu0 %v398
    %4645 = vmatpush.bf16.msra.mxu0 %v397
    %4646 = vmatpush.bf16.msra.mxu0 %v396
    %4647 = vmatpush.bf16.msra.mxu0 %v395
    %4648 = vmatpush.bf16.msra.mxu0 %v394
    %4649 = vmatpush.bf16.msra.mxu0 %v393
    %4650 = vmatpush.bf16.msra.mxu0 %v392
    %4651 = vmatpush.bf16.msra.mxu0 %v391
    %4652 = vmatmul.bf16.gmra.mxu0 %v3223
    %v4653 = vpop.f32.mrf.mxu0
    %v4654 = vadd.f32 %v4641, %v4653
    %v4655 = vpop.f32.mrf.mxu0
    %4656 = vdwg.mxu0
    %4657 = vmatpush.bf16.msra.mxu0 %v554
    %4658 = vmatpush.bf16.msra.mxu0 %v553
    %4659 = vmatpush.bf16.msra.mxu0 %v552
    %4660 = vmatpush.bf16.msra.mxu0 %v551
    %4661 = vmatpush.bf16.msra.mxu0 %v550
    %4662 = vmatpush.bf16.msra.mxu0 %v549
    %4663 = vmatpush.bf16.msra.mxu0 %v548
    %4664 = vmatpush.bf16.msra.mxu0 %v547
    %4665 = vmatmul.bf16.gmra.mxu0 %v4446
    %v4666 = vpop.f32.mrf.mxu0
    %v4667 = vadd.f32 0.0, %v4666
    %v4668 = vpop.f32.mrf.mxu0
    %4669 = vdwg.mxu0
    %4670 = vmatpush.bf16.msra.mxu0 %v562
    %4671 = vmatpush.bf16.msra.mxu0 %v561
    %4672 = vmatpush.bf16.msra.mxu0 %v560
    %4673 = vmatpush.bf16.msra.mxu0 %v559
    %4674 = vmatpush.bf16.msra.mxu0 %v558
    %4675 = vmatpush.bf16.msra.mxu0 %v557
    %4676 = vmatpush.bf16.msra.mxu0 %v556
    %4677 = vmatpush.bf16.msra.mxu0 %v555
    %4678 = vmatmul.bf16.gmra.mxu0 %v4447
    %v4679 = vpop.f32.mrf.mxu0
    %v4680 = vadd.f32 %v4667, %v4679
    %v4681 = vpop.f32.mrf.mxu0
    %4682 = vdwg.mxu0
    %v4683 = vadd.f32 %v4654, %v4680
    %s4684 = scalar_lea.vmem %s0, 208
    %v4685 = vld [vmem:[%s4684] sm:$0xff]
    %v4687 = vunpack.c.l.b16 %v4685
    %v4688 = vunpack.c.h.b16 %v4685
    %v4689 = vpack.c.b16 %v4687, %v4687
    %v4690 = vpack.c.b16 %v4688, %v4688
    %4693 = vmatpush.bf16.msra.mxu0 %v719
    %4694 = vmatpush.bf16.msra.mxu0 %v718
    %4695 = vmatpush.bf16.msra.mxu0 %v717
    %4696 = vmatpush.bf16.msra.mxu0 %v716
    %4697 = vmatpush.bf16.msra.mxu0 %v715
    %4698 = vmatpush.bf16.msra.mxu0 %v714
    %4699 = vmatpush.bf16.msra.mxu0 %v713
    %4700 = vmatpush.bf16.msra.mxu0 %v712
    %4701 = vmatmul.bf16.gmra.mxu0 %v4689
    %v4702 = vpop.f32.mrf.mxu0
    %v4703 = vadd.f32 0.0, %v4702
    %v4704 = vpop.f32.mrf.mxu0
    %4705 = vdwg.mxu0
    %4706 = vmatpush.bf16.msra.mxu0 %v727
    %4707 = vmatpush.bf16.msra.mxu0 %v726
    %4708 = vmatpush.bf16.msra.mxu0 %v725
    %4709 = vmatpush.bf16.msra.mxu0 %v724
    %4710 = vmatpush.bf16.msra.mxu0 %v723
    %4711 = vmatpush.bf16.msra.mxu0 %v722
    %4712 = vmatpush.bf16.msra.mxu0 %v721
    %4713 = vmatpush.bf16.msra.mxu0 %v720
    %4714 = vmatmul.bf16.gmra.mxu0 %v4690
    %v4715 = vpop.f32.mrf.mxu0
    %v4716 = vadd.f32 %v4703, %v4715
    %v4717 = vpop.f32.mrf.mxu0
    %4718 = vdwg.mxu0
    %v4719 = vadd.f32 %v4683, %v4716
    %v4720 = vadd.f32 %v4719, %v772
    %v4721 = vmax.f32 %v4720, 0.0
    %v4722 = vpack.c.bf16 %v4721, %v4721
    %s4723 = scalar_lea.vmem [#allocation6], 2048
    %v4724 = vld [vmem:[%s4723] sm:$0xff]
    %v4725 = vld [vmem:[%s4723 + $0x8] sm:$0xff]
    %v4726 = vld [vmem:[%s4723 + $0x10] sm:$0xff]
    %v4727 = vld [vmem:[%s4723 + $0x18] sm:$0xff]
    %v4728 = vld [vmem:[%s4723 + $0x20] sm:$0xff]
    %v4729 = vld [vmem:[%s4723 + $0x28] sm:$0xff]
    %v4730 = vld [vmem:[%s4723 + $0x30] sm:$0xff]
    %v4731 = vld [vmem:[%s4723 + $0x38] sm:$0xff]
    %v4732 = vld [vmem:[%s4723 + $0x40] sm:$0xff]
    %v4733 = vld [vmem:[%s4723 + $0x48] sm:$0xff]
    %v4734 = vld [vmem:[%s4723 + $0x50] sm:$0xff]
    %v4735 = vld [vmem:[%s4723 + $0x58] sm:$0xff]
    %v4736 = vld [vmem:[%s4723 + $0x60] sm:$0xff]
    %v4737 = vld [vmem:[%s4723 + $0x68] sm:$0xff]
    %v4738 = vld [vmem:[%s4723 + $0x70] sm:$0xff]
    %v4739 = vld [vmem:[%s4723 + $0x78] sm:$0xff]
    %v4756 = vunpack.c.l.b16 %v4724
    %v4757 = vunpack.c.h.b16 %v4724
    %v4758 = vunpack.c.l.b16 %v4725
    %v4759 = vunpack.c.h.b16 %v4725
    %v4760 = vunpack.c.l.b16 %v4726
    %v4761 = vunpack.c.h.b16 %v4726
    %v4762 = vunpack.c.l.b16 %v4727
    %v4763 = vunpack.c.h.b16 %v4727
    %v4764 = vunpack.c.l.b16 %v4728
    %v4765 = vunpack.c.h.b16 %v4728
    %v4766 = vunpack.c.l.b16 %v4729
    %v4767 = vunpack.c.h.b16 %v4729
    %v4768 = vunpack.c.l.b16 %v4730
    %v4769 = vunpack.c.h.b16 %v4730
    %v4770 = vunpack.c.l.b16 %v4731
    %v4771 = vunpack.c.h.b16 %v4731
    %v4772 = vunpack.c.l.b16 %v4732
    %v4773 = vunpack.c.h.b16 %v4732
    %v4774 = vunpack.c.l.b16 %v4733
    %v4775 = vunpack.c.h.b16 %v4733
    %v4776 = vunpack.c.l.b16 %v4734
    %v4777 = vunpack.c.h.b16 %v4734
    %v4778 = vunpack.c.l.b16 %v4735
    %v4779 = vunpack.c.h.b16 %v4735
    %v4780 = vunpack.c.l.b16 %v4736
    %v4781 = vunpack.c.h.b16 %v4736
    %v4782 = vunpack.c.l.b16 %v4737
    %v4783 = vunpack.c.h.b16 %v4737
    %v4784 = vunpack.c.l.b16 %v4738
    %v4785 = vunpack.c.h.b16 %v4738
    %v4786 = vunpack.c.l.b16 %v4739
    %v4787 = vunpack.c.h.b16 %v4739
    %v4788 = vpack.c.b16 %v4758, %v4756
    %v4789 = vpack.c.b16 %v4759, %v4757
    %v4790 = vpack.c.b16 %v4762, %v4760
    %v4791 = vpack.c.b16 %v4763, %v4761
    %v4792 = vpack.c.b16 %v4766, %v4764
    %v4793 = vpack.c.b16 %v4767, %v4765
    %v4794 = vpack.c.b16 %v4770, %v4768
    %v4795 = vpack.c.b16 %v4771, %v4769
    %v4796 = vpack.c.b16 %v4774, %v4772
    %v4797 = vpack.c.b16 %v4775, %v4773
    %v4798 = vpack.c.b16 %v4778, %v4776
    %v4799 = vpack.c.b16 %v4779, %v4777
    %v4800 = vpack.c.b16 %v4782, %v4780
    %v4801 = vpack.c.b16 %v4783, %v4781
    %v4802 = vpack.c.b16 %v4786, %v4784
    %v4803 = vpack.c.b16 %v4787, %v4785
    %4820 = vmatpush.bf16.msra.mxu0 %v4802
    %4821 = vmatpush.bf16.msra.mxu0 %v4800
    %4822 = vmatpush.bf16.msra.mxu0 %v4798
    %4823 = vmatpush.bf16.msra.mxu0 %v4796
    %4824 = vmatpush.bf16.msra.mxu0 %v4794
    %4825 = vmatpush.bf16.msra.mxu0 %v4792
    %4826 = vmatpush.bf16.msra.mxu0 %v4790
    %4827 = vmatpush.bf16.msra.mxu0 %v4788
    %4828 = vmatmul.bf16.gmra.mxu0 %v4722
    %v4829 = vpop.f32.mrf.mxu0
    %v4830 = vadd.f32 0.0, %v4829
    %v4831 = vpop.f32.mrf.mxu0
    %4832 = vdwg.mxu0
    %4833 = vmatpush.bf16.msra.mxu0 %v4803
    %4834 = vmatpush.bf16.msra.mxu0 %v4801
    %4835 = vmatpush.bf16.msra.mxu0 %v4799
    %4836 = vmatpush.bf16.msra.mxu0 %v4797
    %4837 = vmatpush.bf16.msra.mxu0 %v4795
    %4838 = vmatpush.bf16.msra.mxu0 %v4793
    %4839 = vmatpush.bf16.msra.mxu0 %v4791
    %4840 = vmatpush.bf16.msra.mxu0 %v4789
    %4841 = vmatmul.bf16.gmra.mxu0 %v4722
    %v4842 = vpop.f32.mrf.mxu0
    %v4843 = vadd.f32 0.0, %v4842
    %v4844 = vpop.f32.mrf.mxu0
    %4845 = vdwg.mxu0
    %v4846 = vadd.f32 %v4603, %v4830
    %v4847 = vadd.f32 %v4604, %v4843
    %4848 = vmatpush.bf16.msra.mxu0 %v261
    %4849 = vmatpush.bf16.msra.mxu0 %v260
    %4850 = vmatpush.bf16.msra.mxu0 %v259
    %4851 = vmatpush.bf16.msra.mxu0 %v258
    %4852 = vmatpush.bf16.msra.mxu0 %v257
    %4853 = vmatpush.bf16.msra.mxu0 %v256
    %4854 = vmatpush.bf16.msra.mxu0 %v255
    %4855 = vmatpush.bf16.msra.mxu0 %v254
    %4856 = vmatmul.bf16.gmra.mxu0 %v3708
    %v4857 = vpop.f32.mrf.mxu0
    %v4858 = vadd.f32 0.0, %v4857
    %v4859 = vpop.f32.mrf.mxu0
    %4860 = vdwg.mxu0
    %4861 = vmatpush.bf16.msra.mxu0 %v269
    %4862 = vmatpush.bf16.msra.mxu0 %v268
    %4863 = vmatpush.bf16.msra.mxu0 %v267
    %4864 = vmatpush.bf16.msra.mxu0 %v266
    %4865 = vmatpush.bf16.msra.mxu0 %v265
    %4866 = vmatpush.bf16.msra.mxu0 %v264
    %4867 = vmatpush.bf16.msra.mxu0 %v263
    %4868 = vmatpush.bf16.msra.mxu0 %v262
    %4869 = vmatmul.bf16.gmra.mxu0 %v3709
    %v4870 = vpop.f32.mrf.mxu0
    %v4871 = vadd.f32 %v4858, %v4870
    %v4872 = vpop.f32.mrf.mxu0
    %4873 = vdwg.mxu0
    %4874 = vmatpush.bf16.msra.mxu0 %v390
    %4875 = vmatpush.bf16.msra.mxu0 %v389
    %4876 = vmatpush.bf16.msra.mxu0 %v388
    %4877 = vmatpush.bf16.msra.mxu0 %v387
    %4878 = vmatpush.bf16.msra.mxu0 %v386
    %4879 = vmatpush.bf16.msra.mxu0 %v385
    %4880 = vmatpush.bf16.msra.mxu0 %v384
    %4881 = vmatpush.bf16.msra.mxu0 %v383
    %4882 = vmatmul.bf16.gmra.mxu0 %v3465
    %v4883 = vpop.f32.mrf.mxu0
    %v4884 = vadd.f32 %v4871, %v4883
    %v4885 = vpop.f32.mrf.mxu0
    %4886 = vdwg.mxu0
    %4887 = vmatpush.bf16.msra.mxu0 %v398
    %4888 = vmatpush.bf16.msra.mxu0 %v397
    %4889 = vmatpush.bf16.msra.mxu0 %v396
    %4890 = vmatpush.bf16.msra.mxu0 %v395
    %4891 = vmatpush.bf16.msra.mxu0 %v394
    %4892 = vmatpush.bf16.msra.mxu0 %v393
    %4893 = vmatpush.bf16.msra.mxu0 %v392
    %4894 = vmatpush.bf16.msra.mxu0 %v391
    %4895 = vmatmul.bf16.gmra.mxu0 %v3466
    %v4896 = vpop.f32.mrf.mxu0
    %v4897 = vadd.f32 %v4884, %v4896
    %v4898 = vpop.f32.mrf.mxu0
    %4899 = vdwg.mxu0
    %4900 = vmatpush.bf16.msra.mxu0 %v554
    %4901 = vmatpush.bf16.msra.mxu0 %v553
    %4902 = vmatpush.bf16.msra.mxu0 %v552
    %4903 = vmatpush.bf16.msra.mxu0 %v551
    %4904 = vmatpush.bf16.msra.mxu0 %v550
    %4905 = vmatpush.bf16.msra.mxu0 %v549
    %4906 = vmatpush.bf16.msra.mxu0 %v548
    %4907 = vmatpush.bf16.msra.mxu0 %v547
    %4908 = vmatmul.bf16.gmra.mxu0 %v4689
    %v4909 = vpop.f32.mrf.mxu0
    %v4910 = vadd.f32 0.0, %v4909
    %v4911 = vpop.f32.mrf.mxu0
    %4912 = vdwg.mxu0
    %4913 = vmatpush.bf16.msra.mxu0 %v562
    %4914 = vmatpush.bf16.msra.mxu0 %v561
    %4915 = vmatpush.bf16.msra.mxu0 %v560
    %4916 = vmatpush.bf16.msra.mxu0 %v559
    %4917 = vmatpush.bf16.msra.mxu0 %v558
    %4918 = vmatpush.bf16.msra.mxu0 %v557
    %4919 = vmatpush.bf16.msra.mxu0 %v556
    %4920 = vmatpush.bf16.msra.mxu0 %v555
    %4921 = vmatmul.bf16.gmra.mxu0 %v4690
    %v4922 = vpop.f32.mrf.mxu0
    %v4923 = vadd.f32 %v4910, %v4922
    %v4924 = vpop.f32.mrf.mxu0
    %4925 = vdwg.mxu0
    %v4926 = vadd.f32 %v4897, %v4923
    %s4927 = scalar_lea.vmem %s0, 216
    %v4928 = vld [vmem:[%s4927] sm:$0xff]
    %v4930 = vunpack.c.l.b16 %v4928
    %v4931 = vunpack.c.h.b16 %v4928
    %v4932 = vpack.c.b16 %v4930, %v4930
    %v4933 = vpack.c.b16 %v4931, %v4931
    %4936 = vmatpush.bf16.msra.mxu0 %v719
    %4937 = vmatpush.bf16.msra.mxu0 %v718
    %4938 = vmatpush.bf16.msra.mxu0 %v717
    %4939 = vmatpush.bf16.msra.mxu0 %v716
    %4940 = vmatpush.bf16.msra.mxu0 %v715
    %4941 = vmatpush.bf16.msra.mxu0 %v714
    %4942 = vmatpush.bf16.msra.mxu0 %v713
    %4943 = vmatpush.bf16.msra.mxu0 %v712
    %4944 = vmatmul.bf16.gmra.mxu0 %v4932
    %v4945 = vpop.f32.mrf.mxu0
    %v4946 = vadd.f32 0.0, %v4945
    %v4947 = vpop.f32.mrf.mxu0
    %4948 = vdwg.mxu0
    %4949 = vmatpush.bf16.msra.mxu0 %v727
    %4950 = vmatpush.bf16.msra.mxu0 %v726
    %4951 = vmatpush.bf16.msra.mxu0 %v725
    %4952 = vmatpush.bf16.msra.mxu0 %v724
    %4953 = vmatpush.bf16.msra.mxu0 %v723
    %4954 = vmatpush.bf16.msra.mxu0 %v722
    %4955 = vmatpush.bf16.msra.mxu0 %v721
    %4956 = vmatpush.bf16.msra.mxu0 %v720
    %4957 = vmatmul.bf16.gmra.mxu0 %v4933
    %v4958 = vpop.f32.mrf.mxu0
    %v4959 = vadd.f32 %v4946, %v4958
    %v4960 = vpop.f32.mrf.mxu0
    %4961 = vdwg.mxu0
    %v4962 = vadd.f32 %v4926, %v4959
    %v4963 = vadd.f32 %v4962, %v772
    %v4964 = vmax.f32 %v4963, 0.0
    %v4965 = vpack.c.bf16 %v4964, %v4964
    %s4966 = scalar_lea.vmem [#allocation6], 2176
    %v4967 = vld [vmem:[%s4966] sm:$0xff]
    %v4968 = vld [vmem:[%s4966 + $0x8] sm:$0xff]
    %v4969 = vld [vmem:[%s4966 + $0x10] sm:$0xff]
    %v4970 = vld [vmem:[%s4966 + $0x18] sm:$0xff]
    %v4971 = vld [vmem:[%s4966 + $0x20] sm:$0xff]
    %v4972 = vld [vmem:[%s4966 + $0x28] sm:$0xff]
    %v4973 = vld [vmem:[%s4966 + $0x30] sm:$0xff]
    %v4974 = vld [vmem:[%s4966 + $0x38] sm:$0xff]
    %v4975 = vld [vmem:[%s4966 + $0x40] sm:$0xff]
    %v4976 = vld [vmem:[%s4966 + $0x48] sm:$0xff]
    %v4977 = vld [vmem:[%s4966 + $0x50] sm:$0xff]
    %v4978 = vld [vmem:[%s4966 + $0x58] sm:$0xff]
    %v4979 = vld [vmem:[%s4966 + $0x60] sm:$0xff]
    %v4980 = vld [vmem:[%s4966 + $0x68] sm:$0xff]
    %v4981 = vld [vmem:[%s4966 + $0x70] sm:$0xff]
    %v4982 = vld [vmem:[%s4966 + $0x78] sm:$0xff]
    %v4999 = vunpack.c.l.b16 %v4967
    %v5000 = vunpack.c.h.b16 %v4967
    %v5001 = vunpack.c.l.b16 %v4968
    %v5002 = vunpack.c.h.b16 %v4968
    %v5003 = vunpack.c.l.b16 %v4969
    %v5004 = vunpack.c.h.b16 %v4969
    %v5005 = vunpack.c.l.b16 %v4970
    %v5006 = vunpack.c.h.b16 %v4970
    %v5007 = vunpack.c.l.b16 %v4971
    %v5008 = vunpack.c.h.b16 %v4971
    %v5009 = vunpack.c.l.b16 %v4972
    %v5010 = vunpack.c.h.b16 %v4972
    %v5011 = vunpack.c.l.b16 %v4973
    %v5012 = vunpack.c.h.b16 %v4973
    %v5013 = vunpack.c.l.b16 %v4974
    %v5014 = vunpack.c.h.b16 %v4974
    %v5015 = vunpack.c.l.b16 %v4975
    %v5016 = vunpack.c.h.b16 %v4975
    %v5017 = vunpack.c.l.b16 %v4976
    %v5018 = vunpack.c.h.b16 %v4976
    %v5019 = vunpack.c.l.b16 %v4977
    %v5020 = vunpack.c.h.b16 %v4977
    %v5021 = vunpack.c.l.b16 %v4978
    %v5022 = vunpack.c.h.b16 %v4978
    %v5023 = vunpack.c.l.b16 %v4979
    %v5024 = vunpack.c.h.b16 %v4979
    %v5025 = vunpack.c.l.b16 %v4980
    %v5026 = vunpack.c.h.b16 %v4980
    %v5027 = vunpack.c.l.b16 %v4981
    %v5028 = vunpack.c.h.b16 %v4981
    %v5029 = vunpack.c.l.b16 %v4982
    %v5030 = vunpack.c.h.b16 %v4982
    %v5031 = vpack.c.b16 %v5001, %v4999
    %v5032 = vpack.c.b16 %v5002, %v5000
    %v5033 = vpack.c.b16 %v5005, %v5003
    %v5034 = vpack.c.b16 %v5006, %v5004
    %v5035 = vpack.c.b16 %v5009, %v5007
    %v5036 = vpack.c.b16 %v5010, %v5008
    %v5037 = vpack.c.b16 %v5013, %v5011
    %v5038 = vpack.c.b16 %v5014, %v5012
    %v5039 = vpack.c.b16 %v5017, %v5015
    %v5040 = vpack.c.b16 %v5018, %v5016
    %v5041 = vpack.c.b16 %v5021, %v5019
    %v5042 = vpack.c.b16 %v5022, %v5020
    %v5043 = vpack.c.b16 %v5025, %v5023
    %v5044 = vpack.c.b16 %v5026, %v5024
    %v5045 = vpack.c.b16 %v5029, %v5027
    %v5046 = vpack.c.b16 %v5030, %v5028
    %5063 = vmatpush.bf16.msra.mxu0 %v5045
    %5064 = vmatpush.bf16.msra.mxu0 %v5043
    %5065 = vmatpush.bf16.msra.mxu0 %v5041
    %5066 = vmatpush.bf16.msra.mxu0 %v5039
    %5067 = vmatpush.bf16.msra.mxu0 %v5037
    %5068 = vmatpush.bf16.msra.mxu0 %v5035
    %5069 = vmatpush.bf16.msra.mxu0 %v5033
    %5070 = vmatpush.bf16.msra.mxu0 %v5031
    %5071 = vmatmul.bf16.gmra.mxu0 %v4965
    %v5072 = vpop.f32.mrf.mxu0
    %v5073 = vadd.f32 0.0, %v5072
    %v5074 = vpop.f32.mrf.mxu0
    %5075 = vdwg.mxu0
    %5076 = vmatpush.bf16.msra.mxu0 %v5046
    %5077 = vmatpush.bf16.msra.mxu0 %v5044
    %5078 = vmatpush.bf16.msra.mxu0 %v5042
    %5079 = vmatpush.bf16.msra.mxu0 %v5040
    %5080 = vmatpush.bf16.msra.mxu0 %v5038
    %5081 = vmatpush.bf16.msra.mxu0 %v5036
    %5082 = vmatpush.bf16.msra.mxu0 %v5034
    %5083 = vmatpush.bf16.msra.mxu0 %v5032
    %5084 = vmatmul.bf16.gmra.mxu0 %v4965
    %v5085 = vpop.f32.mrf.mxu0
    %v5086 = vadd.f32 0.0, %v5085
    %v5087 = vpop.f32.mrf.mxu0
    %5088 = vdwg.mxu0
    %v5089 = vadd.f32 %v4846, %v5073
    %v5090 = vadd.f32 %v4847, %v5086
    %5091 = vmatpush.bf16.msra.mxu0 %v261
    %5092 = vmatpush.bf16.msra.mxu0 %v260
    %5093 = vmatpush.bf16.msra.mxu0 %v259
    %5094 = vmatpush.bf16.msra.mxu0 %v258
    %5095 = vmatpush.bf16.msra.mxu0 %v257
    %5096 = vmatpush.bf16.msra.mxu0 %v256
    %5097 = vmatpush.bf16.msra.mxu0 %v255
    %5098 = vmatpush.bf16.msra.mxu0 %v254
    %5099 = vmatmul.bf16.gmra.mxu0 %v3951
    %v5100 = vpop.f32.mrf.mxu0
    %v5101 = vadd.f32 0.0, %v5100
    %v5102 = vpop.f32.mrf.mxu0
    %5103 = vdwg.mxu0
    %5104 = vmatpush.bf16.msra.mxu0 %v269
    %5105 = vmatpush.bf16.msra.mxu0 %v268
    %5106 = vmatpush.bf16.msra.mxu0 %v267
    %5107 = vmatpush.bf16.msra.mxu0 %v266
    %5108 = vmatpush.bf16.msra.mxu0 %v265
    %5109 = vmatpush.bf16.msra.mxu0 %v264
    %5110 = vmatpush.bf16.msra.mxu0 %v263
    %5111 = vmatpush.bf16.msra.mxu0 %v262
    %5112 = vmatmul.bf16.gmra.mxu0 %v3952
    %v5113 = vpop.f32.mrf.mxu0
    %v5114 = vadd.f32 %v5101, %v5113
    %v5115 = vpop.f32.mrf.mxu0
    %5116 = vdwg.mxu0
    %5117 = vmatpush.bf16.msra.mxu0 %v390
    %5118 = vmatpush.bf16.msra.mxu0 %v389
    %5119 = vmatpush.bf16.msra.mxu0 %v388
    %5120 = vmatpush.bf16.msra.mxu0 %v387
    %5121 = vmatpush.bf16.msra.mxu0 %v386
    %5122 = vmatpush.bf16.msra.mxu0 %v385
    %5123 = vmatpush.bf16.msra.mxu0 %v384
    %5124 = vmatpush.bf16.msra.mxu0 %v383
    %5125 = vmatmul.bf16.gmra.mxu0 %v3708
    %v5126 = vpop.f32.mrf.mxu0
    %v5127 = vadd.f32 %v5114, %v5126
    %v5128 = vpop.f32.mrf.mxu0
    %5129 = vdwg.mxu0
    %5130 = vmatpush.bf16.msra.mxu0 %v398
    %5131 = vmatpush.bf16.msra.mxu0 %v397
    %5132 = vmatpush.bf16.msra.mxu0 %v396
    %5133 = vmatpush.bf16.msra.mxu0 %v395
    %5134 = vmatpush.bf16.msra.mxu0 %v394
    %5135 = vmatpush.bf16.msra.mxu0 %v393
    %5136 = vmatpush.bf16.msra.mxu0 %v392
    %5137 = vmatpush.bf16.msra.mxu0 %v391
    %5138 = vmatmul.bf16.gmra.mxu0 %v3709
    %v5139 = vpop.f32.mrf.mxu0
    %v5140 = vadd.f32 %v5127, %v5139
    %v5141 = vpop.f32.mrf.mxu0
    %5142 = vdwg.mxu0
    %5143 = vmatpush.bf16.msra.mxu0 %v554
    %5144 = vmatpush.bf16.msra.mxu0 %v553
    %5145 = vmatpush.bf16.msra.mxu0 %v552
    %5146 = vmatpush.bf16.msra.mxu0 %v551
    %5147 = vmatpush.bf16.msra.mxu0 %v550
    %5148 = vmatpush.bf16.msra.mxu0 %v549
    %5149 = vmatpush.bf16.msra.mxu0 %v548
    %5150 = vmatpush.bf16.msra.mxu0 %v547
    %5151 = vmatmul.bf16.gmra.mxu0 %v4932
    %v5152 = vpop.f32.mrf.mxu0
    %v5153 = vadd.f32 0.0, %v5152
    %v5154 = vpop.f32.mrf.mxu0
    %5155 = vdwg.mxu0
    %5156 = vmatpush.bf16.msra.mxu0 %v562
    %5157 = vmatpush.bf16.msra.mxu0 %v561
    %5158 = vmatpush.bf16.msra.mxu0 %v560
    %5159 = vmatpush.bf16.msra.mxu0 %v559
    %5160 = vmatpush.bf16.msra.mxu0 %v558
    %5161 = vmatpush.bf16.msra.mxu0 %v557
    %5162 = vmatpush.bf16.msra.mxu0 %v556
    %5163 = vmatpush.bf16.msra.mxu0 %v555
    %5164 = vmatmul.bf16.gmra.mxu0 %v4933
    %v5165 = vpop.f32.mrf.mxu0
    %v5166 = vadd.f32 %v5153, %v5165
    %v5167 = vpop.f32.mrf.mxu0
    %5168 = vdwg.mxu0
    %v5169 = vadd.f32 %v5140, %v5166
    %s5170 = scalar_lea.vmem %s0, 224
    %v5171 = vld [vmem:[%s5170] sm:$0xff]
    %v5173 = vunpack.c.l.b16 %v5171
    %v5174 = vunpack.c.h.b16 %v5171
    %v5175 = vpack.c.b16 %v5173, %v5173
    %v5176 = vpack.c.b16 %v5174, %v5174
    %5179 = vmatpush.bf16.msra.mxu0 %v719
    %5180 = vmatpush.bf16.msra.mxu0 %v718
    %5181 = vmatpush.bf16.msra.mxu0 %v717
    %5182 = vmatpush.bf16.msra.mxu0 %v716
    %5183 = vmatpush.bf16.msra.mxu0 %v715
    %5184 = vmatpush.bf16.msra.mxu0 %v714
    %5185 = vmatpush.bf16.msra.mxu0 %v713
    %5186 = vmatpush.bf16.msra.mxu0 %v712
    %5187 = vmatmul.bf16.gmra.mxu0 %v5175
    %v5188 = vpop.f32.mrf.mxu0
    %v5189 = vadd.f32 0.0, %v5188
    %v5190 = vpop.f32.mrf.mxu0
    %5191 = vdwg.mxu0
    %5192 = vmatpush.bf16.msra.mxu0 %v727
    %5193 = vmatpush.bf16.msra.mxu0 %v726
    %5194 = vmatpush.bf16.msra.mxu0 %v725
    %5195 = vmatpush.bf16.msra.mxu0 %v724
    %5196 = vmatpush.bf16.msra.mxu0 %v723
    %5197 = vmatpush.bf16.msra.mxu0 %v722
    %5198 = vmatpush.bf16.msra.mxu0 %v721
    %5199 = vmatpush.bf16.msra.mxu0 %v720
    %5200 = vmatmul.bf16.gmra.mxu0 %v5176
    %v5201 = vpop.f32.mrf.mxu0
    %v5202 = vadd.f32 %v5189, %v5201
    %v5203 = vpop.f32.mrf.mxu0
    %5204 = vdwg.mxu0
    %v5205 = vadd.f32 %v5169, %v5202
    %v5206 = vadd.f32 %v5205, %v772
    %v5207 = vmax.f32 %v5206, 0.0
    %v5208 = vpack.c.bf16 %v5207, %v5207
    %s5209 = scalar_lea.vmem [#allocation6], 2304
    %v5210 = vld [vmem:[%s5209] sm:$0xff]
    %v5211 = vld [vmem:[%s5209 + $0x8] sm:$0xff]
    %v5212 = vld [vmem:[%s5209 + $0x10] sm:$0xff]
    %v5213 = vld [vmem:[%s5209 + $0x18] sm:$0xff]
    %v5214 = vld [vmem:[%s5209 + $0x20] sm:$0xff]
    %v5215 = vld [vmem:[%s5209 + $0x28] sm:$0xff]
    %v5216 = vld [vmem:[%s5209 + $0x30] sm:$0xff]
    %v5217 = vld [vmem:[%s5209 + $0x38] sm:$0xff]
    %v5218 = vld [vmem:[%s5209 + $0x40] sm:$0xff]
    %v5219 = vld [vmem:[%s5209 + $0x48] sm:$0xff]
    %v5220 = vld [vmem:[%s5209 + $0x50] sm:$0xff]
    %v5221 = vld [vmem:[%s5209 + $0x58] sm:$0xff]
    %v5222 = vld [vmem:[%s5209 + $0x60] sm:$0xff]
    %v5223 = vld [vmem:[%s5209 + $0x68] sm:$0xff]
    %v5224 = vld [vmem:[%s5209 + $0x70] sm:$0xff]
    %v5225 = vld [vmem:[%s5209 + $0x78] sm:$0xff]
    %v5242 = vunpack.c.l.b16 %v5210
    %v5243 = vunpack.c.h.b16 %v5210
    %v5244 = vunpack.c.l.b16 %v5211
    %v5245 = vunpack.c.h.b16 %v5211
    %v5246 = vunpack.c.l.b16 %v5212
    %v5247 = vunpack.c.h.b16 %v5212
    %v5248 = vunpack.c.l.b16 %v5213
    %v5249 = vunpack.c.h.b16 %v5213
    %v5250 = vunpack.c.l.b16 %v5214
    %v5251 = vunpack.c.h.b16 %v5214
    %v5252 = vunpack.c.l.b16 %v5215
    %v5253 = vunpack.c.h.b16 %v5215
    %v5254 = vunpack.c.l.b16 %v5216
    %v5255 = vunpack.c.h.b16 %v5216
    %v5256 = vunpack.c.l.b16 %v5217
    %v5257 = vunpack.c.h.b16 %v5217
    %v5258 = vunpack.c.l.b16 %v5218
    %v5259 = vunpack.c.h.b16 %v5218
    %v5260 = vunpack.c.l.b16 %v5219
    %v5261 = vunpack.c.h.b16 %v5219
    %v5262 = vunpack.c.l.b16 %v5220
    %v5263 = vunpack.c.h.b16 %v5220
    %v5264 = vunpack.c.l.b16 %v5221
    %v5265 = vunpack.c.h.b16 %v5221
    %v5266 = vunpack.c.l.b16 %v5222
    %v5267 = vunpack.c.h.b16 %v5222
    %v5268 = vunpack.c.l.b16 %v5223
    %v5269 = vunpack.c.h.b16 %v5223
    %v5270 = vunpack.c.l.b16 %v5224
    %v5271 = vunpack.c.h.b16 %v5224
    %v5272 = vunpack.c.l.b16 %v5225
    %v5273 = vunpack.c.h.b16 %v5225
    %v5274 = vpack.c.b16 %v5244, %v5242
    %v5275 = vpack.c.b16 %v5245, %v5243
    %v5276 = vpack.c.b16 %v5248, %v5246
    %v5277 = vpack.c.b16 %v5249, %v5247
    %v5278 = vpack.c.b16 %v5252, %v5250
    %v5279 = vpack.c.b16 %v5253, %v5251
    %v5280 = vpack.c.b16 %v5256, %v5254
    %v5281 = vpack.c.b16 %v5257, %v5255
    %v5282 = vpack.c.b16 %v5260, %v5258
    %v5283 = vpack.c.b16 %v5261, %v5259
    %v5284 = vpack.c.b16 %v5264, %v5262
    %v5285 = vpack.c.b16 %v5265, %v5263
    %v5286 = vpack.c.b16 %v5268, %v5266
    %v5287 = vpack.c.b16 %v5269, %v5267
    %v5288 = vpack.c.b16 %v5272, %v5270
    %v5289 = vpack.c.b16 %v5273, %v5271
    %5306 = vmatpush.bf16.msra.mxu0 %v5288
    %5307 = vmatpush.bf16.msra.mxu0 %v5286
    %5308 = vmatpush.bf16.msra.mxu0 %v5284
    %5309 = vmatpush.bf16.msra.mxu0 %v5282
    %5310 = vmatpush.bf16.msra.mxu0 %v5280
    %5311 = vmatpush.bf16.msra.mxu0 %v5278
    %5312 = vmatpush.bf16.msra.mxu0 %v5276
    %5313 = vmatpush.bf16.msra.mxu0 %v5274
    %5314 = vmatmul.bf16.gmra.mxu0 %v5208
    %v5315 = vpop.f32.mrf.mxu0
    %v5316 = vadd.f32 0.0, %v5315
    %v5317 = vpop.f32.mrf.mxu0
    %5318 = vdwg.mxu0
    %5319 = vmatpush.bf16.msra.mxu0 %v5289
    %5320 = vmatpush.bf16.msra.mxu0 %v5287
    %5321 = vmatpush.bf16.msra.mxu0 %v5285
    %5322 = vmatpush.bf16.msra.mxu0 %v5283
    %5323 = vmatpush.bf16.msra.mxu0 %v5281
    %5324 = vmatpush.bf16.msra.mxu0 %v5279
    %5325 = vmatpush.bf16.msra.mxu0 %v5277
    %5326 = vmatpush.bf16.msra.mxu0 %v5275
    %5327 = vmatmul.bf16.gmra.mxu0 %v5208
    %v5328 = vpop.f32.mrf.mxu0
    %v5329 = vadd.f32 0.0, %v5328
    %v5330 = vpop.f32.mrf.mxu0
    %5331 = vdwg.mxu0
    %v5332 = vadd.f32 %v5089, %v5316
    %v5333 = vadd.f32 %v5090, %v5329
    %5334 = vmatpush.bf16.msra.mxu0 %v261
    %5335 = vmatpush.bf16.msra.mxu0 %v260
    %5336 = vmatpush.bf16.msra.mxu0 %v259
    %5337 = vmatpush.bf16.msra.mxu0 %v258
    %5338 = vmatpush.bf16.msra.mxu0 %v257
    %5339 = vmatpush.bf16.msra.mxu0 %v256
    %5340 = vmatpush.bf16.msra.mxu0 %v255
    %5341 = vmatpush.bf16.msra.mxu0 %v254
    %5342 = vmatmul.bf16.gmra.mxu0 %v4194
    %v5343 = vpop.f32.mrf.mxu0
    %v5344 = vadd.f32 0.0, %v5343
    %v5345 = vpop.f32.mrf.mxu0
    %5346 = vdwg.mxu0
    %5347 = vmatpush.bf16.msra.mxu0 %v269
    %5348 = vmatpush.bf16.msra.mxu0 %v268
    %5349 = vmatpush.bf16.msra.mxu0 %v267
    %5350 = vmatpush.bf16.msra.mxu0 %v266
    %5351 = vmatpush.bf16.msra.mxu0 %v265
    %5352 = vmatpush.bf16.msra.mxu0 %v264
    %5353 = vmatpush.bf16.msra.mxu0 %v263
    %5354 = vmatpush.bf16.msra.mxu0 %v262
    %5355 = vmatmul.bf16.gmra.mxu0 %v4195
    %v5356 = vpop.f32.mrf.mxu0
    %v5357 = vadd.f32 %v5344, %v5356
    %v5358 = vpop.f32.mrf.mxu0
    %5359 = vdwg.mxu0
    %5360 = vmatpush.bf16.msra.mxu0 %v390
    %5361 = vmatpush.bf16.msra.mxu0 %v389
    %5362 = vmatpush.bf16.msra.mxu0 %v388
    %5363 = vmatpush.bf16.msra.mxu0 %v387
    %5364 = vmatpush.bf16.msra.mxu0 %v386
    %5365 = vmatpush.bf16.msra.mxu0 %v385
    %5366 = vmatpush.bf16.msra.mxu0 %v384
    %5367 = vmatpush.bf16.msra.mxu0 %v383
    %5368 = vmatmul.bf16.gmra.mxu0 %v3951
    %v5369 = vpop.f32.mrf.mxu0
    %v5370 = vadd.f32 %v5357, %v5369
    %v5371 = vpop.f32.mrf.mxu0
    %5372 = vdwg.mxu0
    %5373 = vmatpush.bf16.msra.mxu0 %v398
    %5374 = vmatpush.bf16.msra.mxu0 %v397
    %5375 = vmatpush.bf16.msra.mxu0 %v396
    %5376 = vmatpush.bf16.msra.mxu0 %v395
    %5377 = vmatpush.bf16.msra.mxu0 %v394
    %5378 = vmatpush.bf16.msra.mxu0 %v393
    %5379 = vmatpush.bf16.msra.mxu0 %v392
    %5380 = vmatpush.bf16.msra.mxu0 %v391
    %5381 = vmatmul.bf16.gmra.mxu0 %v3952
    %v5382 = vpop.f32.mrf.mxu0
    %v5383 = vadd.f32 %v5370, %v5382
    %v5384 = vpop.f32.mrf.mxu0
    %5385 = vdwg.mxu0
    %5386 = vmatpush.bf16.msra.mxu0 %v554
    %5387 = vmatpush.bf16.msra.mxu0 %v553
    %5388 = vmatpush.bf16.msra.mxu0 %v552
    %5389 = vmatpush.bf16.msra.mxu0 %v551
    %5390 = vmatpush.bf16.msra.mxu0 %v550
    %5391 = vmatpush.bf16.msra.mxu0 %v549
    %5392 = vmatpush.bf16.msra.mxu0 %v548
    %5393 = vmatpush.bf16.msra.mxu0 %v547
    %5394 = vmatmul.bf16.gmra.mxu0 %v5175
    %v5395 = vpop.f32.mrf.mxu0
    %v5396 = vadd.f32 0.0, %v5395
    %v5397 = vpop.f32.mrf.mxu0
    %5398 = vdwg.mxu0
    %5399 = vmatpush.bf16.msra.mxu0 %v562
    %5400 = vmatpush.bf16.msra.mxu0 %v561
    %5401 = vmatpush.bf16.msra.mxu0 %v560
    %5402 = vmatpush.bf16.msra.mxu0 %v559
    %5403 = vmatpush.bf16.msra.mxu0 %v558
    %5404 = vmatpush.bf16.msra.mxu0 %v557
    %5405 = vmatpush.bf16.msra.mxu0 %v556
    %5406 = vmatpush.bf16.msra.mxu0 %v555
    %5407 = vmatmul.bf16.gmra.mxu0 %v5176
    %v5408 = vpop.f32.mrf.mxu0
    %v5409 = vadd.f32 %v5396, %v5408
    %v5410 = vpop.f32.mrf.mxu0
    %5411 = vdwg.mxu0
    %v5412 = vadd.f32 %v5383, %v5409
    %s5413 = scalar_lea.vmem %s0, 232
    %v5414 = vld [vmem:[%s5413] sm:$0xff]
    %v5416 = vunpack.c.l.b16 %v5414
    %v5417 = vunpack.c.h.b16 %v5414
    %v5418 = vpack.c.b16 %v5416, %v5416
    %v5419 = vpack.c.b16 %v5417, %v5417
    %5422 = vmatpush.bf16.msra.mxu0 %v719
    %5423 = vmatpush.bf16.msra.mxu0 %v718
    %5424 = vmatpush.bf16.msra.mxu0 %v717
    %5425 = vmatpush.bf16.msra.mxu0 %v716
    %5426 = vmatpush.bf16.msra.mxu0 %v715
    %5427 = vmatpush.bf16.msra.mxu0 %v714
    %5428 = vmatpush.bf16.msra.mxu0 %v713
    %5429 = vmatpush.bf16.msra.mxu0 %v712
    %5430 = vmatmul.bf16.gmra.mxu0 %v5418
    %v5431 = vpop.f32.mrf.mxu0
    %v5432 = vadd.f32 0.0, %v5431
    %v5433 = vpop.f32.mrf.mxu0
    %5434 = vdwg.mxu0
    %5435 = vmatpush.bf16.msra.mxu0 %v727
    %5436 = vmatpush.bf16.msra.mxu0 %v726
    %5437 = vmatpush.bf16.msra.mxu0 %v725
    %5438 = vmatpush.bf16.msra.mxu0 %v724
    %5439 = vmatpush.bf16.msra.mxu0 %v723
    %5440 = vmatpush.bf16.msra.mxu0 %v722
    %5441 = vmatpush.bf16.msra.mxu0 %v721
    %5442 = vmatpush.bf16.msra.mxu0 %v720
    %5443 = vmatmul.bf16.gmra.mxu0 %v5419
    %v5444 = vpop.f32.mrf.mxu0
    %v5445 = vadd.f32 %v5432, %v5444
    %v5446 = vpop.f32.mrf.mxu0
    %5447 = vdwg.mxu0
    %v5448 = vadd.f32 %v5412, %v5445
    %v5449 = vadd.f32 %v5448, %v772
    %v5450 = vmax.f32 %v5449, 0.0
    %v5451 = vpack.c.bf16 %v5450, %v5450
    %s5452 = scalar_lea.vmem [#allocation6], 2432
    %v5453 = vld [vmem:[%s5452] sm:$0xff]
    %v5454 = vld [vmem:[%s5452 + $0x8] sm:$0xff]
    %v5455 = vld [vmem:[%s5452 + $0x10] sm:$0xff]
    %v5456 = vld [vmem:[%s5452 + $0x18] sm:$0xff]
    %v5457 = vld [vmem:[%s5452 + $0x20] sm:$0xff]
    %v5458 = vld [vmem:[%s5452 + $0x28] sm:$0xff]
    %v5459 = vld [vmem:[%s5452 + $0x30] sm:$0xff]
    %v5460 = vld [vmem:[%s5452 + $0x38] sm:$0xff]
    %v5461 = vld [vmem:[%s5452 + $0x40] sm:$0xff]
    %v5462 = vld [vmem:[%s5452 + $0x48] sm:$0xff]
    %v5463 = vld [vmem:[%s5452 + $0x50] sm:$0xff]
    %v5464 = vld [vmem:[%s5452 + $0x58] sm:$0xff]
    %v5465 = vld [vmem:[%s5452 + $0x60] sm:$0xff]
    %v5466 = vld [vmem:[%s5452 + $0x68] sm:$0xff]
    %v5467 = vld [vmem:[%s5452 + $0x70] sm:$0xff]
    %v5468 = vld [vmem:[%s5452 + $0x78] sm:$0xff]
    %v5485 = vunpack.c.l.b16 %v5453
    %v5486 = vunpack.c.h.b16 %v5453
    %v5487 = vunpack.c.l.b16 %v5454
    %v5488 = vunpack.c.h.b16 %v5454
    %v5489 = vunpack.c.l.b16 %v5455
    %v5490 = vunpack.c.h.b16 %v5455
    %v5491 = vunpack.c.l.b16 %v5456
    %v5492 = vunpack.c.h.b16 %v5456
    %v5493 = vunpack.c.l.b16 %v5457
    %v5494 = vunpack.c.h.b16 %v5457
    %v5495 = vunpack.c.l.b16 %v5458
    %v5496 = vunpack.c.h.b16 %v5458
    %v5497 = vunpack.c.l.b16 %v5459
    %v5498 = vunpack.c.h.b16 %v5459
    %v5499 = vunpack.c.l.b16 %v5460
    %v5500 = vunpack.c.h.b16 %v5460
    %v5501 = vunpack.c.l.b16 %v5461
    %v5502 = vunpack.c.h.b16 %v5461
    %v5503 = vunpack.c.l.b16 %v5462
    %v5504 = vunpack.c.h.b16 %v5462
    %v5505 = vunpack.c.l.b16 %v5463
    %v5506 = vunpack.c.h.b16 %v5463
    %v5507 = vunpack.c.l.b16 %v5464
    %v5508 = vunpack.c.h.b16 %v5464
    %v5509 = vunpack.c.l.b16 %v5465
    %v5510 = vunpack.c.h.b16 %v5465
    %v5511 = vunpack.c.l.b16 %v5466
    %v5512 = vunpack.c.h.b16 %v5466
    %v5513 = vunpack.c.l.b16 %v5467
    %v5514 = vunpack.c.h.b16 %v5467
    %v5515 = vunpack.c.l.b16 %v5468
    %v5516 = vunpack.c.h.b16 %v5468
    %v5517 = vpack.c.b16 %v5487, %v5485
    %v5518 = vpack.c.b16 %v5488, %v5486
    %v5519 = vpack.c.b16 %v5491, %v5489
    %v5520 = vpack.c.b16 %v5492, %v5490
    %v5521 = vpack.c.b16 %v5495, %v5493
    %v5522 = vpack.c.b16 %v5496, %v5494
    %v5523 = vpack.c.b16 %v5499, %v5497
    %v5524 = vpack.c.b16 %v5500, %v5498
    %v5525 = vpack.c.b16 %v5503, %v5501
    %v5526 = vpack.c.b16 %v5504, %v5502
    %v5527 = vpack.c.b16 %v5507, %v5505
    %v5528 = vpack.c.b16 %v5508, %v5506
    %v5529 = vpack.c.b16 %v5511, %v5509
    %v5530 = vpack.c.b16 %v5512, %v5510
    %v5531 = vpack.c.b16 %v5515, %v5513
    %v5532 = vpack.c.b16 %v5516, %v5514
    %5549 = vmatpush.bf16.msra.mxu0 %v5531
    %5550 = vmatpush.bf16.msra.mxu0 %v5529
    %5551 = vmatpush.bf16.msra.mxu0 %v5527
    %5552 = vmatpush.bf16.msra.mxu0 %v5525
    %5553 = vmatpush.bf16.msra.mxu0 %v5523
    %5554 = vmatpush.bf16.msra.mxu0 %v5521
    %5555 = vmatpush.bf16.msra.mxu0 %v5519
    %5556 = vmatpush.bf16.msra.mxu0 %v5517
    %5557 = vmatmul.bf16.gmra.mxu0 %v5451
    %v5558 = vpop.f32.mrf.mxu0
    %v5559 = vadd.f32 0.0, %v5558
    %v5560 = vpop.f32.mrf.mxu0
    %5561 = vdwg.mxu0
    %5562 = vmatpush.bf16.msra.mxu0 %v5532
    %5563 = vmatpush.bf16.msra.mxu0 %v5530
    %5564 = vmatpush.bf16.msra.mxu0 %v5528
    %5565 = vmatpush.bf16.msra.mxu0 %v5526
    %5566 = vmatpush.bf16.msra.mxu0 %v5524
    %5567 = vmatpush.bf16.msra.mxu0 %v5522
    %5568 = vmatpush.bf16.msra.mxu0 %v5520
    %5569 = vmatpush.bf16.msra.mxu0 %v5518
    %5570 = vmatmul.bf16.gmra.mxu0 %v5451
    %v5571 = vpop.f32.mrf.mxu0
    %v5572 = vadd.f32 0.0, %v5571
    %v5573 = vpop.f32.mrf.mxu0
    %5574 = vdwg.mxu0
    %v5575 = vadd.f32 %v5332, %v5559
    %v5576 = vadd.f32 %v5333, %v5572
    %5577 = vmatpush.bf16.msra.mxu0 %v261
    %5578 = vmatpush.bf16.msra.mxu0 %v260
    %5579 = vmatpush.bf16.msra.mxu0 %v259
    %5580 = vmatpush.bf16.msra.mxu0 %v258
    %5581 = vmatpush.bf16.msra.mxu0 %v257
    %5582 = vmatpush.bf16.msra.mxu0 %v256
    %5583 = vmatpush.bf16.msra.mxu0 %v255
    %5584 = vmatpush.bf16.msra.mxu0 %v254
    %5585 = vmatmul.bf16.gmra.mxu0 %v4446
    %v5586 = vpop.f32.mrf.mxu0
    %v5587 = vadd.f32 0.0, %v5586
    %v5588 = vpop.f32.mrf.mxu0
    %5589 = vdwg.mxu0
    %5590 = vmatpush.bf16.msra.mxu0 %v269
    %5591 = vmatpush.bf16.msra.mxu0 %v268
    %5592 = vmatpush.bf16.msra.mxu0 %v267
    %5593 = vmatpush.bf16.msra.mxu0 %v266
    %5594 = vmatpush.bf16.msra.mxu0 %v265
    %5595 = vmatpush.bf16.msra.mxu0 %v264
    %5596 = vmatpush.bf16.msra.mxu0 %v263
    %5597 = vmatpush.bf16.msra.mxu0 %v262
    %5598 = vmatmul.bf16.gmra.mxu0 %v4447
    %v5599 = vpop.f32.mrf.mxu0
    %v5600 = vadd.f32 %v5587, %v5599
    %v5601 = vpop.f32.mrf.mxu0
    %5602 = vdwg.mxu0
    %5603 = vmatpush.bf16.msra.mxu0 %v390
    %5604 = vmatpush.bf16.msra.mxu0 %v389
    %5605 = vmatpush.bf16.msra.mxu0 %v388
    %5606 = vmatpush.bf16.msra.mxu0 %v387
    %5607 = vmatpush.bf16.msra.mxu0 %v386
    %5608 = vmatpush.bf16.msra.mxu0 %v385
    %5609 = vmatpush.bf16.msra.mxu0 %v384
    %5610 = vmatpush.bf16.msra.mxu0 %v383
    %5611 = vmatmul.bf16.gmra.mxu0 %v4410
    %v5612 = vpop.f32.mrf.mxu0
    %v5613 = vadd.f32 %v5600, %v5612
    %v5614 = vpop.f32.mrf.mxu0
    %5615 = vdwg.mxu0
    %5616 = vmatpush.bf16.msra.mxu0 %v398
    %5617 = vmatpush.bf16.msra.mxu0 %v397
    %5618 = vmatpush.bf16.msra.mxu0 %v396
    %5619 = vmatpush.bf16.msra.mxu0 %v395
    %5620 = vmatpush.bf16.msra.mxu0 %v394
    %5621 = vmatpush.bf16.msra.mxu0 %v393
    %5622 = vmatpush.bf16.msra.mxu0 %v392
    %5623 = vmatpush.bf16.msra.mxu0 %v391
    %5624 = vmatmul.bf16.gmra.mxu0 %v4411
    %v5625 = vpop.f32.mrf.mxu0
    %v5626 = vadd.f32 %v5613, %v5625
    %v5627 = vpop.f32.mrf.mxu0
    %5628 = vdwg.mxu0
    %s5629 = scalar_lea.vmem %s0, 240
    %v5630 = vld [vmem:[%s5629] sm:$0xff]
    %v5632 = vunpack.c.l.b16 %v5630
    %v5633 = vunpack.c.h.b16 %v5630
    %v5634 = vpack.c.b16 %v5632, %v5632
    %v5635 = vpack.c.b16 %v5633, %v5633
    %5638 = vmatpush.bf16.msra.mxu0 %v554
    %5639 = vmatpush.bf16.msra.mxu0 %v553
    %5640 = vmatpush.bf16.msra.mxu0 %v552
    %5641 = vmatpush.bf16.msra.mxu0 %v551
    %5642 = vmatpush.bf16.msra.mxu0 %v550
    %5643 = vmatpush.bf16.msra.mxu0 %v549
    %5644 = vmatpush.bf16.msra.mxu0 %v548
    %5645 = vmatpush.bf16.msra.mxu0 %v547
    %5646 = vmatmul.bf16.gmra.mxu0 %v5634
    %v5647 = vpop.f32.mrf.mxu0
    %v5648 = vadd.f32 0.0, %v5647
    %v5649 = vpop.f32.mrf.mxu0
    %5650 = vdwg.mxu0
    %5651 = vmatpush.bf16.msra.mxu0 %v562
    %5652 = vmatpush.bf16.msra.mxu0 %v561
    %5653 = vmatpush.bf16.msra.mxu0 %v560
    %5654 = vmatpush.bf16.msra.mxu0 %v559
    %5655 = vmatpush.bf16.msra.mxu0 %v558
    %5656 = vmatpush.bf16.msra.mxu0 %v557
    %5657 = vmatpush.bf16.msra.mxu0 %v556
    %5658 = vmatpush.bf16.msra.mxu0 %v555
    %5659 = vmatmul.bf16.gmra.mxu0 %v5635
    %v5660 = vpop.f32.mrf.mxu0
    %v5661 = vadd.f32 %v5648, %v5660
    %v5662 = vpop.f32.mrf.mxu0
    %5663 = vdwg.mxu0
    %v5664 = vadd.f32 %v5626, %v5661
    %s5665 = scalar_lea.vmem %s0, 248
    %v5666 = vld [vmem:[%s5665] sm:$0xff]
    %v5668 = vunpack.c.l.b16 %v5666
    %v5669 = vunpack.c.h.b16 %v5666
    %v5670 = vpack.c.b16 %v5668, %v5668
    %v5671 = vpack.c.b16 %v5669, %v5669
    %5674 = vmatpush.bf16.msra.mxu0 %v719
    %5675 = vmatpush.bf16.msra.mxu0 %v718
    %5676 = vmatpush.bf16.msra.mxu0 %v717
    %5677 = vmatpush.bf16.msra.mxu0 %v716
    %5678 = vmatpush.bf16.msra.mxu0 %v715
    %5679 = vmatpush.bf16.msra.mxu0 %v714
    %5680 = vmatpush.bf16.msra.mxu0 %v713
    %5681 = vmatpush.bf16.msra.mxu0 %v712
    %5682 = vmatmul.bf16.gmra.mxu0 %v5670
    %v5683 = vpop.f32.mrf.mxu0
    %v5684 = vadd.f32 0.0, %v5683
    %v5685 = vpop.f32.mrf.mxu0
    %5686 = vdwg.mxu0
    %5687 = vmatpush.bf16.msra.mxu0 %v727
    %5688 = vmatpush.bf16.msra.mxu0 %v726
    %5689 = vmatpush.bf16.msra.mxu0 %v725
    %5690 = vmatpush.bf16.msra.mxu0 %v724
    %5691 = vmatpush.bf16.msra.mxu0 %v723
    %5692 = vmatpush.bf16.msra.mxu0 %v722
    %5693 = vmatpush.bf16.msra.mxu0 %v721
    %5694 = vmatpush.bf16.msra.mxu0 %v720
    %5695 = vmatmul.bf16.gmra.mxu0 %v5671
    %v5696 = vpop.f32.mrf.mxu0
    %v5697 = vadd.f32 %v5684, %v5696
    %v5698 = vpop.f32.mrf.mxu0
    %5699 = vdwg.mxu0
    %v5700 = vadd.f32 %v5664, %v5697
    %v5701 = vadd.f32 %v5700, %v772
    %v5702 = vmax.f32 %v5701, 0.0
    %v5703 = vpack.c.bf16 %v5702, %v5702
    %s5704 = scalar_lea.vmem [#allocation6], 2560
    %v5705 = vld [vmem:[%s5704] sm:$0xff]
    %v5706 = vld [vmem:[%s5704 + $0x8] sm:$0xff]
    %v5707 = vld [vmem:[%s5704 + $0x10] sm:$0xff]
    %v5708 = vld [vmem:[%s5704 + $0x18] sm:$0xff]
    %v5709 = vld [vmem:[%s5704 + $0x20] sm:$0xff]
    %v5710 = vld [vmem:[%s5704 + $0x28] sm:$0xff]
    %v5711 = vld [vmem:[%s5704 + $0x30] sm:$0xff]
    %v5712 = vld [vmem:[%s5704 + $0x38] sm:$0xff]
    %v5713 = vld [vmem:[%s5704 + $0x40] sm:$0xff]
    %v5714 = vld [vmem:[%s5704 + $0x48] sm:$0xff]
    %v5715 = vld [vmem:[%s5704 + $0x50] sm:$0xff]
    %v5716 = vld [vmem:[%s5704 + $0x58] sm:$0xff]
    %v5717 = vld [vmem:[%s5704 + $0x60] sm:$0xff]
    %v5718 = vld [vmem:[%s5704 + $0x68] sm:$0xff]
    %v5719 = vld [vmem:[%s5704 + $0x70] sm:$0xff]
    %v5720 = vld [vmem:[%s5704 + $0x78] sm:$0xff]
    %v5737 = vunpack.c.l.b16 %v5705
    %v5738 = vunpack.c.h.b16 %v5705
    %v5739 = vunpack.c.l.b16 %v5706
    %v5740 = vunpack.c.h.b16 %v5706
    %v5741 = vunpack.c.l.b16 %v5707
    %v5742 = vunpack.c.h.b16 %v5707
    %v5743 = vunpack.c.l.b16 %v5708
    %v5744 = vunpack.c.h.b16 %v5708
    %v5745 = vunpack.c.l.b16 %v5709
    %v5746 = vunpack.c.h.b16 %v5709
    %v5747 = vunpack.c.l.b16 %v5710
    %v5748 = vunpack.c.h.b16 %v5710
    %v5749 = vunpack.c.l.b16 %v5711
    %v5750 = vunpack.c.h.b16 %v5711
    %v5751 = vunpack.c.l.b16 %v5712
    %v5752 = vunpack.c.h.b16 %v5712
    %v5753 = vunpack.c.l.b16 %v5713
    %v5754 = vunpack.c.h.b16 %v5713
    %v5755 = vunpack.c.l.b16 %v5714
    %v5756 = vunpack.c.h.b16 %v5714
    %v5757 = vunpack.c.l.b16 %v5715
    %v5758 = vunpack.c.h.b16 %v5715
    %v5759 = vunpack.c.l.b16 %v5716
    %v5760 = vunpack.c.h.b16 %v5716
    %v5761 = vunpack.c.l.b16 %v5717
    %v5762 = vunpack.c.h.b16 %v5717
    %v5763 = vunpack.c.l.b16 %v5718
    %v5764 = vunpack.c.h.b16 %v5718
    %v5765 = vunpack.c.l.b16 %v5719
    %v5766 = vunpack.c.h.b16 %v5719
    %v5767 = vunpack.c.l.b16 %v5720
    %v5768 = vunpack.c.h.b16 %v5720
    %v5769 = vpack.c.b16 %v5739, %v5737
    %v5770 = vpack.c.b16 %v5740, %v5738
    %v5771 = vpack.c.b16 %v5743, %v5741
    %v5772 = vpack.c.b16 %v5744, %v5742
    %v5773 = vpack.c.b16 %v5747, %v5745
    %v5774 = vpack.c.b16 %v5748, %v5746
    %v5775 = vpack.c.b16 %v5751, %v5749
    %v5776 = vpack.c.b16 %v5752, %v5750
    %v5777 = vpack.c.b16 %v5755, %v5753
    %v5778 = vpack.c.b16 %v5756, %v5754
    %v5779 = vpack.c.b16 %v5759, %v5757
    %v5780 = vpack.c.b16 %v5760, %v5758
    %v5781 = vpack.c.b16 %v5763, %v5761
    %v5782 = vpack.c.b16 %v5764, %v5762
    %v5783 = vpack.c.b16 %v5767, %v5765
    %v5784 = vpack.c.b16 %v5768, %v5766
    %5801 = vmatpush.bf16.msra.mxu0 %v5783
    %5802 = vmatpush.bf16.msra.mxu0 %v5781
    %5803 = vmatpush.bf16.msra.mxu0 %v5779
    %5804 = vmatpush.bf16.msra.mxu0 %v5777
    %5805 = vmatpush.bf16.msra.mxu0 %v5775
    %5806 = vmatpush.bf16.msra.mxu0 %v5773
    %5807 = vmatpush.bf16.msra.mxu0 %v5771
    %5808 = vmatpush.bf16.msra.mxu0 %v5769
    %5809 = vmatmul.bf16.gmra.mxu0 %v5703
    %v5810 = vpop.f32.mrf.mxu0
    %v5811 = vadd.f32 0.0, %v5810
    %v5812 = vpop.f32.mrf.mxu0
    %5813 = vdwg.mxu0
    %5814 = vmatpush.bf16.msra.mxu0 %v5784
    %5815 = vmatpush.bf16.msra.mxu0 %v5782
    %5816 = vmatpush.bf16.msra.mxu0 %v5780
    %5817 = vmatpush.bf16.msra.mxu0 %v5778
    %5818 = vmatpush.bf16.msra.mxu0 %v5776
    %5819 = vmatpush.bf16.msra.mxu0 %v5774
    %5820 = vmatpush.bf16.msra.mxu0 %v5772
    %5821 = vmatpush.bf16.msra.mxu0 %v5770
    %5822 = vmatmul.bf16.gmra.mxu0 %v5703
    %v5823 = vpop.f32.mrf.mxu0
    %v5824 = vadd.f32 0.0, %v5823
    %v5825 = vpop.f32.mrf.mxu0
    %5826 = vdwg.mxu0
    %v5827 = vadd.f32 %v5575, %v5811
    %v5828 = vadd.f32 %v5576, %v5824
    %5829 = vmatpush.bf16.msra.mxu0 %v261
    %5830 = vmatpush.bf16.msra.mxu0 %v260
    %5831 = vmatpush.bf16.msra.mxu0 %v259
    %5832 = vmatpush.bf16.msra.mxu0 %v258
    %5833 = vmatpush.bf16.msra.mxu0 %v257
    %5834 = vmatpush.bf16.msra.mxu0 %v256
    %5835 = vmatpush.bf16.msra.mxu0 %v255
    %5836 = vmatpush.bf16.msra.mxu0 %v254
    %5837 = vmatmul.bf16.gmra.mxu0 %v4689
    %v5838 = vpop.f32.mrf.mxu0
    %v5839 = vadd.f32 0.0, %v5838
    %v5840 = vpop.f32.mrf.mxu0
    %5841 = vdwg.mxu0
    %5842 = vmatpush.bf16.msra.mxu0 %v269
    %5843 = vmatpush.bf16.msra.mxu0 %v268
    %5844 = vmatpush.bf16.msra.mxu0 %v267
    %5845 = vmatpush.bf16.msra.mxu0 %v266
    %5846 = vmatpush.bf16.msra.mxu0 %v265
    %5847 = vmatpush.bf16.msra.mxu0 %v264
    %5848 = vmatpush.bf16.msra.mxu0 %v263
    %5849 = vmatpush.bf16.msra.mxu0 %v262
    %5850 = vmatmul.bf16.gmra.mxu0 %v4690
    %v5851 = vpop.f32.mrf.mxu0
    %v5852 = vadd.f32 %v5839, %v5851
    %v5853 = vpop.f32.mrf.mxu0
    %5854 = vdwg.mxu0
    %5855 = vmatpush.bf16.msra.mxu0 %v390
    %5856 = vmatpush.bf16.msra.mxu0 %v389
    %5857 = vmatpush.bf16.msra.mxu0 %v388
    %5858 = vmatpush.bf16.msra.mxu0 %v387
    %5859 = vmatpush.bf16.msra.mxu0 %v386
    %5860 = vmatpush.bf16.msra.mxu0 %v385
    %5861 = vmatpush.bf16.msra.mxu0 %v384
    %5862 = vmatpush.bf16.msra.mxu0 %v383
    %5863 = vmatmul.bf16.gmra.mxu0 %v4446
    %v5864 = vpop.f32.mrf.mxu0
    %v5865 = vadd.f32 %v5852, %v5864
    %v5866 = vpop.f32.mrf.mxu0
    %5867 = vdwg.mxu0
    %5868 = vmatpush.bf16.msra.mxu0 %v398
    %5869 = vmatpush.bf16.msra.mxu0 %v397
    %5870 = vmatpush.bf16.msra.mxu0 %v396
    %5871 = vmatpush.bf16.msra.mxu0 %v395
    %5872 = vmatpush.bf16.msra.mxu0 %v394
    %5873 = vmatpush.bf16.msra.mxu0 %v393
    %5874 = vmatpush.bf16.msra.mxu0 %v392
    %5875 = vmatpush.bf16.msra.mxu0 %v391
    %5876 = vmatmul.bf16.gmra.mxu0 %v4447
    %v5877 = vpop.f32.mrf.mxu0
    %v5878 = vadd.f32 %v5865, %v5877
    %v5879 = vpop.f32.mrf.mxu0
    %5880 = vdwg.mxu0
    %5881 = vmatpush.bf16.msra.mxu0 %v554
    %5882 = vmatpush.bf16.msra.mxu0 %v553
    %5883 = vmatpush.bf16.msra.mxu0 %v552
    %5884 = vmatpush.bf16.msra.mxu0 %v551
    %5885 = vmatpush.bf16.msra.mxu0 %v550
    %5886 = vmatpush.bf16.msra.mxu0 %v549
    %5887 = vmatpush.bf16.msra.mxu0 %v548
    %5888 = vmatpush.bf16.msra.mxu0 %v547
    %5889 = vmatmul.bf16.gmra.mxu0 %v5670
    %v5890 = vpop.f32.mrf.mxu0
    %v5891 = vadd.f32 0.0, %v5890
    %v5892 = vpop.f32.mrf.mxu0
    %5893 = vdwg.mxu0
    %5894 = vmatpush.bf16.msra.mxu0 %v562
    %5895 = vmatpush.bf16.msra.mxu0 %v561
    %5896 = vmatpush.bf16.msra.mxu0 %v560
    %5897 = vmatpush.bf16.msra.mxu0 %v559
    %5898 = vmatpush.bf16.msra.mxu0 %v558
    %5899 = vmatpush.bf16.msra.mxu0 %v557
    %5900 = vmatpush.bf16.msra.mxu0 %v556
    %5901 = vmatpush.bf16.msra.mxu0 %v555
    %5902 = vmatmul.bf16.gmra.mxu0 %v5671
    %v5903 = vpop.f32.mrf.mxu0
    %v5904 = vadd.f32 %v5891, %v5903
    %v5905 = vpop.f32.mrf.mxu0
    %5906 = vdwg.mxu0
    %v5907 = vadd.f32 %v5878, %v5904
    %s5908 = scalar_lea.vmem %s0, 256
    %v5909 = vld [vmem:[%s5908] sm:$0xff]
    %v5911 = vunpack.c.l.b16 %v5909
    %v5912 = vunpack.c.h.b16 %v5909
    %v5913 = vpack.c.b16 %v5911, %v5911
    %v5914 = vpack.c.b16 %v5912, %v5912
    %5917 = vmatpush.bf16.msra.mxu0 %v719
    %5918 = vmatpush.bf16.msra.mxu0 %v718
    %5919 = vmatpush.bf16.msra.mxu0 %v717
    %5920 = vmatpush.bf16.msra.mxu0 %v716
    %5921 = vmatpush.bf16.msra.mxu0 %v715
    %5922 = vmatpush.bf16.msra.mxu0 %v714
    %5923 = vmatpush.bf16.msra.mxu0 %v713
    %5924 = vmatpush.bf16.msra.mxu0 %v712
    %5925 = vmatmul.bf16.gmra.mxu0 %v5913
    %v5926 = vpop.f32.mrf.mxu0
    %v5927 = vadd.f32 0.0, %v5926
    %v5928 = vpop.f32.mrf.mxu0
    %5929 = vdwg.mxu0
    %5930 = vmatpush.bf16.msra.mxu0 %v727
    %5931 = vmatpush.bf16.msra.mxu0 %v726
    %5932 = vmatpush.bf16.msra.mxu0 %v725
    %5933 = vmatpush.bf16.msra.mxu0 %v724
    %5934 = vmatpush.bf16.msra.mxu0 %v723
    %5935 = vmatpush.bf16.msra.mxu0 %v722
    %5936 = vmatpush.bf16.msra.mxu0 %v721
    %5937 = vmatpush.bf16.msra.mxu0 %v720
    %5938 = vmatmul.bf16.gmra.mxu0 %v5914
    %v5939 = vpop.f32.mrf.mxu0
    %v5940 = vadd.f32 %v5927, %v5939
    %v5941 = vpop.f32.mrf.mxu0
    %5942 = vdwg.mxu0
    %v5943 = vadd.f32 %v5907, %v5940
    %v5944 = vadd.f32 %v5943, %v772
    %v5945 = vmax.f32 %v5944, 0.0
    %v5946 = vpack.c.bf16 %v5945, %v5945
    %s5947 = scalar_lea.vmem [#allocation6], 2688
    %v5948 = vld [vmem:[%s5947] sm:$0xff]
    %v5949 = vld [vmem:[%s5947 + $0x8] sm:$0xff]
    %v5950 = vld [vmem:[%s5947 + $0x10] sm:$0xff]
    %v5951 = vld [vmem:[%s5947 + $0x18] sm:$0xff]
    %v5952 = vld [vmem:[%s5947 + $0x20] sm:$0xff]
    %v5953 = vld [vmem:[%s5947 + $0x28] sm:$0xff]
    %v5954 = vld [vmem:[%s5947 + $0x30] sm:$0xff]
    %v5955 = vld [vmem:[%s5947 + $0x38] sm:$0xff]
    %v5956 = vld [vmem:[%s5947 + $0x40] sm:$0xff]
    %v5957 = vld [vmem:[%s5947 + $0x48] sm:$0xff]
    %v5958 = vld [vmem:[%s5947 + $0x50] sm:$0xff]
    %v5959 = vld [vmem:[%s5947 + $0x58] sm:$0xff]
    %v5960 = vld [vmem:[%s5947 + $0x60] sm:$0xff]
    %v5961 = vld [vmem:[%s5947 + $0x68] sm:$0xff]
    %v5962 = vld [vmem:[%s5947 + $0x70] sm:$0xff]
    %v5963 = vld [vmem:[%s5947 + $0x78] sm:$0xff]
    %v5980 = vunpack.c.l.b16 %v5948
    %v5981 = vunpack.c.h.b16 %v5948
    %v5982 = vunpack.c.l.b16 %v5949
    %v5983 = vunpack.c.h.b16 %v5949
    %v5984 = vunpack.c.l.b16 %v5950
    %v5985 = vunpack.c.h.b16 %v5950
    %v5986 = vunpack.c.l.b16 %v5951
    %v5987 = vunpack.c.h.b16 %v5951
    %v5988 = vunpack.c.l.b16 %v5952
    %v5989 = vunpack.c.h.b16 %v5952
    %v5990 = vunpack.c.l.b16 %v5953
    %v5991 = vunpack.c.h.b16 %v5953
    %v5992 = vunpack.c.l.b16 %v5954
    %v5993 = vunpack.c.h.b16 %v5954
    %v5994 = vunpack.c.l.b16 %v5955
    %v5995 = vunpack.c.h.b16 %v5955
    %v5996 = vunpack.c.l.b16 %v5956
    %v5997 = vunpack.c.h.b16 %v5956
    %v5998 = vunpack.c.l.b16 %v5957
    %v5999 = vunpack.c.h.b16 %v5957
    %v6000 = vunpack.c.l.b16 %v5958
    %v6001 = vunpack.c.h.b16 %v5958
    %v6002 = vunpack.c.l.b16 %v5959
    %v6003 = vunpack.c.h.b16 %v5959
    %v6004 = vunpack.c.l.b16 %v5960
    %v6005 = vunpack.c.h.b16 %v5960
    %v6006 = vunpack.c.l.b16 %v5961
    %v6007 = vunpack.c.h.b16 %v5961
    %v6008 = vunpack.c.l.b16 %v5962
    %v6009 = vunpack.c.h.b16 %v5962
    %v6010 = vunpack.c.l.b16 %v5963
    %v6011 = vunpack.c.h.b16 %v5963
    %v6012 = vpack.c.b16 %v5982, %v5980
    %v6013 = vpack.c.b16 %v5983, %v5981
    %v6014 = vpack.c.b16 %v5986, %v5984
    %v6015 = vpack.c.b16 %v5987, %v5985
    %v6016 = vpack.c.b16 %v5990, %v5988
    %v6017 = vpack.c.b16 %v5991, %v5989
    %v6018 = vpack.c.b16 %v5994, %v5992
    %v6019 = vpack.c.b16 %v5995, %v5993
    %v6020 = vpack.c.b16 %v5998, %v5996
    %v6021 = vpack.c.b16 %v5999, %v5997
    %v6022 = vpack.c.b16 %v6002, %v6000
    %v6023 = vpack.c.b16 %v6003, %v6001
    %v6024 = vpack.c.b16 %v6006, %v6004
    %v6025 = vpack.c.b16 %v6007, %v6005
    %v6026 = vpack.c.b16 %v6010, %v6008
    %v6027 = vpack.c.b16 %v6011, %v6009
    %6044 = vmatpush.bf16.msra.mxu0 %v6026
    %6045 = vmatpush.bf16.msra.mxu0 %v6024
    %6046 = vmatpush.bf16.msra.mxu0 %v6022
    %6047 = vmatpush.bf16.msra.mxu0 %v6020
    %6048 = vmatpush.bf16.msra.mxu0 %v6018
    %6049 = vmatpush.bf16.msra.mxu0 %v6016
    %6050 = vmatpush.bf16.msra.mxu0 %v6014
    %6051 = vmatpush.bf16.msra.mxu0 %v6012
    %6052 = vmatmul.bf16.gmra.mxu0 %v5946
    %v6053 = vpop.f32.mrf.mxu0
    %v6054 = vadd.f32 0.0, %v6053
    %v6055 = vpop.f32.mrf.mxu0
    %6056 = vdwg.mxu0
    %6057 = vmatpush.bf16.msra.mxu0 %v6027
    %6058 = vmatpush.bf16.msra.mxu0 %v6025
    %6059 = vmatpush.bf16.msra.mxu0 %v6023
    %6060 = vmatpush.bf16.msra.mxu0 %v6021
    %6061 = vmatpush.bf16.msra.mxu0 %v6019
    %6062 = vmatpush.bf16.msra.mxu0 %v6017
    %6063 = vmatpush.bf16.msra.mxu0 %v6015
    %6064 = vmatpush.bf16.msra.mxu0 %v6013
    %6065 = vmatmul.bf16.gmra.mxu0 %v5946
    %v6066 = vpop.f32.mrf.mxu0
    %v6067 = vadd.f32 0.0, %v6066
    %v6068 = vpop.f32.mrf.mxu0
    %6069 = vdwg.mxu0
    %v6070 = vadd.f32 %v5827, %v6054
    %v6071 = vadd.f32 %v5828, %v6067
    %6072 = vmatpush.bf16.msra.mxu0 %v261
    %6073 = vmatpush.bf16.msra.mxu0 %v260
    %6074 = vmatpush.bf16.msra.mxu0 %v259
    %6075 = vmatpush.bf16.msra.mxu0 %v258
    %6076 = vmatpush.bf16.msra.mxu0 %v257
    %6077 = vmatpush.bf16.msra.mxu0 %v256
    %6078 = vmatpush.bf16.msra.mxu0 %v255
    %6079 = vmatpush.bf16.msra.mxu0 %v254
    %6080 = vmatmul.bf16.gmra.mxu0 %v4932
    %v6081 = vpop.f32.mrf.mxu0
    %v6082 = vadd.f32 0.0, %v6081
    %v6083 = vpop.f32.mrf.mxu0
    %6084 = vdwg.mxu0
    %6085 = vmatpush.bf16.msra.mxu0 %v269
    %6086 = vmatpush.bf16.msra.mxu0 %v268
    %6087 = vmatpush.bf16.msra.mxu0 %v267
    %6088 = vmatpush.bf16.msra.mxu0 %v266
    %6089 = vmatpush.bf16.msra.mxu0 %v265
    %6090 = vmatpush.bf16.msra.mxu0 %v264
    %6091 = vmatpush.bf16.msra.mxu0 %v263
    %6092 = vmatpush.bf16.msra.mxu0 %v262
    %6093 = vmatmul.bf16.gmra.mxu0 %v4933
    %v6094 = vpop.f32.mrf.mxu0
    %v6095 = vadd.f32 %v6082, %v6094
    %v6096 = vpop.f32.mrf.mxu0
    %6097 = vdwg.mxu0
    %6098 = vmatpush.bf16.msra.mxu0 %v390
    %6099 = vmatpush.bf16.msra.mxu0 %v389
    %6100 = vmatpush.bf16.msra.mxu0 %v388
    %6101 = vmatpush.bf16.msra.mxu0 %v387
    %6102 = vmatpush.bf16.msra.mxu0 %v386
    %6103 = vmatpush.bf16.msra.mxu0 %v385
    %6104 = vmatpush.bf16.msra.mxu0 %v384
    %6105 = vmatpush.bf16.msra.mxu0 %v383
    %6106 = vmatmul.bf16.gmra.mxu0 %v4689
    %v6107 = vpop.f32.mrf.mxu0
    %v6108 = vadd.f32 %v6095, %v6107
    %v6109 = vpop.f32.mrf.mxu0
    %6110 = vdwg.mxu0
    %6111 = vmatpush.bf16.msra.mxu0 %v398
    %6112 = vmatpush.bf16.msra.mxu0 %v397
    %6113 = vmatpush.bf16.msra.mxu0 %v396
    %6114 = vmatpush.bf16.msra.mxu0 %v395
    %6115 = vmatpush.bf16.msra.mxu0 %v394
    %6116 = vmatpush.bf16.msra.mxu0 %v393
    %6117 = vmatpush.bf16.msra.mxu0 %v392
    %6118 = vmatpush.bf16.msra.mxu0 %v391
    %6119 = vmatmul.bf16.gmra.mxu0 %v4690
    %v6120 = vpop.f32.mrf.mxu0
    %v6121 = vadd.f32 %v6108, %v6120
    %v6122 = vpop.f32.mrf.mxu0
    %6123 = vdwg.mxu0
    %6124 = vmatpush.bf16.msra.mxu0 %v554
    %6125 = vmatpush.bf16.msra.mxu0 %v553
    %6126 = vmatpush.bf16.msra.mxu0 %v552
    %6127 = vmatpush.bf16.msra.mxu0 %v551
    %6128 = vmatpush.bf16.msra.mxu0 %v550
    %6129 = vmatpush.bf16.msra.mxu0 %v549
    %6130 = vmatpush.bf16.msra.mxu0 %v548
    %6131 = vmatpush.bf16.msra.mxu0 %v547
    %6132 = vmatmul.bf16.gmra.mxu0 %v5913
    %v6133 = vpop.f32.mrf.mxu0
    %v6134 = vadd.f32 0.0, %v6133
    %v6135 = vpop.f32.mrf.mxu0
    %6136 = vdwg.mxu0
    %6137 = vmatpush.bf16.msra.mxu0 %v562
    %6138 = vmatpush.bf16.msra.mxu0 %v561
    %6139 = vmatpush.bf16.msra.mxu0 %v560
    %6140 = vmatpush.bf16.msra.mxu0 %v559
    %6141 = vmatpush.bf16.msra.mxu0 %v558
    %6142 = vmatpush.bf16.msra.mxu0 %v557
    %6143 = vmatpush.bf16.msra.mxu0 %v556
    %6144 = vmatpush.bf16.msra.mxu0 %v555
    %6145 = vmatmul.bf16.gmra.mxu0 %v5914
    %v6146 = vpop.f32.mrf.mxu0
    %v6147 = vadd.f32 %v6134, %v6146
    %v6148 = vpop.f32.mrf.mxu0
    %6149 = vdwg.mxu0
    %v6150 = vadd.f32 %v6121, %v6147
    %s6151 = scalar_lea.vmem %s0, 264
    %v6152 = vld [vmem:[%s6151] sm:$0xff]
    %v6154 = vunpack.c.l.b16 %v6152
    %v6155 = vunpack.c.h.b16 %v6152
    %v6156 = vpack.c.b16 %v6154, %v6154
    %v6157 = vpack.c.b16 %v6155, %v6155
    %6160 = vmatpush.bf16.msra.mxu0 %v719
    %6161 = vmatpush.bf16.msra.mxu0 %v718
    %6162 = vmatpush.bf16.msra.mxu0 %v717
    %6163 = vmatpush.bf16.msra.mxu0 %v716
    %6164 = vmatpush.bf16.msra.mxu0 %v715
    %6165 = vmatpush.bf16.msra.mxu0 %v714
    %6166 = vmatpush.bf16.msra.mxu0 %v713
    %6167 = vmatpush.bf16.msra.mxu0 %v712
    %6168 = vmatmul.bf16.gmra.mxu0 %v6156
    %v6169 = vpop.f32.mrf.mxu0
    %v6170 = vadd.f32 0.0, %v6169
    %v6171 = vpop.f32.mrf.mxu0
    %6172 = vdwg.mxu0
    %6173 = vmatpush.bf16.msra.mxu0 %v727
    %6174 = vmatpush.bf16.msra.mxu0 %v726
    %6175 = vmatpush.bf16.msra.mxu0 %v725
    %6176 = vmatpush.bf16.msra.mxu0 %v724
    %6177 = vmatpush.bf16.msra.mxu0 %v723
    %6178 = vmatpush.bf16.msra.mxu0 %v722
    %6179 = vmatpush.bf16.msra.mxu0 %v721
    %6180 = vmatpush.bf16.msra.mxu0 %v720
    %6181 = vmatmul.bf16.gmra.mxu0 %v6157
    %v6182 = vpop.f32.mrf.mxu0
    %v6183 = vadd.f32 %v6170, %v6182
    %v6184 = vpop.f32.mrf.mxu0
    %6185 = vdwg.mxu0
    %v6186 = vadd.f32 %v6150, %v6183
    %v6187 = vadd.f32 %v6186, %v772
    %v6188 = vmax.f32 %v6187, 0.0
    %v6189 = vpack.c.bf16 %v6188, %v6188
    %s6190 = scalar_lea.vmem [#allocation6], 2816
    %v6191 = vld [vmem:[%s6190] sm:$0xff]
    %v6192 = vld [vmem:[%s6190 + $0x8] sm:$0xff]
    %v6193 = vld [vmem:[%s6190 + $0x10] sm:$0xff]
    %v6194 = vld [vmem:[%s6190 + $0x18] sm:$0xff]
    %v6195 = vld [vmem:[%s6190 + $0x20] sm:$0xff]
    %v6196 = vld [vmem:[%s6190 + $0x28] sm:$0xff]
    %v6197 = vld [vmem:[%s6190 + $0x30] sm:$0xff]
    %v6198 = vld [vmem:[%s6190 + $0x38] sm:$0xff]
    %v6199 = vld [vmem:[%s6190 + $0x40] sm:$0xff]
    %v6200 = vld [vmem:[%s6190 + $0x48] sm:$0xff]
    %v6201 = vld [vmem:[%s6190 + $0x50] sm:$0xff]
    %v6202 = vld [vmem:[%s6190 + $0x58] sm:$0xff]
    %v6203 = vld [vmem:[%s6190 + $0x60] sm:$0xff]
    %v6204 = vld [vmem:[%s6190 + $0x68] sm:$0xff]
    %v6205 = vld [vmem:[%s6190 + $0x70] sm:$0xff]
    %v6206 = vld [vmem:[%s6190 + $0x78] sm:$0xff]
    %v6223 = vunpack.c.l.b16 %v6191
    %v6224 = vunpack.c.h.b16 %v6191
    %v6225 = vunpack.c.l.b16 %v6192
    %v6226 = vunpack.c.h.b16 %v6192
    %v6227 = vunpack.c.l.b16 %v6193
    %v6228 = vunpack.c.h.b16 %v6193
    %v6229 = vunpack.c.l.b16 %v6194
    %v6230 = vunpack.c.h.b16 %v6194
    %v6231 = vunpack.c.l.b16 %v6195
    %v6232 = vunpack.c.h.b16 %v6195
    %v6233 = vunpack.c.l.b16 %v6196
    %v6234 = vunpack.c.h.b16 %v6196
    %v6235 = vunpack.c.l.b16 %v6197
    %v6236 = vunpack.c.h.b16 %v6197
    %v6237 = vunpack.c.l.b16 %v6198
    %v6238 = vunpack.c.h.b16 %v6198
    %v6239 = vunpack.c.l.b16 %v6199
    %v6240 = vunpack.c.h.b16 %v6199
    %v6241 = vunpack.c.l.b16 %v6200
    %v6242 = vunpack.c.h.b16 %v6200
    %v6243 = vunpack.c.l.b16 %v6201
    %v6244 = vunpack.c.h.b16 %v6201
    %v6245 = vunpack.c.l.b16 %v6202
    %v6246 = vunpack.c.h.b16 %v6202
    %v6247 = vunpack.c.l.b16 %v6203
    %v6248 = vunpack.c.h.b16 %v6203
    %v6249 = vunpack.c.l.b16 %v6204
    %v6250 = vunpack.c.h.b16 %v6204
    %v6251 = vunpack.c.l.b16 %v6205
    %v6252 = vunpack.c.h.b16 %v6205
    %v6253 = vunpack.c.l.b16 %v6206
    %v6254 = vunpack.c.h.b16 %v6206
    %v6255 = vpack.c.b16 %v6225, %v6223
    %v6256 = vpack.c.b16 %v6226, %v6224
    %v6257 = vpack.c.b16 %v6229, %v6227
    %v6258 = vpack.c.b16 %v6230, %v6228
    %v6259 = vpack.c.b16 %v6233, %v6231
    %v6260 = vpack.c.b16 %v6234, %v6232
    %v6261 = vpack.c.b16 %v6237, %v6235
    %v6262 = vpack.c.b16 %v6238, %v6236
    %v6263 = vpack.c.b16 %v6241, %v6239
    %v6264 = vpack.c.b16 %v6242, %v6240
    %v6265 = vpack.c.b16 %v6245, %v6243
    %v6266 = vpack.c.b16 %v6246, %v6244
    %v6267 = vpack.c.b16 %v6249, %v6247
    %v6268 = vpack.c.b16 %v6250, %v6248
    %v6269 = vpack.c.b16 %v6253, %v6251
    %v6270 = vpack.c.b16 %v6254, %v6252
    %6287 = vmatpush.bf16.msra.mxu0 %v6269
    %6288 = vmatpush.bf16.msra.mxu0 %v6267
    %6289 = vmatpush.bf16.msra.mxu0 %v6265
    %6290 = vmatpush.bf16.msra.mxu0 %v6263
    %6291 = vmatpush.bf16.msra.mxu0 %v6261
    %6292 = vmatpush.bf16.msra.mxu0 %v6259
    %6293 = vmatpush.bf16.msra.mxu0 %v6257
    %6294 = vmatpush.bf16.msra.mxu0 %v6255
    %6295 = vmatmul.bf16.gmra.mxu0 %v6189
    %v6296 = vpop.f32.mrf.mxu0
    %v6297 = vadd.f32 0.0, %v6296
    %v6298 = vpop.f32.mrf.mxu0
    %6299 = vdwg.mxu0
    %6300 = vmatpush.bf16.msra.mxu0 %v6270
    %6301 = vmatpush.bf16.msra.mxu0 %v6268
    %6302 = vmatpush.bf16.msra.mxu0 %v6266
    %6303 = vmatpush.bf16.msra.mxu0 %v6264
    %6304 = vmatpush.bf16.msra.mxu0 %v6262
    %6305 = vmatpush.bf16.msra.mxu0 %v6260
    %6306 = vmatpush.bf16.msra.mxu0 %v6258
    %6307 = vmatpush.bf16.msra.mxu0 %v6256
    %6308 = vmatmul.bf16.gmra.mxu0 %v6189
    %v6309 = vpop.f32.mrf.mxu0
    %v6310 = vadd.f32 0.0, %v6309
    %v6311 = vpop.f32.mrf.mxu0
    %6312 = vdwg.mxu0
    %v6313 = vadd.f32 %v6070, %v6297
    %v6314 = vadd.f32 %v6071, %v6310
    %6315 = vmatpush.bf16.msra.mxu0 %v261
    %6316 = vmatpush.bf16.msra.mxu0 %v260
    %6317 = vmatpush.bf16.msra.mxu0 %v259
    %6318 = vmatpush.bf16.msra.mxu0 %v258
    %6319 = vmatpush.bf16.msra.mxu0 %v257
    %6320 = vmatpush.bf16.msra.mxu0 %v256
    %6321 = vmatpush.bf16.msra.mxu0 %v255
    %6322 = vmatpush.bf16.msra.mxu0 %v254
    %6323 = vmatmul.bf16.gmra.mxu0 %v5175
    %v6324 = vpop.f32.mrf.mxu0
    %v6325 = vadd.f32 0.0, %v6324
    %v6326 = vpop.f32.mrf.mxu0
    %6327 = vdwg.mxu0
    %6328 = vmatpush.bf16.msra.mxu0 %v269
    %6329 = vmatpush.bf16.msra.mxu0 %v268
    %6330 = vmatpush.bf16.msra.mxu0 %v267
    %6331 = vmatpush.bf16.msra.mxu0 %v266
    %6332 = vmatpush.bf16.msra.mxu0 %v265
    %6333 = vmatpush.bf16.msra.mxu0 %v264
    %6334 = vmatpush.bf16.msra.mxu0 %v263
    %6335 = vmatpush.bf16.msra.mxu0 %v262
    %6336 = vmatmul.bf16.gmra.mxu0 %v5176
    %v6337 = vpop.f32.mrf.mxu0
    %v6338 = vadd.f32 %v6325, %v6337
    %v6339 = vpop.f32.mrf.mxu0
    %6340 = vdwg.mxu0
    %6341 = vmatpush.bf16.msra.mxu0 %v390
    %6342 = vmatpush.bf16.msra.mxu0 %v389
    %6343 = vmatpush.bf16.msra.mxu0 %v388
    %6344 = vmatpush.bf16.msra.mxu0 %v387
    %6345 = vmatpush.bf16.msra.mxu0 %v386
    %6346 = vmatpush.bf16.msra.mxu0 %v385
    %6347 = vmatpush.bf16.msra.mxu0 %v384
    %6348 = vmatpush.bf16.msra.mxu0 %v383
    %6349 = vmatmul.bf16.gmra.mxu0 %v4932
    %v6350 = vpop.f32.mrf.mxu0
    %v6351 = vadd.f32 %v6338, %v6350
    %v6352 = vpop.f32.mrf.mxu0
    %6353 = vdwg.mxu0
    %6354 = vmatpush.bf16.msra.mxu0 %v398
    %6355 = vmatpush.bf16.msra.mxu0 %v397
    %6356 = vmatpush.bf16.msra.mxu0 %v396
    %6357 = vmatpush.bf16.msra.mxu0 %v395
    %6358 = vmatpush.bf16.msra.mxu0 %v394
    %6359 = vmatpush.bf16.msra.mxu0 %v393
    %6360 = vmatpush.bf16.msra.mxu0 %v392
    %6361 = vmatpush.bf16.msra.mxu0 %v391
    %6362 = vmatmul.bf16.gmra.mxu0 %v4933
    %v6363 = vpop.f32.mrf.mxu0
    %v6364 = vadd.f32 %v6351, %v6363
    %v6365 = vpop.f32.mrf.mxu0
    %6366 = vdwg.mxu0
    %6367 = vmatpush.bf16.msra.mxu0 %v554
    %6368 = vmatpush.bf16.msra.mxu0 %v553
    %6369 = vmatpush.bf16.msra.mxu0 %v552
    %6370 = vmatpush.bf16.msra.mxu0 %v551
    %6371 = vmatpush.bf16.msra.mxu0 %v550
    %6372 = vmatpush.bf16.msra.mxu0 %v549
    %6373 = vmatpush.bf16.msra.mxu0 %v548
    %6374 = vmatpush.bf16.msra.mxu0 %v547
    %6375 = vmatmul.bf16.gmra.mxu0 %v6156
    %v6376 = vpop.f32.mrf.mxu0
    %v6377 = vadd.f32 0.0, %v6376
    %v6378 = vpop.f32.mrf.mxu0
    %6379 = vdwg.mxu0
    %6380 = vmatpush.bf16.msra.mxu0 %v562
    %6381 = vmatpush.bf16.msra.mxu0 %v561
    %6382 = vmatpush.bf16.msra.mxu0 %v560
    %6383 = vmatpush.bf16.msra.mxu0 %v559
    %6384 = vmatpush.bf16.msra.mxu0 %v558
    %6385 = vmatpush.bf16.msra.mxu0 %v557
    %6386 = vmatpush.bf16.msra.mxu0 %v556
    %6387 = vmatpush.bf16.msra.mxu0 %v555
    %6388 = vmatmul.bf16.gmra.mxu0 %v6157
    %v6389 = vpop.f32.mrf.mxu0
    %v6390 = vadd.f32 %v6377, %v6389
    %v6391 = vpop.f32.mrf.mxu0
    %6392 = vdwg.mxu0
    %v6393 = vadd.f32 %v6364, %v6390
    %s6394 = scalar_lea.vmem %s0, 272
    %v6395 = vld [vmem:[%s6394] sm:$0xff]
    %v6397 = vunpack.c.l.b16 %v6395
    %v6398 = vunpack.c.h.b16 %v6395
    %v6399 = vpack.c.b16 %v6397, %v6397
    %v6400 = vpack.c.b16 %v6398, %v6398
    %6403 = vmatpush.bf16.msra.mxu0 %v719
    %6404 = vmatpush.bf16.msra.mxu0 %v718
    %6405 = vmatpush.bf16.msra.mxu0 %v717
    %6406 = vmatpush.bf16.msra.mxu0 %v716
    %6407 = vmatpush.bf16.msra.mxu0 %v715
    %6408 = vmatpush.bf16.msra.mxu0 %v714
    %6409 = vmatpush.bf16.msra.mxu0 %v713
    %6410 = vmatpush.bf16.msra.mxu0 %v712
    %6411 = vmatmul.bf16.gmra.mxu0 %v6399
    %v6412 = vpop.f32.mrf.mxu0
    %v6413 = vadd.f32 0.0, %v6412
    %v6414 = vpop.f32.mrf.mxu0
    %6415 = vdwg.mxu0
    %6416 = vmatpush.bf16.msra.mxu0 %v727
    %6417 = vmatpush.bf16.msra.mxu0 %v726
    %6418 = vmatpush.bf16.msra.mxu0 %v725
    %6419 = vmatpush.bf16.msra.mxu0 %v724
    %6420 = vmatpush.bf16.msra.mxu0 %v723
    %6421 = vmatpush.bf16.msra.mxu0 %v722
    %6422 = vmatpush.bf16.msra.mxu0 %v721
    %6423 = vmatpush.bf16.msra.mxu0 %v720
    %6424 = vmatmul.bf16.gmra.mxu0 %v6400
    %v6425 = vpop.f32.mrf.mxu0
    %v6426 = vadd.f32 %v6413, %v6425
    %v6427 = vpop.f32.mrf.mxu0
    %6428 = vdwg.mxu0
    %v6429 = vadd.f32 %v6393, %v6426
    %v6430 = vadd.f32 %v6429, %v772
    %v6431 = vmax.f32 %v6430, 0.0
    %v6432 = vpack.c.bf16 %v6431, %v6431
    %s6433 = scalar_lea.vmem [#allocation6], 2944
    %v6434 = vld [vmem:[%s6433] sm:$0xff]
    %v6435 = vld [vmem:[%s6433 + $0x8] sm:$0xff]
    %v6436 = vld [vmem:[%s6433 + $0x10] sm:$0xff]
    %v6437 = vld [vmem:[%s6433 + $0x18] sm:$0xff]
    %v6438 = vld [vmem:[%s6433 + $0x20] sm:$0xff]
    %v6439 = vld [vmem:[%s6433 + $0x28] sm:$0xff]
    %v6440 = vld [vmem:[%s6433 + $0x30] sm:$0xff]
    %v6441 = vld [vmem:[%s6433 + $0x38] sm:$0xff]
    %v6442 = vld [vmem:[%s6433 + $0x40] sm:$0xff]
    %v6443 = vld [vmem:[%s6433 + $0x48] sm:$0xff]
    %v6444 = vld [vmem:[%s6433 + $0x50] sm:$0xff]
    %v6445 = vld [vmem:[%s6433 + $0x58] sm:$0xff]
    %v6446 = vld [vmem:[%s6433 + $0x60] sm:$0xff]
    %v6447 = vld [vmem:[%s6433 + $0x68] sm:$0xff]
    %v6448 = vld [vmem:[%s6433 + $0x70] sm:$0xff]
    %v6449 = vld [vmem:[%s6433 + $0x78] sm:$0xff]
    %v6466 = vunpack.c.l.b16 %v6434
    %v6467 = vunpack.c.h.b16 %v6434
    %v6468 = vunpack.c.l.b16 %v6435
    %v6469 = vunpack.c.h.b16 %v6435
    %v6470 = vunpack.c.l.b16 %v6436
    %v6471 = vunpack.c.h.b16 %v6436
    %v6472 = vunpack.c.l.b16 %v6437
    %v6473 = vunpack.c.h.b16 %v6437
    %v6474 = vunpack.c.l.b16 %v6438
    %v6475 = vunpack.c.h.b16 %v6438
    %v6476 = vunpack.c.l.b16 %v6439
    %v6477 = vunpack.c.h.b16 %v6439
    %v6478 = vunpack.c.l.b16 %v6440
    %v6479 = vunpack.c.h.b16 %v6440
    %v6480 = vunpack.c.l.b16 %v6441
    %v6481 = vunpack.c.h.b16 %v6441
    %v6482 = vunpack.c.l.b16 %v6442
    %v6483 = vunpack.c.h.b16 %v6442
    %v6484 = vunpack.c.l.b16 %v6443
    %v6485 = vunpack.c.h.b16 %v6443
    %v6486 = vunpack.c.l.b16 %v6444
    %v6487 = vunpack.c.h.b16 %v6444
    %v6488 = vunpack.c.l.b16 %v6445
    %v6489 = vunpack.c.h.b16 %v6445
    %v6490 = vunpack.c.l.b16 %v6446
    %v6491 = vunpack.c.h.b16 %v6446
    %v6492 = vunpack.c.l.b16 %v6447
    %v6493 = vunpack.c.h.b16 %v6447
    %v6494 = vunpack.c.l.b16 %v6448
    %v6495 = vunpack.c.h.b16 %v6448
    %v6496 = vunpack.c.l.b16 %v6449
    %v6497 = vunpack.c.h.b16 %v6449
    %v6498 = vpack.c.b16 %v6468, %v6466
    %v6499 = vpack.c.b16 %v6469, %v6467
    %v6500 = vpack.c.b16 %v6472, %v6470
    %v6501 = vpack.c.b16 %v6473, %v6471
    %v6502 = vpack.c.b16 %v6476, %v6474
    %v6503 = vpack.c.b16 %v6477, %v6475
    %v6504 = vpack.c.b16 %v6480, %v6478
    %v6505 = vpack.c.b16 %v6481, %v6479
    %v6506 = vpack.c.b16 %v6484, %v6482
    %v6507 = vpack.c.b16 %v6485, %v6483
    %v6508 = vpack.c.b16 %v6488, %v6486
    %v6509 = vpack.c.b16 %v6489, %v6487
    %v6510 = vpack.c.b16 %v6492, %v6490
    %v6511 = vpack.c.b16 %v6493, %v6491
    %v6512 = vpack.c.b16 %v6496, %v6494
    %v6513 = vpack.c.b16 %v6497, %v6495
    %6530 = vmatpush.bf16.msra.mxu0 %v6512
    %6531 = vmatpush.bf16.msra.mxu0 %v6510
    %6532 = vmatpush.bf16.msra.mxu0 %v6508
    %6533 = vmatpush.bf16.msra.mxu0 %v6506
    %6534 = vmatpush.bf16.msra.mxu0 %v6504
    %6535 = vmatpush.bf16.msra.mxu0 %v6502
    %6536 = vmatpush.bf16.msra.mxu0 %v6500
    %6537 = vmatpush.bf16.msra.mxu0 %v6498
    %6538 = vmatmul.bf16.gmra.mxu0 %v6432
    %v6539 = vpop.f32.mrf.mxu0
    %v6540 = vadd.f32 0.0, %v6539
    %v6541 = vpop.f32.mrf.mxu0
    %6542 = vdwg.mxu0
    %6543 = vmatpush.bf16.msra.mxu0 %v6513
    %6544 = vmatpush.bf16.msra.mxu0 %v6511
    %6545 = vmatpush.bf16.msra.mxu0 %v6509
    %6546 = vmatpush.bf16.msra.mxu0 %v6507
    %6547 = vmatpush.bf16.msra.mxu0 %v6505
    %6548 = vmatpush.bf16.msra.mxu0 %v6503
    %6549 = vmatpush.bf16.msra.mxu0 %v6501
    %6550 = vmatpush.bf16.msra.mxu0 %v6499
    %6551 = vmatmul.bf16.gmra.mxu0 %v6432
    %v6552 = vpop.f32.mrf.mxu0
    %v6553 = vadd.f32 0.0, %v6552
    %v6554 = vpop.f32.mrf.mxu0
    %6555 = vdwg.mxu0
    %v6556 = vadd.f32 %v6313, %v6540
    %v6557 = vadd.f32 %v6314, %v6553
    %6558 = vmatpush.bf16.msra.mxu0 %v261
    %6559 = vmatpush.bf16.msra.mxu0 %v260
    %6560 = vmatpush.bf16.msra.mxu0 %v259
    %6561 = vmatpush.bf16.msra.mxu0 %v258
    %6562 = vmatpush.bf16.msra.mxu0 %v257
    %6563 = vmatpush.bf16.msra.mxu0 %v256
    %6564 = vmatpush.bf16.msra.mxu0 %v255
    %6565 = vmatpush.bf16.msra.mxu0 %v254
    %6566 = vmatmul.bf16.gmra.mxu0 %v5418
    %v6567 = vpop.f32.mrf.mxu0
    %v6568 = vadd.f32 0.0, %v6567
    %v6569 = vpop.f32.mrf.mxu0
    %6570 = vdwg.mxu0
    %6571 = vmatpush.bf16.msra.mxu0 %v269
    %6572 = vmatpush.bf16.msra.mxu0 %v268
    %6573 = vmatpush.bf16.msra.mxu0 %v267
    %6574 = vmatpush.bf16.msra.mxu0 %v266
    %6575 = vmatpush.bf16.msra.mxu0 %v265
    %6576 = vmatpush.bf16.msra.mxu0 %v264
    %6577 = vmatpush.bf16.msra.mxu0 %v263
    %6578 = vmatpush.bf16.msra.mxu0 %v262
    %6579 = vmatmul.bf16.gmra.mxu0 %v5419
    %v6580 = vpop.f32.mrf.mxu0
    %v6581 = vadd.f32 %v6568, %v6580
    %v6582 = vpop.f32.mrf.mxu0
    %6583 = vdwg.mxu0
    %6584 = vmatpush.bf16.msra.mxu0 %v390
    %6585 = vmatpush.bf16.msra.mxu0 %v389
    %6586 = vmatpush.bf16.msra.mxu0 %v388
    %6587 = vmatpush.bf16.msra.mxu0 %v387
    %6588 = vmatpush.bf16.msra.mxu0 %v386
    %6589 = vmatpush.bf16.msra.mxu0 %v385
    %6590 = vmatpush.bf16.msra.mxu0 %v384
    %6591 = vmatpush.bf16.msra.mxu0 %v383
    %6592 = vmatmul.bf16.gmra.mxu0 %v5175
    %v6593 = vpop.f32.mrf.mxu0
    %v6594 = vadd.f32 %v6581, %v6593
    %v6595 = vpop.f32.mrf.mxu0
    %6596 = vdwg.mxu0
    %6597 = vmatpush.bf16.msra.mxu0 %v398
    %6598 = vmatpush.bf16.msra.mxu0 %v397
    %6599 = vmatpush.bf16.msra.mxu0 %v396
    %6600 = vmatpush.bf16.msra.mxu0 %v395
    %6601 = vmatpush.bf16.msra.mxu0 %v394
    %6602 = vmatpush.bf16.msra.mxu0 %v393
    %6603 = vmatpush.bf16.msra.mxu0 %v392
    %6604 = vmatpush.bf16.msra.mxu0 %v391
    %6605 = vmatmul.bf16.gmra.mxu0 %v5176
    %v6606 = vpop.f32.mrf.mxu0
    %v6607 = vadd.f32 %v6594, %v6606
    %v6608 = vpop.f32.mrf.mxu0
    %6609 = vdwg.mxu0
    %6610 = vmatpush.bf16.msra.mxu0 %v554
    %6611 = vmatpush.bf16.msra.mxu0 %v553
    %6612 = vmatpush.bf16.msra.mxu0 %v552
    %6613 = vmatpush.bf16.msra.mxu0 %v551
    %6614 = vmatpush.bf16.msra.mxu0 %v550
    %6615 = vmatpush.bf16.msra.mxu0 %v549
    %6616 = vmatpush.bf16.msra.mxu0 %v548
    %6617 = vmatpush.bf16.msra.mxu0 %v547
    %6618 = vmatmul.bf16.gmra.mxu0 %v6399
    %v6619 = vpop.f32.mrf.mxu0
    %v6620 = vadd.f32 0.0, %v6619
    %v6621 = vpop.f32.mrf.mxu0
    %6622 = vdwg.mxu0
    %6623 = vmatpush.bf16.msra.mxu0 %v562
    %6624 = vmatpush.bf16.msra.mxu0 %v561
    %6625 = vmatpush.bf16.msra.mxu0 %v560
    %6626 = vmatpush.bf16.msra.mxu0 %v559
    %6627 = vmatpush.bf16.msra.mxu0 %v558
    %6628 = vmatpush.bf16.msra.mxu0 %v557
    %6629 = vmatpush.bf16.msra.mxu0 %v556
    %6630 = vmatpush.bf16.msra.mxu0 %v555
    %6631 = vmatmul.bf16.gmra.mxu0 %v6400
    %v6632 = vpop.f32.mrf.mxu0
    %v6633 = vadd.f32 %v6620, %v6632
    %v6634 = vpop.f32.mrf.mxu0
    %6635 = vdwg.mxu0
    %v6636 = vadd.f32 %v6607, %v6633
    %s6637 = scalar_lea.vmem %s0, 280
    %v6638 = vld [vmem:[%s6637] sm:$0xff]
    %v6640 = vunpack.c.l.b16 %v6638
    %v6641 = vunpack.c.h.b16 %v6638
    %v6642 = vpack.c.b16 %v6640, %v6640
    %v6643 = vpack.c.b16 %v6641, %v6641
    %6646 = vmatpush.bf16.msra.mxu0 %v719
    %6647 = vmatpush.bf16.msra.mxu0 %v718
    %6648 = vmatpush.bf16.msra.mxu0 %v717
    %6649 = vmatpush.bf16.msra.mxu0 %v716
    %6650 = vmatpush.bf16.msra.mxu0 %v715
    %6651 = vmatpush.bf16.msra.mxu0 %v714
    %6652 = vmatpush.bf16.msra.mxu0 %v713
    %6653 = vmatpush.bf16.msra.mxu0 %v712
    %6654 = vmatmul.bf16.gmra.mxu0 %v6642
    %v6655 = vpop.f32.mrf.mxu0
    %v6656 = vadd.f32 0.0, %v6655
    %v6657 = vpop.f32.mrf.mxu0
    %6658 = vdwg.mxu0
    %6659 = vmatpush.bf16.msra.mxu0 %v727
    %6660 = vmatpush.bf16.msra.mxu0 %v726
    %6661 = vmatpush.bf16.msra.mxu0 %v725
    %6662 = vmatpush.bf16.msra.mxu0 %v724
    %6663 = vmatpush.bf16.msra.mxu0 %v723
    %6664 = vmatpush.bf16.msra.mxu0 %v722
    %6665 = vmatpush.bf16.msra.mxu0 %v721
    %6666 = vmatpush.bf16.msra.mxu0 %v720
    %6667 = vmatmul.bf16.gmra.mxu0 %v6643
    %v6668 = vpop.f32.mrf.mxu0
    %v6669 = vadd.f32 %v6656, %v6668
    %v6670 = vpop.f32.mrf.mxu0
    %6671 = vdwg.mxu0
    %v6672 = vadd.f32 %v6636, %v6669
    %v6673 = vadd.f32 %v6672, %v772
    %v6674 = vmax.f32 %v6673, 0.0
    %v6675 = vpack.c.bf16 %v6674, %v6674
    %s6676 = scalar_lea.vmem [#allocation6], 3072
    %v6677 = vld [vmem:[%s6676] sm:$0xff]
    %v6678 = vld [vmem:[%s6676 + $0x8] sm:$0xff]
    %v6679 = vld [vmem:[%s6676 + $0x10] sm:$0xff]
    %v6680 = vld [vmem:[%s6676 + $0x18] sm:$0xff]
    %v6681 = vld [vmem:[%s6676 + $0x20] sm:$0xff]
    %v6682 = vld [vmem:[%s6676 + $0x28] sm:$0xff]
    %v6683 = vld [vmem:[%s6676 + $0x30] sm:$0xff]
    %v6684 = vld [vmem:[%s6676 + $0x38] sm:$0xff]
    %v6685 = vld [vmem:[%s6676 + $0x40] sm:$0xff]
    %v6686 = vld [vmem:[%s6676 + $0x48] sm:$0xff]
    %v6687 = vld [vmem:[%s6676 + $0x50] sm:$0xff]
    %v6688 = vld [vmem:[%s6676 + $0x58] sm:$0xff]
    %v6689 = vld [vmem:[%s6676 + $0x60] sm:$0xff]
    %v6690 = vld [vmem:[%s6676 + $0x68] sm:$0xff]
    %v6691 = vld [vmem:[%s6676 + $0x70] sm:$0xff]
    %v6692 = vld [vmem:[%s6676 + $0x78] sm:$0xff]
    %v6709 = vunpack.c.l.b16 %v6677
    %v6710 = vunpack.c.h.b16 %v6677
    %v6711 = vunpack.c.l.b16 %v6678
    %v6712 = vunpack.c.h.b16 %v6678
    %v6713 = vunpack.c.l.b16 %v6679
    %v6714 = vunpack.c.h.b16 %v6679
    %v6715 = vunpack.c.l.b16 %v6680
    %v6716 = vunpack.c.h.b16 %v6680
    %v6717 = vunpack.c.l.b16 %v6681
    %v6718 = vunpack.c.h.b16 %v6681
    %v6719 = vunpack.c.l.b16 %v6682
    %v6720 = vunpack.c.h.b16 %v6682
    %v6721 = vunpack.c.l.b16 %v6683
    %v6722 = vunpack.c.h.b16 %v6683
    %v6723 = vunpack.c.l.b16 %v6684
    %v6724 = vunpack.c.h.b16 %v6684
    %v6725 = vunpack.c.l.b16 %v6685
    %v6726 = vunpack.c.h.b16 %v6685
    %v6727 = vunpack.c.l.b16 %v6686
    %v6728 = vunpack.c.h.b16 %v6686
    %v6729 = vunpack.c.l.b16 %v6687
    %v6730 = vunpack.c.h.b16 %v6687
    %v6731 = vunpack.c.l.b16 %v6688
    %v6732 = vunpack.c.h.b16 %v6688
    %v6733 = vunpack.c.l.b16 %v6689
    %v6734 = vunpack.c.h.b16 %v6689
    %v6735 = vunpack.c.l.b16 %v6690
    %v6736 = vunpack.c.h.b16 %v6690
    %v6737 = vunpack.c.l.b16 %v6691
    %v6738 = vunpack.c.h.b16 %v6691
    %v6739 = vunpack.c.l.b16 %v6692
    %v6740 = vunpack.c.h.b16 %v6692
    %v6741 = vpack.c.b16 %v6711, %v6709
    %v6742 = vpack.c.b16 %v6712, %v6710
    %v6743 = vpack.c.b16 %v6715, %v6713
    %v6744 = vpack.c.b16 %v6716, %v6714
    %v6745 = vpack.c.b16 %v6719, %v6717
    %v6746 = vpack.c.b16 %v6720, %v6718
    %v6747 = vpack.c.b16 %v6723, %v6721
    %v6748 = vpack.c.b16 %v6724, %v6722
    %v6749 = vpack.c.b16 %v6727, %v6725
    %v6750 = vpack.c.b16 %v6728, %v6726
    %v6751 = vpack.c.b16 %v6731, %v6729
    %v6752 = vpack.c.b16 %v6732, %v6730
    %v6753 = vpack.c.b16 %v6735, %v6733
    %v6754 = vpack.c.b16 %v6736, %v6734
    %v6755 = vpack.c.b16 %v6739, %v6737
    %v6756 = vpack.c.b16 %v6740, %v6738
    %6773 = vmatpush.bf16.msra.mxu0 %v6755
    %6774 = vmatpush.bf16.msra.mxu0 %v6753
    %6775 = vmatpush.bf16.msra.mxu0 %v6751
    %6776 = vmatpush.bf16.msra.mxu0 %v6749
    %6777 = vmatpush.bf16.msra.mxu0 %v6747
    %6778 = vmatpush.bf16.msra.mxu0 %v6745
    %6779 = vmatpush.bf16.msra.mxu0 %v6743
    %6780 = vmatpush.bf16.msra.mxu0 %v6741
    %6781 = vmatmul.bf16.gmra.mxu0 %v6675
    %v6782 = vpop.f32.mrf.mxu0
    %v6783 = vadd.f32 0.0, %v6782
    %v6784 = vpop.f32.mrf.mxu0
    %6785 = vdwg.mxu0
    %6786 = vmatpush.bf16.msra.mxu0 %v6756
    %6787 = vmatpush.bf16.msra.mxu0 %v6754
    %6788 = vmatpush.bf16.msra.mxu0 %v6752
    %6789 = vmatpush.bf16.msra.mxu0 %v6750
    %6790 = vmatpush.bf16.msra.mxu0 %v6748
    %6791 = vmatpush.bf16.msra.mxu0 %v6746
    %6792 = vmatpush.bf16.msra.mxu0 %v6744
    %6793 = vmatpush.bf16.msra.mxu0 %v6742
    %6794 = vmatmul.bf16.gmra.mxu0 %v6675
    %v6795 = vpop.f32.mrf.mxu0
    %v6796 = vadd.f32 0.0, %v6795
    %v6797 = vpop.f32.mrf.mxu0
    %6798 = vdwg.mxu0
    %v6799 = vadd.f32 %v6556, %v6783
    %v6800 = vadd.f32 %v6557, %v6796
    %v6801 = vld [vmem:[#allocation7] sm:$0x3]
    %v6803 = vperm.slane %v6801, 0
    %v6804 = vperm.slane %v6801, 1
    %v6807 = vadd.f32 %v6799, %v6803
    %v6808 = vadd.f32 %v6800, %v6804
    %v6809 = vtanh.pop %v6807
    %v6810 = vtanh.pop %v6808
    %v6811 = vpack.c.bf16 %v6809, %v6809
    %v6812 = vpack.c.bf16 %v6810, %v6810
    %v6813 = vld [vmem:[#allocation9] sm:$0xf]
    %v6814 = vld [vmem:[#allocation9 + $0x4] sm:$0xf]
    %v6815 = vld [vmem:[#allocation9 + $0x8] sm:$0xf]
    %v6816 = vld [vmem:[#allocation9 + $0xc] sm:$0xf]
    %v6817 = vld [vmem:[#allocation9 + $0x10] sm:$0xf]
    %v6818 = vld [vmem:[#allocation9 + $0x14] sm:$0xf]
    %v6819 = vld [vmem:[#allocation9 + $0x18] sm:$0xf]
    %v6820 = vld [vmem:[#allocation9 + $0x1c] sm:$0xf]
    %v6821 = vld [vmem:[#allocation9 + $0x20] sm:$0xf]
    %v6822 = vld [vmem:[#allocation9 + $0x24] sm:$0xf]
    %v6823 = vld [vmem:[#allocation9 + $0x28] sm:$0xf]
    %v6824 = vld [vmem:[#allocation9 + $0x2c] sm:$0xf]
    %v6825 = vld [vmem:[#allocation9 + $0x30] sm:$0xf]
    %v6826 = vld [vmem:[#allocation9 + $0x34] sm:$0xf]
    %v6827 = vld [vmem:[#allocation9 + $0x38] sm:$0xf]
    %v6828 = vld [vmem:[#allocation9 + $0x3c] sm:$0xf]
    %v6829 = vld [vmem:[#allocation9 + $0x40] sm:$0xf]
    %v6830 = vld [vmem:[#allocation9 + $0x44] sm:$0xf]
    %v6831 = vld [vmem:[#allocation9 + $0x48] sm:$0xf]
    %v6832 = vld [vmem:[#allocation9 + $0x4c] sm:$0xf]
    %v6833 = vld [vmem:[#allocation9 + $0x50] sm:$0xf]
    %v6834 = vld [vmem:[#allocation9 + $0x54] sm:$0xf]
    %v6835 = vld [vmem:[#allocation9 + $0x58] sm:$0xf]
    %v6836 = vld [vmem:[#allocation9 + $0x5c] sm:$0xf]
    %v6837 = vld [vmem:[#allocation9 + $0x60] sm:$0xf]
    %v6838 = vld [vmem:[#allocation9 + $0x64] sm:$0xf]
    %v6839 = vld [vmem:[#allocation9 + $0x68] sm:$0xf]
    %v6840 = vld [vmem:[#allocation9 + $0x6c] sm:$0xf]
    %v6841 = vld [vmem:[#allocation9 + $0x70] sm:$0xf]
    %v6842 = vld [vmem:[#allocation9 + $0x74] sm:$0xf]
    %v6843 = vld [vmem:[#allocation9 + $0x78] sm:$0xf]
    %v6844 = vld [vmem:[#allocation9 + $0x7c] sm:$0xf]
    %v6845 = vld [vmem:[#allocation10] sm:$0x1]
    %v6847 = vperm.slane %v6845, 0
    %v6881 = vunpack.c.l.b16 %v6813
    %v6882 = vunpack.c.l.b16 %v6814
    %v6883 = vunpack.c.l.b16 %v6815
    %v6884 = vunpack.c.l.b16 %v6816
    %v6885 = vunpack.c.l.b16 %v6817
    %v6886 = vunpack.c.l.b16 %v6818
    %v6887 = vunpack.c.l.b16 %v6819
    %v6888 = vunpack.c.l.b16 %v6820
    %v6889 = vunpack.c.l.b16 %v6821
    %v6890 = vunpack.c.l.b16 %v6822
    %v6891 = vunpack.c.l.b16 %v6823
    %v6892 = vunpack.c.l.b16 %v6824
    %v6893 = vunpack.c.l.b16 %v6825
    %v6894 = vunpack.c.l.b16 %v6826
    %v6895 = vunpack.c.l.b16 %v6827
    %v6896 = vunpack.c.l.b16 %v6828
    %v6897 = vunpack.c.l.b16 %v6829
    %v6898 = vunpack.c.l.b16 %v6830
    %v6899 = vunpack.c.l.b16 %v6831
    %v6900 = vunpack.c.l.b16 %v6832
    %v6901 = vunpack.c.l.b16 %v6833
    %v6902 = vunpack.c.l.b16 %v6834
    %v6903 = vunpack.c.l.b16 %v6835
    %v6904 = vunpack.c.l.b16 %v6836
    %v6905 = vunpack.c.l.b16 %v6837
    %v6906 = vunpack.c.l.b16 %v6838
    %v6907 = vunpack.c.l.b16 %v6839
    %v6908 = vunpack.c.l.b16 %v6840
    %v6909 = vunpack.c.l.b16 %v6841
    %v6910 = vunpack.c.l.b16 %v6842
    %v6911 = vunpack.c.l.b16 %v6843
    %v6912 = vunpack.c.l.b16 %v6844
    %v6913 = vpack.c.b16 %v6882, %v6881
    %v6914 = vpack.c.b16 %v6884, %v6883
    %v6915 = vpack.c.b16 %v6886, %v6885
    %v6916 = vpack.c.b16 %v6888, %v6887
    %v6917 = vpack.c.b16 %v6890, %v6889
    %v6918 = vpack.c.b16 %v6892, %v6891
    %v6919 = vpack.c.b16 %v6894, %v6893
    %v6920 = vpack.c.b16 %v6896, %v6895
    %v6921 = vpack.c.b16 %v6898, %v6897
    %v6922 = vpack.c.b16 %v6900, %v6899
    %v6923 = vpack.c.b16 %v6902, %v6901
    %v6924 = vpack.c.b16 %v6904, %v6903
    %v6925 = vpack.c.b16 %v6906, %v6905
    %v6926 = vpack.c.b16 %v6908, %v6907
    %v6927 = vpack.c.b16 %v6910, %v6909
    %v6928 = vpack.c.b16 %v6912, %v6911
    %6945 = vmatpush.bf16.msra.mxu0 %v6920
    %6946 = vmatpush.bf16.msra.mxu0 %v6919
    %6947 = vmatpush.bf16.msra.mxu0 %v6918
    %6948 = vmatpush.bf16.msra.mxu0 %v6917
    %6949 = vmatpush.bf16.msra.mxu0 %v6916
    %6950 = vmatpush.bf16.msra.mxu0 %v6915
    %6951 = vmatpush.bf16.msra.mxu0 %v6914
    %6952 = vmatpush.bf16.msra.mxu0 %v6913
    %6953 = vmatmul.bf16.gmra.mxu0 %v6811
    %v6954 = vpop.f32.mrf.mxu0
    %v6955 = vadd.f32 %v6847, %v6954
    %v6956 = vpop.f32.mrf.mxu0
    %6957 = vdwg.mxu0
    %6958 = vmatpush.bf16.msra.mxu0 %v6928
    %6959 = vmatpush.bf16.msra.mxu0 %v6927
    %6960 = vmatpush.bf16.msra.mxu0 %v6926
    %6961 = vmatpush.bf16.msra.mxu0 %v6925
    %6962 = vmatpush.bf16.msra.mxu0 %v6924
    %6963 = vmatpush.bf16.msra.mxu0 %v6923
    %6964 = vmatpush.bf16.msra.mxu0 %v6922
    %6965 = vmatpush.bf16.msra.mxu0 %v6921
    %6966 = vmatmul.bf16.gmra.mxu0 %v6812
    %v6967 = vpop.f32.mrf.mxu0
    %v6968 = vadd.f32 %v6955, %v6967
    %v6969 = vpop.f32.mrf.mxu0
    %6970 = vdwg.mxu0
    %6971 = vst [vmem:[%s7] sm:$0xff] %v6968
    // Predicated region
    $region54: #{transfer3_forward.1} parent=1 // pred_check
      _
    $region55: #{transfer3_forward.1} parent=1 // pred_check_branch
      %6973 = sbr.rel (0) target = $region57
    $region56: #{transfer3_forward.1} parent=1 // pred_region
      _
    $region57: #{transfer3_forward.1} parent=1 // pred_fallthru
      _
    // Predicated region
    $region58: #{transfer3_forward.1} parent=1 // pred_check
      _
    $region59: #{transfer3_forward.1} parent=1 // pred_check_branch
      %6975 = sbr.rel (0) target = $region61
    $region60: #{transfer3_forward.1} parent=1 // pred_region
      _
    $region61: #{transfer3_forward.1} parent=1 // pred_fallthru
      _
    %6976 = vsyncpa [#allocation3], 1
    %6977 = vsyncpa [#allocation5], 1
    %6978 = vsyncpa [#allocation8], 1
    %6979 = vsyncpa [#allocation11], 1

</llo_original>
